<compile_context>
chip_gen: v5e
topology: v5e:2x2
jax: 0.10.0
libtpu: 0.0.40
codegen_flags: <defaults>
</compile_context>

<pallas_src>
import functools

import jax
import jax.numpy as jnp
from jax import lax
from jax.experimental import pallas as pl
from jax.experimental.pallas import tpu as pltpu

_LOG2E = 1.4426950408889634


def _pick_tile(n, candidates):
    for c in candidates:
        if n % c == 0:
            return c
    return n


# ----------------------------------------------------------------------------
# Fused QKV projection kernel: qkv = x @ W_qkv   (qkv_bias=False)
# One matmul with a packed [tm, 3D] lane-aligned output (columns = q | k | v,
# head-packed within each); no activation reshapes/transposes downstream.
# ----------------------------------------------------------------------------
def _qkv_proj_kernel(x_ref, w_ref, qkv_ref):
    qkv_ref[...] = jnp.dot(
        x_ref[...], w_ref[...], preferred_element_type=jnp.float32
    ).astype(qkv_ref.dtype)


def pallas_qkv_proj(x2d, w_qkv):
    M, D = x2d.shape
    D3 = w_qkv.shape[1]
    tm = _pick_tile(M, (512, 256, 128, 64, 32, 16, 8))
    return pl.pallas_call(
        _qkv_proj_kernel,
        out_shape=jax.ShapeDtypeStruct((M, D3), x2d.dtype),
        grid_spec=pltpu.PrefetchScalarGridSpec(
            num_scalar_prefetch=0,
            grid=(M // tm,),
            in_specs=[
                pl.BlockSpec((tm, D), lambda i: (i, 0)),
                pl.BlockSpec((D, D3), lambda i: (0, 0)),
            ],
            out_specs=pl.BlockSpec((tm, D3), lambda i: (i, 0)),
        ),
        compiler_params=pltpu.CompilerParams(dimension_semantics=("parallel",)),
    )(x2d, w_qkv)


# ----------------------------------------------------------------------------
# Flash attention (non-causal, base-2 online softmax) over head-packed tiles,
# with the output projection (x @ Wp + bp) fused into the epilogue.
#   qkv : [B, N, 3D]  (q | k | v columns; head h of q occupies lanes h*Dh..)
#   out : [B, N, D]   (already projected)
# The softmax scale * log2(e) is pre-folded into the q columns of W_qkv, so q
# arrives already in the base-2 logit domain.
# ----------------------------------------------------------------------------
def _mha_attn_proj_kernel(q_ref, k_ref, v_ref, wp_ref, bp_ref, o_ref,
                          m_sc, l_sc, acc_sc, *, num_heads, head_dim):
    ki = pl.program_id(2)

    @pl.when(ki == 0)
    def _():
        m_sc[...] = jnp.full_like(m_sc, -jnp.inf)
        l_sc[...] = jnp.zeros_like(l_sc)
        acc_sc[...] = jnp.zeros_like(acc_sc)

    q_all = q_ref[...]        # [tq, D] bf16 (scale*log2e already folded in)
    k_all = k_ref[...]        # [tk, D] bf16
    v_all = v_ref[...]        # [tk, D] bf16
    m_all = m_sc[...]         # [tq, D] f32 (per-head stat broadcast over Dh lanes)
    l_all = l_sc[...]         # [tq, D] f32
    acc_all = acc_sc[...]     # [tq, D] f32

    m_parts, l_parts, acc_parts = [], [], []
    for h in range(num_heads):
        lo = h * head_dim
        hi = lo + head_dim
        q = q_all[:, lo:hi]                                # [tq, Dh] bf16
        k = k_all[:, lo:hi]                                # [tk, Dh] bf16
        v = v_all[:, lo:hi]                                # [tk, Dh] bf16

        # s = q @ k^T  (bf16 MXU, f32 accumulation), already base-2 logits.
        s = lax.dot_general(q, k, (((1,), (1,)), ((), ())),
                            preferred_element_type=jnp.float32)  # [tq, tk]

        m_prev = m_all[:, lo:lo + 1]                       # [tq, 1] f32
        l_prev = l_all[:, lo:lo + 1]                       # [tq, 1] f32
        a_prev = acc_all[:, lo:hi]                         # [tq, Dh] f32

        m_new = jnp.maximum(m_prev, s.max(-1, keepdims=True))
        alpha = jnp.exp2(m_prev - m_new)                   # [tq, 1] f32
        p = jnp.exp2(s - m_new)                            # [tq, tk] f32
        l_new = alpha * l_prev + p.sum(-1, keepdims=True)
        a_new = alpha * a_prev + jnp.dot(p.astype(v.dtype), v,
                                         preferred_element_type=jnp.float32)

        m_parts.append(jnp.broadcast_to(m_new, (m_new.shape[0], head_dim)))
        l_parts.append(jnp.broadcast_to(l_new, (l_new.shape[0], head_dim)))
        acc_parts.append(a_new)

    # Single lane-dense [tq, D] stores (unmasked vst) instead of per-head
    # 32-lane masked stores.
    m_full = jnp.concatenate(m_parts, axis=-1)
    l_full = jnp.concatenate(l_parts, axis=-1)
    acc_full = jnp.concatenate(acc_parts, axis=-1)
    m_sc[...] = m_full
    l_sc[...] = l_full
    acc_sc[...] = acc_full

    @pl.when(ki == pl.num_programs(2) - 1)
    def _():
        inv_l = pl.reciprocal(l_full, approx=True)         # [tq, D] f32
        o = (acc_full * inv_l).astype(wp_ref.dtype)        # lane-dense bf16 [tq, D]
        # Fused output projection (bf16 MXU, f32 accumulation) + bias.
        y = jnp.dot(o, wp_ref[...], preferred_element_type=jnp.float32)
        y = y + bp_ref[...].astype(jnp.float32)
        o_ref[...] = y.astype(o_ref.dtype)


def pallas_mha_attention_proj(qkv, w_proj, b_proj, *, num_heads):
    B, N, D3 = qkv.shape
    D = D3 // 3
    head_dim = D // num_heads
    tq = _pick_tile(N, (256, 128, 64, 32, 16, 8))
    tk = _pick_tile(N, (512, 256, 128, 64, 32, 16, 8))
    kernel = functools.partial(_mha_attn_proj_kernel,
                               num_heads=num_heads, head_dim=head_dim)
    return pl.pallas_call(
        kernel,
        out_shape=jax.ShapeDtypeStruct((B, N, D), qkv.dtype),
        grid_spec=pltpu.PrefetchScalarGridSpec(
            num_scalar_prefetch=0,
            grid=(B, N // tq, N // tk),
            in_specs=[
                # q / k / v are column blocks 0 / 1 / 2 of the packed qkv.
                pl.BlockSpec((None, tq, D), lambda b, qi, ki: (b, qi, 0)),
                pl.BlockSpec((None, tk, D), lambda b, qi, ki: (b, ki, 1)),
                pl.BlockSpec((None, tk, D), lambda b, qi, ki: (b, ki, 2)),
                pl.BlockSpec((D, D), lambda b, qi, ki: (0, 0)),
                pl.BlockSpec((1, D), lambda b, qi, ki: (0, 0)),
            ],
            out_specs=pl.BlockSpec((None, tq, D), lambda b, qi, ki: (b, qi, 0)),
            scratch_shapes=[
                pltpu.VMEM((tq, D), jnp.float32),   # running max (base-2 domain)
                pltpu.VMEM((tq, D), jnp.float32),   # running sum
                pltpu.VMEM((tq, D), jnp.float32),   # un-normalized output accumulator
            ],
        ),
        compiler_params=pltpu.CompilerParams(
            dimension_semantics=("parallel", "parallel", "arbitrary")
        ),
    )(qkv, qkv, qkv, w_proj, b_proj)


# ----------------------------------------------------------------------------
# Full MHA forward.
# ----------------------------------------------------------------------------
def mha_forward(x, params, *, num_heads):
    B, N, D = x.shape
    head_dim = D // num_heads
    scale = head_dim ** -0.5

    w_qkv = params["w_qkv"]    # [D, 3D] stored [in, out]; columns = (q | k | v), head-packed
    w_proj = params["w_proj"]  # [D, D]
    b_proj = params["b_proj"]  # [1, D]

    # Fold softmax scale and the exp->exp2 change of base into the q columns
    # of the QKV weight.  Parameter-sized, one-time, f32 prep => single bf16
    # rounding of the weight; removes per-head per-kv-step scaling in-kernel.
    wf = w_qkv.astype(jnp.float32)
    w_prepped = jnp.concatenate(
        [wf[:, :D] * (scale * _LOG2E), wf[:, D:]], axis=1
    ).astype(w_qkv.dtype)

    qkv2d = pallas_qkv_proj(x.reshape(B * N, D), w_prepped)
    qkv = qkv2d.reshape(B, N, 3 * D)   # free row-major reshape, no data movement

    # attn_drop / proj_drop are identity in eval mode (p=0).
    return pallas_mha_attention_proj(qkv, w_proj, b_proj, num_heads=num_heads)


# ----------------------------------------------------------------------------
# Plain-JAX fp32 reference for a sanity check.
# ----------------------------------------------------------------------------
def mha_reference(x, params, *, num_heads):
    B, N, D = x.shape
    head_dim = D // num_heads
    scale = head_dim ** -0.5
    xf = x.astype(jnp.float32)
    w_qkv = params["w_qkv"].astype(jnp.float32)
    w_proj = params["w_proj"].astype(jnp.float32)
    b_proj = params["b_proj"].astype(jnp.float32)

    qkv = (xf.reshape(B * N, D) @ w_qkv).reshape(B, N, 3, num_heads, head_dim)
    q, k, v = qkv[:, :, 0], qkv[:, :, 1], qkv[:, :, 2]
    q = q.transpose(0, 2, 1, 3)   # [B, H, N, Dh]
    k = k.transpose(0, 2, 1, 3)
    v = v.transpose(0, 2, 1, 3)
    s = jnp.einsum("bhqd,bhkd->bhqk", q, k) * scale
    p = jax.nn.softmax(s, axis=-1)
    o = jnp.einsum("bhqk,bhkd->bhqd", p, v)
    o = o.transpose(0, 2, 1, 3).reshape(B, N, D)
    return o @ w_proj + b_proj


if __name__ == "__main__":
    B, N, D, H = 2, 256, 128, 4   # head_dim = 32
    dtype = jnp.bfloat16

    key = jax.random.PRNGKey(0)
    kx, kw1, kw2, kb2 = jax.random.split(key, 4)

    x = jax.random.normal(kx, (B, N, D), dtype=jnp.float32).astype(dtype)

    # Deterministic synthetic parameters (shapes match nn.Linear(dim, dim*3)
    # with bias=False and nn.Linear(dim, dim); stored as [in, out]).
    params = {
        "w_qkv": (jax.random.normal(kw1, (D, 3 * D), dtype=jnp.float32) * 0.05).astype(dtype),
        "w_proj": (jax.random.normal(kw2, (D, D), dtype=jnp.float32) * 0.05).astype(dtype),
        "b_proj": (jax.random.normal(kb2, (1, D), dtype=jnp.float32) * 0.05).astype(dtype),
    }

    fwd = jax.jit(functools.partial(mha_forward, num_heads=H))
    out = jax.block_until_ready(fwd(x, params))

    ref = mha_reference(x, params, num_heads=H)
    out_f32 = out.astype(jnp.float32)
    assert out.shape == (B, N, D)
    assert jnp.all(jnp.isfinite(out_f32))
    assert jnp.allclose(out_f32, ref, atol=5e-2, rtol=5e-2), \
        float(jnp.max(jnp.abs(out_f32 - ref)))

    print("KERNEL_OK")
</pallas_src>

<mosaic_0001>
module attributes {stable_mosaic.version = 11 : i64} {
  func.func @_qkv_proj_kernel(%arg0: i32, %arg1: memref<512x128xbf16, #tpu.memory_space<vmem>>, %arg2: memref<128x384xbf16, #tpu.memory_space<vmem>>, %arg3: memref<512x384xbf16, #tpu.memory_space<vmem>>) attributes {dimension_semantics = [#tpu.dimension_semantics<parallel>], iteration_bounds = array<i64: 1>, scalar_prefetch = 0 : i64, scratch_operands = 0 : i64, tpu.core_type = #tpu.core_type<tc>, window_params = [{transform_indices = @transform_0, window_bounds = array<i64: 512, 128>}, {pipeline_mode = #tpu.pipeline_mode<synchronous>, transform_indices = @transform_1, window_bounds = array<i64: 128, 384>}, {transform_indices = @transform_2, window_bounds = array<i64: 512, 384>}]} {
    %c0 = arith.constant 0 : index
    %c0_0 = arith.constant 0 : index
    %0 = vector.load %arg1[%c0, %c0_0] : memref<512x128xbf16, #tpu.memory_space<vmem>>, vector<512x128xbf16>
    %c0_1 = arith.constant 0 : index
    %c0_2 = arith.constant 0 : index
    %1 = vector.load %arg2[%c0_1, %c0_2] : memref<128x384xbf16, #tpu.memory_space<vmem>>, vector<128x384xbf16>
    %cst = arith.constant dense<0.000000e+00> : vector<512x384xf32>
    %2 = tpu.matmul %0, %1, %cst {dimension_numbers = #tpu.dot_dimension_numbers<[1], [0], [0], [1], [0, 0, 1, 1], [], []>} : vector<512x128xbf16>, vector<128x384xbf16>, vector<512x384xf32> -> vector<512x384xf32>
    %3 = arith.truncf %2 : vector<512x384xf32> to vector<512x384xbf16>
    %c0_3 = arith.constant 0 : index
    %c0_4 = arith.constant 0 : index
    %4 = vector.load %arg3[%c0_3, %c0_4] : memref<512x384xbf16, #tpu.memory_space<vmem>>, vector<512x384xbf16>
    tpu.vector_store %arg3[%c0_3, %c0_4], %3 {strides = array<i32>} : memref<512x384xbf16, #tpu.memory_space<vmem>>, vector<512x384xbf16>,
    return
  }
  func.func @transform_0(%arg0: i32) -> (i32, i32) {
    %c0_i32 = arith.constant 0 : i32
    %c0_i32_0 = arith.constant 0 : i32
    return %arg0, %c0_i32 : i32, i32
  }
  func.func @transform_1(%arg0: i32) -> (i32, i32) {
    %c0_i32 = arith.constant 0 : i32
    %c0_i32_0 = arith.constant 0 : i32
    %c0_i32_1 = arith.constant 0 : i32
    return %c0_i32, %c0_i32_0 : i32, i32
  }
  func.func @transform_2(%arg0: i32) -> (i32, i32) {
    %c0_i32 = arith.constant 0 : i32
    %c0_i32_0 = arith.constant 0 : i32
    return %arg0, %c0_i32 : i32, i32
  }
}

module attributes {stable_mosaic.version = 11 : i64} {
  func.func @_mha_attn_proj_kernel(%arg0: i32, %arg1: i32, %arg2: i32, %arg3: memref<1x256x128xbf16, #tpu.memory_space<vmem>>, %arg4: memref<1x256x128xbf16, #tpu.memory_space<vmem>>, %arg5: memref<1x256x128xbf16, #tpu.memory_space<vmem>>, %arg6: memref<128x128xbf16, #tpu.memory_space<vmem>>, %arg7: memref<1x128xbf16, #tpu.memory_space<vmem>>, %arg8: memref<1x256x128xbf16, #tpu.memory_space<vmem>>, %arg9: memref<256x128xf32, #tpu.memory_space<vmem>>, %arg10: memref<256x128xf32, #tpu.memory_space<vmem>>, %arg11: memref<256x128xf32, #tpu.memory_space<vmem>>) attributes {dimension_semantics = [#tpu.dimension_semantics<parallel>, #tpu.dimension_semantics<parallel>, #tpu.dimension_semantics<arbitrary>], iteration_bounds = array<i64: 2, 1, 1>, scalar_prefetch = 0 : i64, scratch_operands = 3 : i64, tpu.core_type = #tpu.core_type<tc>, window_params = [{transform_indices = @transform_0, window_bounds = array<i64: 1, 256, 128>}, {transform_indices = @transform_1, window_bounds = array<i64: 1, 256, 128>}, {transform_indices = @transform_2, window_bounds = array<i64: 1, 256, 128>}, {pipeline_mode = #tpu.pipeline_mode<synchronous>, transform_indices = @transform_3, window_bounds = array<i64: 128, 128>}, {pipeline_mode = #tpu.pipeline_mode<synchronous>, transform_indices = @transform_4, window_bounds = array<i64: 1, 128>}, {transform_indices = @transform_5, window_bounds = array<i64: 1, 256, 128>}]} {
    %c0_i32 = arith.constant 0 : i32
    %0 = arith.cmpi eq, %arg2, %c0_i32 : i32
    %1 = arith.extui %0 : i1 to i32
    %c0_i32_0 = arith.constant 0 : i32
    %2 = arith.cmpi ne, %1, %c0_i32_0 : i32
    scf.if %2 {
      %cst_38 = arith.constant 0xFF800000 : f32
      %133 = vector.broadcast %cst_38 : f32 to vector<256x128xf32>
      %c0_39 = arith.constant 0 : index
      %c0_40 = arith.constant 0 : index
      %134 = vector.load %arg9[%c0_39, %c0_40] : memref<256x128xf32, #tpu.memory_space<vmem>>, vector<256x128xf32>
      tpu.vector_store %arg9[%c0_39, %c0_40], %133 {strides = array<i32>} : memref<256x128xf32, #tpu.memory_space<vmem>>, vector<256x128xf32>,
      %cst_41 = arith.constant 0.000000e+00 : f32
      %135 = vector.broadcast %cst_41 : f32 to vector<256x128xf32>
      %c0_42 = arith.constant 0 : index
      %c0_43 = arith.constant 0 : index
      %136 = vector.load %arg10[%c0_42, %c0_43] : memref<256x128xf32, #tpu.memory_space<vmem>>, vector<256x128xf32>
      tpu.vector_store %arg10[%c0_42, %c0_43], %135 {strides = array<i32>} : memref<256x128xf32, #tpu.memory_space<vmem>>, vector<256x128xf32>,
      %cst_44 = arith.constant 0.000000e+00 : f32
      %137 = vector.broadcast %cst_44 : f32 to vector<256x128xf32>
      %c0_45 = arith.constant 0 : index
      %c0_46 = arith.constant 0 : index
      %138 = vector.load %arg11[%c0_45, %c0_46] : memref<256x128xf32, #tpu.memory_space<vmem>>, vector<256x128xf32>
      tpu.vector_store %arg11[%c0_45, %c0_46], %137 {strides = array<i32>} : memref<256x128xf32, #tpu.memory_space<vmem>>, vector<256x128xf32>,
    } else {
    }
    %c0 = arith.constant 0 : index
    %c0_1 = arith.constant 0 : index
    %c0_2 = arith.constant 0 : index
    %3 = vector.load %arg3[%c0, %c0_1, %c0_2] : memref<1x256x128xbf16, #tpu.memory_space<vmem>>, vector<1x256x128xbf16>
    %4 = vector.shape_cast %3 : vector<1x256x128xbf16> to vector<256x128xbf16>
    %c0_3 = arith.constant 0 : index
    %c0_4 = arith.constant 0 : index
    %c0_5 = arith.constant 0 : index
    %5 = vector.load %arg4[%c0_3, %c0_4, %c0_5] : memref<1x256x128xbf16, #tpu.memory_space<vmem>>, vector<1x256x128xbf16>
    %6 = vector.shape_cast %5 : vector<1x256x128xbf16> to vector<256x128xbf16>
    %c0_6 = arith.constant 0 : index
    %c0_7 = arith.constant 0 : index
    %c0_8 = arith.constant 0 : index
    %7 = vector.load %arg5[%c0_6, %c0_7, %c0_8] : memref<1x256x128xbf16, #tpu.memory_space<vmem>>, vector<1x256x128xbf16>
    %8 = vector.shape_cast %7 : vector<1x256x128xbf16> to vector<256x128xbf16>
    %c0_9 = arith.constant 0 : index
    %c0_10 = arith.constant 0 : index
    %9 = vector.load %arg9[%c0_9, %c0_10] : memref<256x128xf32, #tpu.memory_space<vmem>>, vector<256x128xf32>
    %c0_11 = arith.constant 0 : index
    %c0_12 = arith.constant 0 : index
    %10 = vector.load %arg10[%c0_11, %c0_12] : memref<256x128xf32, #tpu.memory_space<vmem>>, vector<256x128xf32>
    %c0_13 = arith.constant 0 : index
    %c0_14 = arith.constant 0 : index
    %11 = vector.load %arg11[%c0_13, %c0_14] : memref<256x128xf32, #tpu.memory_space<vmem>>, vector<256x128xf32>
    %12 = vector.extract_strided_slice %4 {offsets = [0, 0], sizes = [256, 32], strides = [1, 1]} : vector<256x128xbf16> to vector<256x32xbf16>
    %13 = vector.extract_strided_slice %6 {offsets = [0, 0], sizes = [256, 32], strides = [1, 1]} : vector<256x128xbf16> to vector<256x32xbf16>
    %14 = vector.extract_strided_slice %8 {offsets = [0, 0], sizes = [256, 32], strides = [1, 1]} : vector<256x128xbf16> to vector<256x32xbf16>
    %cst = arith.constant dense<0.000000e+00> : vector<256x256xf32>
    %15 = tpu.matmul %12, %13, %cst {dimension_numbers = #tpu.dot_dimension_numbers<[1], [1], [0], [0], [0, 0, 1, 0], [], []>} : vector<256x32xbf16>, vector<256x32xbf16>, vector<256x256xf32> -> vector<256x256xf32>
    %16 = vector.extract_strided_slice %9 {offsets = [0, 0], sizes = [256, 1], strides = [1, 1]} : vector<256x128xf32> to vector<256x1xf32>
    %17 = vector.extract_strided_slice %10 {offsets = [0, 0], sizes = [256, 1], strides = [1, 1]} : vector<256x128xf32> to vector<256x1xf32>
    %18 = vector.extract_strided_slice %11 {offsets = [0, 0], sizes = [256, 32], strides = [1, 1]} : vector<256x128xf32> to vector<256x32xf32>
    %cst_15 = arith.constant dense<0xFF800000> : vector<256xf32>
    %19 = vector.multi_reduction <maximumf>, %15, %cst_15 [1] : vector<256x256xf32> to vector<256xf32>
    %20 = vector.shape_cast %19 : vector<256xf32> to vector<256x1xf32>
    %21 = arith.maximumf %16, %20 : vector<256x1xf32>
    %22 = arith.subf %16, %21 : vector<256x1xf32>
    %23 = math.exp2 %22 : vector<256x1xf32>
    %24 = vector.broadcast %21 : vector<256x1xf32> to vector<256x256xf32>
    %25 = arith.subf %15, %24 : vector<256x256xf32>
    %26 = math.exp2 %25 : vector<256x256xf32>
    %27 = arith.mulf %23, %17 : vector<256x1xf32>
    %cst_16 = arith.constant dense<0.000000e+00> : vector<256xf32>
    %28 = vector.multi_reduction <add>, %26, %cst_16 [1] : vector<256x256xf32> to vector<256xf32>
    %29 = vector.shape_cast %28 : vector<256xf32> to vector<256x1xf32>
    %30 = arith.addf %27, %29 : vector<256x1xf32>
    %31 = vector.broadcast %23 : vector<256x1xf32> to vector<256x32xf32>
    %32 = arith.mulf %31, %18 : vector<256x32xf32>
    %33 = arith.truncf %26 : vector<256x256xf32> to vector<256x256xbf16>
    %cst_17 = arith.constant dense<0.000000e+00> : vector<256x32xf32>
    %34 = tpu.matmul %33, %14, %cst_17 {dimension_numbers = #tpu.dot_dimension_numbers<[1], [0], [0], [1], [0, 0, 1, 1], [], []>} : vector<256x256xbf16>, vector<256x32xbf16>, vector<256x32xf32> -> vector<256x32xf32>
    %35 = arith.addf %32, %34 : vector<256x32xf32>
    %36 = vector.shape_cast %21 : vector<256x1xf32> to vector<256x1xf32>
    %37 = vector.broadcast %36 : vector<256x1xf32> to vector<256x32xf32>
    %38 = vector.shape_cast %30 : vector<256x1xf32> to vector<256x1xf32>
    %39 = vector.broadcast %38 : vector<256x1xf32> to vector<256x32xf32>
    %40 = vector.extract_strided_slice %4 {offsets = [0, 32], sizes = [256, 32], strides = [1, 1]} : vector<256x128xbf16> to vector<256x32xbf16>
    %41 = vector.extract_strided_slice %6 {offsets = [0, 32], sizes = [256, 32], strides = [1, 1]} : vector<256x128xbf16> to vector<256x32xbf16>
    %42 = vector.extract_strided_slice %8 {offsets = [0, 32], sizes = [256, 32], strides = [1, 1]} : vector<256x128xbf16> to vector<256x32xbf16>
    %cst_18 = arith.constant dense<0.000000e+00> : vector<256x256xf32>
    %43 = tpu.matmul %40, %41, %cst_18 {dimension_numbers = #tpu.dot_dimension_numbers<[1], [1], [0], [0], [0, 0, 1, 0], [], []>} : vector<256x32xbf16>, vector<256x32xbf16>, vector<256x256xf32> -> vector<256x256xf32>
    %44 = vector.extract_strided_slice %9 {offsets = [0, 32], sizes = [256, 1], strides = [1, 1]} : vector<256x128xf32> to vector<256x1xf32>
    %45 = vector.extract_strided_slice %10 {offsets = [0, 32], sizes = [256, 1], strides = [1, 1]} : vector<256x128xf32> to vector<256x1xf32>
    %46 = vector.extract_strided_slice %11 {offsets = [0, 32], sizes = [256, 32], strides = [1, 1]} : vector<256x128xf32> to vector<256x32xf32>
    %cst_19 = arith.constant dense<0xFF800000> : vector<256xf32>
    %47 = vector.multi_reduction <maximumf>, %43, %cst_19 [1] : vector<256x256xf32> to vector<256xf32>
    %48 = vector.shape_cast %47 : vector<256xf32> to vector<256x1xf32>
    %49 = arith.maximumf %44, %48 : vector<256x1xf32>
    %50 = arith.subf %44, %49 : vector<256x1xf32>
    %51 = math.exp2 %50 : vector<256x1xf32>
    %52 = vector.broadcast %49 : vector<256x1xf32> to vector<256x256xf32>
    %53 = arith.subf %43, %52 : vector<256x256xf32>
    %54 = math.exp2 %53 : vector<256x256xf32>
    %55 = arith.mulf %51, %45 : vector<256x1xf32>
    %cst_20 = arith.constant dense<0.000000e+00> : vector<256xf32>
    %56 = vector.multi_reduction <add>, %54, %cst_20 [1] : vector<256x256xf32> to vector<256xf32>
    %57 = vector.shape_cast %56 : vector<256xf32> to vector<256x1xf32>
    %58 = arith.addf %55, %57 : vector<256x1xf32>
    %59 = vector.broadcast %51 : vector<256x1xf32> to vector<256x32xf32>
    %60 = arith.mulf %59, %46 : vector<256x32xf32>
    %61 = arith.truncf %54 : vector<256x256xf32> to vector<256x256xbf16>
    %cst_21 = arith.constant dense<0.000000e+00> : vector<256x32xf32>
    %62 = tpu.matmul %61, %42, %cst_21 {dimension_numbers = #tpu.dot_dimension_numbers<[1], [0], [0], [1], [0, 0, 1, 1], [], []>} : vector<256x256xbf16>, vector<256x32xbf16>, vector<256x32xf32> -> vector<256x32xf32>
    %63 = arith.addf %60, %62 : vector<256x32xf32>
    %64 = vector.shape_cast %49 : vector<256x1xf32> to vector<256x1xf32>
    %65 = vector.broadcast %64 : vector<256x1xf32> to vector<256x32xf32>
    %66 = vector.shape_cast %58 : vector<256x1xf32> to vector<256x1xf32>
    %67 = vector.broadcast %66 : vector<256x1xf32> to vector<256x32xf32>
    %68 = vector.extract_strided_slice %4 {offsets = [0, 64], sizes = [256, 32], strides = [1, 1]} : vector<256x128xbf16> to vector<256x32xbf16>
    %69 = vector.extract_strided_slice %6 {offsets = [0, 64], sizes = [256, 32], strides = [1, 1]} : vector<256x128xbf16> to vector<256x32xbf16>
    %70 = vector.extract_strided_slice %8 {offsets = [0, 64], sizes = [256, 32], strides = [1, 1]} : vector<256x128xbf16> to vector<256x32xbf16>
    %cst_22 = arith.constant dense<0.000000e+00> : vector<256x256xf32>
    %71 = tpu.matmul %68, %69, %cst_22 {dimension_numbers = #tpu.dot_dimension_numbers<[1], [1], [0], [0], [0, 0, 1, 0], [], []>} : vector<256x32xbf16>, vector<256x32xbf16>, vector<256x256xf32> -> vector<256x256xf32>
    %72 = vector.extract_strided_slice %9 {offsets = [0, 64], sizes = [256, 1], strides = [1, 1]} : vector<256x128xf32> to vector<256x1xf32>
    %73 = vector.extract_strided_slice %10 {offsets = [0, 64], sizes = [256, 1], strides = [1, 1]} : vector<256x128xf32> to vector<256x1xf32>
    %74 = vector.extract_strided_slice %11 {offsets = [0, 64], sizes = [256, 32], strides = [1, 1]} : vector<256x128xf32> to vector<256x32xf32>
    %cst_23 = arith.constant dense<0xFF800000> : vector<256xf32>
    %75 = vector.multi_reduction <maximumf>, %71, %cst_23 [1] : vector<256x256xf32> to vector<256xf32>
    %76 = vector.shape_cast %75 : vector<256xf32> to vector<256x1xf32>
    %77 = arith.maximumf %72, %76 : vector<256x1xf32>
    %78 = arith.subf %72, %77 : vector<256x1xf32>
    %79 = math.exp2 %78 : vector<256x1xf32>
    %80 = vector.broadcast %77 : vector<256x1xf32> to vector<256x256xf32>
    %81 = arith.subf %71, %80 : vector<256x256xf32>
    %82 = math.exp2 %81 : vector<256x256xf32>
    %83 = arith.mulf %79, %73 : vector<256x1xf32>
    %cst_24 = arith.constant dense<0.000000e+00> : vector<256xf32>
    %84 = vector.multi_reduction <add>, %82, %cst_24 [1] : vector<256x256xf32> to vector<256xf32>
    %85 = vector.shape_cast %84 : vector<256xf32> to vector<256x1xf32>
    %86 = arith.addf %83, %85 : vector<256x1xf32>
    %87 = vector.broadcast %79 : vector<256x1xf32> to vector<256x32xf32>
    %88 = arith.mulf %87, %74 : vector<256x32xf32>
    %89 = arith.truncf %82 : vector<256x256xf32> to vector<256x256xbf16>
    %cst_25 = arith.constant dense<0.000000e+00> : vector<256x32xf32>
    %90 = tpu.matmul %89, %70, %cst_25 {dimension_numbers = #tpu.dot_dimension_numbers<[1], [0], [0], [1], [0, 0, 1, 1], [], []>} : vector<256x256xbf16>, vector<256x32xbf16>, vector<256x32xf32> -> vector<256x32xf32>
    %91 = arith.addf %88, %90 : vector<256x32xf32>
    %92 = vector.shape_cast %77 : vector<256x1xf32> to vector<256x1xf32>
    %93 = vector.broadcast %92 : vector<256x1xf32> to vector<256x32xf32>
    %94 = vector.shape_cast %86 : vector<256x1xf32> to vector<256x1xf32>
    %95 = vector.broadcast %94 : vector<256x1xf32> to vector<256x32xf32>
    %96 = vector.extract_strided_slice %4 {offsets = [0, 96], sizes = [256, 32], strides = [1, 1]} : vector<256x128xbf16> to vector<256x32xbf16>
    %97 = vector.extract_strided_slice %6 {offsets = [0, 96], sizes = [256, 32], strides = [1, 1]} : vector<256x128xbf16> to vector<256x32xbf16>
    %98 = vector.extract_strided_slice %8 {offsets = [0, 96], sizes = [256, 32], strides = [1, 1]} : vector<256x128xbf16> to vector<256x32xbf16>
    %cst_26 = arith.constant dense<0.000000e+00> : vector<256x256xf32>
    %99 = tpu.matmul %96, %97, %cst_26 {dimension_numbers = #tpu.dot_dimension_numbers<[1], [1], [0], [0], [0, 0, 1, 0], [], []>} : vector<256x32xbf16>, vector<256x32xbf16>, vector<256x256xf32> -> vector<256x256xf32>
    %100 = vector.extract_strided_slice %9 {offsets = [0, 96], sizes = [256, 1], strides = [1, 1]} : vector<256x128xf32> to vector<256x1xf32>
    %101 = vector.extract_strided_slice %10 {offsets = [0, 96], sizes = [256, 1], strides = [1, 1]} : vector<256x128xf32> to vector<256x1xf32>
    %102 = vector.extract_strided_slice %11 {offsets = [0, 96], sizes = [256, 32], strides = [1, 1]} : vector<256x128xf32> to vector<256x32xf32>
    %cst_27 = arith.constant dense<0xFF800000> : vector<256xf32>
    %103 = vector.multi_reduction <maximumf>, %99, %cst_27 [1] : vector<256x256xf32> to vector<256xf32>
    %104 = vector.shape_cast %103 : vector<256xf32> to vector<256x1xf32>
    %105 = arith.maximumf %100, %104 : vector<256x1xf32>
    %106 = arith.subf %100, %105 : vector<256x1xf32>
    %107 = math.exp2 %106 : vector<256x1xf32>
    %108 = vector.broadcast %105 : vector<256x1xf32> to vector<256x256xf32>
    %109 = arith.subf %99, %108 : vector<256x256xf32>
    %110 = math.exp2 %109 : vector<256x256xf32>
    %111 = arith.mulf %107, %101 : vector<256x1xf32>
    %cst_28 = arith.constant dense<0.000000e+00> : vector<256xf32>
    %112 = vector.multi_reduction <add>, %110, %cst_28 [1] : vector<256x256xf32> to vector<256xf32>
    %113 = vector.shape_cast %112 : vector<256xf32> to vector<256x1xf32>
    %114 = arith.addf %111, %113 : vector<256x1xf32>
    %115 = vector.broadcast %107 : vector<256x1xf32> to vector<256x32xf32>
    %116 = arith.mulf %115, %102 : vector<256x32xf32>
    %117 = arith.truncf %110 : vector<256x256xf32> to vector<256x256xbf16>
    %cst_29 = arith.constant dense<0.000000e+00> : vector<256x32xf32>
    %118 = tpu.matmul %117, %98, %cst_29 {dimension_numbers = #tpu.dot_dimension_numbers<[1], [0], [0], [1], [0, 0, 1, 1], [], []>} : vector<256x256xbf16>, vector<256x32xbf16>, vector<256x32xf32> -> vector<256x32xf32>
    %119 = arith.addf %116, %118 : vector<256x32xf32>
    %120 = vector.shape_cast %105 : vector<256x1xf32> to vector<256x1xf32>
    %121 = vector.broadcast %120 : vector<256x1xf32> to vector<256x32xf32>
    %122 = vector.shape_cast %114 : vector<256x1xf32> to vector<256x1xf32>
    %123 = vector.broadcast %122 : vector<256x1xf32> to vector<256x32xf32>
    %124 = tpu.concatenate %37, %65, %93, %121 in 1 : vector<256x32xf32>, vector<256x32xf32>, vector<256x32xf32>, vector<256x32xf32> -> vector<256x128xf32>
    %125 = tpu.concatenate %39, %67, %95, %123 in 1 : vector<256x32xf32>, vector<256x32xf32>, vector<256x32xf32>, vector<256x32xf32> -> vector<256x128xf32>
    %126 = tpu.concatenate %35, %63, %91, %119 in 1 : vector<256x32xf32>, vector<256x32xf32>, vector<256x32xf32>, vector<256x32xf32> -> vector<256x128xf32>
    %c0_30 = arith.constant 0 : index
    %c0_31 = arith.constant 0 : index
    %127 = vector.load %arg9[%c0_30, %c0_31] : memref<256x128xf32, #tpu.memory_space<vmem>>, vector<256x128xf32>
    tpu.vector_store %arg9[%c0_30, %c0_31], %124 {strides = array<i32>} : memref<256x128xf32, #tpu.memory_space<vmem>>, vector<256x128xf32>,
    %c0_32 = arith.constant 0 : index
    %c0_33 = arith.constant 0 : index
    %128 = vector.load %arg10[%c0_32, %c0_33] : memref<256x128xf32, #tpu.memory_space<vmem>>, vector<256x128xf32>
    tpu.vector_store %arg10[%c0_32, %c0_33], %125 {strides = array<i32>} : memref<256x128xf32, #tpu.memory_space<vmem>>, vector<256x128xf32>,
    %c0_34 = arith.constant 0 : index
    %c0_35 = arith.constant 0 : index
    %129 = vector.load %arg11[%c0_34, %c0_35] : memref<256x128xf32, #tpu.memory_space<vmem>>, vector<256x128xf32>
    tpu.vector_store %arg11[%c0_34, %c0_35], %126 {strides = array<i32>} : memref<256x128xf32, #tpu.memory_space<vmem>>, vector<256x128xf32>,
    %c0_i32_36 = arith.constant 0 : i32
    %130 = arith.cmpi eq, %arg2, %c0_i32_36 : i32
    %131 = arith.extui %130 : i1 to i32
    %c0_i32_37 = arith.constant 0 : i32
    %132 = arith.cmpi ne, %131, %c0_i32_37 : i32
    scf.if %132 {
      %133 = tpu.reciprocal %125 {approx = true} : vector<256x128xf32> -> vector<256x128xf32>
      %134 = arith.mulf %126, %133 : vector<256x128xf32>
      %135 = arith.truncf %134 : vector<256x128xf32> to vector<256x128xbf16>
      %c0_38 = arith.constant 0 : index
      %c0_39 = arith.constant 0 : index
      %136 = vector.load %arg6[%c0_38, %c0_39] : memref<128x128xbf16, #tpu.memory_space<vmem>>, vector<128x128xbf16>
      %cst_40 = arith.constant dense<0.000000e+00> : vector<256x128xf32>
      %137 = tpu.matmul %135, %136, %cst_40 {dimension_numbers = #tpu.dot_dimension_numbers<[1], [0], [0], [1], [0, 0, 1, 1], [], []>} : vector<256x128xbf16>, vector<128x128xbf16>, vector<256x128xf32> -> vector<256x128xf32>
      %c0_41 = arith.constant 0 : index
      %c0_42 = arith.constant 0 : index
      %138 = vector.load %arg7[%c0_41, %c0_42] : memref<1x128xbf16, #tpu.memory_space<vmem>>, vector<1x128xbf16>
      %139 = arith.extf %138 : vector<1x128xbf16> to vector<1x128xf32>
      %140 = vector.broadcast %139 : vector<1x128xf32> to vector<256x128xf32>
      %141 = arith.addf %137, %140 : vector<256x128xf32>
      %142 = arith.truncf %141 : vector<256x128xf32> to vector<256x128xbf16>
      %c0_43 = arith.constant 0 : index
      %c0_44 = arith.constant 0 : index
      %c0_45 = arith.constant 0 : index
      %143 = vector.load %arg8[%c0_43, %c0_44, %c0_45] : memref<1x256x128xbf16, #tpu.memory_space<vmem>>, vector<1x256x128xbf16>
      %144 = vector.shape_cast %143 : vector<1x256x128xbf16> to vector<256x128xbf16>
      %145 = vector.shape_cast %142 : vector<256x128xbf16> to vector<1x256x128xbf16>
      tpu.vector_store %arg8[%c0_43, %c0_44, %c0_45], %145 {strides = array<i32>} : memref<1x256x128xbf16, #tpu.memory_space<vmem>>, vector<1x256x128xbf16>,
    } else {
    }
    return
  }
  func.func @transform_0(%arg0: i32, %arg1: i32, %arg2: i32) -> (i32, i32, i32) {
    %c0_i32 = arith.constant 0 : i32
    %c0_i32_0 = arith.constant 0 : i32
    return %arg0, %arg1, %c0_i32 : i32, i32, i32
  }
  func.func @transform_1(%arg0: i32, %arg1: i32, %arg2: i32) -> (i32, i32, i32) {
    %c1_i32 = arith.constant 1 : i32
    %c0_i32 = arith.constant 0 : i32
    return %arg0, %arg2, %c1_i32 : i32, i32, i32
  }
  func.func @transform_2(%arg0: i32, %arg1: i32, %arg2: i32) -> (i32, i32, i32) {
    %c2_i32 = arith.constant 2 : i32
    %c0_i32 = arith.constant 0 : i32
    return %arg0, %arg2, %c2_i32 : i32, i32, i32
  }
  func.func @transform_3(%arg0: i32, %arg1: i32, %arg2: i32) -> (i32, i32) {
    %c0_i32 = arith.constant 0 : i32
    %c0_i32_0 = arith.constant 0 : i32
    %c0_i32_1 = arith.constant 0 : i32
    return %c0_i32, %c0_i32_0 : i32, i32
  }
  func.func @transform_4(%arg0: i32, %arg1: i32, %arg2: i32) -> (i32, i32) {
    %c0_i32 = arith.constant 0 : i32
    %c0_i32_0 = arith.constant 0 : i32
    %c0_i32_1 = arith.constant 0 : i32
    return %c0_i32, %c0_i32_0 : i32, i32
  }
  func.func @transform_5(%arg0: i32, %arg1: i32, %arg2: i32) -> (i32, i32, i32) {
    %c0_i32 = arith.constant 0 : i32
    %c0_i32_0 = arith.constant 0 : i32
    return %arg0, %arg1, %c0_i32 : i32, i32, i32
  }
}

</mosaic_0001>

<llo_original>
// kernel: mha_forward.2
$region0: #{mha_forward.2}
  #allocation0 [shape = 'u32[]', space=smem, size = 0x4, offset = 0x4, fixed_abs, tag = 'smem constant byte address 0x4 - core index']
  #allocation1 [shape = 'u32[72,128]{1,0:T(1,128)}', space=vmem, size = 0x9000, scoped, tag = 'internal scratch']
  %s0 = inlined_call_operand.vmem [shape: bf16[512,128], index: 0, kind: input, shape index: {}]
  %s1 = inlined_call_operand.vmem [shape: bf16[128,384], index: 1, kind: input, shape index: {}]
  %s2 = inlined_call_operand.vmem [shape: bf16[512,384], index: 2, kind: output, shape index: {}]
  %s3 = sld [smem:[#allocation0]]
  $region18: #{mha_forward.2} parent=0
    _
  %s5 = ssub.s32 1, %s3
  %s6 = scalar_select 0, %s5, %s3
  // Predicated region
  $region2: #{mha_forward.2} parent=0 // pred_check
    _
  $region3: #{mha_forward.2} parent=0 // pred_check_branch
    %8 = sbr.rel (0) target = $region5
  $region4: #{mha_forward.2} parent=0 // pred_region
    _
  $region5: #{mha_forward.2} parent=0 // pred_fallthru
    _
  // Predicated region
  $region6: #{mha_forward.2} parent=0 // pred_check
    _
  $region7: #{mha_forward.2} parent=0 // pred_check_branch
    %10 = sbr.rel (0) target = $region9
  $region8: #{mha_forward.2} parent=0 // pred_region
    _
  $region9: #{mha_forward.2} parent=0 // pred_fallthru
    _
  %v11 = vld [vmem:[%s0] sm:$0xf]
  %v12 = vld [vmem:[%s0 + $0x4] sm:$0xf]
  %v13 = vld [vmem:[%s0 + $0x8] sm:$0xf]
  %v14 = vld [vmem:[%s0 + $0xc] sm:$0xf]
  %v15 = vld [vmem:[%s0 + $0x10] sm:$0xf]
  %v16 = vld [vmem:[%s0 + $0x14] sm:$0xf]
  %v17 = vld [vmem:[%s0 + $0x18] sm:$0xf]
  %v18 = vld [vmem:[%s0 + $0x1c] sm:$0xf]
  %v19 = vld [vmem:[%s0 + $0x20] sm:$0xf]
  %v20 = vld [vmem:[%s0 + $0x24] sm:$0xf]
  %v21 = vld [vmem:[%s0 + $0x28] sm:$0xf]
  %v22 = vld [vmem:[%s0 + $0x2c] sm:$0xf]
  %v23 = vld [vmem:[%s0 + $0x30] sm:$0xf]
  %v24 = vld [vmem:[%s0 + $0x34] sm:$0xf]
  %v25 = vld [vmem:[%s0 + $0x38] sm:$0xf]
  %v26 = vld [vmem:[%s0 + $0x3c] sm:$0xf]
  %v27 = vld [vmem:[%s0 + $0x40] sm:$0xf]
  %v28 = vld [vmem:[%s0 + $0x44] sm:$0xf]
  %v29 = vld [vmem:[%s0 + $0x48] sm:$0xf]
  %v30 = vld [vmem:[%s0 + $0x4c] sm:$0xf]
  %v31 = vld [vmem:[%s0 + $0x50] sm:$0xf]
  %v32 = vld [vmem:[%s0 + $0x54] sm:$0xf]
  %v33 = vld [vmem:[%s0 + $0x58] sm:$0xf]
  %v34 = vld [vmem:[%s0 + $0x5c] sm:$0xf]
  %v35 = vld [vmem:[%s0 + $0x60] sm:$0xf]
  %v36 = vld [vmem:[%s0 + $0x64] sm:$0xf]
  %v37 = vld [vmem:[%s0 + $0x68] sm:$0xf]
  %v38 = vld [vmem:[%s0 + $0x6c] sm:$0xf]
  %v39 = vld [vmem:[%s0 + $0x70] sm:$0xf]
  %v40 = vld [vmem:[%s0 + $0x74] sm:$0xf]
  %v41 = vld [vmem:[%s0 + $0x78] sm:$0xf]
  %v42 = vld [vmem:[%s0 + $0x7c] sm:$0xf]
  %v43 = vld [vmem:[%s0 + $0x80] sm:$0xf]
  %v44 = vld [vmem:[%s0 + $0x84] sm:$0xf]
  %v45 = vld [vmem:[%s0 + $0x88] sm:$0xf]
  %v46 = vld [vmem:[%s0 + $0x8c] sm:$0xf]
  %v47 = vld [vmem:[%s0 + $0x90] sm:$0xf]
  %v48 = vld [vmem:[%s0 + $0x94] sm:$0xf]
  %v49 = vld [vmem:[%s0 + $0x98] sm:$0xf]
  %v50 = vld [vmem:[%s0 + $0x9c] sm:$0xf]
  %v51 = vld [vmem:[%s0 + $0xa0] sm:$0xf]
  %v52 = vld [vmem:[%s0 + $0xa4] sm:$0xf]
  %v53 = vld [vmem:[%s0 + $0xa8] sm:$0xf]
  %v54 = vld [vmem:[%s0 + $0xac] sm:$0xf]
  %v55 = vld [vmem:[%s0 + $0xb0] sm:$0xf]
  %v56 = vld [vmem:[%s0 + $0xb4] sm:$0xf]
  %v57 = vld [vmem:[%s0 + $0xb8] sm:$0xf]
  %v58 = vld [vmem:[%s0 + $0xbc] sm:$0xf]
  %v59 = vld [vmem:[%s0 + $0xc0] sm:$0xf]
  %v60 = vld [vmem:[%s0 + $0xc4] sm:$0xf]
  %v61 = vld [vmem:[%s0 + $0xc8] sm:$0xf]
  %v62 = vld [vmem:[%s0 + $0xcc] sm:$0xf]
  %v63 = vld [vmem:[%s0 + $0xd0] sm:$0xf]
  %v64 = vld [vmem:[%s0 + $0xd4] sm:$0xf]
  %v65 = vld [vmem:[%s0 + $0xd8] sm:$0xf]
  %v66 = vld [vmem:[%s0 + $0xdc] sm:$0xf]
  %v67 = vld [vmem:[%s0 + $0xe0] sm:$0xf]
  %v68 = vld [vmem:[%s0 + $0xe4] sm:$0xf]
  %v69 = vld [vmem:[%s0 + $0xe8] sm:$0xf]
  %v70 = vld [vmem:[%s0 + $0xec] sm:$0xf]
  %v71 = vld [vmem:[%s0 + $0xf0] sm:$0xf]
  %v72 = vld [vmem:[%s0 + $0xf4] sm:$0xf]
  %v73 = vld [vmem:[%s0 + $0xf8] sm:$0xf]
  %v74 = vld [vmem:[%s0 + $0xfc] sm:$0xf]
  %v75 = vld [vmem:[%s1] sm:$0xff]
  %v76 = vld [vmem:[%s1 + $0x8] sm:$0xf]
  %v77 = vld [vmem:[%s1 + $0xc] sm:$0xff]
  %v78 = vld [vmem:[%s1 + $0x14] sm:$0xf]
  %v79 = vld [vmem:[%s1 + $0x18] sm:$0xff]
  %v80 = vld [vmem:[%s1 + $0x20] sm:$0xf]
  %v81 = vld [vmem:[%s1 + $0x24] sm:$0xff]
  %v82 = vld [vmem:[%s1 + $0x2c] sm:$0xf]
  %v83 = vld [vmem:[%s1 + $0x30] sm:$0xff]
  %v84 = vld [vmem:[%s1 + $0x38] sm:$0xf]
  %v85 = vld [vmem:[%s1 + $0x3c] sm:$0xff]
  %v86 = vld [vmem:[%s1 + $0x44] sm:$0xf]
  %v87 = vld [vmem:[%s1 + $0x48] sm:$0xff]
  %v88 = vld [vmem:[%s1 + $0x50] sm:$0xf]
  %v89 = vld [vmem:[%s1 + $0x54] sm:$0xff]
  %v90 = vld [vmem:[%s1 + $0x5c] sm:$0xf]
  %v91 = vld [vmem:[%s1 + $0x60] sm:$0xff]
  %v92 = vld [vmem:[%s1 + $0x68] sm:$0xf]
  %v93 = vld [vmem:[%s1 + $0x6c] sm:$0xff]
  %v94 = vld [vmem:[%s1 + $0x74] sm:$0xf]
  %v95 = vld [vmem:[%s1 + $0x78] sm:$0xff]
  %v96 = vld [vmem:[%s1 + $0x80] sm:$0xf]
  %v97 = vld [vmem:[%s1 + $0x84] sm:$0xff]
  %v98 = vld [vmem:[%s1 + $0x8c] sm:$0xf]
  %v99 = vld [vmem:[%s1 + $0x90] sm:$0xff]
  %v100 = vld [vmem:[%s1 + $0x98] sm:$0xf]
  %v101 = vld [vmem:[%s1 + $0x9c] sm:$0xff]
  %v102 = vld [vmem:[%s1 + $0xa4] sm:$0xf]
  %v103 = vld [vmem:[%s1 + $0xa8] sm:$0xff]
  %v104 = vld [vmem:[%s1 + $0xb0] sm:$0xf]
  %v105 = vld [vmem:[%s1 + $0xb4] sm:$0xff]
  %v106 = vld [vmem:[%s1 + $0xbc] sm:$0xf]
  %v171 = vunpack.c.l.b16 %v11
  %v172 = vunpack.c.l.b16 %v12
  %v173 = vunpack.c.l.b16 %v13
  %v174 = vunpack.c.l.b16 %v14
  %v175 = vunpack.c.l.b16 %v15
  %v176 = vunpack.c.l.b16 %v16
  %v177 = vunpack.c.l.b16 %v17
  %v178 = vunpack.c.l.b16 %v18
  %v179 = vunpack.c.l.b16 %v19
  %v180 = vunpack.c.l.b16 %v20
  %v181 = vunpack.c.l.b16 %v21
  %v182 = vunpack.c.l.b16 %v22
  %v183 = vunpack.c.l.b16 %v23
  %v184 = vunpack.c.l.b16 %v24
  %v185 = vunpack.c.l.b16 %v25
  %v186 = vunpack.c.l.b16 %v26
  %v187 = vunpack.c.l.b16 %v27
  %v188 = vunpack.c.l.b16 %v28
  %v189 = vunpack.c.l.b16 %v29
  %v190 = vunpack.c.l.b16 %v30
  %v191 = vunpack.c.l.b16 %v31
  %v192 = vunpack.c.l.b16 %v32
  %v193 = vunpack.c.l.b16 %v33
  %v194 = vunpack.c.l.b16 %v34
  %v195 = vunpack.c.l.b16 %v35
  %v196 = vunpack.c.l.b16 %v36
  %v197 = vunpack.c.l.b16 %v37
  %v198 = vunpack.c.l.b16 %v38
  %v199 = vunpack.c.l.b16 %v39
  %v200 = vunpack.c.l.b16 %v40
  %v201 = vunpack.c.l.b16 %v41
  %v202 = vunpack.c.l.b16 %v42
  %v203 = vunpack.c.l.b16 %v43
  %v204 = vunpack.c.l.b16 %v44
  %v205 = vunpack.c.l.b16 %v45
  %v206 = vunpack.c.l.b16 %v46
  %v207 = vunpack.c.l.b16 %v47
  %v208 = vunpack.c.l.b16 %v48
  %v209 = vunpack.c.l.b16 %v49
  %v210 = vunpack.c.l.b16 %v50
  %v211 = vunpack.c.l.b16 %v51
  %v212 = vunpack.c.l.b16 %v52
  %v213 = vunpack.c.l.b16 %v53
  %v214 = vunpack.c.l.b16 %v54
  %v215 = vunpack.c.l.b16 %v55
  %v216 = vunpack.c.l.b16 %v56
  %v217 = vunpack.c.l.b16 %v57
  %v218 = vunpack.c.l.b16 %v58
  %v219 = vunpack.c.l.b16 %v59
  %v220 = vunpack.c.l.b16 %v60
  %v221 = vunpack.c.l.b16 %v61
  %v222 = vunpack.c.l.b16 %v62
  %v223 = vunpack.c.l.b16 %v63
  %v224 = vunpack.c.l.b16 %v64
  %v225 = vunpack.c.l.b16 %v65
  %v226 = vunpack.c.l.b16 %v66
  %v227 = vunpack.c.l.b16 %v67
  %v228 = vunpack.c.l.b16 %v68
  %v229 = vunpack.c.l.b16 %v69
  %v230 = vunpack.c.l.b16 %v70
  %v231 = vunpack.c.l.b16 %v71
  %v232 = vunpack.c.l.b16 %v72
  %v233 = vunpack.c.l.b16 %v73
  %v234 = vunpack.c.l.b16 %v74
  %v235 = vpack.c.b16 %v172, %v171
  %v236 = vpack.c.b16 %v174, %v173
  %v237 = vpack.c.b16 %v176, %v175
  %v238 = vpack.c.b16 %v178, %v177
  %v239 = vpack.c.b16 %v180, %v179
  %v240 = vpack.c.b16 %v182, %v181
  %v241 = vpack.c.b16 %v184, %v183
  %v242 = vpack.c.b16 %v186, %v185
  %v243 = vpack.c.b16 %v188, %v187
  %v244 = vpack.c.b16 %v190, %v189
  %v245 = vpack.c.b16 %v192, %v191
  %v246 = vpack.c.b16 %v194, %v193
  %v247 = vpack.c.b16 %v196, %v195
  %v248 = vpack.c.b16 %v198, %v197
  %v249 = vpack.c.b16 %v200, %v199
  %v250 = vpack.c.b16 %v202, %v201
  %v251 = vpack.c.b16 %v204, %v203
  %v252 = vpack.c.b16 %v206, %v205
  %v253 = vpack.c.b16 %v208, %v207
  %v254 = vpack.c.b16 %v210, %v209
  %v255 = vpack.c.b16 %v212, %v211
  %v256 = vpack.c.b16 %v214, %v213
  %v257 = vpack.c.b16 %v216, %v215
  %v258 = vpack.c.b16 %v218, %v217
  %v259 = vpack.c.b16 %v220, %v219
  %v260 = vpack.c.b16 %v222, %v221
  %v261 = vpack.c.b16 %v224, %v223
  %v262 = vpack.c.b16 %v226, %v225
  %v263 = vpack.c.b16 %v228, %v227
  %v264 = vpack.c.b16 %v230, %v229
  %v265 = vpack.c.b16 %v232, %v231
  %v266 = vpack.c.b16 %v234, %v233
  %v331 = vunpack.c.l.b16 %v75
  %v332 = vunpack.c.h.b16 %v75
  %v333 = vunpack.c.l.b16 %v76
  %v334 = vunpack.c.l.b16 %v77
  %v335 = vunpack.c.h.b16 %v77
  %v336 = vunpack.c.l.b16 %v78
  %v337 = vunpack.c.l.b16 %v79
  %v338 = vunpack.c.h.b16 %v79
  %v339 = vunpack.c.l.b16 %v80
  %v340 = vunpack.c.l.b16 %v81
  %v341 = vunpack.c.h.b16 %v81
  %v342 = vunpack.c.l.b16 %v82
  %v343 = vunpack.c.l.b16 %v83
  %v344 = vunpack.c.h.b16 %v83
  %v345 = vunpack.c.l.b16 %v84
  %v346 = vunpack.c.l.b16 %v85
  %v347 = vunpack.c.h.b16 %v85
  %v348 = vunpack.c.l.b16 %v86
  %v349 = vunpack.c.l.b16 %v87
  %v350 = vunpack.c.h.b16 %v87
  %v351 = vunpack.c.l.b16 %v88
  %v352 = vunpack.c.l.b16 %v89
  %v353 = vunpack.c.h.b16 %v89
  %v354 = vunpack.c.l.b16 %v90
  %v355 = vunpack.c.l.b16 %v91
  %v356 = vunpack.c.h.b16 %v91
  %v357 = vunpack.c.l.b16 %v92
  %v358 = vunpack.c.l.b16 %v93
  %v359 = vunpack.c.h.b16 %v93
  %v360 = vunpack.c.l.b16 %v94
  %v361 = vunpack.c.l.b16 %v95
  %v362 = vunpack.c.h.b16 %v95
  %v363 = vunpack.c.l.b16 %v96
  %v364 = vunpack.c.l.b16 %v97
  %v365 = vunpack.c.h.b16 %v97
  %v366 = vunpack.c.l.b16 %v98
  %v367 = vunpack.c.l.b16 %v99
  %v368 = vunpack.c.h.b16 %v99
  %v369 = vunpack.c.l.b16 %v100
  %v370 = vunpack.c.l.b16 %v101
  %v371 = vunpack.c.h.b16 %v101
  %v372 = vunpack.c.l.b16 %v102
  %v373 = vunpack.c.l.b16 %v103
  %v374 = vunpack.c.h.b16 %v103
  %v375 = vunpack.c.l.b16 %v104
  %v376 = vunpack.c.l.b16 %v105
  %v377 = vunpack.c.h.b16 %v105
  %v378 = vunpack.c.l.b16 %v106
  %v379 = vpack.c.b16 %v334, %v331
  %v380 = vpack.c.b16 %v335, %v332
  %v381 = vpack.c.b16 %v336, %v333
  %v382 = vpack.c.b16 %v340, %v337
  %v383 = vpack.c.b16 %v341, %v338
  %v384 = vpack.c.b16 %v342, %v339
  %v385 = vpack.c.b16 %v346, %v343
  %v386 = vpack.c.b16 %v347, %v344
  %v387 = vpack.c.b16 %v348, %v345
  %v388 = vpack.c.b16 %v352, %v349
  %v389 = vpack.c.b16 %v353, %v350
  %v390 = vpack.c.b16 %v354, %v351
  %v391 = vpack.c.b16 %v358, %v355
  %v392 = vpack.c.b16 %v359, %v356
  %v393 = vpack.c.b16 %v360, %v357
  %v394 = vpack.c.b16 %v364, %v361
  %v395 = vpack.c.b16 %v365, %v362
  %v396 = vpack.c.b16 %v366, %v363
  %v397 = vpack.c.b16 %v370, %v367
  %v398 = vpack.c.b16 %v371, %v368
  %v399 = vpack.c.b16 %v372, %v369
  %v400 = vpack.c.b16 %v376, %v373
  %v401 = vpack.c.b16 %v377, %v374
  %v402 = vpack.c.b16 %v378, %v375
  %427 = vmatpush.bf16.msra.mxu0 %v400
  %428 = vmatpush.bf16.msra.mxu0 %v397
  %429 = vmatpush.bf16.msra.mxu0 %v394
  %430 = vmatpush.bf16.msra.mxu0 %v391
  %431 = vmatpush.bf16.msra.mxu0 %v388
  %432 = vmatpush.bf16.msra.mxu0 %v385
  %433 = vmatpush.bf16.msra.mxu0 %v382
  %434 = vmatpush.bf16.msra.mxu0 %v379
  %435 = vmatmul.bf16.gmra.mxu0 %v235
  %v436 = vpop.f32.mrf.mxu0
  %v437 = vadd.f32 0.0, %v436
  %v438 = vpop.f32.mrf.mxu0
  %v439 = vadd.f32 0.0, %v438
  %440 = vmatmul.bf16.gmra.mxu0 %v236
  %v441 = vpop.f32.mrf.mxu0
  %v442 = vadd.f32 0.0, %v441
  %v443 = vpop.f32.mrf.mxu0
  %v444 = vadd.f32 0.0, %v443
  %445 = vmatmul.bf16.gmra.mxu0 %v237
  %v446 = vpop.f32.mrf.mxu0
  %v447 = vadd.f32 0.0, %v446
  %v448 = vpop.f32.mrf.mxu0
  %v449 = vadd.f32 0.0, %v448
  %450 = vmatmul.bf16.gmra.mxu0 %v238
  %v451 = vpop.f32.mrf.mxu0
  %v452 = vadd.f32 0.0, %v451
  %v453 = vpop.f32.mrf.mxu0
  %v454 = vadd.f32 0.0, %v453
  %455 = vmatmul.bf16.gmra.mxu0 %v239
  %v456 = vpop.f32.mrf.mxu0
  %v457 = vadd.f32 0.0, %v456
  %v458 = vpop.f32.mrf.mxu0
  %v459 = vadd.f32 0.0, %v458
  %460 = vmatmul.bf16.gmra.mxu0 %v240
  %v461 = vpop.f32.mrf.mxu0
  %v462 = vadd.f32 0.0, %v461
  %v463 = vpop.f32.mrf.mxu0
  %v464 = vadd.f32 0.0, %v463
  %465 = vmatmul.bf16.gmra.mxu0 %v241
  %v466 = vpop.f32.mrf.mxu0
  %v467 = vadd.f32 0.0, %v466
  %v468 = vpop.f32.mrf.mxu0
  %v469 = vadd.f32 0.0, %v468
  %470 = vmatmul.bf16.gmra.mxu0 %v242
  %v471 = vpop.f32.mrf.mxu0
  %v472 = vadd.f32 0.0, %v471
  %v473 = vpop.f32.mrf.mxu0
  %v474 = vadd.f32 0.0, %v473
  %475 = vmatmul.bf16.gmra.mxu0 %v243
  %v476 = vpop.f32.mrf.mxu0
  %v477 = vadd.f32 0.0, %v476
  %v478 = vpop.f32.mrf.mxu0
  %v479 = vadd.f32 0.0, %v478
  %480 = vmatmul.bf16.gmra.mxu0 %v244
  %v481 = vpop.f32.mrf.mxu0
  %v482 = vadd.f32 0.0, %v481
  %v483 = vpop.f32.mrf.mxu0
  %v484 = vadd.f32 0.0, %v483
  %485 = vmatmul.bf16.gmra.mxu0 %v245
  %v486 = vpop.f32.mrf.mxu0
  %v487 = vadd.f32 0.0, %v486
  %v488 = vpop.f32.mrf.mxu0
  %v489 = vadd.f32 0.0, %v488
  %490 = vmatmul.bf16.gmra.mxu0 %v246
  %v491 = vpop.f32.mrf.mxu0
  %v492 = vadd.f32 0.0, %v491
  %v493 = vpop.f32.mrf.mxu0
  %v494 = vadd.f32 0.0, %v493
  %495 = vmatmul.bf16.gmra.mxu0 %v247
  %v496 = vpop.f32.mrf.mxu0
  %v497 = vadd.f32 0.0, %v496
  %v498 = vpop.f32.mrf.mxu0
  %v499 = vadd.f32 0.0, %v498
  %500 = vmatmul.bf16.gmra.mxu0 %v248
  %v501 = vpop.f32.mrf.mxu0
  %v502 = vadd.f32 0.0, %v501
  %v503 = vpop.f32.mrf.mxu0
  %v504 = vadd.f32 0.0, %v503
  %505 = vmatmul.bf16.gmra.mxu0 %v249
  %v506 = vpop.f32.mrf.mxu0
  %v507 = vadd.f32 0.0, %v506
  %v508 = vpop.f32.mrf.mxu0
  %v509 = vadd.f32 0.0, %v508
  %510 = vmatmul.bf16.gmra.mxu0 %v250
  %v511 = vpop.f32.mrf.mxu0
  %v512 = vadd.f32 0.0, %v511
  %v513 = vpop.f32.mrf.mxu0
  %v514 = vadd.f32 0.0, %v513
  %515 = vmatmul.bf16.gmra.mxu0 %v251
  %v516 = vpop.f32.mrf.mxu0
  %v517 = vadd.f32 0.0, %v516
  %v518 = vpop.f32.mrf.mxu0
  %v519 = vadd.f32 0.0, %v518
  %520 = vmatmul.bf16.gmra.mxu0 %v252
  %v521 = vpop.f32.mrf.mxu0
  %v522 = vadd.f32 0.0, %v521
  %v523 = vpop.f32.mrf.mxu0
  %v524 = vadd.f32 0.0, %v523
  %525 = vmatmul.bf16.gmra.mxu0 %v253
  %v526 = vpop.f32.mrf.mxu0
  %v527 = vadd.f32 0.0, %v526
  %v528 = vpop.f32.mrf.mxu0
  %v529 = vadd.f32 0.0, %v528
  %530 = vmatmul.bf16.gmra.mxu0 %v254
  %v531 = vpop.f32.mrf.mxu0
  %v532 = vadd.f32 0.0, %v531
  %v533 = vpop.f32.mrf.mxu0
  %v534 = vadd.f32 0.0, %v533
  %535 = vmatmul.bf16.gmra.mxu0 %v255
  %v536 = vpop.f32.mrf.mxu0
  %v537 = vadd.f32 0.0, %v536
  %v538 = vpop.f32.mrf.mxu0
  %v539 = vadd.f32 0.0, %v538
  %540 = vmatmul.bf16.gmra.mxu0 %v256
  %v541 = vpop.f32.mrf.mxu0
  %v542 = vadd.f32 0.0, %v541
  %v543 = vpop.f32.mrf.mxu0
  %v544 = vadd.f32 0.0, %v543
  %545 = vmatmul.bf16.gmra.mxu0 %v257
  %v546 = vpop.f32.mrf.mxu0
  %v547 = vadd.f32 0.0, %v546
  %v548 = vpop.f32.mrf.mxu0
  %v549 = vadd.f32 0.0, %v548
  %550 = vmatmul.bf16.gmra.mxu0 %v258
  %v551 = vpop.f32.mrf.mxu0
  %v552 = vadd.f32 0.0, %v551
  %v553 = vpop.f32.mrf.mxu0
  %v554 = vadd.f32 0.0, %v553
  %555 = vmatmul.bf16.gmra.mxu0 %v259
  %v556 = vpop.f32.mrf.mxu0
  %v557 = vadd.f32 0.0, %v556
  %v558 = vpop.f32.mrf.mxu0
  %v559 = vadd.f32 0.0, %v558
  %560 = vmatmul.bf16.gmra.mxu0 %v260
  %v561 = vpop.f32.mrf.mxu0
  %v562 = vadd.f32 0.0, %v561
  %v563 = vpop.f32.mrf.mxu0
  %v564 = vadd.f32 0.0, %v563
  %565 = vmatmul.bf16.gmra.mxu0 %v261
  %v566 = vpop.f32.mrf.mxu0
  %v567 = vadd.f32 0.0, %v566
  %v568 = vpop.f32.mrf.mxu0
  %v569 = vadd.f32 0.0, %v568
  %570 = vmatmul.bf16.gmra.mxu0 %v262
  %v571 = vpop.f32.mrf.mxu0
  %v572 = vadd.f32 0.0, %v571
  %v573 = vpop.f32.mrf.mxu0
  %v574 = vadd.f32 0.0, %v573
  %575 = vmatmul.bf16.gmra.mxu0 %v263
  %v576 = vpop.f32.mrf.mxu0
  %v577 = vadd.f32 0.0, %v576
  %v578 = vpop.f32.mrf.mxu0
  %v579 = vadd.f32 0.0, %v578
  %580 = vmatmul.bf16.gmra.mxu0 %v264
  %v581 = vpop.f32.mrf.mxu0
  %v582 = vadd.f32 0.0, %v581
  %v583 = vpop.f32.mrf.mxu0
  %v584 = vadd.f32 0.0, %v583
  %585 = vmatmul.bf16.gmra.mxu0 %v265
  %v586 = vpop.f32.mrf.mxu0
  %v587 = vadd.f32 0.0, %v586
  %v588 = vpop.f32.mrf.mxu0
  %v589 = vadd.f32 0.0, %v588
  %590 = vmatmul.bf16.gmra.mxu0 %v266
  %v591 = vpop.f32.mrf.mxu0
  %v592 = vadd.f32 0.0, %v591
  %v593 = vpop.f32.mrf.mxu0
  %v594 = vadd.f32 0.0, %v593
  %595 = vdwg.mxu0
  %596 = vmatpush.bf16.msra.mxu0 %v401
  %597 = vmatpush.bf16.msra.mxu0 %v398
  %598 = vmatpush.bf16.msra.mxu0 %v395
  %599 = vmatpush.bf16.msra.mxu0 %v392
  %600 = vmatpush.bf16.msra.mxu0 %v389
  %601 = vmatpush.bf16.msra.mxu0 %v386
  %602 = vmatpush.bf16.msra.mxu0 %v383
  %603 = vmatpush.bf16.msra.mxu0 %v380
  %604 = vmatmul.bf16.gmra.mxu0 %v235
  %v605 = vpop.f32.mrf.mxu0
  %v606 = vadd.f32 0.0, %v605
  %v607 = vpop.f32.mrf.mxu0
  %v608 = vadd.f32 0.0, %v607
  %609 = vmatmul.bf16.gmra.mxu0 %v236
  %v610 = vpop.f32.mrf.mxu0
  %v611 = vadd.f32 0.0, %v610
  %v612 = vpop.f32.mrf.mxu0
  %v613 = vadd.f32 0.0, %v612
  %614 = vmatmul.bf16.gmra.mxu0 %v237
  %v615 = vpop.f32.mrf.mxu0
  %v616 = vadd.f32 0.0, %v615
  %v617 = vpop.f32.mrf.mxu0
  %v618 = vadd.f32 0.0, %v617
  %619 = vmatmul.bf16.gmra.mxu0 %v238
  %v620 = vpop.f32.mrf.mxu0
  %v621 = vadd.f32 0.0, %v620
  %v622 = vpop.f32.mrf.mxu0
  %v623 = vadd.f32 0.0, %v622
  %624 = vmatmul.bf16.gmra.mxu0 %v239
  %v625 = vpop.f32.mrf.mxu0
  %v626 = vadd.f32 0.0, %v625
  %v627 = vpop.f32.mrf.mxu0
  %v628 = vadd.f32 0.0, %v627
  %629 = vmatmul.bf16.gmra.mxu0 %v240
  %v630 = vpop.f32.mrf.mxu0
  %v631 = vadd.f32 0.0, %v630
  %v632 = vpop.f32.mrf.mxu0
  %v633 = vadd.f32 0.0, %v632
  %634 = vmatmul.bf16.gmra.mxu0 %v241
  %v635 = vpop.f32.mrf.mxu0
  %v636 = vadd.f32 0.0, %v635
  %v637 = vpop.f32.mrf.mxu0
  %v638 = vadd.f32 0.0, %v637
  %639 = vmatmul.bf16.gmra.mxu0 %v242
  %v640 = vpop.f32.mrf.mxu0
  %v641 = vadd.f32 0.0, %v640
  %v642 = vpop.f32.mrf.mxu0
  %v643 = vadd.f32 0.0, %v642
  %644 = vmatmul.bf16.gmra.mxu0 %v243
  %v645 = vpop.f32.mrf.mxu0
  %v646 = vadd.f32 0.0, %v645
  %v647 = vpop.f32.mrf.mxu0
  %v648 = vadd.f32 0.0, %v647
  %649 = vmatmul.bf16.gmra.mxu0 %v244
  %v650 = vpop.f32.mrf.mxu0
  %v651 = vadd.f32 0.0, %v650
  %v652 = vpop.f32.mrf.mxu0
  %v653 = vadd.f32 0.0, %v652
  %654 = vmatmul.bf16.gmra.mxu0 %v245
  %v655 = vpop.f32.mrf.mxu0
  %v656 = vadd.f32 0.0, %v655
  %v657 = vpop.f32.mrf.mxu0
  %v658 = vadd.f32 0.0, %v657
  %659 = vmatmul.bf16.gmra.mxu0 %v246
  %v660 = vpop.f32.mrf.mxu0
  %v661 = vadd.f32 0.0, %v660
  %v662 = vpop.f32.mrf.mxu0
  %v663 = vadd.f32 0.0, %v662
  %664 = vmatmul.bf16.gmra.mxu0 %v247
  %v665 = vpop.f32.mrf.mxu0
  %v666 = vadd.f32 0.0, %v665
  %v667 = vpop.f32.mrf.mxu0
  %v668 = vadd.f32 0.0, %v667
  %669 = vmatmul.bf16.gmra.mxu0 %v248
  %v670 = vpop.f32.mrf.mxu0
  %v671 = vadd.f32 0.0, %v670
  %v672 = vpop.f32.mrf.mxu0
  %v673 = vadd.f32 0.0, %v672
  %674 = vmatmul.bf16.gmra.mxu0 %v249
  %v675 = vpop.f32.mrf.mxu0
  %v676 = vadd.f32 0.0, %v675
  %v677 = vpop.f32.mrf.mxu0
  %v678 = vadd.f32 0.0, %v677
  %679 = vmatmul.bf16.gmra.mxu0 %v250
  %v680 = vpop.f32.mrf.mxu0
  %v681 = vadd.f32 0.0, %v680
  %v682 = vpop.f32.mrf.mxu0
  %v683 = vadd.f32 0.0, %v682
  %684 = vmatmul.bf16.gmra.mxu0 %v251
  %v685 = vpop.f32.mrf.mxu0
  %v686 = vadd.f32 0.0, %v685
  %v687 = vpop.f32.mrf.mxu0
  %v688 = vadd.f32 0.0, %v687
  %689 = vmatmul.bf16.gmra.mxu0 %v252
  %v690 = vpop.f32.mrf.mxu0
  %v691 = vadd.f32 0.0, %v690
  %v692 = vpop.f32.mrf.mxu0
  %v693 = vadd.f32 0.0, %v692
  %694 = vmatmul.bf16.gmra.mxu0 %v253
  %v695 = vpop.f32.mrf.mxu0
  %v696 = vadd.f32 0.0, %v695
  %v697 = vpop.f32.mrf.mxu0
  %v698 = vadd.f32 0.0, %v697
  %699 = vmatmul.bf16.gmra.mxu0 %v254
  %v700 = vpop.f32.mrf.mxu0
  %v701 = vadd.f32 0.0, %v700
  %v702 = vpop.f32.mrf.mxu0
  %v703 = vadd.f32 0.0, %v702
  %704 = vmatmul.bf16.gmra.mxu0 %v255
  %v705 = vpop.f32.mrf.mxu0
  %v706 = vadd.f32 0.0, %v705
  %v707 = vpop.f32.mrf.mxu0
  %v708 = vadd.f32 0.0, %v707
  %709 = vmatmul.bf16.gmra.mxu0 %v256
  %v710 = vpop.f32.mrf.mxu0
  %v711 = vadd.f32 0.0, %v710
  %v712 = vpop.f32.mrf.mxu0
  %v713 = vadd.f32 0.0, %v712
  %714 = vmatmul.bf16.gmra.mxu0 %v257
  %v715 = vpop.f32.mrf.mxu0
  %v716 = vadd.f32 0.0, %v715
  %v717 = vpop.f32.mrf.mxu0
  %v718 = vadd.f32 0.0, %v717
  %719 = vmatmul.bf16.gmra.mxu0 %v258
  %v720 = vpop.f32.mrf.mxu0
  %v721 = vadd.f32 0.0, %v720
  %v722 = vpop.f32.mrf.mxu0
  %v723 = vadd.f32 0.0, %v722
  %724 = vmatmul.bf16.gmra.mxu0 %v259
  %v725 = vpop.f32.mrf.mxu0
  %v726 = vadd.f32 0.0, %v725
  %v727 = vpop.f32.mrf.mxu0
  %v728 = vadd.f32 0.0, %v727
  %729 = vmatmul.bf16.gmra.mxu0 %v260
  %v730 = vpop.f32.mrf.mxu0
  %v731 = vadd.f32 0.0, %v730
  %v732 = vpop.f32.mrf.mxu0
  %v733 = vadd.f32 0.0, %v732
  %734 = vmatmul.bf16.gmra.mxu0 %v261
  %v735 = vpop.f32.mrf.mxu0
  %v736 = vadd.f32 0.0, %v735
  %v737 = vpop.f32.mrf.mxu0
  %v738 = vadd.f32 0.0, %v737
  %739 = vmatmul.bf16.gmra.mxu0 %v262
  %v740 = vpop.f32.mrf.mxu0
  %v741 = vadd.f32 0.0, %v740
  %v742 = vpop.f32.mrf.mxu0
  %v743 = vadd.f32 0.0, %v742
  %744 = vmatmul.bf16.gmra.mxu0 %v263
  %v745 = vpop.f32.mrf.mxu0
  %v746 = vadd.f32 0.0, %v745
  %v747 = vpop.f32.mrf.mxu0
  %v748 = vadd.f32 0.0, %v747
  %749 = vmatmul.bf16.gmra.mxu0 %v264
  %v750 = vpop.f32.mrf.mxu0
  %v751 = vadd.f32 0.0, %v750
  %v752 = vpop.f32.mrf.mxu0
  %v753 = vadd.f32 0.0, %v752
  %754 = vmatmul.bf16.gmra.mxu0 %v265
  %v755 = vpop.f32.mrf.mxu0
  %v756 = vadd.f32 0.0, %v755
  %v757 = vpop.f32.mrf.mxu0
  %v758 = vadd.f32 0.0, %v757
  %759 = vmatmul.bf16.gmra.mxu0 %v266
  %v760 = vpop.f32.mrf.mxu0
  %v761 = vadd.f32 0.0, %v760
  %v762 = vpop.f32.mrf.mxu0
  %v763 = vadd.f32 0.0, %v762
  %764 = vdwg.mxu0
  %765 = vmatpush.bf16.msra.mxu0 %v402
  %766 = vmatpush.bf16.msra.mxu0 %v399
  %767 = vmatpush.bf16.msra.mxu0 %v396
  %768 = vmatpush.bf16.msra.mxu0 %v393
  %769 = vmatpush.bf16.msra.mxu0 %v390
  %770 = vmatpush.bf16.msra.mxu0 %v387
  %771 = vmatpush.bf16.msra.mxu0 %v384
  %772 = vmatpush.bf16.msra.mxu0 %v381
  %773 = vmatmul.bf16.gmra.mxu0 %v235
  %v774 = vpop.f32.mrf.mxu0
  %v775 = vadd.f32 0.0, %v774
  %v776 = vpop.f32.mrf.mxu0
  %v777 = vadd.f32 0.0, %v776
  %778 = vmatmul.bf16.gmra.mxu0 %v236
  %v779 = vpop.f32.mrf.mxu0
  %v780 = vadd.f32 0.0, %v779
  %v781 = vpop.f32.mrf.mxu0
  %v782 = vadd.f32 0.0, %v781
  %783 = vmatmul.bf16.gmra.mxu0 %v237
  %v784 = vpop.f32.mrf.mxu0
  %v785 = vadd.f32 0.0, %v784
  %v786 = vpop.f32.mrf.mxu0
  %v787 = vadd.f32 0.0, %v786
  %788 = vmatmul.bf16.gmra.mxu0 %v238
  %v789 = vpop.f32.mrf.mxu0
  %v790 = vadd.f32 0.0, %v789
  %v791 = vpop.f32.mrf.mxu0
  %v792 = vadd.f32 0.0, %v791
  %793 = vmatmul.bf16.gmra.mxu0 %v239
  %v794 = vpop.f32.mrf.mxu0
  %v795 = vadd.f32 0.0, %v794
  %v796 = vpop.f32.mrf.mxu0
  %v797 = vadd.f32 0.0, %v796
  %798 = vmatmul.bf16.gmra.mxu0 %v240
  %v799 = vpop.f32.mrf.mxu0
  %v800 = vadd.f32 0.0, %v799
  %v801 = vpop.f32.mrf.mxu0
  %v802 = vadd.f32 0.0, %v801
  %803 = vmatmul.bf16.gmra.mxu0 %v241
  %v804 = vpop.f32.mrf.mxu0
  %v805 = vadd.f32 0.0, %v804
  %v806 = vpop.f32.mrf.mxu0
  %v807 = vadd.f32 0.0, %v806
  %808 = vmatmul.bf16.gmra.mxu0 %v242
  %v809 = vpop.f32.mrf.mxu0
  %v810 = vadd.f32 0.0, %v809
  %v811 = vpop.f32.mrf.mxu0
  %v812 = vadd.f32 0.0, %v811
  %813 = vmatmul.bf16.gmra.mxu0 %v243
  %v814 = vpop.f32.mrf.mxu0
  %v815 = vadd.f32 0.0, %v814
  %v816 = vpop.f32.mrf.mxu0
  %v817 = vadd.f32 0.0, %v816
  %818 = vmatmul.bf16.gmra.mxu0 %v244
  %v819 = vpop.f32.mrf.mxu0
  %v820 = vadd.f32 0.0, %v819
  %v821 = vpop.f32.mrf.mxu0
  %v822 = vadd.f32 0.0, %v821
  %823 = vmatmul.bf16.gmra.mxu0 %v245
  %v824 = vpop.f32.mrf.mxu0
  %v825 = vadd.f32 0.0, %v824
  %v826 = vpop.f32.mrf.mxu0
  %v827 = vadd.f32 0.0, %v826
  %828 = vmatmul.bf16.gmra.mxu0 %v246
  %v829 = vpop.f32.mrf.mxu0
  %v830 = vadd.f32 0.0, %v829
  %v831 = vpop.f32.mrf.mxu0
  %v832 = vadd.f32 0.0, %v831
  %833 = vmatmul.bf16.gmra.mxu0 %v247
  %v834 = vpop.f32.mrf.mxu0
  %v835 = vadd.f32 0.0, %v834
  %v836 = vpop.f32.mrf.mxu0
  %v837 = vadd.f32 0.0, %v836
  %838 = vmatmul.bf16.gmra.mxu0 %v248
  %v839 = vpop.f32.mrf.mxu0
  %v840 = vadd.f32 0.0, %v839
  %v841 = vpop.f32.mrf.mxu0
  %v842 = vadd.f32 0.0, %v841
  %843 = vmatmul.bf16.gmra.mxu0 %v249
  %v844 = vpop.f32.mrf.mxu0
  %v845 = vadd.f32 0.0, %v844
  %v846 = vpop.f32.mrf.mxu0
  %v847 = vadd.f32 0.0, %v846
  %848 = vmatmul.bf16.gmra.mxu0 %v250
  %v849 = vpop.f32.mrf.mxu0
  %v850 = vadd.f32 0.0, %v849
  %v851 = vpop.f32.mrf.mxu0
  %v852 = vadd.f32 0.0, %v851
  %853 = vmatmul.bf16.gmra.mxu0 %v251
  %v854 = vpop.f32.mrf.mxu0
  %v855 = vadd.f32 0.0, %v854
  %v856 = vpop.f32.mrf.mxu0
  %v857 = vadd.f32 0.0, %v856
  %858 = vmatmul.bf16.gmra.mxu0 %v252
  %v859 = vpop.f32.mrf.mxu0
  %v860 = vadd.f32 0.0, %v859
  %v861 = vpop.f32.mrf.mxu0
  %v862 = vadd.f32 0.0, %v861
  %863 = vmatmul.bf16.gmra.mxu0 %v253
  %v864 = vpop.f32.mrf.mxu0
  %v865 = vadd.f32 0.0, %v864
  %v866 = vpop.f32.mrf.mxu0
  %v867 = vadd.f32 0.0, %v866
  %868 = vmatmul.bf16.gmra.mxu0 %v254
  %v869 = vpop.f32.mrf.mxu0
  %v870 = vadd.f32 0.0, %v869
  %v871 = vpop.f32.mrf.mxu0
  %v872 = vadd.f32 0.0, %v871
  %873 = vmatmul.bf16.gmra.mxu0 %v255
  %v874 = vpop.f32.mrf.mxu0
  %v875 = vadd.f32 0.0, %v874
  %v876 = vpop.f32.mrf.mxu0
  %v877 = vadd.f32 0.0, %v876
  %878 = vmatmul.bf16.gmra.mxu0 %v256
  %v879 = vpop.f32.mrf.mxu0
  %v880 = vadd.f32 0.0, %v879
  %v881 = vpop.f32.mrf.mxu0
  %v882 = vadd.f32 0.0, %v881
  %883 = vmatmul.bf16.gmra.mxu0 %v257
  %v884 = vpop.f32.mrf.mxu0
  %v885 = vadd.f32 0.0, %v884
  %v886 = vpop.f32.mrf.mxu0
  %v887 = vadd.f32 0.0, %v886
  %888 = vmatmul.bf16.gmra.mxu0 %v258
  %v889 = vpop.f32.mrf.mxu0
  %v890 = vadd.f32 0.0, %v889
  %v891 = vpop.f32.mrf.mxu0
  %v892 = vadd.f32 0.0, %v891
  %893 = vmatmul.bf16.gmra.mxu0 %v259
  %v894 = vpop.f32.mrf.mxu0
  %v895 = vadd.f32 0.0, %v894
  %v896 = vpop.f32.mrf.mxu0
  %v897 = vadd.f32 0.0, %v896
  %898 = vmatmul.bf16.gmra.mxu0 %v260
  %v899 = vpop.f32.mrf.mxu0
  %v900 = vadd.f32 0.0, %v899
  %v901 = vpop.f32.mrf.mxu0
  %v902 = vadd.f32 0.0, %v901
  %903 = vmatmul.bf16.gmra.mxu0 %v261
  %v904 = vpop.f32.mrf.mxu0
  %v905 = vadd.f32 0.0, %v904
  %v906 = vpop.f32.mrf.mxu0
  %v907 = vadd.f32 0.0, %v906
  %908 = vmatmul.bf16.gmra.mxu0 %v262
  %v909 = vpop.f32.mrf.mxu0
  %v910 = vadd.f32 0.0, %v909
  %v911 = vpop.f32.mrf.mxu0
  %v912 = vadd.f32 0.0, %v911
  %913 = vmatmul.bf16.gmra.mxu0 %v263
  %v914 = vpop.f32.mrf.mxu0
  %v915 = vadd.f32 0.0, %v914
  %v916 = vpop.f32.mrf.mxu0
  %v917 = vadd.f32 0.0, %v916
  %918 = vmatmul.bf16.gmra.mxu0 %v264
  %v919 = vpop.f32.mrf.mxu0
  %v920 = vadd.f32 0.0, %v919
  %v921 = vpop.f32.mrf.mxu0
  %v922 = vadd.f32 0.0, %v921
  %923 = vmatmul.bf16.gmra.mxu0 %v265
  %v924 = vpop.f32.mrf.mxu0
  %v925 = vadd.f32 0.0, %v924
  %v926 = vpop.f32.mrf.mxu0
  %v927 = vadd.f32 0.0, %v926
  %928 = vmatmul.bf16.gmra.mxu0 %v266
  %v929 = vpop.f32.mrf.mxu0
  %v930 = vadd.f32 0.0, %v929
  %v931 = vpop.f32.mrf.mxu0
  %v932 = vadd.f32 0.0, %v931
  %933 = vdwg.mxu0
  %v934 = vpack.c.bf16 %v606, %v437
  %v935 = vpack.c.bf16 %v775, %v775
  %v936 = vpack.c.bf16 %v608, %v439
  %v937 = vpack.c.bf16 %v777, %v777
  %v938 = vpack.c.bf16 %v611, %v442
  %v939 = vpack.c.bf16 %v780, %v780
  %v940 = vpack.c.bf16 %v613, %v444
  %v941 = vpack.c.bf16 %v782, %v782
  %v942 = vpack.c.bf16 %v616, %v447
  %v943 = vpack.c.bf16 %v785, %v785
  %v944 = vpack.c.bf16 %v618, %v449
  %v945 = vpack.c.bf16 %v787, %v787
  %v946 = vpack.c.bf16 %v621, %v452
  %v947 = vpack.c.bf16 %v790, %v790
  %v948 = vpack.c.bf16 %v623, %v454
  %v949 = vpack.c.bf16 %v792, %v792
  %v950 = vpack.c.bf16 %v626, %v457
  %v951 = vpack.c.bf16 %v795, %v795
  %v952 = vpack.c.bf16 %v628, %v459
  %v953 = vpack.c.bf16 %v797, %v797
  %v954 = vpack.c.bf16 %v631, %v462
  %v955 = vpack.c.bf16 %v800, %v800
  %v956 = vpack.c.bf16 %v633, %v464
  %v957 = vpack.c.bf16 %v802, %v802
  %v958 = vpack.c.bf16 %v636, %v467
  %v959 = vpack.c.bf16 %v805, %v805
  %v960 = vpack.c.bf16 %v638, %v469
  %v961 = vpack.c.bf16 %v807, %v807
  %v962 = vpack.c.bf16 %v641, %v472
  %v963 = vpack.c.bf16 %v810, %v810
  %v964 = vpack.c.bf16 %v643, %v474
  %v965 = vpack.c.bf16 %v812, %v812
  %v966 = vpack.c.bf16 %v646, %v477
  %v967 = vpack.c.bf16 %v815, %v815
  %v968 = vpack.c.bf16 %v648, %v479
  %v969 = vpack.c.bf16 %v817, %v817
  %v970 = vpack.c.bf16 %v651, %v482
  %v971 = vpack.c.bf16 %v820, %v820
  %v972 = vpack.c.bf16 %v653, %v484
  %v973 = vpack.c.bf16 %v822, %v822
  %v974 = vpack.c.bf16 %v656, %v487
  %v975 = vpack.c.bf16 %v825, %v825
  %v976 = vpack.c.bf16 %v658, %v489
  %v977 = vpack.c.bf16 %v827, %v827
  %v978 = vpack.c.bf16 %v661, %v492
  %v979 = vpack.c.bf16 %v830, %v830
  %v980 = vpack.c.bf16 %v663, %v494
  %v981 = vpack.c.bf16 %v832, %v832
  %v982 = vpack.c.bf16 %v666, %v497
  %v983 = vpack.c.bf16 %v835, %v835
  %v984 = vpack.c.bf16 %v668, %v499
  %v985 = vpack.c.bf16 %v837, %v837
  %v986 = vpack.c.bf16 %v671, %v502
  %v987 = vpack.c.bf16 %v840, %v840
  %v988 = vpack.c.bf16 %v673, %v504
  %v989 = vpack.c.bf16 %v842, %v842
  %v990 = vpack.c.bf16 %v676, %v507
  %v991 = vpack.c.bf16 %v845, %v845
  %v992 = vpack.c.bf16 %v678, %v509
  %v993 = vpack.c.bf16 %v847, %v847
  %v994 = vpack.c.bf16 %v681, %v512
  %v995 = vpack.c.bf16 %v850, %v850
  %v996 = vpack.c.bf16 %v683, %v514
  %v997 = vpack.c.bf16 %v852, %v852
  %v998 = vpack.c.bf16 %v686, %v517
  %v999 = vpack.c.bf16 %v855, %v855
  %v1000 = vpack.c.bf16 %v688, %v519
  %v1001 = vpack.c.bf16 %v857, %v857
  %v1002 = vpack.c.bf16 %v691, %v522
  %v1003 = vpack.c.bf16 %v860, %v860
  %v1004 = vpack.c.bf16 %v693, %v524
  %v1005 = vpack.c.bf16 %v862, %v862
  %v1006 = vpack.c.bf16 %v696, %v527
  %v1007 = vpack.c.bf16 %v865, %v865
  %v1008 = vpack.c.bf16 %v698, %v529
  %v1009 = vpack.c.bf16 %v867, %v867
  %v1010 = vpack.c.bf16 %v701, %v532
  %v1011 = vpack.c.bf16 %v870, %v870
  %v1012 = vpack.c.bf16 %v703, %v534
  %v1013 = vpack.c.bf16 %v872, %v872
  %v1014 = vpack.c.bf16 %v706, %v537
  %v1015 = vpack.c.bf16 %v875, %v875
  %v1016 = vpack.c.bf16 %v708, %v539
  %v1017 = vpack.c.bf16 %v877, %v877
  %v1018 = vpack.c.bf16 %v711, %v542
  %v1019 = vpack.c.bf16 %v880, %v880
  %v1020 = vpack.c.bf16 %v713, %v544
  %v1021 = vpack.c.bf16 %v882, %v882
  %v1022 = vpack.c.bf16 %v716, %v547
  %v1023 = vpack.c.bf16 %v885, %v885
  %v1024 = vpack.c.bf16 %v718, %v549
  %v1025 = vpack.c.bf16 %v887, %v887
  %v1026 = vpack.c.bf16 %v721, %v552
  %v1027 = vpack.c.bf16 %v890, %v890
  %v1028 = vpack.c.bf16 %v723, %v554
  %v1029 = vpack.c.bf16 %v892, %v892
  %v1030 = vpack.c.bf16 %v726, %v557
  %v1031 = vpack.c.bf16 %v895, %v895
  %v1032 = vpack.c.bf16 %v728, %v559
  %v1033 = vpack.c.bf16 %v897, %v897
  %v1034 = vpack.c.bf16 %v731, %v562
  %v1035 = vpack.c.bf16 %v900, %v900
  %v1036 = vpack.c.bf16 %v733, %v564
  %v1037 = vpack.c.bf16 %v902, %v902
  %v1038 = vpack.c.bf16 %v736, %v567
  %v1039 = vpack.c.bf16 %v905, %v905
  %v1040 = vpack.c.bf16 %v738, %v569
  %v1041 = vpack.c.bf16 %v907, %v907
  %v1042 = vpack.c.bf16 %v741, %v572
  %v1043 = vpack.c.bf16 %v910, %v910
  %v1044 = vpack.c.bf16 %v743, %v574
  %v1045 = vpack.c.bf16 %v912, %v912
  %v1046 = vpack.c.bf16 %v746, %v577
  %v1047 = vpack.c.bf16 %v915, %v915
  %v1048 = vpack.c.bf16 %v748, %v579
  %v1049 = vpack.c.bf16 %v917, %v917
  %v1050 = vpack.c.bf16 %v751, %v582
  %v1051 = vpack.c.bf16 %v920, %v920
  %v1052 = vpack.c.bf16 %v753, %v584
  %v1053 = vpack.c.bf16 %v922, %v922
  %v1054 = vpack.c.bf16 %v756, %v587
  %v1055 = vpack.c.bf16 %v925, %v925
  %v1056 = vpack.c.bf16 %v758, %v589
  %v1057 = vpack.c.bf16 %v927, %v927
  %v1058 = vpack.c.bf16 %v761, %v592
  %v1059 = vpack.c.bf16 %v930, %v930
  %v1060 = vpack.c.bf16 %v763, %v594
  %v1061 = vpack.c.bf16 %v932, %v932
  %1062 = vst [vmem:[%s2] sm:$0xff] %v934
  %1063 = vst [vmem:[%s2 + $0x8] sm:$0xf] %v935
  %1064 = vst [vmem:[%s2 + $0xc] sm:$0xff] %v936
  %1065 = vst [vmem:[%s2 + $0x14] sm:$0xf] %v937
  %1066 = vst [vmem:[%s2 + $0x18] sm:$0xff] %v938
  %1067 = vst [vmem:[%s2 + $0x20] sm:$0xf] %v939
  %1068 = vst [vmem:[%s2 + $0x24] sm:$0xff] %v940
  %1069 = vst [vmem:[%s2 + $0x2c] sm:$0xf] %v941
  %1070 = vst [vmem:[%s2 + $0x30] sm:$0xff] %v942
  %1071 = vst [vmem:[%s2 + $0x38] sm:$0xf] %v943
  %1072 = vst [vmem:[%s2 + $0x3c] sm:$0xff] %v944
  %1073 = vst [vmem:[%s2 + $0x44] sm:$0xf] %v945
  %1074 = vst [vmem:[%s2 + $0x48] sm:$0xff] %v946
  %1075 = vst [vmem:[%s2 + $0x50] sm:$0xf] %v947
  %1076 = vst [vmem:[%s2 + $0x54] sm:$0xff] %v948
  %1077 = vst [vmem:[%s2 + $0x5c] sm:$0xf] %v949
  %1078 = vst [vmem:[%s2 + $0x60] sm:$0xff] %v950
  %1079 = vst [vmem:[%s2 + $0x68] sm:$0xf] %v951
  %1080 = vst [vmem:[%s2 + $0x6c] sm:$0xff] %v952
  %1081 = vst [vmem:[%s2 + $0x74] sm:$0xf] %v953
  %1082 = vst [vmem:[%s2 + $0x78] sm:$0xff] %v954
  %1083 = vst [vmem:[%s2 + $0x80] sm:$0xf] %v955
  %1084 = vst [vmem:[%s2 + $0x84] sm:$0xff] %v956
  %1085 = vst [vmem:[%s2 + $0x8c] sm:$0xf] %v957
  %1086 = vst [vmem:[%s2 + $0x90] sm:$0xff] %v958
  %1087 = vst [vmem:[%s2 + $0x98] sm:$0xf] %v959
  %1088 = vst [vmem:[%s2 + $0x9c] sm:$0xff] %v960
  %1089 = vst [vmem:[%s2 + $0xa4] sm:$0xf] %v961
  %1090 = vst [vmem:[%s2 + $0xa8] sm:$0xff] %v962
  %1091 = vst [vmem:[%s2 + $0xb0] sm:$0xf] %v963
  %1092 = vst [vmem:[%s2 + $0xb4] sm:$0xff] %v964
  %1093 = vst [vmem:[%s2 + $0xbc] sm:$0xf] %v965
  %1094 = vst [vmem:[%s2 + $0xc0] sm:$0xff] %v966
  %1095 = vst [vmem:[%s2 + $0xc8] sm:$0xf] %v967
  %1096 = vst [vmem:[%s2 + $0xcc] sm:$0xff] %v968
  %1097 = vst [vmem:[%s2 + $0xd4] sm:$0xf] %v969
  %1098 = vst [vmem:[%s2 + $0xd8] sm:$0xff] %v970
  %1099 = vst [vmem:[%s2 + $0xe0] sm:$0xf] %v971
  %1100 = vst [vmem:[%s2 + $0xe4] sm:$0xff] %v972
  %1101 = vst [vmem:[%s2 + $0xec] sm:$0xf] %v973
  %1102 = vst [vmem:[%s2 + $0xf0] sm:$0xff] %v974
  %1103 = vst [vmem:[%s2 + $0xf8] sm:$0xf] %v975
  %1104 = vst [vmem:[%s2 + $0xfc] sm:$0xff] %v976
  %1105 = vst [vmem:[%s2 + $0x104] sm:$0xf] %v977
  %1106 = vst [vmem:[%s2 + $0x108] sm:$0xff] %v978
  %1107 = vst [vmem:[%s2 + $0x110] sm:$0xf] %v979
  %1108 = vst [vmem:[%s2 + $0x114] sm:$0xff] %v980
  %1109 = vst [vmem:[%s2 + $0x11c] sm:$0xf] %v981
  %1110 = vst [vmem:[%s2 + $0x120] sm:$0xff] %v982
  %1111 = vst [vmem:[%s2 + $0x128] sm:$0xf] %v983
  %1112 = vst [vmem:[%s2 + $0x12c] sm:$0xff] %v984
  %1113 = vst [vmem:[%s2 + $0x134] sm:$0xf] %v985
  %1114 = vst [vmem:[%s2 + $0x138] sm:$0xff] %v986
  %1115 = vst [vmem:[%s2 + $0x140] sm:$0xf] %v987
  %1116 = vst [vmem:[%s2 + $0x144] sm:$0xff] %v988
  %1117 = vst [vmem:[%s2 + $0x14c] sm:$0xf] %v989
  %1118 = vst [vmem:[%s2 + $0x150] sm:$0xff] %v990
  %1119 = vst [vmem:[%s2 + $0x158] sm:$0xf] %v991
  %1120 = vst [vmem:[%s2 + $0x15c] sm:$0xff] %v992
  %1121 = vst [vmem:[%s2 + $0x164] sm:$0xf] %v993
  %1122 = vst [vmem:[%s2 + $0x168] sm:$0xff] %v994
  %1123 = vst [vmem:[%s2 + $0x170] sm:$0xf] %v995
  %1124 = vst [vmem:[%s2 + $0x174] sm:$0xff] %v996
  %1125 = vst [vmem:[%s2 + $0x17c] sm:$0xf] %v997
  %1126 = vst [vmem:[%s2 + $0x180] sm:$0xff] %v998
  %1127 = vst [vmem:[%s2 + $0x188] sm:$0xf] %v999
  %1128 = vst [vmem:[%s2 + $0x18c] sm:$0xff] %v1000
  %1129 = vst [vmem:[%s2 + $0x194] sm:$0xf] %v1001
  %1130 = vst [vmem:[%s2 + $0x198] sm:$0xff] %v1002
  %1131 = vst [vmem:[%s2 + $0x1a0] sm:$0xf] %v1003
  %1132 = vst [vmem:[%s2 + $0x1a4] sm:$0xff] %v1004
  %1133 = vst [vmem:[%s2 + $0x1ac] sm:$0xf] %v1005
  %1134 = vst [vmem:[%s2 + $0x1b0] sm:$0xff] %v1006
  %1135 = vst [vmem:[%s2 + $0x1b8] sm:$0xf] %v1007
  %1136 = vst [vmem:[%s2 + $0x1bc] sm:$0xff] %v1008
  %1137 = vst [vmem:[%s2 + $0x1c4] sm:$0xf] %v1009
  %1138 = vst [vmem:[%s2 + $0x1c8] sm:$0xff] %v1010
  %1139 = vst [vmem:[%s2 + $0x1d0] sm:$0xf] %v1011
  %1140 = vst [vmem:[%s2 + $0x1d4] sm:$0xff] %v1012
  %1141 = vst [vmem:[%s2 + $0x1dc] sm:$0xf] %v1013
  %1142 = vst [vmem:[%s2 + $0x1e0] sm:$0xff] %v1014
  %1143 = vst [vmem:[%s2 + $0x1e8] sm:$0xf] %v1015
  %1144 = vst [vmem:[%s2 + $0x1ec] sm:$0xff] %v1016
  %1145 = vst [vmem:[%s2 + $0x1f4] sm:$0xf] %v1017
  %1146 = vst [vmem:[%s2 + $0x1f8] sm:$0xff] %v1018
  %1147 = vst [vmem:[%s2 + $0x200] sm:$0xf] %v1019
  %1148 = vst [vmem:[%s2 + $0x204] sm:$0xff] %v1020
  %1149 = vst [vmem:[%s2 + $0x20c] sm:$0xf] %v1021
  %1150 = vst [vmem:[%s2 + $0x210] sm:$0xff] %v1022
  %1151 = vst [vmem:[%s2 + $0x218] sm:$0xf] %v1023
  %1152 = vst [vmem:[%s2 + $0x21c] sm:$0xff] %v1024
  %1153 = vst [vmem:[%s2 + $0x224] sm:$0xf] %v1025
  %1154 = vst [vmem:[%s2 + $0x228] sm:$0xff] %v1026
  %1155 = vst [vmem:[%s2 + $0x230] sm:$0xf] %v1027
  %1156 = vst [vmem:[%s2 + $0x234] sm:$0xff] %v1028
  %1157 = vst [vmem:[%s2 + $0x23c] sm:$0xf] %v1029
  %1158 = vst [vmem:[%s2 + $0x240] sm:$0xff] %v1030
  %1159 = vst [vmem:[%s2 + $0x248] sm:$0xf] %v1031
  %1160 = vst [vmem:[%s2 + $0x24c] sm:$0xff] %v1032
  %1161 = vst [vmem:[%s2 + $0x254] sm:$0xf] %v1033
  %1162 = vst [vmem:[%s2 + $0x258] sm:$0xff] %v1034
  %1163 = vst [vmem:[%s2 + $0x260] sm:$0xf] %v1035
  %1164 = vst [vmem:[%s2 + $0x264] sm:$0xff] %v1036
  %1165 = vst [vmem:[%s2 + $0x26c] sm:$0xf] %v1037
  %1166 = vst [vmem:[%s2 + $0x270] sm:$0xff] %v1038
  %1167 = vst [vmem:[%s2 + $0x278] sm:$0xf] %v1039
  %1168 = vst [vmem:[%s2 + $0x27c] sm:$0xff] %v1040
  %1169 = vst [vmem:[%s2 + $0x284] sm:$0xf] %v1041
  %1170 = vst [vmem:[%s2 + $0x288] sm:$0xff] %v1042
  %1171 = vst [vmem:[%s2 + $0x290] sm:$0xf] %v1043
  %1172 = vst [vmem:[%s2 + $0x294] sm:$0xff] %v1044
  %1173 = vst [vmem:[%s2 + $0x29c] sm:$0xf] %v1045
  %1174 = vst [vmem:[%s2 + $0x2a0] sm:$0xff] %v1046
  %1175 = vst [vmem:[%s2 + $0x2a8] sm:$0xf] %v1047
  %1176 = vst [vmem:[%s2 + $0x2ac] sm:$0xff] %v1048
  %1177 = vst [vmem:[%s2 + $0x2b4] sm:$0xf] %v1049
  %1178 = vst [vmem:[%s2 + $0x2b8] sm:$0xff] %v1050
  %1179 = vst [vmem:[%s2 + $0x2c0] sm:$0xf] %v1051
  %1180 = vst [vmem:[%s2 + $0x2c4] sm:$0xff] %v1052
  %1181 = vst [vmem:[%s2 + $0x2cc] sm:$0xf] %v1053
  %1182 = vst [vmem:[%s2 + $0x2d0] sm:$0xff] %v1054
  %1183 = vst [vmem:[%s2 + $0x2d8] sm:$0xf] %v1055
  %1184 = vst [vmem:[%s2 + $0x2dc] sm:$0xff] %v1056
  %1185 = vst [vmem:[%s2 + $0x2e4] sm:$0xf] %v1057
  %1186 = vst [vmem:[%s2 + $0x2e8] sm:$0xff] %v1058
  %1187 = vst [vmem:[%s2 + $0x2f0] sm:$0xf] %v1059
  %1188 = vst [vmem:[%s2 + $0x2f4] sm:$0xff] %v1060
  %1189 = vst [vmem:[%s2 + $0x2fc] sm:$0xf] %v1061
  // Predicated region
  $region10: #{mha_forward.2} parent=0 // pred_check
    _
  $region11: #{mha_forward.2} parent=0 // pred_check_branch
    %1191 = sbr.rel (0) target = $region13
  $region12: #{mha_forward.2} parent=0 // pred_region
    _
  $region13: #{mha_forward.2} parent=0 // pred_fallthru
    _
  // Predicated region
  $region14: #{mha_forward.2} parent=0 // pred_check
    _
  $region15: #{mha_forward.2} parent=0 // pred_check_branch
    %1193 = sbr.rel (0) target = $region17
  $region16: #{mha_forward.2} parent=0 // pred_region
    _
  $region17: #{mha_forward.2} parent=0 // pred_fallthru
    _

// kernel: mha_forward.3
$region0: #{mha_forward.3}
  #allocation0 [shape = 'u32[]', space=smem, size = 0x4, offset = 0x4, fixed_abs, tag = 'smem constant byte address 0x4 - core index']
  #allocation1 [shape = 'u32[72,128]{1,0:T(1,128)}', space=vmem, size = 0x9000, scoped, tag = 'internal scratch']
  #allocation2 [shape = 'f32[256,128]{1,0:T(8,128)}', space=vmem, size = 0x20000, scoped, tag = 'scratch operand']
  #allocation3 [shape = 'f32[256,128]{1,0:T(8,128)}', space=vmem, size = 0x20000, scoped, tag = 'scratch operand']
  #allocation4 [shape = 'f32[256,128]{1,0:T(8,128)}', space=vmem, size = 0x20000, scoped, tag = 'scratch operand']
  %s0 = inlined_call_operand.vmem [shape: bf16[2,256,384], index: 0, kind: input, shape index: {}, may-alias: {0,1,2}]
  %s1 = inlined_call_operand.vmem [shape: bf16[2,256,384], index: 1, kind: input, shape index: {}, may-alias: {0,1,2}]
  %s2 = inlined_call_operand.vmem [shape: bf16[2,256,384], index: 2, kind: input, shape index: {}, may-alias: {0,1,2}]
  %s3 = inlined_call_operand.vmem [shape: bf16[128,128], index: 3, kind: input, shape index: {}]
  %s4 = inlined_call_operand.vmem [shape: bf16[1,128], index: 4, kind: input, shape index: {}]
  %s5 = inlined_call_operand.hbm [shape: bf16[2,256,128], index: 5, kind: output, shape index: {}]
  %s6 = sld [smem:[#allocation0]]
  $region184: #{mha_forward.3} parent=0
    _
  %s8 = ssub.s32 1, %s6
  %s9 = scalar_select 0, %s8, %s6
  $region1: #{mha_forward.3} parent=0
    #allocation5 [shape = 'u8[131072]{0}', space=vmem, size = 0x20000, scoped, tag = 'input window, operand 0']
    #allocation6 [shape = 'u8[131072]{0}', space=vmem, size = 0x20000, scoped, tag = 'input window, operand 1']
    #allocation7 [shape = 'u8[131072]{0}', space=vmem, size = 0x20000, scoped, tag = 'input window, operand 2']
    #allocation8 [shape = 'u8[131072]{0}', space=vmem, size = 0x20000, scoped, tag = 'output window, operand 0']
    #allocation9 [shape = 's32[2]{0}', space=sflag, size = 0x8, scoped, tag = 'scoped memory for mha_forward.3']
    %10 = vsyncpa [#allocation9], 0
    %s11 = scalar_lea.sflag [#allocation9], 1
    %12 = vsyncpa %s11, 0
    loop: start=0, step=1, limit=4
    $region2: #{mha_forward.3} parent=1 // loop_pre_header
      _
    $region3: #{mha_forward.3} parent=1 // loop_header
      %s14 = sphi 0, %s18
      %p15 = scmp.ge.s32.totalorder %s14, 4
      %s21 = sphi 0, %s40
      %s22 = sphi 0, %s36
      %s23 = sphi 0, %s32
      %s24 = sphi 0, %s21
      %s25 = sphi 0, %s22
      %s26 = sphi 0, %s23
      %s27 = sphi 0, %s24
      %s28 = sphi 0, %s25
      %s29 = sphi 0, %s26
      %s45 = sphi 0, %s47
      %s48 = sphi 0, %s45
      %s49 = sphi 0, %s48
      %s65 = sphi 0, %s49
      %s73 = sphi 0, %s75
      %s76 = sphi 0, %s73
      %s77 = sphi 0, %s76
      %s93 = sphi 0, %s77
      %s101 = sphi 0, %s103
      %s104 = sphi 0, %s101
      %s105 = sphi 0, %s104
      %s121 = sphi 0, %s105
      %s125 = sphi 0, %s125
      %s127 = sphi 0, %s125
      %s128 = sphi 0, %s127
      %s142 = sphi 0, %s128
      %s146 = sphi 0, %s146
      %s148 = sphi 0, %s146
      %s149 = sphi 0, %s148
      %s163 = sphi 0, %s149
      %s171 = sphi 0, %s173
      %s174 = sphi 0, %s171
      %s175 = sphi 0, %s174
      %s191 = sphi 0, %s175
    $region4: #{mha_forward.3} parent=1 // loop_header_branch
      %17 = sbr.rel (%p15) target = $region8
    $region5: #{mha_forward.3} parent=1 // loop_body
      %s19 = ssub.s32 %s14, 1
      %s20 = ssub.s32 %s14, 2
      %s30 = sadd.s32 1, %s23
      %p31 = scmp.ge.s32.totalorder %s30, 1
      %s32 = scalar_select %p31, 0, %s30
      %s33 = sadd.s32 1, %s22
      %s34 = scalar_select %p31, %s33, %s22
      %p35 = scmp.ge.s32.totalorder %s34, 1
      %s36 = scalar_select %p35, 0, %s34
      %s37 = sadd.s32 1, %s21
      %s38 = scalar_select %p35, %s37, %s21
      %p39 = scmp.ge.s32.totalorder %s38, 2
      %s40 = scalar_select %p39, 0, %s38
      %s41 = ssub.s32 %s21, %s40
      %s42 = ssub.s32 %s22, %s36
      %s43 = sor.u32 %s41, %s42
      %p44 = scmp.eq.s32.totalorder %s43, 0
      %s46 = sadd.s32 %s45, 1
      %s47 = scalar_select %p44, %s45, %s46
      %p50 = pneg %p44
      %p51 = scmp.eq.s32.totalorder %s14, 1
      %p52 = por %p50, %p51
      %p53 = scmp.ne.s32.totalorder %s45, %s48
      %p54 = scmp.eq.s32.totalorder %s14, 0
      %p55 = por %p53, %p54
      %p56 = scmp.ne.s32.totalorder %s45, %s48
      %p57 = scmp.eq.s32.totalorder %s19, 1
      %p58 = por %p56, %p57
      %p59 = scmp.ne.s32.totalorder %s48, %s49
      %p60 = scmp.eq.s32.totalorder %s19, 0
      %p61 = por %p59, %p60
      %p62 = scmp.ne.s32.totalorder %s48, %s49
      %p63 = scmp.eq.s32.totalorder %s20, 1
      %p64 = por %p62, %p63
      %p66 = scmp.ne.s32.totalorder %s49, %s65
      %p67 = scmp.eq.s32.totalorder %s20, 0
      %p68 = por %p66, %p67
      %s69 = ssub.s32 %s21, %s40
      %s70 = ssub.s32 %s23, %s32
      %s71 = sor.u32 %s69, %s70
      %p72 = scmp.eq.s32.totalorder %s71, 0
      %s74 = sadd.s32 %s73, 1
      %s75 = scalar_select %p72, %s73, %s74
      %p78 = pneg %p72
      %p79 = scmp.eq.s32.totalorder %s14, 1
      %p80 = por %p78, %p79
      %p81 = scmp.ne.s32.totalorder %s73, %s76
      %p82 = scmp.eq.s32.totalorder %s14, 0
      %p83 = por %p81, %p82
      %p84 = scmp.ne.s32.totalorder %s73, %s76
      %p85 = scmp.eq.s32.totalorder %s19, 1
      %p86 = por %p84, %p85
      %p87 = scmp.ne.s32.totalorder %s76, %s77
      %p88 = scmp.eq.s32.totalorder %s19, 0
      %p89 = por %p87, %p88
      %p90 = scmp.ne.s32.totalorder %s76, %s77
      %p91 = scmp.eq.s32.totalorder %s20, 1
      %p92 = por %p90, %p91
      %p94 = scmp.ne.s32.totalorder %s77, %s93
      %p95 = scmp.eq.s32.totalorder %s20, 0
      %p96 = por %p94, %p95
      %s97 = ssub.s32 %s21, %s40
      %s98 = ssub.s32 %s23, %s32
      %s99 = sor.u32 %s97, %s98
      %p100 = scmp.eq.s32.totalorder %s99, 0
      %s102 = sadd.s32 %s101, 1
      %s103 = scalar_select %p100, %s101, %s102
      %p106 = pneg %p100
      %p107 = scmp.eq.s32.totalorder %s14, 1
      %p108 = por %p106, %p107
      %p109 = scmp.ne.s32.totalorder %s101, %s104
      %p110 = scmp.eq.s32.totalorder %s14, 0
      %p111 = por %p109, %p110
      %p112 = scmp.ne.s32.totalorder %s101, %s104
      %p113 = scmp.eq.s32.totalorder %s19, 1
      %p114 = por %p112, %p113
      %p115 = scmp.ne.s32.totalorder %s104, %s105
      %p116 = scmp.eq.s32.totalorder %s19, 0
      %p117 = por %p115, %p116
      %p118 = scmp.ne.s32.totalorder %s104, %s105
      %p119 = scmp.eq.s32.totalorder %s20, 1
      %p120 = por %p118, %p119
      %p122 = scmp.ne.s32.totalorder %s105, %s121
      %p123 = scmp.eq.s32.totalorder %s20, 0
      %p124 = por %p122, %p123
      %s126 = sadd.s32 %s125, 1
      %p129 = scmp.eq.s32.totalorder %s14, 1
      %p130 = scmp.ne.s32.totalorder %s125, %s127
      %p131 = scmp.eq.s32.totalorder %s14, 0
      %p132 = por %p130, %p131
      %p133 = scmp.ne.s32.totalorder %s125, %s127
      %p134 = scmp.eq.s32.totalorder %s19, 1
      %p135 = por %p133, %p134
      %p136 = scmp.ne.s32.totalorder %s127, %s128
      %p137 = scmp.eq.s32.totalorder %s19, 0
      %p138 = por %p136, %p137
      %p139 = scmp.ne.s32.totalorder %s127, %s128
      %p140 = scmp.eq.s32.totalorder %s20, 1
      %p141 = por %p139, %p140
      %p143 = scmp.ne.s32.totalorder %s128, %s142
      %p144 = scmp.eq.s32.totalorder %s20, 0
      %p145 = por %p143, %p144
      %s147 = sadd.s32 %s146, 1
      %p150 = scmp.eq.s32.totalorder %s14, 1
      %p151 = scmp.ne.s32.totalorder %s146, %s148
      %p152 = scmp.eq.s32.totalorder %s14, 0
      %p153 = por %p151, %p152
      %p154 = scmp.ne.s32.totalorder %s146, %s148
      %p155 = scmp.eq.s32.totalorder %s19, 1
      %p156 = por %p154, %p155
      %p157 = scmp.ne.s32.totalorder %s148, %s149
      %p158 = scmp.eq.s32.totalorder %s19, 0
      %p159 = por %p157, %p158
      %p160 = scmp.ne.s32.totalorder %s148, %s149
      %p161 = scmp.eq.s32.totalorder %s20, 1
      %p162 = por %p160, %p161
      %p164 = scmp.ne.s32.totalorder %s149, %s163
      %p165 = scmp.eq.s32.totalorder %s20, 0
      %p166 = por %p164, %p165
      %s167 = ssub.s32 %s21, %s40
      %s168 = ssub.s32 %s22, %s36
      %s169 = sor.u32 %s167, %s168
      %p170 = scmp.eq.s32.totalorder %s169, 0
      %s172 = sadd.s32 %s171, 1
      %s173 = scalar_select %p170, %s171, %s172
      %p176 = pneg %p170
      %p177 = scmp.eq.s32.totalorder %s14, 1
      %p178 = por %p176, %p177
      %p179 = scmp.ne.s32.totalorder %s171, %s174
      %p180 = scmp.eq.s32.totalorder %s14, 0
      %p181 = por %p179, %p180
      %p182 = scmp.ne.s32.totalorder %s171, %s174
      %p183 = scmp.eq.s32.totalorder %s19, 1
      %p184 = por %p182, %p183
      %p185 = scmp.ne.s32.totalorder %s174, %s175
      %p186 = scmp.eq.s32.totalorder %s19, 0
      %p187 = por %p185, %p186
      %p188 = scmp.ne.s32.totalorder %s174, %s175
      %p189 = scmp.eq.s32.totalorder %s20, 1
      %p190 = por %p188, %p189
      %p192 = scmp.ne.s32.totalorder %s175, %s191
      %p193 = scmp.eq.s32.totalorder %s20, 0
      %p194 = por %p192, %p193
      %p195 = scmp.le.s32.totalorder 1, %s14
      %p196 = scmp.lt.s32.totalorder %s14, 3
      %p197 = pnand %p195, %p196
      %p198 = pneg %p197
      // Predicated region
      $region9: #{mha_forward.3} parent=5 // pred_check
        _
      $region10: #{mha_forward.3} parent=5 // pred_check_branch
        %200 = sbr.rel (%p197) target = $region12
      $region11: #{mha_forward.3} parent=5 // pred_region
        %s201 = ssub.s32 %s14, 1
        // Predicated region
        $region13: #{mha_forward.3} parent=11 // pred_check
          %p202 = pneg %p138
        $region14: #{mha_forward.3} parent=11 // pred_check_branch
          %204 = sbr.rel (%p202) target = $region16
        $region15: #{mha_forward.3} parent=11 // pred_region
          _
        $region16: #{mha_forward.3} parent=11 // pred_fallthru
          _
        // Predicated region
        $region17: #{mha_forward.3} parent=11 // pred_check
          %p205 = pneg %p159
        $region18: #{mha_forward.3} parent=11 // pred_check_branch
          %207 = sbr.rel (%p205) target = $region20
        $region19: #{mha_forward.3} parent=11 // pred_region
          _
        $region20: #{mha_forward.3} parent=11 // pred_fallthru
          _
      $region12: #{mha_forward.3} parent=5 // pred_fallthru
        _
      %p208 = scmp.lt.s32.totalorder %s14, 2
      // Predicated region
      $region21: #{mha_forward.3} parent=5 // pred_check
        %p209 = pneg %p208
      $region22: #{mha_forward.3} parent=5 // pred_check_branch
        %211 = sbr.rel (%p209) target = $region24
      $region23: #{mha_forward.3} parent=5 // pred_region
        // Predicated region
        $region25: #{mha_forward.3} parent=23 // pred_check
          %p212 = pneg %p55
        $region26: #{mha_forward.3} parent=23 // pred_check_branch
          %214 = sbr.rel (%p212) target = $region28
        $region27: #{mha_forward.3} parent=23 // pred_region
          %s215 = sand.u32 %s45, 1
          %s216 = sand.u32 %s45, 1
          %s217 = smul.addr %s216, 128
          %s218 = scalar_lea.vmem [#allocation5], %s217
          %s219 = smul.u32 32, %s22
          %s220 = smul.addr %s219, 3
          %s221 = smul.addr %s21, 96
          %s222 = sadd.s32 %s220, %s221
          %s223 = smul.addr %s222, 4
          %s224 = scalar_lea.vmem %s0, %s223
          // Predicated region
          $region29: #{mha_forward.3} parent=27 // pred_check
            _
          $region30: #{mha_forward.3} parent=27 // pred_check_branch
            %226 = sbr.rel (0) target = $region32
          $region31: #{mha_forward.3} parent=27 // pred_region
            // Predicated region
            $region33: #{mha_forward.3} parent=31 // pred_check
              _
            $region34: #{mha_forward.3} parent=31 // pred_check_branch
              %228 = sbr.rel target = $region36
            $region35: #{mha_forward.3} parent=31 // pred_region
              // Predicated region
              $region48: #{mha_forward.3} parent=35 // pred_check
                _
              $region49: #{mha_forward.3} parent=35 // pred_check_branch
                %306 = sbr.rel (0) target = $region51
              $region50: #{mha_forward.3} parent=35 // pred_region
                loop: start=0, step=1, limit=1
                $region52: #{mha_forward.3} parent=50 // loop_pre_header
                  _
                $region53: #{mha_forward.3} parent=50 // loop_header
                  %s308 = sphi 0, %s312
                  %p309 = scmp.ge.s32.totalorder %s308, 1
                  %s313 = sphi %s224, %s224
                  %s314 = sphi %s218, %s218
                $region54: #{mha_forward.3} parent=50 // loop_header_branch
                  %311 = sbr.rel (%p309) target = $region58
                $region55: #{mha_forward.3} parent=50 // loop_body
                  _
                $region56: #{mha_forward.3} parent=50 // loop_footer
                  %s312 = sadd.s32 1, %s308
                $region57: #{mha_forward.3} parent=50 // loop_footer_branch
                  %307 = sbr.rel target = $region53
                $region58: #{mha_forward.3} parent=50 // loop_exit
                  _
                %s316 = ssub.s32 16, 1
                loop: start=0, step=1, limit=1
                $region59: #{mha_forward.3} parent=50 // loop_pre_header
                  _
                $region60: #{mha_forward.3} parent=50 // loop_header
                  %s318 = sphi 0, %s322
                  %p319 = scmp.ge.s32.totalorder %s318, 1
                  %s323 = sphi %s224, %s224
                  %s324 = sphi %s218, %s218
                $region61: #{mha_forward.3} parent=50 // loop_header_branch
                  %321 = sbr.rel (%p319) target = $region65
                $region62: #{mha_forward.3} parent=50 // loop_body
                  %v325 = vld [vmem:[%s323] sm:%s316]
                  %326 = vst [vmem:[%s324] sm:%s316] %v325
                  %v327 = vld [vmem:[%s323 + $0xc] sm:%s316]
                  %328 = vst [vmem:[%s324 + $0x4] sm:%s316] %v327
                  %v329 = vld [vmem:[%s323 + $0x18] sm:%s316]
                  %330 = vst [vmem:[%s324 + $0x8] sm:%s316] %v329
                  %v331 = vld [vmem:[%s323 + $0x24] sm:%s316]
                  %332 = vst [vmem:[%s324 + $0xc] sm:%s316] %v331
                  %v333 = vld [vmem:[%s323 + $0x30] sm:%s316]
                  %334 = vst [vmem:[%s324 + $0x10] sm:%s316] %v333
                  %v335 = vld [vmem:[%s323 + $0x3c] sm:%s316]
                  %336 = vst [vmem:[%s324 + $0x14] sm:%s316] %v335
                  %v337 = vld [vmem:[%s323 + $0x48] sm:%s316]
                  %338 = vst [vmem:[%s324 + $0x18] sm:%s316] %v337
                  %v339 = vld [vmem:[%s323 + $0x54] sm:%s316]
                  %340 = vst [vmem:[%s324 + $0x1c] sm:%s316] %v339
                  %v341 = vld [vmem:[%s323 + $0x60] sm:%s316]
                  %342 = vst [vmem:[%s324 + $0x20] sm:%s316] %v341
                  %v343 = vld [vmem:[%s323 + $0x6c] sm:%s316]
                  %344 = vst [vmem:[%s324 + $0x24] sm:%s316] %v343
                  %v345 = vld [vmem:[%s323 + $0x78] sm:%s316]
                  %346 = vst [vmem:[%s324 + $0x28] sm:%s316] %v345
                  %v347 = vld [vmem:[%s323 + $0x84] sm:%s316]
                  %348 = vst [vmem:[%s324 + $0x2c] sm:%s316] %v347
                  %v349 = vld [vmem:[%s323 + $0x90] sm:%s316]
                  %350 = vst [vmem:[%s324 + $0x30] sm:%s316] %v349
                  %v351 = vld [vmem:[%s323 + $0x9c] sm:%s316]
                  %352 = vst [vmem:[%s324 + $0x34] sm:%s316] %v351
                  %v353 = vld [vmem:[%s323 + $0xa8] sm:%s316]
                  %354 = vst [vmem:[%s324 + $0x38] sm:%s316] %v353
                  %v355 = vld [vmem:[%s323 + $0xb4] sm:%s316]
                  %356 = vst [vmem:[%s324 + $0x3c] sm:%s316] %v355
                  %v357 = vld [vmem:[%s323 + $0xc0] sm:%s316]
                  %358 = vst [vmem:[%s324 + $0x40] sm:%s316] %v357
                  %v359 = vld [vmem:[%s323 + $0xcc] sm:%s316]
                  %360 = vst [vmem:[%s324 + $0x44] sm:%s316] %v359
                  %v361 = vld [vmem:[%s323 + $0xd8] sm:%s316]
                  %362 = vst [vmem:[%s324 + $0x48] sm:%s316] %v361
                  %v363 = vld [vmem:[%s323 + $0xe4] sm:%s316]
                  %364 = vst [vmem:[%s324 + $0x4c] sm:%s316] %v363
                  %v365 = vld [vmem:[%s323 + $0xf0] sm:%s316]
                  %366 = vst [vmem:[%s324 + $0x50] sm:%s316] %v365
                  %v367 = vld [vmem:[%s323 + $0xfc] sm:%s316]
                  %368 = vst [vmem:[%s324 + $0x54] sm:%s316] %v367
                  %v369 = vld [vmem:[%s323 + $0x108] sm:%s316]
                  %370 = vst [vmem:[%s324 + $0x58] sm:%s316] %v369
                  %v371 = vld [vmem:[%s323 + $0x114] sm:%s316]
                  %372 = vst [vmem:[%s324 + $0x5c] sm:%s316] %v371
                  %v373 = vld [vmem:[%s323 + $0x120] sm:%s316]
                  %374 = vst [vmem:[%s324 + $0x60] sm:%s316] %v373
                  %v375 = vld [vmem:[%s323 + $0x12c] sm:%s316]
                  %376 = vst [vmem:[%s324 + $0x64] sm:%s316] %v375
                  %v377 = vld [vmem:[%s323 + $0x138] sm:%s316]
                  %378 = vst [vmem:[%s324 + $0x68] sm:%s316] %v377
                  %v379 = vld [vmem:[%s323 + $0x144] sm:%s316]
                  %380 = vst [vmem:[%s324 + $0x6c] sm:%s316] %v379
                  %v381 = vld [vmem:[%s323 + $0x150] sm:%s316]
                  %382 = vst [vmem:[%s324 + $0x70] sm:%s316] %v381
                  %v383 = vld [vmem:[%s323 + $0x15c] sm:%s316]
                  %384 = vst [vmem:[%s324 + $0x74] sm:%s316] %v383
                  %v385 = vld [vmem:[%s323 + $0x168] sm:%s316]
                  %386 = vst [vmem:[%s324 + $0x78] sm:%s316] %v385
                  %v387 = vld [vmem:[%s323 + $0x174] sm:%s316]
                  %388 = vst [vmem:[%s324 + $0x7c] sm:%s316] %v387
                $region63: #{mha_forward.3} parent=50 // loop_footer
                  %s322 = sadd.s32 1, %s318
                $region64: #{mha_forward.3} parent=50 // loop_footer_branch
                  %317 = sbr.rel target = $region60
                $region65: #{mha_forward.3} parent=50 // loop_exit
                  _
              $region51: #{mha_forward.3} parent=35 // pred_fallthru
                _
            $region36: #{mha_forward.3} parent=31 // pred_fallthru
              _
            // Predicated region
            $region37: #{mha_forward.3} parent=31 // pred_check
              _
            $region38: #{mha_forward.3} parent=31 // pred_check_branch
              %230 = sbr.rel (0) target = $region40
            $region39: #{mha_forward.3} parent=31 // pred_region
              %s232 = ssub.s32 16, 1
              loop: start=0, step=1, limit=1
              $region41: #{mha_forward.3} parent=39 // loop_pre_header
                _
              $region42: #{mha_forward.3} parent=39 // loop_header
                %s234 = sphi 0, %s238
                %p235 = scmp.ge.s32.totalorder %s234, 1
                %s239 = sphi %s224, %s224
                %s240 = sphi %s218, %s218
              $region43: #{mha_forward.3} parent=39 // loop_header_branch
                %237 = sbr.rel (%p235) target = $region47
              $region44: #{mha_forward.3} parent=39 // loop_body
                %v241 = vld [vmem:[%s239] sm:%s232]
                %242 = vst [vmem:[%s240] sm:%s232] %v241
                %v243 = vld [vmem:[%s239 + $0xc] sm:%s232]
                %244 = vst [vmem:[%s240 + $0x4] sm:%s232] %v243
                %v245 = vld [vmem:[%s239 + $0x18] sm:%s232]
                %246 = vst [vmem:[%s240 + $0x8] sm:%s232] %v245
                %v247 = vld [vmem:[%s239 + $0x24] sm:%s232]
                %248 = vst [vmem:[%s240 + $0xc] sm:%s232] %v247
                %v249 = vld [vmem:[%s239 + $0x30] sm:%s232]
                %250 = vst [vmem:[%s240 + $0x10] sm:%s232] %v249
                %v251 = vld [vmem:[%s239 + $0x3c] sm:%s232]
                %252 = vst [vmem:[%s240 + $0x14] sm:%s232] %v251
                %v253 = vld [vmem:[%s239 + $0x48] sm:%s232]
                %254 = vst [vmem:[%s240 + $0x18] sm:%s232] %v253
                %v255 = vld [vmem:[%s239 + $0x54] sm:%s232]
                %256 = vst [vmem:[%s240 + $0x1c] sm:%s232] %v255
                %v257 = vld [vmem:[%s239 + $0x60] sm:%s232]
                %258 = vst [vmem:[%s240 + $0x20] sm:%s232] %v257
                %v259 = vld [vmem:[%s239 + $0x6c] sm:%s232]
                %260 = vst [vmem:[%s240 + $0x24] sm:%s232] %v259
                %v261 = vld [vmem:[%s239 + $0x78] sm:%s232]
                %262 = vst [vmem:[%s240 + $0x28] sm:%s232] %v261
                %v263 = vld [vmem:[%s239 + $0x84] sm:%s232]
                %264 = vst [vmem:[%s240 + $0x2c] sm:%s232] %v263
                %v265 = vld [vmem:[%s239 + $0x90] sm:%s232]
                %266 = vst [vmem:[%s240 + $0x30] sm:%s232] %v265
                %v267 = vld [vmem:[%s239 + $0x9c] sm:%s232]
                %268 = vst [vmem:[%s240 + $0x34] sm:%s232] %v267
                %v269 = vld [vmem:[%s239 + $0xa8] sm:%s232]
                %270 = vst [vmem:[%s240 + $0x38] sm:%s232] %v269
                %v271 = vld [vmem:[%s239 + $0xb4] sm:%s232]
                %272 = vst [vmem:[%s240 + $0x3c] sm:%s232] %v271
                %v273 = vld [vmem:[%s239 + $0xc0] sm:%s232]
                %274 = vst [vmem:[%s240 + $0x40] sm:%s232] %v273
                %v275 = vld [vmem:[%s239 + $0xcc] sm:%s232]
                %276 = vst [vmem:[%s240 + $0x44] sm:%s232] %v275
                %v277 = vld [vmem:[%s239 + $0xd8] sm:%s232]
                %278 = vst [vmem:[%s240 + $0x48] sm:%s232] %v277
                %v279 = vld [vmem:[%s239 + $0xe4] sm:%s232]
                %280 = vst [vmem:[%s240 + $0x4c] sm:%s232] %v279
                %v281 = vld [vmem:[%s239 + $0xf0] sm:%s232]
                %282 = vst [vmem:[%s240 + $0x50] sm:%s232] %v281
                %v283 = vld [vmem:[%s239 + $0xfc] sm:%s232]
                %284 = vst [vmem:[%s240 + $0x54] sm:%s232] %v283
                %v285 = vld [vmem:[%s239 + $0x108] sm:%s232]
                %286 = vst [vmem:[%s240 + $0x58] sm:%s232] %v285
                %v287 = vld [vmem:[%s239 + $0x114] sm:%s232]
                %288 = vst [vmem:[%s240 + $0x5c] sm:%s232] %v287
                %v289 = vld [vmem:[%s239 + $0x120] sm:%s232]
                %290 = vst [vmem:[%s240 + $0x60] sm:%s232] %v289
                %v291 = vld [vmem:[%s239 + $0x12c] sm:%s232]
                %292 = vst [vmem:[%s240 + $0x64] sm:%s232] %v291
                %v293 = vld [vmem:[%s239 + $0x138] sm:%s232]
                %294 = vst [vmem:[%s240 + $0x68] sm:%s232] %v293
                %v295 = vld [vmem:[%s239 + $0x144] sm:%s232]
                %296 = vst [vmem:[%s240 + $0x6c] sm:%s232] %v295
                %v297 = vld [vmem:[%s239 + $0x150] sm:%s232]
                %298 = vst [vmem:[%s240 + $0x70] sm:%s232] %v297
                %v299 = vld [vmem:[%s239 + $0x15c] sm:%s232]
                %300 = vst [vmem:[%s240 + $0x74] sm:%s232] %v299
                %v301 = vld [vmem:[%s239 + $0x168] sm:%s232]
                %302 = vst [vmem:[%s240 + $0x78] sm:%s232] %v301
                %v303 = vld [vmem:[%s239 + $0x174] sm:%s232]
                %304 = vst [vmem:[%s240 + $0x7c] sm:%s232] %v303
              $region45: #{mha_forward.3} parent=39 // loop_footer
                %s238 = sadd.s32 1, %s234
              $region46: #{mha_forward.3} parent=39 // loop_footer_branch
                %233 = sbr.rel target = $region42
              $region47: #{mha_forward.3} parent=39 // loop_exit
                _
            $region40: #{mha_forward.3} parent=31 // pred_fallthru
              _
          $region32: #{mha_forward.3} parent=27 // pred_fallthru
            _
          %389 = vnop
        $region28: #{mha_forward.3} parent=23 // pred_fallthru
          _
        // Predicated region
        $region66: #{mha_forward.3} parent=23 // pred_check
          %p390 = pneg %p83
        $region67: #{mha_forward.3} parent=23 // pred_check_branch
          %392 = sbr.rel (%p390) target = $region69
        $region68: #{mha_forward.3} parent=23 // pred_region
          %s393 = sand.u32 %s73, 1
          %s394 = sand.u32 %s73, 1
          %s395 = smul.addr %s394, 128
          %s396 = scalar_lea.vmem [#allocation6], %s395
          %s397 = smul.u32 32, %s23
          %s398 = smul.addr %s397, 3
          %s399 = sadd.s32 1, %s398
          %s400 = smul.addr %s21, 96
          %s401 = sadd.s32 %s399, %s400
          %s402 = smul.addr %s401, 4
          %s403 = scalar_lea.vmem %s1, %s402
          // Predicated region
          $region70: #{mha_forward.3} parent=68 // pred_check
            _
          $region71: #{mha_forward.3} parent=68 // pred_check_branch
            %405 = sbr.rel (0) target = $region73
          $region72: #{mha_forward.3} parent=68 // pred_region
            // Predicated region
            $region74: #{mha_forward.3} parent=72 // pred_check
              _
            $region75: #{mha_forward.3} parent=72 // pred_check_branch
              %407 = sbr.rel target = $region77
            $region76: #{mha_forward.3} parent=72 // pred_region
              // Predicated region
              $region89: #{mha_forward.3} parent=76 // pred_check
                _
              $region90: #{mha_forward.3} parent=76 // pred_check_branch
                %485 = sbr.rel (0) target = $region92
              $region91: #{mha_forward.3} parent=76 // pred_region
                loop: start=0, step=1, limit=1
                $region93: #{mha_forward.3} parent=91 // loop_pre_header
                  _
                $region94: #{mha_forward.3} parent=91 // loop_header
                  %s487 = sphi 0, %s491
                  %p488 = scmp.ge.s32.totalorder %s487, 1
                  %s492 = sphi %s403, %s403
                  %s493 = sphi %s396, %s396
                $region95: #{mha_forward.3} parent=91 // loop_header_branch
                  %490 = sbr.rel (%p488) target = $region99
                $region96: #{mha_forward.3} parent=91 // loop_body
                  _
                $region97: #{mha_forward.3} parent=91 // loop_footer
                  %s491 = sadd.s32 1, %s487
                $region98: #{mha_forward.3} parent=91 // loop_footer_branch
                  %486 = sbr.rel target = $region94
                $region99: #{mha_forward.3} parent=91 // loop_exit
                  _
                %s495 = ssub.s32 16, 1
                loop: start=0, step=1, limit=1
                $region100: #{mha_forward.3} parent=91 // loop_pre_header
                  _
                $region101: #{mha_forward.3} parent=91 // loop_header
                  %s497 = sphi 0, %s501
                  %p498 = scmp.ge.s32.totalorder %s497, 1
                  %s502 = sphi %s403, %s403
                  %s503 = sphi %s396, %s396
                $region102: #{mha_forward.3} parent=91 // loop_header_branch
                  %500 = sbr.rel (%p498) target = $region106
                $region103: #{mha_forward.3} parent=91 // loop_body
                  %v504 = vld [vmem:[%s502] sm:%s495]
                  %505 = vst [vmem:[%s503] sm:%s495] %v504
                  %v506 = vld [vmem:[%s502 + $0xc] sm:%s495]
                  %507 = vst [vmem:[%s503 + $0x4] sm:%s495] %v506
                  %v508 = vld [vmem:[%s502 + $0x18] sm:%s495]
                  %509 = vst [vmem:[%s503 + $0x8] sm:%s495] %v508
                  %v510 = vld [vmem:[%s502 + $0x24] sm:%s495]
                  %511 = vst [vmem:[%s503 + $0xc] sm:%s495] %v510
                  %v512 = vld [vmem:[%s502 + $0x30] sm:%s495]
                  %513 = vst [vmem:[%s503 + $0x10] sm:%s495] %v512
                  %v514 = vld [vmem:[%s502 + $0x3c] sm:%s495]
                  %515 = vst [vmem:[%s503 + $0x14] sm:%s495] %v514
                  %v516 = vld [vmem:[%s502 + $0x48] sm:%s495]
                  %517 = vst [vmem:[%s503 + $0x18] sm:%s495] %v516
                  %v518 = vld [vmem:[%s502 + $0x54] sm:%s495]
                  %519 = vst [vmem:[%s503 + $0x1c] sm:%s495] %v518
                  %v520 = vld [vmem:[%s502 + $0x60] sm:%s495]
                  %521 = vst [vmem:[%s503 + $0x20] sm:%s495] %v520
                  %v522 = vld [vmem:[%s502 + $0x6c] sm:%s495]
                  %523 = vst [vmem:[%s503 + $0x24] sm:%s495] %v522
                  %v524 = vld [vmem:[%s502 + $0x78] sm:%s495]
                  %525 = vst [vmem:[%s503 + $0x28] sm:%s495] %v524
                  %v526 = vld [vmem:[%s502 + $0x84] sm:%s495]
                  %527 = vst [vmem:[%s503 + $0x2c] sm:%s495] %v526
                  %v528 = vld [vmem:[%s502 + $0x90] sm:%s495]
                  %529 = vst [vmem:[%s503 + $0x30] sm:%s495] %v528
                  %v530 = vld [vmem:[%s502 + $0x9c] sm:%s495]
                  %531 = vst [vmem:[%s503 + $0x34] sm:%s495] %v530
                  %v532 = vld [vmem:[%s502 + $0xa8] sm:%s495]
                  %533 = vst [vmem:[%s503 + $0x38] sm:%s495] %v532
                  %v534 = vld [vmem:[%s502 + $0xb4] sm:%s495]
                  %535 = vst [vmem:[%s503 + $0x3c] sm:%s495] %v534
                  %v536 = vld [vmem:[%s502 + $0xc0] sm:%s495]
                  %537 = vst [vmem:[%s503 + $0x40] sm:%s495] %v536
                  %v538 = vld [vmem:[%s502 + $0xcc] sm:%s495]
                  %539 = vst [vmem:[%s503 + $0x44] sm:%s495] %v538
                  %v540 = vld [vmem:[%s502 + $0xd8] sm:%s495]
                  %541 = vst [vmem:[%s503 + $0x48] sm:%s495] %v540
                  %v542 = vld [vmem:[%s502 + $0xe4] sm:%s495]
                  %543 = vst [vmem:[%s503 + $0x4c] sm:%s495] %v542
                  %v544 = vld [vmem:[%s502 + $0xf0] sm:%s495]
                  %545 = vst [vmem:[%s503 + $0x50] sm:%s495] %v544
                  %v546 = vld [vmem:[%s502 + $0xfc] sm:%s495]
                  %547 = vst [vmem:[%s503 + $0x54] sm:%s495] %v546
                  %v548 = vld [vmem:[%s502 + $0x108] sm:%s495]
                  %549 = vst [vmem:[%s503 + $0x58] sm:%s495] %v548
                  %v550 = vld [vmem:[%s502 + $0x114] sm:%s495]
                  %551 = vst [vmem:[%s503 + $0x5c] sm:%s495] %v550
                  %v552 = vld [vmem:[%s502 + $0x120] sm:%s495]
                  %553 = vst [vmem:[%s503 + $0x60] sm:%s495] %v552
                  %v554 = vld [vmem:[%s502 + $0x12c] sm:%s495]
                  %555 = vst [vmem:[%s503 + $0x64] sm:%s495] %v554
                  %v556 = vld [vmem:[%s502 + $0x138] sm:%s495]
                  %557 = vst [vmem:[%s503 + $0x68] sm:%s495] %v556
                  %v558 = vld [vmem:[%s502 + $0x144] sm:%s495]
                  %559 = vst [vmem:[%s503 + $0x6c] sm:%s495] %v558
                  %v560 = vld [vmem:[%s502 + $0x150] sm:%s495]
                  %561 = vst [vmem:[%s503 + $0x70] sm:%s495] %v560
                  %v562 = vld [vmem:[%s502 + $0x15c] sm:%s495]
                  %563 = vst [vmem:[%s503 + $0x74] sm:%s495] %v562
                  %v564 = vld [vmem:[%s502 + $0x168] sm:%s495]
                  %565 = vst [vmem:[%s503 + $0x78] sm:%s495] %v564
                  %v566 = vld [vmem:[%s502 + $0x174] sm:%s495]
                  %567 = vst [vmem:[%s503 + $0x7c] sm:%s495] %v566
                $region104: #{mha_forward.3} parent=91 // loop_footer
                  %s501 = sadd.s32 1, %s497
                $region105: #{mha_forward.3} parent=91 // loop_footer_branch
                  %496 = sbr.rel target = $region101
                $region106: #{mha_forward.3} parent=91 // loop_exit
                  _
              $region92: #{mha_forward.3} parent=76 // pred_fallthru
                _
            $region77: #{mha_forward.3} parent=72 // pred_fallthru
              _
            // Predicated region
            $region78: #{mha_forward.3} parent=72 // pred_check
              _
            $region79: #{mha_forward.3} parent=72 // pred_check_branch
              %409 = sbr.rel (0) target = $region81
            $region80: #{mha_forward.3} parent=72 // pred_region
              %s411 = ssub.s32 16, 1
              loop: start=0, step=1, limit=1
              $region82: #{mha_forward.3} parent=80 // loop_pre_header
                _
              $region83: #{mha_forward.3} parent=80 // loop_header
                %s413 = sphi 0, %s417
                %p414 = scmp.ge.s32.totalorder %s413, 1
                %s418 = sphi %s403, %s403
                %s419 = sphi %s396, %s396
              $region84: #{mha_forward.3} parent=80 // loop_header_branch
                %416 = sbr.rel (%p414) target = $region88
              $region85: #{mha_forward.3} parent=80 // loop_body
                %v420 = vld [vmem:[%s418] sm:%s411]
                %421 = vst [vmem:[%s419] sm:%s411] %v420
                %v422 = vld [vmem:[%s418 + $0xc] sm:%s411]
                %423 = vst [vmem:[%s419 + $0x4] sm:%s411] %v422
                %v424 = vld [vmem:[%s418 + $0x18] sm:%s411]
                %425 = vst [vmem:[%s419 + $0x8] sm:%s411] %v424
                %v426 = vld [vmem:[%s418 + $0x24] sm:%s411]
                %427 = vst [vmem:[%s419 + $0xc] sm:%s411] %v426
                %v428 = vld [vmem:[%s418 + $0x30] sm:%s411]
                %429 = vst [vmem:[%s419 + $0x10] sm:%s411] %v428
                %v430 = vld [vmem:[%s418 + $0x3c] sm:%s411]
                %431 = vst [vmem:[%s419 + $0x14] sm:%s411] %v430
                %v432 = vld [vmem:[%s418 + $0x48] sm:%s411]
                %433 = vst [vmem:[%s419 + $0x18] sm:%s411] %v432
                %v434 = vld [vmem:[%s418 + $0x54] sm:%s411]
                %435 = vst [vmem:[%s419 + $0x1c] sm:%s411] %v434
                %v436 = vld [vmem:[%s418 + $0x60] sm:%s411]
                %437 = vst [vmem:[%s419 + $0x20] sm:%s411] %v436
                %v438 = vld [vmem:[%s418 + $0x6c] sm:%s411]
                %439 = vst [vmem:[%s419 + $0x24] sm:%s411] %v438
                %v440 = vld [vmem:[%s418 + $0x78] sm:%s411]
                %441 = vst [vmem:[%s419 + $0x28] sm:%s411] %v440
                %v442 = vld [vmem:[%s418 + $0x84] sm:%s411]
                %443 = vst [vmem:[%s419 + $0x2c] sm:%s411] %v442
                %v444 = vld [vmem:[%s418 + $0x90] sm:%s411]
                %445 = vst [vmem:[%s419 + $0x30] sm:%s411] %v444
                %v446 = vld [vmem:[%s418 + $0x9c] sm:%s411]
                %447 = vst [vmem:[%s419 + $0x34] sm:%s411] %v446
                %v448 = vld [vmem:[%s418 + $0xa8] sm:%s411]
                %449 = vst [vmem:[%s419 + $0x38] sm:%s411] %v448
                %v450 = vld [vmem:[%s418 + $0xb4] sm:%s411]
                %451 = vst [vmem:[%s419 + $0x3c] sm:%s411] %v450
                %v452 = vld [vmem:[%s418 + $0xc0] sm:%s411]
                %453 = vst [vmem:[%s419 + $0x40] sm:%s411] %v452
                %v454 = vld [vmem:[%s418 + $0xcc] sm:%s411]
                %455 = vst [vmem:[%s419 + $0x44] sm:%s411] %v454
                %v456 = vld [vmem:[%s418 + $0xd8] sm:%s411]
                %457 = vst [vmem:[%s419 + $0x48] sm:%s411] %v456
                %v458 = vld [vmem:[%s418 + $0xe4] sm:%s411]
                %459 = vst [vmem:[%s419 + $0x4c] sm:%s411] %v458
                %v460 = vld [vmem:[%s418 + $0xf0] sm:%s411]
                %461 = vst [vmem:[%s419 + $0x50] sm:%s411] %v460
                %v462 = vld [vmem:[%s418 + $0xfc] sm:%s411]
                %463 = vst [vmem:[%s419 + $0x54] sm:%s411] %v462
                %v464 = vld [vmem:[%s418 + $0x108] sm:%s411]
                %465 = vst [vmem:[%s419 + $0x58] sm:%s411] %v464
                %v466 = vld [vmem:[%s418 + $0x114] sm:%s411]
                %467 = vst [vmem:[%s419 + $0x5c] sm:%s411] %v466
                %v468 = vld [vmem:[%s418 + $0x120] sm:%s411]
                %469 = vst [vmem:[%s419 + $0x60] sm:%s411] %v468
                %v470 = vld [vmem:[%s418 + $0x12c] sm:%s411]
                %471 = vst [vmem:[%s419 + $0x64] sm:%s411] %v470
                %v472 = vld [vmem:[%s418 + $0x138] sm:%s411]
                %473 = vst [vmem:[%s419 + $0x68] sm:%s411] %v472
                %v474 = vld [vmem:[%s418 + $0x144] sm:%s411]
                %475 = vst [vmem:[%s419 + $0x6c] sm:%s411] %v474
                %v476 = vld [vmem:[%s418 + $0x150] sm:%s411]
                %477 = vst [vmem:[%s419 + $0x70] sm:%s411] %v476
                %v478 = vld [vmem:[%s418 + $0x15c] sm:%s411]
                %479 = vst [vmem:[%s419 + $0x74] sm:%s411] %v478
                %v480 = vld [vmem:[%s418 + $0x168] sm:%s411]
                %481 = vst [vmem:[%s419 + $0x78] sm:%s411] %v480
                %v482 = vld [vmem:[%s418 + $0x174] sm:%s411]
                %483 = vst [vmem:[%s419 + $0x7c] sm:%s411] %v482
              $region86: #{mha_forward.3} parent=80 // loop_footer
                %s417 = sadd.s32 1, %s413
              $region87: #{mha_forward.3} parent=80 // loop_footer_branch
                %412 = sbr.rel target = $region83
              $region88: #{mha_forward.3} parent=80 // loop_exit
                _
            $region81: #{mha_forward.3} parent=72 // pred_fallthru
              _
          $region73: #{mha_forward.3} parent=68 // pred_fallthru
            _
          %568 = vnop
        $region69: #{mha_forward.3} parent=23 // pred_fallthru
          _
        // Predicated region
        $region107: #{mha_forward.3} parent=23 // pred_check
          %p569 = pneg %p111
        $region108: #{mha_forward.3} parent=23 // pred_check_branch
          %571 = sbr.rel (%p569) target = $region110
        $region109: #{mha_forward.3} parent=23 // pred_region
          %s572 = sand.u32 %s101, 1
          %s573 = sand.u32 %s101, 1
          %s574 = smul.addr %s573, 128
          %s575 = scalar_lea.vmem [#allocation7], %s574
          %s576 = smul.u32 32, %s23
          %s577 = smul.addr %s576, 3
          %s578 = sadd.s32 2, %s577
          %s579 = smul.addr %s21, 96
          %s580 = sadd.s32 %s578, %s579
          %s581 = smul.addr %s580, 4
          %s582 = scalar_lea.vmem %s2, %s581
          // Predicated region
          $region111: #{mha_forward.3} parent=109 // pred_check
            _
          $region112: #{mha_forward.3} parent=109 // pred_check_branch
            %584 = sbr.rel (0) target = $region114
          $region113: #{mha_forward.3} parent=109 // pred_region
            // Predicated region
            $region115: #{mha_forward.3} parent=113 // pred_check
              _
            $region116: #{mha_forward.3} parent=113 // pred_check_branch
              %586 = sbr.rel target = $region118
            $region117: #{mha_forward.3} parent=113 // pred_region
              // Predicated region
              $region130: #{mha_forward.3} parent=117 // pred_check
                _
              $region131: #{mha_forward.3} parent=117 // pred_check_branch
                %664 = sbr.rel (0) target = $region133
              $region132: #{mha_forward.3} parent=117 // pred_region
                loop: start=0, step=1, limit=1
                $region134: #{mha_forward.3} parent=132 // loop_pre_header
                  _
                $region135: #{mha_forward.3} parent=132 // loop_header
                  %s666 = sphi 0, %s670
                  %p667 = scmp.ge.s32.totalorder %s666, 1
                  %s671 = sphi %s582, %s582
                  %s672 = sphi %s575, %s575
                $region136: #{mha_forward.3} parent=132 // loop_header_branch
                  %669 = sbr.rel (%p667) target = $region140
                $region137: #{mha_forward.3} parent=132 // loop_body
                  _
                $region138: #{mha_forward.3} parent=132 // loop_footer
                  %s670 = sadd.s32 1, %s666
                $region139: #{mha_forward.3} parent=132 // loop_footer_branch
                  %665 = sbr.rel target = $region135
                $region140: #{mha_forward.3} parent=132 // loop_exit
                  _
                %s674 = ssub.s32 16, 1
                loop: start=0, step=1, limit=1
                $region141: #{mha_forward.3} parent=132 // loop_pre_header
                  _
                $region142: #{mha_forward.3} parent=132 // loop_header
                  %s676 = sphi 0, %s680
                  %p677 = scmp.ge.s32.totalorder %s676, 1
                  %s681 = sphi %s582, %s582
                  %s682 = sphi %s575, %s575
                $region143: #{mha_forward.3} parent=132 // loop_header_branch
                  %679 = sbr.rel (%p677) target = $region147
                $region144: #{mha_forward.3} parent=132 // loop_body
                  %v683 = vld [vmem:[%s681] sm:%s674]
                  %684 = vst [vmem:[%s682] sm:%s674] %v683
                  %v685 = vld [vmem:[%s681 + $0xc] sm:%s674]
                  %686 = vst [vmem:[%s682 + $0x4] sm:%s674] %v685
                  %v687 = vld [vmem:[%s681 + $0x18] sm:%s674]
                  %688 = vst [vmem:[%s682 + $0x8] sm:%s674] %v687
                  %v689 = vld [vmem:[%s681 + $0x24] sm:%s674]
                  %690 = vst [vmem:[%s682 + $0xc] sm:%s674] %v689
                  %v691 = vld [vmem:[%s681 + $0x30] sm:%s674]
                  %692 = vst [vmem:[%s682 + $0x10] sm:%s674] %v691
                  %v693 = vld [vmem:[%s681 + $0x3c] sm:%s674]
                  %694 = vst [vmem:[%s682 + $0x14] sm:%s674] %v693
                  %v695 = vld [vmem:[%s681 + $0x48] sm:%s674]
                  %696 = vst [vmem:[%s682 + $0x18] sm:%s674] %v695
                  %v697 = vld [vmem:[%s681 + $0x54] sm:%s674]
                  %698 = vst [vmem:[%s682 + $0x1c] sm:%s674] %v697
                  %v699 = vld [vmem:[%s681 + $0x60] sm:%s674]
                  %700 = vst [vmem:[%s682 + $0x20] sm:%s674] %v699
                  %v701 = vld [vmem:[%s681 + $0x6c] sm:%s674]
                  %702 = vst [vmem:[%s682 + $0x24] sm:%s674] %v701
                  %v703 = vld [vmem:[%s681 + $0x78] sm:%s674]
                  %704 = vst [vmem:[%s682 + $0x28] sm:%s674] %v703
                  %v705 = vld [vmem:[%s681 + $0x84] sm:%s674]
                  %706 = vst [vmem:[%s682 + $0x2c] sm:%s674] %v705
                  %v707 = vld [vmem:[%s681 + $0x90] sm:%s674]
                  %708 = vst [vmem:[%s682 + $0x30] sm:%s674] %v707
                  %v709 = vld [vmem:[%s681 + $0x9c] sm:%s674]
                  %710 = vst [vmem:[%s682 + $0x34] sm:%s674] %v709
                  %v711 = vld [vmem:[%s681 + $0xa8] sm:%s674]
                  %712 = vst [vmem:[%s682 + $0x38] sm:%s674] %v711
                  %v713 = vld [vmem:[%s681 + $0xb4] sm:%s674]
                  %714 = vst [vmem:[%s682 + $0x3c] sm:%s674] %v713
                  %v715 = vld [vmem:[%s681 + $0xc0] sm:%s674]
                  %716 = vst [vmem:[%s682 + $0x40] sm:%s674] %v715
                  %v717 = vld [vmem:[%s681 + $0xcc] sm:%s674]
                  %718 = vst [vmem:[%s682 + $0x44] sm:%s674] %v717
                  %v719 = vld [vmem:[%s681 + $0xd8] sm:%s674]
                  %720 = vst [vmem:[%s682 + $0x48] sm:%s674] %v719
                  %v721 = vld [vmem:[%s681 + $0xe4] sm:%s674]
                  %722 = vst [vmem:[%s682 + $0x4c] sm:%s674] %v721
                  %v723 = vld [vmem:[%s681 + $0xf0] sm:%s674]
                  %724 = vst [vmem:[%s682 + $0x50] sm:%s674] %v723
                  %v725 = vld [vmem:[%s681 + $0xfc] sm:%s674]
                  %726 = vst [vmem:[%s682 + $0x54] sm:%s674] %v725
                  %v727 = vld [vmem:[%s681 + $0x108] sm:%s674]
                  %728 = vst [vmem:[%s682 + $0x58] sm:%s674] %v727
                  %v729 = vld [vmem:[%s681 + $0x114] sm:%s674]
                  %730 = vst [vmem:[%s682 + $0x5c] sm:%s674] %v729
                  %v731 = vld [vmem:[%s681 + $0x120] sm:%s674]
                  %732 = vst [vmem:[%s682 + $0x60] sm:%s674] %v731
                  %v733 = vld [vmem:[%s681 + $0x12c] sm:%s674]
                  %734 = vst [vmem:[%s682 + $0x64] sm:%s674] %v733
                  %v735 = vld [vmem:[%s681 + $0x138] sm:%s674]
                  %736 = vst [vmem:[%s682 + $0x68] sm:%s674] %v735
                  %v737 = vld [vmem:[%s681 + $0x144] sm:%s674]
                  %738 = vst [vmem:[%s682 + $0x6c] sm:%s674] %v737
                  %v739 = vld [vmem:[%s681 + $0x150] sm:%s674]
                  %740 = vst [vmem:[%s682 + $0x70] sm:%s674] %v739
                  %v741 = vld [vmem:[%s681 + $0x15c] sm:%s674]
                  %742 = vst [vmem:[%s682 + $0x74] sm:%s674] %v741
                  %v743 = vld [vmem:[%s681 + $0x168] sm:%s674]
                  %744 = vst [vmem:[%s682 + $0x78] sm:%s674] %v743
                  %v745 = vld [vmem:[%s681 + $0x174] sm:%s674]
                  %746 = vst [vmem:[%s682 + $0x7c] sm:%s674] %v745
                $region145: #{mha_forward.3} parent=132 // loop_footer
                  %s680 = sadd.s32 1, %s676
                $region146: #{mha_forward.3} parent=132 // loop_footer_branch
                  %675 = sbr.rel target = $region142
                $region147: #{mha_forward.3} parent=132 // loop_exit
                  _
              $region133: #{mha_forward.3} parent=117 // pred_fallthru
                _
            $region118: #{mha_forward.3} parent=113 // pred_fallthru
              _
            // Predicated region
            $region119: #{mha_forward.3} parent=113 // pred_check
              _
            $region120: #{mha_forward.3} parent=113 // pred_check_branch
              %588 = sbr.rel (0) target = $region122
            $region121: #{mha_forward.3} parent=113 // pred_region
              %s590 = ssub.s32 16, 1
              loop: start=0, step=1, limit=1
              $region123: #{mha_forward.3} parent=121 // loop_pre_header
                _
              $region124: #{mha_forward.3} parent=121 // loop_header
                %s592 = sphi 0, %s596
                %p593 = scmp.ge.s32.totalorder %s592, 1
                %s597 = sphi %s582, %s582
                %s598 = sphi %s575, %s575
              $region125: #{mha_forward.3} parent=121 // loop_header_branch
                %595 = sbr.rel (%p593) target = $region129
              $region126: #{mha_forward.3} parent=121 // loop_body
                %v599 = vld [vmem:[%s597] sm:%s590]
                %600 = vst [vmem:[%s598] sm:%s590] %v599
                %v601 = vld [vmem:[%s597 + $0xc] sm:%s590]
                %602 = vst [vmem:[%s598 + $0x4] sm:%s590] %v601
                %v603 = vld [vmem:[%s597 + $0x18] sm:%s590]
                %604 = vst [vmem:[%s598 + $0x8] sm:%s590] %v603
                %v605 = vld [vmem:[%s597 + $0x24] sm:%s590]
                %606 = vst [vmem:[%s598 + $0xc] sm:%s590] %v605
                %v607 = vld [vmem:[%s597 + $0x30] sm:%s590]
                %608 = vst [vmem:[%s598 + $0x10] sm:%s590] %v607
                %v609 = vld [vmem:[%s597 + $0x3c] sm:%s590]
                %610 = vst [vmem:[%s598 + $0x14] sm:%s590] %v609
                %v611 = vld [vmem:[%s597 + $0x48] sm:%s590]
                %612 = vst [vmem:[%s598 + $0x18] sm:%s590] %v611
                %v613 = vld [vmem:[%s597 + $0x54] sm:%s590]
                %614 = vst [vmem:[%s598 + $0x1c] sm:%s590] %v613
                %v615 = vld [vmem:[%s597 + $0x60] sm:%s590]
                %616 = vst [vmem:[%s598 + $0x20] sm:%s590] %v615
                %v617 = vld [vmem:[%s597 + $0x6c] sm:%s590]
                %618 = vst [vmem:[%s598 + $0x24] sm:%s590] %v617
                %v619 = vld [vmem:[%s597 + $0x78] sm:%s590]
                %620 = vst [vmem:[%s598 + $0x28] sm:%s590] %v619
                %v621 = vld [vmem:[%s597 + $0x84] sm:%s590]
                %622 = vst [vmem:[%s598 + $0x2c] sm:%s590] %v621
                %v623 = vld [vmem:[%s597 + $0x90] sm:%s590]
                %624 = vst [vmem:[%s598 + $0x30] sm:%s590] %v623
                %v625 = vld [vmem:[%s597 + $0x9c] sm:%s590]
                %626 = vst [vmem:[%s598 + $0x34] sm:%s590] %v625
                %v627 = vld [vmem:[%s597 + $0xa8] sm:%s590]
                %628 = vst [vmem:[%s598 + $0x38] sm:%s590] %v627
                %v629 = vld [vmem:[%s597 + $0xb4] sm:%s590]
                %630 = vst [vmem:[%s598 + $0x3c] sm:%s590] %v629
                %v631 = vld [vmem:[%s597 + $0xc0] sm:%s590]
                %632 = vst [vmem:[%s598 + $0x40] sm:%s590] %v631
                %v633 = vld [vmem:[%s597 + $0xcc] sm:%s590]
                %634 = vst [vmem:[%s598 + $0x44] sm:%s590] %v633
                %v635 = vld [vmem:[%s597 + $0xd8] sm:%s590]
                %636 = vst [vmem:[%s598 + $0x48] sm:%s590] %v635
                %v637 = vld [vmem:[%s597 + $0xe4] sm:%s590]
                %638 = vst [vmem:[%s598 + $0x4c] sm:%s590] %v637
                %v639 = vld [vmem:[%s597 + $0xf0] sm:%s590]
                %640 = vst [vmem:[%s598 + $0x50] sm:%s590] %v639
                %v641 = vld [vmem:[%s597 + $0xfc] sm:%s590]
                %642 = vst [vmem:[%s598 + $0x54] sm:%s590] %v641
                %v643 = vld [vmem:[%s597 + $0x108] sm:%s590]
                %644 = vst [vmem:[%s598 + $0x58] sm:%s590] %v643
                %v645 = vld [vmem:[%s597 + $0x114] sm:%s590]
                %646 = vst [vmem:[%s598 + $0x5c] sm:%s590] %v645
                %v647 = vld [vmem:[%s597 + $0x120] sm:%s590]
                %648 = vst [vmem:[%s598 + $0x60] sm:%s590] %v647
                %v649 = vld [vmem:[%s597 + $0x12c] sm:%s590]
                %650 = vst [vmem:[%s598 + $0x64] sm:%s590] %v649
                %v651 = vld [vmem:[%s597 + $0x138] sm:%s590]
                %652 = vst [vmem:[%s598 + $0x68] sm:%s590] %v651
                %v653 = vld [vmem:[%s597 + $0x144] sm:%s590]
                %654 = vst [vmem:[%s598 + $0x6c] sm:%s590] %v653
                %v655 = vld [vmem:[%s597 + $0x150] sm:%s590]
                %656 = vst [vmem:[%s598 + $0x70] sm:%s590] %v655
                %v657 = vld [vmem:[%s597 + $0x15c] sm:%s590]
                %658 = vst [vmem:[%s598 + $0x74] sm:%s590] %v657
                %v659 = vld [vmem:[%s597 + $0x168] sm:%s590]
                %660 = vst [vmem:[%s598 + $0x78] sm:%s590] %v659
                %v661 = vld [vmem:[%s597 + $0x174] sm:%s590]
                %662 = vst [vmem:[%s598 + $0x7c] sm:%s590] %v661
              $region127: #{mha_forward.3} parent=121 // loop_footer
                %s596 = sadd.s32 1, %s592
              $region128: #{mha_forward.3} parent=121 // loop_footer_branch
                %591 = sbr.rel target = $region124
              $region129: #{mha_forward.3} parent=121 // loop_exit
                _
            $region122: #{mha_forward.3} parent=113 // pred_fallthru
              _
          $region114: #{mha_forward.3} parent=109 // pred_fallthru
            _
          %747 = vnop
        $region110: #{mha_forward.3} parent=23 // pred_fallthru
          _
      $region24: #{mha_forward.3} parent=5 // pred_fallthru
        _
      %p748 = scmp.le.s32.totalorder 1, %s14
      %p749 = scmp.lt.s32.totalorder %s14, 3
      %p750 = pnand %p748, %p749
      %p751 = pneg %p750
      // Predicated region
      $region148: #{mha_forward.3} parent=5 // pred_check
        _
      $region149: #{mha_forward.3} parent=5 // pred_check_branch
        %753 = sbr.rel (%p750) target = $region151
      $region150: #{mha_forward.3} parent=5 // pred_region
        %s754 = ssub.s32 %s14, 1
        %s755 = sand.u32 %s48, 1
        %s756 = sand.u32 %s48, 1
        %s757 = smul.addr %s756, 128
        %s758 = scalar_lea.vmem [#allocation5], %s757
        // Predicated region
        $region152: #{mha_forward.3} parent=150 // pred_check
          %p759 = pneg %p61
        $region153: #{mha_forward.3} parent=150 // pred_check_branch
          %761 = sbr.rel (%p759) target = $region155
        $region154: #{mha_forward.3} parent=150 // pred_region
          _
        $region155: #{mha_forward.3} parent=150 // pred_fallthru
          _
        %s762 = sand.u32 %s76, 1
        %s763 = sand.u32 %s76, 1
        %s764 = smul.addr %s763, 128
        %s765 = scalar_lea.vmem [#allocation6], %s764
        // Predicated region
        $region156: #{mha_forward.3} parent=150 // pred_check
          %p766 = pneg %p89
        $region157: #{mha_forward.3} parent=150 // pred_check_branch
          %768 = sbr.rel (%p766) target = $region159
        $region158: #{mha_forward.3} parent=150 // pred_region
          _
        $region159: #{mha_forward.3} parent=150 // pred_fallthru
          _
        %s769 = sand.u32 %s104, 1
        %s770 = sand.u32 %s104, 1
        %s771 = smul.addr %s770, 128
        %s772 = scalar_lea.vmem [#allocation7], %s771
        // Predicated region
        $region160: #{mha_forward.3} parent=150 // pred_check
          %p773 = pneg %p117
        $region161: #{mha_forward.3} parent=150 // pred_check_branch
          %775 = sbr.rel (%p773) target = $region163
        $region162: #{mha_forward.3} parent=150 // pred_region
          _
        $region163: #{mha_forward.3} parent=150 // pred_fallthru
          _
        %s776 = sand.u32 %s48, 1
        %s777 = sand.u32 %s48, 1
        %s778 = smul.addr %s777, 128
        %s779 = scalar_lea.vmem [#allocation5], %s778
        %p780 = pneg %p61
        %p781 = pneg %p58
        %s782 = sand.u32 %s76, 1
        %s783 = sand.u32 %s76, 1
        %s784 = smul.addr %s783, 128
        %s785 = scalar_lea.vmem [#allocation6], %s784
        %p786 = pneg %p89
        %p787 = pneg %p86
        %s788 = sand.u32 %s104, 1
        %s789 = sand.u32 %s104, 1
        %s790 = smul.addr %s789, 128
        %s791 = scalar_lea.vmem [#allocation7], %s790
        %p792 = pneg %p117
        %p793 = pneg %p114
        %p794 = pneg %p138
        %p795 = pneg %p135
        %p796 = pneg %p159
        %p797 = pneg %p156
        %p798 = pneg %p187
        %p799 = pneg %p184
        %s800 = sand.u32 %s174, 1
        %s801 = scalar_lea.sflag [#allocation9], %s800
        %s802 = sand.u32 %s174, 1
        %s803 = smul.addr %s802, 128
        %s804 = scalar_lea.vmem [#allocation8], %s803
        %s805 = smul.u32 32, %s25
        %s806 = smul.u32 32, %s26
        %s807 = smul.u32 32, %s26
        %s808 = smul.u32 32, %s25
        %p809 = scmp.eq.s32.totalorder %s26, 0
        // Predicated region
        $region164: #{mha_forward.3} parent=150 // pred_check
          %p810 = pneg %p809
        $region165: #{mha_forward.3} parent=150 // pred_check_branch
          %812 = sbr.rel (%p810) target = $region167
        $region166: #{mha_forward.3} parent=150 // pred_region
          %813 = vst [vmem:[#allocation2] sm:$0xff] -inf
          %814 = vst [vmem:[#allocation2 + $0x8] sm:$0xff] -inf
          %815 = vst [vmem:[#allocation2 + $0x10] sm:$0xff] -inf
          %816 = vst [vmem:[#allocation2 + $0x18] sm:$0xff] -inf
          %817 = vst [vmem:[#allocation2 + $0x20] sm:$0xff] -inf
          %818 = vst [vmem:[#allocation2 + $0x28] sm:$0xff] -inf
          %819 = vst [vmem:[#allocation2 + $0x30] sm:$0xff] -inf
          %820 = vst [vmem:[#allocation2 + $0x38] sm:$0xff] -inf
          %821 = vst [vmem:[#allocation2 + $0x40] sm:$0xff] -inf
          %822 = vst [vmem:[#allocation2 + $0x48] sm:$0xff] -inf
          %823 = vst [vmem:[#allocation2 + $0x50] sm:$0xff] -inf
          %824 = vst [vmem:[#allocation2 + $0x58] sm:$0xff] -inf
          %825 = vst [vmem:[#allocation2 + $0x60] sm:$0xff] -inf
          %826 = vst [vmem:[#allocation2 + $0x68] sm:$0xff] -inf
          %827 = vst [vmem:[#allocation2 + $0x70] sm:$0xff] -inf
          %828 = vst [vmem:[#allocation2 + $0x78] sm:$0xff] -inf
          %829 = vst [vmem:[#allocation2 + $0x80] sm:$0xff] -inf
          %830 = vst [vmem:[#allocation2 + $0x88] sm:$0xff] -inf
          %831 = vst [vmem:[#allocation2 + $0x90] sm:$0xff] -inf
          %832 = vst [vmem:[#allocation2 + $0x98] sm:$0xff] -inf
          %833 = vst [vmem:[#allocation2 + $0xa0] sm:$0xff] -inf
          %834 = vst [vmem:[#allocation2 + $0xa8] sm:$0xff] -inf
          %835 = vst [vmem:[#allocation2 + $0xb0] sm:$0xff] -inf
          %836 = vst [vmem:[#allocation2 + $0xb8] sm:$0xff] -inf
          %837 = vst [vmem:[#allocation2 + $0xc0] sm:$0xff] -inf
          %838 = vst [vmem:[#allocation2 + $0xc8] sm:$0xff] -inf
          %839 = vst [vmem:[#allocation2 + $0xd0] sm:$0xff] -inf
          %840 = vst [vmem:[#allocation2 + $0xd8] sm:$0xff] -inf
          %841 = vst [vmem:[#allocation2 + $0xe0] sm:$0xff] -inf
          %842 = vst [vmem:[#allocation2 + $0xe8] sm:$0xff] -inf
          %843 = vst [vmem:[#allocation2 + $0xf0] sm:$0xff] -inf
          %844 = vst [vmem:[#allocation2 + $0xf8] sm:$0xff] -inf
          %845 = vst [vmem:[#allocation3] sm:$0xff] 0.0
          %846 = vst [vmem:[#allocation3 + $0x8] sm:$0xff] 0.0
          %847 = vst [vmem:[#allocation3 + $0x10] sm:$0xff] 0.0
          %848 = vst [vmem:[#allocation3 + $0x18] sm:$0xff] 0.0
          %849 = vst [vmem:[#allocation3 + $0x20] sm:$0xff] 0.0
          %850 = vst [vmem:[#allocation3 + $0x28] sm:$0xff] 0.0
          %851 = vst [vmem:[#allocation3 + $0x30] sm:$0xff] 0.0
          %852 = vst [vmem:[#allocation3 + $0x38] sm:$0xff] 0.0
          %853 = vst [vmem:[#allocation3 + $0x40] sm:$0xff] 0.0
          %854 = vst [vmem:[#allocation3 + $0x48] sm:$0xff] 0.0
          %855 = vst [vmem:[#allocation3 + $0x50] sm:$0xff] 0.0
          %856 = vst [vmem:[#allocation3 + $0x58] sm:$0xff] 0.0
          %857 = vst [vmem:[#allocation3 + $0x60] sm:$0xff] 0.0
          %858 = vst [vmem:[#allocation3 + $0x68] sm:$0xff] 0.0
          %859 = vst [vmem:[#allocation3 + $0x70] sm:$0xff] 0.0
          %860 = vst [vmem:[#allocation3 + $0x78] sm:$0xff] 0.0
          %861 = vst [vmem:[#allocation3 + $0x80] sm:$0xff] 0.0
          %862 = vst [vmem:[#allocation3 + $0x88] sm:$0xff] 0.0
          %863 = vst [vmem:[#allocation3 + $0x90] sm:$0xff] 0.0
          %864 = vst [vmem:[#allocation3 + $0x98] sm:$0xff] 0.0
          %865 = vst [vmem:[#allocation3 + $0xa0] sm:$0xff] 0.0
          %866 = vst [vmem:[#allocation3 + $0xa8] sm:$0xff] 0.0
          %867 = vst [vmem:[#allocation3 + $0xb0] sm:$0xff] 0.0
          %868 = vst [vmem:[#allocation3 + $0xb8] sm:$0xff] 0.0
          %869 = vst [vmem:[#allocation3 + $0xc0] sm:$0xff] 0.0
          %870 = vst [vmem:[#allocation3 + $0xc8] sm:$0xff] 0.0
          %871 = vst [vmem:[#allocation3 + $0xd0] sm:$0xff] 0.0
          %872 = vst [vmem:[#allocation3 + $0xd8] sm:$0xff] 0.0
          %873 = vst [vmem:[#allocation3 + $0xe0] sm:$0xff] 0.0
          %874 = vst [vmem:[#allocation3 + $0xe8] sm:$0xff] 0.0
          %875 = vst [vmem:[#allocation3 + $0xf0] sm:$0xff] 0.0
          %876 = vst [vmem:[#allocation3 + $0xf8] sm:$0xff] 0.0
          %877 = vst [vmem:[#allocation4] sm:$0xff] 0.0
          %878 = vst [vmem:[#allocation4 + $0x8] sm:$0xff] 0.0
          %879 = vst [vmem:[#allocation4 + $0x10] sm:$0xff] 0.0
          %880 = vst [vmem:[#allocation4 + $0x18] sm:$0xff] 0.0
          %881 = vst [vmem:[#allocation4 + $0x20] sm:$0xff] 0.0
          %882 = vst [vmem:[#allocation4 + $0x28] sm:$0xff] 0.0
          %883 = vst [vmem:[#allocation4 + $0x30] sm:$0xff] 0.0
          %884 = vst [vmem:[#allocation4 + $0x38] sm:$0xff] 0.0
          %885 = vst [vmem:[#allocation4 + $0x40] sm:$0xff] 0.0
          %886 = vst [vmem:[#allocation4 + $0x48] sm:$0xff] 0.0
          %887 = vst [vmem:[#allocation4 + $0x50] sm:$0xff] 0.0
          %888 = vst [vmem:[#allocation4 + $0x58] sm:$0xff] 0.0
          %889 = vst [vmem:[#allocation4 + $0x60] sm:$0xff] 0.0
          %890 = vst [vmem:[#allocation4 + $0x68] sm:$0xff] 0.0
          %891 = vst [vmem:[#allocation4 + $0x70] sm:$0xff] 0.0
          %892 = vst [vmem:[#allocation4 + $0x78] sm:$0xff] 0.0
          %893 = vst [vmem:[#allocation4 + $0x80] sm:$0xff] 0.0
          %894 = vst [vmem:[#allocation4 + $0x88] sm:$0xff] 0.0
          %895 = vst [vmem:[#allocation4 + $0x90] sm:$0xff] 0.0
          %896 = vst [vmem:[#allocation4 + $0x98] sm:$0xff] 0.0
          %897 = vst [vmem:[#allocation4 + $0xa0] sm:$0xff] 0.0
          %898 = vst [vmem:[#allocation4 + $0xa8] sm:$0xff] 0.0
          %899 = vst [vmem:[#allocation4 + $0xb0] sm:$0xff] 0.0
          %900 = vst [vmem:[#allocation4 + $0xb8] sm:$0xff] 0.0
          %901 = vst [vmem:[#allocation4 + $0xc0] sm:$0xff] 0.0
          %902 = vst [vmem:[#allocation4 + $0xc8] sm:$0xff] 0.0
          %903 = vst [vmem:[#allocation4 + $0xd0] sm:$0xff] 0.0
          %904 = vst [vmem:[#allocation4 + $0xd8] sm:$0xff] 0.0
          %905 = vst [vmem:[#allocation4 + $0xe0] sm:$0xff] 0.0
          %906 = vst [vmem:[#allocation4 + $0xe8] sm:$0xff] 0.0
          %907 = vst [vmem:[#allocation4 + $0xf0] sm:$0xff] 0.0
          %908 = vst [vmem:[#allocation4 + $0xf8] sm:$0xff] 0.0
        $region167: #{mha_forward.3} parent=150 // pred_fallthru
          _
        %v909 = vld [vmem:[%s758] sm:$0xf]
        %v910 = vld [vmem:[%s758 + $0x4] sm:$0xf]
        %v911 = vld [vmem:[%s758 + $0x8] sm:$0xf]
        %v912 = vld [vmem:[%s758 + $0xc] sm:$0xf]
        %v913 = vld [vmem:[%s758 + $0x10] sm:$0xf]
        %v914 = vld [vmem:[%s758 + $0x14] sm:$0xf]
        %v915 = vld [vmem:[%s758 + $0x18] sm:$0xf]
        %v916 = vld [vmem:[%s758 + $0x1c] sm:$0xf]
        %v917 = vld [vmem:[%s758 + $0x20] sm:$0xf]
        %v918 = vld [vmem:[%s758 + $0x24] sm:$0xf]
        %v919 = vld [vmem:[%s758 + $0x28] sm:$0xf]
        %v920 = vld [vmem:[%s758 + $0x2c] sm:$0xf]
        %v921 = vld [vmem:[%s758 + $0x30] sm:$0xf]
        %v922 = vld [vmem:[%s758 + $0x34] sm:$0xf]
        %v923 = vld [vmem:[%s758 + $0x38] sm:$0xf]
        %v924 = vld [vmem:[%s758 + $0x3c] sm:$0xf]
        %v925 = vld [vmem:[%s758 + $0x40] sm:$0xf]
        %v926 = vld [vmem:[%s758 + $0x44] sm:$0xf]
        %v927 = vld [vmem:[%s758 + $0x48] sm:$0xf]
        %v928 = vld [vmem:[%s758 + $0x4c] sm:$0xf]
        %v929 = vld [vmem:[%s758 + $0x50] sm:$0xf]
        %v930 = vld [vmem:[%s758 + $0x54] sm:$0xf]
        %v931 = vld [vmem:[%s758 + $0x58] sm:$0xf]
        %v932 = vld [vmem:[%s758 + $0x5c] sm:$0xf]
        %v933 = vld [vmem:[%s758 + $0x60] sm:$0xf]
        %v934 = vld [vmem:[%s758 + $0x64] sm:$0xf]
        %v935 = vld [vmem:[%s758 + $0x68] sm:$0xf]
        %v936 = vld [vmem:[%s758 + $0x6c] sm:$0xf]
        %v937 = vld [vmem:[%s758 + $0x70] sm:$0xf]
        %v938 = vld [vmem:[%s758 + $0x74] sm:$0xf]
        %v939 = vld [vmem:[%s758 + $0x78] sm:$0xf]
        %v940 = vld [vmem:[%s758 + $0x7c] sm:$0xf]
        %v941 = vld [vmem:[%s765] sm:$0xf]
        %v942 = vld [vmem:[%s765 + $0x4] sm:$0xf]
        %v943 = vld [vmem:[%s765 + $0x8] sm:$0xf]
        %v944 = vld [vmem:[%s765 + $0xc] sm:$0xf]
        %v945 = vld [vmem:[%s765 + $0x10] sm:$0xf]
        %v946 = vld [vmem:[%s765 + $0x14] sm:$0xf]
        %v947 = vld [vmem:[%s765 + $0x18] sm:$0xf]
        %v948 = vld [vmem:[%s765 + $0x1c] sm:$0xf]
        %v949 = vld [vmem:[%s765 + $0x20] sm:$0xf]
        %v950 = vld [vmem:[%s765 + $0x24] sm:$0xf]
        %v951 = vld [vmem:[%s765 + $0x28] sm:$0xf]
        %v952 = vld [vmem:[%s765 + $0x2c] sm:$0xf]
        %v953 = vld [vmem:[%s765 + $0x30] sm:$0xf]
        %v954 = vld [vmem:[%s765 + $0x34] sm:$0xf]
        %v955 = vld [vmem:[%s765 + $0x38] sm:$0xf]
        %v956 = vld [vmem:[%s765 + $0x3c] sm:$0xf]
        %v957 = vld [vmem:[%s765 + $0x40] sm:$0xf]
        %v958 = vld [vmem:[%s765 + $0x44] sm:$0xf]
        %v959 = vld [vmem:[%s765 + $0x48] sm:$0xf]
        %v960 = vld [vmem:[%s765 + $0x4c] sm:$0xf]
        %v961 = vld [vmem:[%s765 + $0x50] sm:$0xf]
        %v962 = vld [vmem:[%s765 + $0x54] sm:$0xf]
        %v963 = vld [vmem:[%s765 + $0x58] sm:$0xf]
        %v964 = vld [vmem:[%s765 + $0x5c] sm:$0xf]
        %v965 = vld [vmem:[%s765 + $0x60] sm:$0xf]
        %v966 = vld [vmem:[%s765 + $0x64] sm:$0xf]
        %v967 = vld [vmem:[%s765 + $0x68] sm:$0xf]
        %v968 = vld [vmem:[%s765 + $0x6c] sm:$0xf]
        %v969 = vld [vmem:[%s765 + $0x70] sm:$0xf]
        %v970 = vld [vmem:[%s765 + $0x74] sm:$0xf]
        %v971 = vld [vmem:[%s765 + $0x78] sm:$0xf]
        %v972 = vld [vmem:[%s765 + $0x7c] sm:$0xf]
        %v973 = vld [vmem:[%s772] sm:$0xf]
        %v974 = vld [vmem:[%s772 + $0x4] sm:$0xf]
        %v975 = vld [vmem:[%s772 + $0x8] sm:$0xf]
        %v976 = vld [vmem:[%s772 + $0xc] sm:$0xf]
        %v977 = vld [vmem:[%s772 + $0x10] sm:$0xf]
        %v978 = vld [vmem:[%s772 + $0x14] sm:$0xf]
        %v979 = vld [vmem:[%s772 + $0x18] sm:$0xf]
        %v980 = vld [vmem:[%s772 + $0x1c] sm:$0xf]
        %v981 = vld [vmem:[%s772 + $0x20] sm:$0xf]
        %v982 = vld [vmem:[%s772 + $0x24] sm:$0xf]
        %v983 = vld [vmem:[%s772 + $0x28] sm:$0xf]
        %v984 = vld [vmem:[%s772 + $0x2c] sm:$0xf]
        %v985 = vld [vmem:[%s772 + $0x30] sm:$0xf]
        %v986 = vld [vmem:[%s772 + $0x34] sm:$0xf]
        %v987 = vld [vmem:[%s772 + $0x38] sm:$0xf]
        %v988 = vld [vmem:[%s772 + $0x3c] sm:$0xf]
        %v989 = vld [vmem:[%s772 + $0x40] sm:$0xf]
        %v990 = vld [vmem:[%s772 + $0x44] sm:$0xf]
        %v991 = vld [vmem:[%s772 + $0x48] sm:$0xf]
        %v992 = vld [vmem:[%s772 + $0x4c] sm:$0xf]
        %v993 = vld [vmem:[%s772 + $0x50] sm:$0xf]
        %v994 = vld [vmem:[%s772 + $0x54] sm:$0xf]
        %v995 = vld [vmem:[%s772 + $0x58] sm:$0xf]
        %v996 = vld [vmem:[%s772 + $0x5c] sm:$0xf]
        %v997 = vld [vmem:[%s772 + $0x60] sm:$0xf]
        %v998 = vld [vmem:[%s772 + $0x64] sm:$0xf]
        %v999 = vld [vmem:[%s772 + $0x68] sm:$0xf]
        %v1000 = vld [vmem:[%s772 + $0x6c] sm:$0xf]
        %v1001 = vld [vmem:[%s772 + $0x70] sm:$0xf]
        %v1002 = vld [vmem:[%s772 + $0x74] sm:$0xf]
        %v1003 = vld [vmem:[%s772 + $0x78] sm:$0xf]
        %v1004 = vld [vmem:[%s772 + $0x7c] sm:$0xf]
        %v1005 = vld [vmem:[#allocation2] sm:$0xff]
        %v1006 = vld [vmem:[#allocation2 + $0x8] sm:$0xff]
        %v1007 = vld [vmem:[#allocation2 + $0x10] sm:$0xff]
        %v1008 = vld [vmem:[#allocation2 + $0x18] sm:$0xff]
        %v1009 = vld [vmem:[#allocation2 + $0x20] sm:$0xff]
        %v1010 = vld [vmem:[#allocation2 + $0x28] sm:$0xff]
        %v1011 = vld [vmem:[#allocation2 + $0x30] sm:$0xff]
        %v1012 = vld [vmem:[#allocation2 + $0x38] sm:$0xff]
        %v1013 = vld [vmem:[#allocation2 + $0x40] sm:$0xff]
        %v1014 = vld [vmem:[#allocation2 + $0x48] sm:$0xff]
        %v1015 = vld [vmem:[#allocation2 + $0x50] sm:$0xff]
        %v1016 = vld [vmem:[#allocation2 + $0x58] sm:$0xff]
        %v1017 = vld [vmem:[#allocation2 + $0x60] sm:$0xff]
        %v1018 = vld [vmem:[#allocation2 + $0x68] sm:$0xff]
        %v1019 = vld [vmem:[#allocation2 + $0x70] sm:$0xff]
        %v1020 = vld [vmem:[#allocation2 + $0x78] sm:$0xff]
        %v1021 = vld [vmem:[#allocation2 + $0x80] sm:$0xff]
        %v1022 = vld [vmem:[#allocation2 + $0x88] sm:$0xff]
        %v1023 = vld [vmem:[#allocation2 + $0x90] sm:$0xff]
        %v1024 = vld [vmem:[#allocation2 + $0x98] sm:$0xff]
        %v1025 = vld [vmem:[#allocation2 + $0xa0] sm:$0xff]
        %v1026 = vld [vmem:[#allocation2 + $0xa8] sm:$0xff]
        %v1027 = vld [vmem:[#allocation2 + $0xb0] sm:$0xff]
        %v1028 = vld [vmem:[#allocation2 + $0xb8] sm:$0xff]
        %v1029 = vld [vmem:[#allocation2 + $0xc0] sm:$0xff]
        %v1030 = vld [vmem:[#allocation2 + $0xc8] sm:$0xff]
        %v1031 = vld [vmem:[#allocation2 + $0xd0] sm:$0xff]
        %v1032 = vld [vmem:[#allocation2 + $0xd8] sm:$0xff]
        %v1033 = vld [vmem:[#allocation2 + $0xe0] sm:$0xff]
        %v1034 = vld [vmem:[#allocation2 + $0xe8] sm:$0xff]
        %v1035 = vld [vmem:[#allocation2 + $0xf0] sm:$0xff]
        %v1036 = vld [vmem:[#allocation2 + $0xf8] sm:$0xff]
        %v1037 = vld [vmem:[#allocation3] sm:$0xff]
        %v1038 = vld [vmem:[#allocation3 + $0x8] sm:$0xff]
        %v1039 = vld [vmem:[#allocation3 + $0x10] sm:$0xff]
        %v1040 = vld [vmem:[#allocation3 + $0x18] sm:$0xff]
        %v1041 = vld [vmem:[#allocation3 + $0x20] sm:$0xff]
        %v1042 = vld [vmem:[#allocation3 + $0x28] sm:$0xff]
        %v1043 = vld [vmem:[#allocation3 + $0x30] sm:$0xff]
        %v1044 = vld [vmem:[#allocation3 + $0x38] sm:$0xff]
        %v1045 = vld [vmem:[#allocation3 + $0x40] sm:$0xff]
        %v1046 = vld [vmem:[#allocation3 + $0x48] sm:$0xff]
        %v1047 = vld [vmem:[#allocation3 + $0x50] sm:$0xff]
        %v1048 = vld [vmem:[#allocation3 + $0x58] sm:$0xff]
        %v1049 = vld [vmem:[#allocation3 + $0x60] sm:$0xff]
        %v1050 = vld [vmem:[#allocation3 + $0x68] sm:$0xff]
        %v1051 = vld [vmem:[#allocation3 + $0x70] sm:$0xff]
        %v1052 = vld [vmem:[#allocation3 + $0x78] sm:$0xff]
        %v1053 = vld [vmem:[#allocation3 + $0x80] sm:$0xff]
        %v1054 = vld [vmem:[#allocation3 + $0x88] sm:$0xff]
        %v1055 = vld [vmem:[#allocation3 + $0x90] sm:$0xff]
        %v1056 = vld [vmem:[#allocation3 + $0x98] sm:$0xff]
        %v1057 = vld [vmem:[#allocation3 + $0xa0] sm:$0xff]
        %v1058 = vld [vmem:[#allocation3 + $0xa8] sm:$0xff]
        %v1059 = vld [vmem:[#allocation3 + $0xb0] sm:$0xff]
        %v1060 = vld [vmem:[#allocation3 + $0xb8] sm:$0xff]
        %v1061 = vld [vmem:[#allocation3 + $0xc0] sm:$0xff]
        %v1062 = vld [vmem:[#allocation3 + $0xc8] sm:$0xff]
        %v1063 = vld [vmem:[#allocation3 + $0xd0] sm:$0xff]
        %v1064 = vld [vmem:[#allocation3 + $0xd8] sm:$0xff]
        %v1065 = vld [vmem:[#allocation3 + $0xe0] sm:$0xff]
        %v1066 = vld [vmem:[#allocation3 + $0xe8] sm:$0xff]
        %v1067 = vld [vmem:[#allocation3 + $0xf0] sm:$0xff]
        %v1068 = vld [vmem:[#allocation3 + $0xf8] sm:$0xff]
        %v1069 = vld [vmem:[#allocation4] sm:$0xff]
        %v1070 = vld [vmem:[#allocation4 + $0x8] sm:$0xff]
        %v1071 = vld [vmem:[#allocation4 + $0x10] sm:$0xff]
        %v1072 = vld [vmem:[#allocation4 + $0x18] sm:$0xff]
        %v1073 = vld [vmem:[#allocation4 + $0x20] sm:$0xff]
        %v1074 = vld [vmem:[#allocation4 + $0x28] sm:$0xff]
        %v1075 = vld [vmem:[#allocation4 + $0x30] sm:$0xff]
        %v1076 = vld [vmem:[#allocation4 + $0x38] sm:$0xff]
        %v1077 = vld [vmem:[#allocation4 + $0x40] sm:$0xff]
        %v1078 = vld [vmem:[#allocation4 + $0x48] sm:$0xff]
        %v1079 = vld [vmem:[#allocation4 + $0x50] sm:$0xff]
        %v1080 = vld [vmem:[#allocation4 + $0x58] sm:$0xff]
        %v1081 = vld [vmem:[#allocation4 + $0x60] sm:$0xff]
        %v1082 = vld [vmem:[#allocation4 + $0x68] sm:$0xff]
        %v1083 = vld [vmem:[#allocation4 + $0x70] sm:$0xff]
        %v1084 = vld [vmem:[#allocation4 + $0x78] sm:$0xff]
        %v1085 = vld [vmem:[#allocation4 + $0x80] sm:$0xff]
        %v1086 = vld [vmem:[#allocation4 + $0x88] sm:$0xff]
        %v1087 = vld [vmem:[#allocation4 + $0x90] sm:$0xff]
        %v1088 = vld [vmem:[#allocation4 + $0x98] sm:$0xff]
        %v1089 = vld [vmem:[#allocation4 + $0xa0] sm:$0xff]
        %v1090 = vld [vmem:[#allocation4 + $0xa8] sm:$0xff]
        %v1091 = vld [vmem:[#allocation4 + $0xb0] sm:$0xff]
        %v1092 = vld [vmem:[#allocation4 + $0xb8] sm:$0xff]
        %v1093 = vld [vmem:[#allocation4 + $0xc0] sm:$0xff]
        %v1094 = vld [vmem:[#allocation4 + $0xc8] sm:$0xff]
        %v1095 = vld [vmem:[#allocation4 + $0xd0] sm:$0xff]
        %v1096 = vld [vmem:[#allocation4 + $0xd8] sm:$0xff]
        %v1097 = vld [vmem:[#allocation4 + $0xe0] sm:$0xff]
        %v1098 = vld [vmem:[#allocation4 + $0xe8] sm:$0xff]
        %v1099 = vld [vmem:[#allocation4 + $0xf0] sm:$0xff]
        %v1100 = vld [vmem:[#allocation4 + $0xf8] sm:$0xff]
        %v1133 = vunpack.c.l.b16 %v909
        %v1134 = vunpack.c.l.b16 %v910
        %v1135 = vunpack.c.l.b16 %v911
        %v1136 = vunpack.c.l.b16 %v912
        %v1137 = vunpack.c.l.b16 %v913
        %v1138 = vunpack.c.l.b16 %v914
        %v1139 = vunpack.c.l.b16 %v915
        %v1140 = vunpack.c.l.b16 %v916
        %v1141 = vunpack.c.l.b16 %v917
        %v1142 = vunpack.c.l.b16 %v918
        %v1143 = vunpack.c.l.b16 %v919
        %v1144 = vunpack.c.l.b16 %v920
        %v1145 = vunpack.c.l.b16 %v921
        %v1146 = vunpack.c.l.b16 %v922
        %v1147 = vunpack.c.l.b16 %v923
        %v1148 = vunpack.c.l.b16 %v924
        %v1149 = vunpack.c.l.b16 %v925
        %v1150 = vunpack.c.l.b16 %v926
        %v1151 = vunpack.c.l.b16 %v927
        %v1152 = vunpack.c.l.b16 %v928
        %v1153 = vunpack.c.l.b16 %v929
        %v1154 = vunpack.c.l.b16 %v930
        %v1155 = vunpack.c.l.b16 %v931
        %v1156 = vunpack.c.l.b16 %v932
        %v1157 = vunpack.c.l.b16 %v933
        %v1158 = vunpack.c.l.b16 %v934
        %v1159 = vunpack.c.l.b16 %v935
        %v1160 = vunpack.c.l.b16 %v936
        %v1161 = vunpack.c.l.b16 %v937
        %v1162 = vunpack.c.l.b16 %v938
        %v1163 = vunpack.c.l.b16 %v939
        %v1164 = vunpack.c.l.b16 %v940
        %v1165 = vpack.c.b16 %v1134, %v1133
        %v1166 = vpack.c.b16 %v1136, %v1135
        %v1167 = vpack.c.b16 %v1138, %v1137
        %v1168 = vpack.c.b16 %v1140, %v1139
        %v1169 = vpack.c.b16 %v1142, %v1141
        %v1170 = vpack.c.b16 %v1144, %v1143
        %v1171 = vpack.c.b16 %v1146, %v1145
        %v1172 = vpack.c.b16 %v1148, %v1147
        %v1173 = vpack.c.b16 %v1150, %v1149
        %v1174 = vpack.c.b16 %v1152, %v1151
        %v1175 = vpack.c.b16 %v1154, %v1153
        %v1176 = vpack.c.b16 %v1156, %v1155
        %v1177 = vpack.c.b16 %v1158, %v1157
        %v1178 = vpack.c.b16 %v1160, %v1159
        %v1179 = vpack.c.b16 %v1162, %v1161
        %v1180 = vpack.c.b16 %v1164, %v1163
        %v1213 = vunpack.c.l.b16 %v941
        %v1214 = vunpack.c.l.b16 %v942
        %v1215 = vunpack.c.l.b16 %v943
        %v1216 = vunpack.c.l.b16 %v944
        %v1217 = vunpack.c.l.b16 %v945
        %v1218 = vunpack.c.l.b16 %v946
        %v1219 = vunpack.c.l.b16 %v947
        %v1220 = vunpack.c.l.b16 %v948
        %v1221 = vunpack.c.l.b16 %v949
        %v1222 = vunpack.c.l.b16 %v950
        %v1223 = vunpack.c.l.b16 %v951
        %v1224 = vunpack.c.l.b16 %v952
        %v1225 = vunpack.c.l.b16 %v953
        %v1226 = vunpack.c.l.b16 %v954
        %v1227 = vunpack.c.l.b16 %v955
        %v1228 = vunpack.c.l.b16 %v956
        %v1229 = vunpack.c.l.b16 %v957
        %v1230 = vunpack.c.l.b16 %v958
        %v1231 = vunpack.c.l.b16 %v959
        %v1232 = vunpack.c.l.b16 %v960
        %v1233 = vunpack.c.l.b16 %v961
        %v1234 = vunpack.c.l.b16 %v962
        %v1235 = vunpack.c.l.b16 %v963
        %v1236 = vunpack.c.l.b16 %v964
        %v1237 = vunpack.c.l.b16 %v965
        %v1238 = vunpack.c.l.b16 %v966
        %v1239 = vunpack.c.l.b16 %v967
        %v1240 = vunpack.c.l.b16 %v968
        %v1241 = vunpack.c.l.b16 %v969
        %v1242 = vunpack.c.l.b16 %v970
        %v1243 = vunpack.c.l.b16 %v971
        %v1244 = vunpack.c.l.b16 %v972
        %v1245 = vpack.c.b16 %v1214, %v1213
        %v1246 = vpack.c.b16 %v1216, %v1215
        %v1247 = vpack.c.b16 %v1218, %v1217
        %v1248 = vpack.c.b16 %v1220, %v1219
        %v1249 = vpack.c.b16 %v1222, %v1221
        %v1250 = vpack.c.b16 %v1224, %v1223
        %v1251 = vpack.c.b16 %v1226, %v1225
        %v1252 = vpack.c.b16 %v1228, %v1227
        %v1253 = vpack.c.b16 %v1230, %v1229
        %v1254 = vpack.c.b16 %v1232, %v1231
        %v1255 = vpack.c.b16 %v1234, %v1233
        %v1256 = vpack.c.b16 %v1236, %v1235
        %v1257 = vpack.c.b16 %v1238, %v1237
        %v1258 = vpack.c.b16 %v1240, %v1239
        %v1259 = vpack.c.b16 %v1242, %v1241
        %v1260 = vpack.c.b16 %v1244, %v1243
        %vm1261 = vcmask 261120
        %v1263 = vsel %vm1261, %v1165, 0
        %v1266 = vsel %vm1261, %v1166, 0
        %v1269 = vsel %vm1261, %v1167, 0
        %v1272 = vsel %vm1261, %v1168, 0
        %v1275 = vsel %vm1261, %v1169, 0
        %v1278 = vsel %vm1261, %v1170, 0
        %v1281 = vsel %vm1261, %v1171, 0
        %v1284 = vsel %vm1261, %v1172, 0
        %v1287 = vsel %vm1261, %v1173, 0
        %v1290 = vsel %vm1261, %v1174, 0
        %v1293 = vsel %vm1261, %v1175, 0
        %v1296 = vsel %vm1261, %v1176, 0
        %v1299 = vsel %vm1261, %v1177, 0
        %v1302 = vsel %vm1261, %v1178, 0
        %v1305 = vsel %vm1261, %v1179, 0
        %v1308 = vsel %vm1261, %v1180, 0
        %v1311 = vsel %vm1261, %v1245, 0
        %v1314 = vsel %vm1261, %v1246, 0
        %v1317 = vsel %vm1261, %v1247, 0
        %v1320 = vsel %vm1261, %v1248, 0
        %v1323 = vsel %vm1261, %v1249, 0
        %v1326 = vsel %vm1261, %v1250, 0
        %v1329 = vsel %vm1261, %v1251, 0
        %v1332 = vsel %vm1261, %v1252, 0
        %v1335 = vsel %vm1261, %v1253, 0
        %v1338 = vsel %vm1261, %v1254, 0
        %v1341 = vsel %vm1261, %v1255, 0
        %v1344 = vsel %vm1261, %v1256, 0
        %v1347 = vsel %vm1261, %v1257, 0
        %v1350 = vsel %vm1261, %v1258, 0
        %v1353 = vsel %vm1261, %v1259, 0
        %v1356 = vsel %vm1261, %v1260, 0
        %1358 = vmatpush.bf16.xpose.msra.mxu0 %v1332
        %1359 = vmatpush.bf16.xpose.msra.mxu0 %v1329
        %1360 = vmatpush.bf16.xpose.msra.mxu0 %v1326
        %1361 = vmatpush.bf16.xpose.msra.mxu0 %v1323
        %1362 = vmatpush.bf16.xpose.msra.mxu0 %v1320
        %1363 = vmatpush.bf16.xpose.msra.mxu0 %v1317
        %1364 = vmatpush.bf16.xpose.msra.mxu0 %v1314
        %1365 = vmatpush.bf16.xpose.msra.mxu0 %v1311
        %1366 = vmatmul.bf16.gmra.mxu0 %v1263
        %v1367 = vpop.f32.mrf.mxu0
        %v1368 = vadd.f32 0.0, %v1367
        %v1369 = vpop.f32.mrf.mxu0
        %v1370 = vadd.f32 0.0, %v1369
        %1371 = vmatmul.bf16.gmra.mxu0 %v1266
        %v1372 = vpop.f32.mrf.mxu0
        %v1373 = vadd.f32 0.0, %v1372
        %v1374 = vpop.f32.mrf.mxu0
        %v1375 = vadd.f32 0.0, %v1374
        %1376 = vmatmul.bf16.gmra.mxu0 %v1269
        %v1377 = vpop.f32.mrf.mxu0
        %v1378 = vadd.f32 0.0, %v1377
        %v1379 = vpop.f32.mrf.mxu0
        %v1380 = vadd.f32 0.0, %v1379
        %1381 = vmatmul.bf16.gmra.mxu0 %v1272
        %v1382 = vpop.f32.mrf.mxu0
        %v1383 = vadd.f32 0.0, %v1382
        %v1384 = vpop.f32.mrf.mxu0
        %v1385 = vadd.f32 0.0, %v1384
        %1386 = vmatmul.bf16.gmra.mxu0 %v1275
        %v1387 = vpop.f32.mrf.mxu0
        %v1388 = vadd.f32 0.0, %v1387
        %v1389 = vpop.f32.mrf.mxu0
        %v1390 = vadd.f32 0.0, %v1389
        %1391 = vmatmul.bf16.gmra.mxu0 %v1278
        %v1392 = vpop.f32.mrf.mxu0
        %v1393 = vadd.f32 0.0, %v1392
        %v1394 = vpop.f32.mrf.mxu0
        %v1395 = vadd.f32 0.0, %v1394
        %1396 = vmatmul.bf16.gmra.mxu0 %v1281
        %v1397 = vpop.f32.mrf.mxu0
        %v1398 = vadd.f32 0.0, %v1397
        %v1399 = vpop.f32.mrf.mxu0
        %v1400 = vadd.f32 0.0, %v1399
        %1401 = vmatmul.bf16.gmra.mxu0 %v1284
        %v1402 = vpop.f32.mrf.mxu0
        %v1403 = vadd.f32 0.0, %v1402
        %v1404 = vpop.f32.mrf.mxu0
        %v1405 = vadd.f32 0.0, %v1404
        %1406 = vmatmul.bf16.gmra.mxu0 %v1287
        %v1407 = vpop.f32.mrf.mxu0
        %v1408 = vadd.f32 0.0, %v1407
        %v1409 = vpop.f32.mrf.mxu0
        %v1410 = vadd.f32 0.0, %v1409
        %1411 = vmatmul.bf16.gmra.mxu0 %v1290
        %v1412 = vpop.f32.mrf.mxu0
        %v1413 = vadd.f32 0.0, %v1412
        %v1414 = vpop.f32.mrf.mxu0
        %v1415 = vadd.f32 0.0, %v1414
        %1416 = vmatmul.bf16.gmra.mxu0 %v1293
        %v1417 = vpop.f32.mrf.mxu0
        %v1418 = vadd.f32 0.0, %v1417
        %v1419 = vpop.f32.mrf.mxu0
        %v1420 = vadd.f32 0.0, %v1419
        %1421 = vmatmul.bf16.gmra.mxu0 %v1296
        %v1422 = vpop.f32.mrf.mxu0
        %v1423 = vadd.f32 0.0, %v1422
        %v1424 = vpop.f32.mrf.mxu0
        %v1425 = vadd.f32 0.0, %v1424
        %1426 = vmatmul.bf16.gmra.mxu0 %v1299
        %v1427 = vpop.f32.mrf.mxu0
        %v1428 = vadd.f32 0.0, %v1427
        %v1429 = vpop.f32.mrf.mxu0
        %v1430 = vadd.f32 0.0, %v1429
        %1431 = vmatmul.bf16.gmra.mxu0 %v1302
        %v1432 = vpop.f32.mrf.mxu0
        %v1433 = vadd.f32 0.0, %v1432
        %v1434 = vpop.f32.mrf.mxu0
        %v1435 = vadd.f32 0.0, %v1434
        %1436 = vmatmul.bf16.gmra.mxu0 %v1305
        %v1437 = vpop.f32.mrf.mxu0
        %v1438 = vadd.f32 0.0, %v1437
        %v1439 = vpop.f32.mrf.mxu0
        %v1440 = vadd.f32 0.0, %v1439
        %1441 = vmatmul.bf16.gmra.mxu0 %v1308
        %v1442 = vpop.f32.mrf.mxu0
        %v1443 = vadd.f32 0.0, %v1442
        %v1444 = vpop.f32.mrf.mxu0
        %v1445 = vadd.f32 0.0, %v1444
        %1446 = vdwg.mxu0
        %1447 = vmatpush.bf16.xpose.msra.mxu0 %v1356
        %1448 = vmatpush.bf16.xpose.msra.mxu0 %v1353
        %1449 = vmatpush.bf16.xpose.msra.mxu0 %v1350
        %1450 = vmatpush.bf16.xpose.msra.mxu0 %v1347
        %1451 = vmatpush.bf16.xpose.msra.mxu0 %v1344
        %1452 = vmatpush.bf16.xpose.msra.mxu0 %v1341
        %1453 = vmatpush.bf16.xpose.msra.mxu0 %v1338
        %1454 = vmatpush.bf16.xpose.msra.mxu0 %v1335
        %1455 = vmatmul.bf16.gmra.mxu0 %v1263
        %v1456 = vpop.f32.mrf.mxu0
        %v1457 = vadd.f32 0.0, %v1456
        %v1458 = vpop.f32.mrf.mxu0
        %v1459 = vadd.f32 0.0, %v1458
        %1460 = vmatmul.bf16.gmra.mxu0 %v1266
        %v1461 = vpop.f32.mrf.mxu0
        %v1462 = vadd.f32 0.0, %v1461
        %v1463 = vpop.f32.mrf.mxu0
        %v1464 = vadd.f32 0.0, %v1463
        %1465 = vmatmul.bf16.gmra.mxu0 %v1269
        %v1466 = vpop.f32.mrf.mxu0
        %v1467 = vadd.f32 0.0, %v1466
        %v1468 = vpop.f32.mrf.mxu0
        %v1469 = vadd.f32 0.0, %v1468
        %1470 = vmatmul.bf16.gmra.mxu0 %v1272
        %v1471 = vpop.f32.mrf.mxu0
        %v1472 = vadd.f32 0.0, %v1471
        %v1473 = vpop.f32.mrf.mxu0
        %v1474 = vadd.f32 0.0, %v1473
        %1475 = vmatmul.bf16.gmra.mxu0 %v1275
        %v1476 = vpop.f32.mrf.mxu0
        %v1477 = vadd.f32 0.0, %v1476
        %v1478 = vpop.f32.mrf.mxu0
        %v1479 = vadd.f32 0.0, %v1478
        %1480 = vmatmul.bf16.gmra.mxu0 %v1278
        %v1481 = vpop.f32.mrf.mxu0
        %v1482 = vadd.f32 0.0, %v1481
        %v1483 = vpop.f32.mrf.mxu0
        %v1484 = vadd.f32 0.0, %v1483
        %1485 = vmatmul.bf16.gmra.mxu0 %v1281
        %v1486 = vpop.f32.mrf.mxu0
        %v1487 = vadd.f32 0.0, %v1486
        %v1488 = vpop.f32.mrf.mxu0
        %v1489 = vadd.f32 0.0, %v1488
        %1490 = vmatmul.bf16.gmra.mxu0 %v1284
        %v1491 = vpop.f32.mrf.mxu0
        %v1492 = vadd.f32 0.0, %v1491
        %v1493 = vpop.f32.mrf.mxu0
        %v1494 = vadd.f32 0.0, %v1493
        %1495 = vmatmul.bf16.gmra.mxu0 %v1287
        %v1496 = vpop.f32.mrf.mxu0
        %v1497 = vadd.f32 0.0, %v1496
        %v1498 = vpop.f32.mrf.mxu0
        %v1499 = vadd.f32 0.0, %v1498
        %1500 = vmatmul.bf16.gmra.mxu0 %v1290
        %v1501 = vpop.f32.mrf.mxu0
        %v1502 = vadd.f32 0.0, %v1501
        %v1503 = vpop.f32.mrf.mxu0
        %v1504 = vadd.f32 0.0, %v1503
        %1505 = vmatmul.bf16.gmra.mxu0 %v1293
        %v1506 = vpop.f32.mrf.mxu0
        %v1507 = vadd.f32 0.0, %v1506
        %v1508 = vpop.f32.mrf.mxu0
        %v1509 = vadd.f32 0.0, %v1508
        %1510 = vmatmul.bf16.gmra.mxu0 %v1296
        %v1511 = vpop.f32.mrf.mxu0
        %v1512 = vadd.f32 0.0, %v1511
        %v1513 = vpop.f32.mrf.mxu0
        %v1514 = vadd.f32 0.0, %v1513
        %1515 = vmatmul.bf16.gmra.mxu0 %v1299
        %v1516 = vpop.f32.mrf.mxu0
        %v1517 = vadd.f32 0.0, %v1516
        %v1518 = vpop.f32.mrf.mxu0
        %v1519 = vadd.f32 0.0, %v1518
        %1520 = vmatmul.bf16.gmra.mxu0 %v1302
        %v1521 = vpop.f32.mrf.mxu0
        %v1522 = vadd.f32 0.0, %v1521
        %v1523 = vpop.f32.mrf.mxu0
        %v1524 = vadd.f32 0.0, %v1523
        %1525 = vmatmul.bf16.gmra.mxu0 %v1305
        %v1526 = vpop.f32.mrf.mxu0
        %v1527 = vadd.f32 0.0, %v1526
        %v1528 = vpop.f32.mrf.mxu0
        %v1529 = vadd.f32 0.0, %v1528
        %1530 = vmatmul.bf16.gmra.mxu0 %v1308
        %v1531 = vpop.f32.mrf.mxu0
        %v1532 = vadd.f32 0.0, %v1531
        %v1533 = vpop.f32.mrf.mxu0
        %v1534 = vadd.f32 0.0, %v1533
        %1535 = vdwg.mxu0
        %v1536 = vmax.f32 %v1368, %v1457
        %1537 = vmax.xlane.f32.xlu0 %v1536
        %v1538 = vpop.xlane.xlu0 %1537
        %v1539 = vmax.f32 %v1370, %v1459
        %1540 = vmax.xlane.f32.xlu0 %v1539
        %v1541 = vpop.xlane.xlu0 %1540
        %v1542 = vmax.f32 %v1373, %v1462
        %1543 = vmax.xlane.f32.xlu0 %v1542
        %v1544 = vpop.xlane.xlu0 %1543
        %v1545 = vmax.f32 %v1375, %v1464
        %1546 = vmax.xlane.f32.xlu0 %v1545
        %v1547 = vpop.xlane.xlu0 %1546
        %v1548 = vmax.f32 %v1378, %v1467
        %1549 = vmax.xlane.f32.xlu0 %v1548
        %v1550 = vpop.xlane.xlu0 %1549
        %v1551 = vmax.f32 %v1380, %v1469
        %1552 = vmax.xlane.f32.xlu0 %v1551
        %v1553 = vpop.xlane.xlu0 %1552
        %v1554 = vmax.f32 %v1383, %v1472
        %1555 = vmax.xlane.f32.xlu0 %v1554
        %v1556 = vpop.xlane.xlu0 %1555
        %v1557 = vmax.f32 %v1385, %v1474
        %1558 = vmax.xlane.f32.xlu0 %v1557
        %v1559 = vpop.xlane.xlu0 %1558
        %v1560 = vmax.f32 %v1388, %v1477
        %1561 = vmax.xlane.f32.xlu0 %v1560
        %v1562 = vpop.xlane.xlu0 %1561
        %v1563 = vmax.f32 %v1390, %v1479
        %1564 = vmax.xlane.f32.xlu0 %v1563
        %v1565 = vpop.xlane.xlu0 %1564
        %v1566 = vmax.f32 %v1393, %v1482
        %1567 = vmax.xlane.f32.xlu0 %v1566
        %v1568 = vpop.xlane.xlu0 %1567
        %v1569 = vmax.f32 %v1395, %v1484
        %1570 = vmax.xlane.f32.xlu0 %v1569
        %v1571 = vpop.xlane.xlu0 %1570
        %v1572 = vmax.f32 %v1398, %v1487
        %1573 = vmax.xlane.f32.xlu0 %v1572
        %v1574 = vpop.xlane.xlu0 %1573
        %v1575 = vmax.f32 %v1400, %v1489
        %1576 = vmax.xlane.f32.xlu0 %v1575
        %v1577 = vpop.xlane.xlu0 %1576
        %v1578 = vmax.f32 %v1403, %v1492
        %1579 = vmax.xlane.f32.xlu0 %v1578
        %v1580 = vpop.xlane.xlu0 %1579
        %v1581 = vmax.f32 %v1405, %v1494
        %1582 = vmax.xlane.f32.xlu0 %v1581
        %v1583 = vpop.xlane.xlu0 %1582
        %v1584 = vmax.f32 %v1408, %v1497
        %1585 = vmax.xlane.f32.xlu0 %v1584
        %v1586 = vpop.xlane.xlu0 %1585
        %v1587 = vmax.f32 %v1410, %v1499
        %1588 = vmax.xlane.f32.xlu0 %v1587
        %v1589 = vpop.xlane.xlu0 %1588
        %v1590 = vmax.f32 %v1413, %v1502
        %1591 = vmax.xlane.f32.xlu0 %v1590
        %v1592 = vpop.xlane.xlu0 %1591
        %v1593 = vmax.f32 %v1415, %v1504
        %1594 = vmax.xlane.f32.xlu0 %v1593
        %v1595 = vpop.xlane.xlu0 %1594
        %v1596 = vmax.f32 %v1418, %v1507
        %1597 = vmax.xlane.f32.xlu0 %v1596
        %v1598 = vpop.xlane.xlu0 %1597
        %v1599 = vmax.f32 %v1420, %v1509
        %1600 = vmax.xlane.f32.xlu0 %v1599
        %v1601 = vpop.xlane.xlu0 %1600
        %v1602 = vmax.f32 %v1423, %v1512
        %1603 = vmax.xlane.f32.xlu0 %v1602
        %v1604 = vpop.xlane.xlu0 %1603
        %v1605 = vmax.f32 %v1425, %v1514
        %1606 = vmax.xlane.f32.xlu0 %v1605
        %v1607 = vpop.xlane.xlu0 %1606
        %v1608 = vmax.f32 %v1428, %v1517
        %1609 = vmax.xlane.f32.xlu0 %v1608
        %v1610 = vpop.xlane.xlu0 %1609
        %v1611 = vmax.f32 %v1430, %v1519
        %1612 = vmax.xlane.f32.xlu0 %v1611
        %v1613 = vpop.xlane.xlu0 %1612
        %v1614 = vmax.f32 %v1433, %v1522
        %1615 = vmax.xlane.f32.xlu0 %v1614
        %v1616 = vpop.xlane.xlu0 %1615
        %v1617 = vmax.f32 %v1435, %v1524
        %1618 = vmax.xlane.f32.xlu0 %v1617
        %v1619 = vpop.xlane.xlu0 %1618
        %v1620 = vmax.f32 %v1438, %v1527
        %1621 = vmax.xlane.f32.xlu0 %v1620
        %v1622 = vpop.xlane.xlu0 %1621
        %v1623 = vmax.f32 %v1440, %v1529
        %1624 = vmax.xlane.f32.xlu0 %v1623
        %v1625 = vpop.xlane.xlu0 %1624
        %v1626 = vmax.f32 %v1443, %v1532
        %1627 = vmax.xlane.f32.xlu0 %v1626
        %v1628 = vpop.xlane.xlu0 %1627
        %v1629 = vmax.f32 %v1445, %v1534
        %1630 = vmax.xlane.f32.xlu0 %v1629
        %v1631 = vpop.xlane.xlu0 %1630
        %v1632 = vmax.f32 %v1005, %v1538
        %v1633 = vmax.f32 %v1006, %v1541
        %v1634 = vmax.f32 %v1007, %v1544
        %v1635 = vmax.f32 %v1008, %v1547
        %v1636 = vmax.f32 %v1009, %v1550
        %v1637 = vmax.f32 %v1010, %v1553
        %v1638 = vmax.f32 %v1011, %v1556
        %v1639 = vmax.f32 %v1012, %v1559
        %v1640 = vmax.f32 %v1013, %v1562
        %v1641 = vmax.f32 %v1014, %v1565
        %v1642 = vmax.f32 %v1015, %v1568
        %v1643 = vmax.f32 %v1016, %v1571
        %v1644 = vmax.f32 %v1017, %v1574
        %v1645 = vmax.f32 %v1018, %v1577
        %v1646 = vmax.f32 %v1019, %v1580
        %v1647 = vmax.f32 %v1020, %v1583
        %v1648 = vmax.f32 %v1021, %v1586
        %v1649 = vmax.f32 %v1022, %v1589
        %v1650 = vmax.f32 %v1023, %v1592
        %v1651 = vmax.f32 %v1024, %v1595
        %v1652 = vmax.f32 %v1025, %v1598
        %v1653 = vmax.f32 %v1026, %v1601
        %v1654 = vmax.f32 %v1027, %v1604
        %v1655 = vmax.f32 %v1028, %v1607
        %v1656 = vmax.f32 %v1029, %v1610
        %v1657 = vmax.f32 %v1030, %v1613
        %v1658 = vmax.f32 %v1031, %v1616
        %v1659 = vmax.f32 %v1032, %v1619
        %v1660 = vmax.f32 %v1033, %v1622
        %v1661 = vmax.f32 %v1034, %v1625
        %v1662 = vmax.f32 %v1035, %v1628
        %v1663 = vmax.f32 %v1036, %v1631
        %v1664 = vsub.f32 %v1005, %v1632
        %v1665 = vsub.f32 %v1006, %v1633
        %v1666 = vsub.f32 %v1007, %v1634
        %v1667 = vsub.f32 %v1008, %v1635
        %v1668 = vsub.f32 %v1009, %v1636
        %v1669 = vsub.f32 %v1010, %v1637
        %v1670 = vsub.f32 %v1011, %v1638
        %v1671 = vsub.f32 %v1012, %v1639
        %v1672 = vsub.f32 %v1013, %v1640
        %v1673 = vsub.f32 %v1014, %v1641
        %v1674 = vsub.f32 %v1015, %v1642
        %v1675 = vsub.f32 %v1016, %v1643
        %v1676 = vsub.f32 %v1017, %v1644
        %v1677 = vsub.f32 %v1018, %v1645
        %v1678 = vsub.f32 %v1019, %v1646
        %v1679 = vsub.f32 %v1020, %v1647
        %v1680 = vsub.f32 %v1021, %v1648
        %v1681 = vsub.f32 %v1022, %v1649
        %v1682 = vsub.f32 %v1023, %v1650
        %v1683 = vsub.f32 %v1024, %v1651
        %v1684 = vsub.f32 %v1025, %v1652
        %v1685 = vsub.f32 %v1026, %v1653
        %v1686 = vsub.f32 %v1027, %v1654
        %v1687 = vsub.f32 %v1028, %v1655
        %v1688 = vsub.f32 %v1029, %v1656
        %v1689 = vsub.f32 %v1030, %v1657
        %v1690 = vsub.f32 %v1031, %v1658
        %v1691 = vsub.f32 %v1032, %v1659
        %v1692 = vsub.f32 %v1033, %v1660
        %v1693 = vsub.f32 %v1034, %v1661
        %v1694 = vsub.f32 %v1035, %v1662
        %v1695 = vsub.f32 %v1036, %v1663
        %v1696 = vpow.pop %v1664
        %v1697 = vpow.pop %v1665
        %v1698 = vpow.pop %v1666
        %v1699 = vpow.pop %v1667
        %v1700 = vpow.pop %v1668
        %v1701 = vpow.pop %v1669
        %v1702 = vpow.pop %v1670
        %v1703 = vpow.pop %v1671
        %v1704 = vpow.pop %v1672
        %v1705 = vpow.pop %v1673
        %v1706 = vpow.pop %v1674
        %v1707 = vpow.pop %v1675
        %v1708 = vpow.pop %v1676
        %v1709 = vpow.pop %v1677
        %v1710 = vpow.pop %v1678
        %v1711 = vpow.pop %v1679
        %v1712 = vpow.pop %v1680
        %v1713 = vpow.pop %v1681
        %v1714 = vpow.pop %v1682
        %v1715 = vpow.pop %v1683
        %v1716 = vpow.pop %v1684
        %v1717 = vpow.pop %v1685
        %v1718 = vpow.pop %v1686
        %v1719 = vpow.pop %v1687
        %v1720 = vpow.pop %v1688
        %v1721 = vpow.pop %v1689
        %v1722 = vpow.pop %v1690
        %v1723 = vpow.pop %v1691
        %v1724 = vpow.pop %v1692
        %v1725 = vpow.pop %v1693
        %v1726 = vpow.pop %v1694
        %v1727 = vpow.pop %v1695
        %1729 = vset.pattern.permute.xlu0 0
        %1730 = vperm.xlu0 %1729, %v1632
        %v1731 = vpop.permute.xlu0 %1730
        %1734 = vset.pattern.permute.xlu0 0
        %1735 = vperm.xlu0 %1734, %v1633
        %v1736 = vpop.permute.xlu0 %1735
        %1739 = vset.pattern.permute.xlu0 0
        %1740 = vperm.xlu0 %1739, %v1634
        %v1741 = vpop.permute.xlu0 %1740
        %1744 = vset.pattern.permute.xlu0 0
        %1745 = vperm.xlu0 %1744, %v1635
        %v1746 = vpop.permute.xlu0 %1745
        %1749 = vset.pattern.permute.xlu0 0
        %1750 = vperm.xlu0 %1749, %v1636
        %v1751 = vpop.permute.xlu0 %1750
        %1754 = vset.pattern.permute.xlu0 0
        %1755 = vperm.xlu0 %1754, %v1637
        %v1756 = vpop.permute.xlu0 %1755
        %1759 = vset.pattern.permute.xlu0 0
        %1760 = vperm.xlu0 %1759, %v1638
        %v1761 = vpop.permute.xlu0 %1760
        %1764 = vset.pattern.permute.xlu0 0
        %1765 = vperm.xlu0 %1764, %v1639
        %v1766 = vpop.permute.xlu0 %1765
        %1769 = vset.pattern.permute.xlu0 0
        %1770 = vperm.xlu0 %1769, %v1640
        %v1771 = vpop.permute.xlu0 %1770
        %1774 = vset.pattern.permute.xlu0 0
        %1775 = vperm.xlu0 %1774, %v1641
        %v1776 = vpop.permute.xlu0 %1775
        %1779 = vset.pattern.permute.xlu0 0
        %1780 = vperm.xlu0 %1779, %v1642
        %v1781 = vpop.permute.xlu0 %1780
        %1784 = vset.pattern.permute.xlu0 0
        %1785 = vperm.xlu0 %1784, %v1643
        %v1786 = vpop.permute.xlu0 %1785
        %1789 = vset.pattern.permute.xlu0 0
        %1790 = vperm.xlu0 %1789, %v1644
        %v1791 = vpop.permute.xlu0 %1790
        %1794 = vset.pattern.permute.xlu0 0
        %1795 = vperm.xlu0 %1794, %v1645
        %v1796 = vpop.permute.xlu0 %1795
        %1799 = vset.pattern.permute.xlu0 0
        %1800 = vperm.xlu0 %1799, %v1646
        %v1801 = vpop.permute.xlu0 %1800
        %1804 = vset.pattern.permute.xlu0 0
        %1805 = vperm.xlu0 %1804, %v1647
        %v1806 = vpop.permute.xlu0 %1805
        %1809 = vset.pattern.permute.xlu0 0
        %1810 = vperm.xlu0 %1809, %v1648
        %v1811 = vpop.permute.xlu0 %1810
        %1814 = vset.pattern.permute.xlu0 0
        %1815 = vperm.xlu0 %1814, %v1649
        %v1816 = vpop.permute.xlu0 %1815
        %1819 = vset.pattern.permute.xlu0 0
        %1820 = vperm.xlu0 %1819, %v1650
        %v1821 = vpop.permute.xlu0 %1820
        %1824 = vset.pattern.permute.xlu0 0
        %1825 = vperm.xlu0 %1824, %v1651
        %v1826 = vpop.permute.xlu0 %1825
        %1829 = vset.pattern.permute.xlu0 0
        %1830 = vperm.xlu0 %1829, %v1652
        %v1831 = vpop.permute.xlu0 %1830
        %1834 = vset.pattern.permute.xlu0 0
        %1835 = vperm.xlu0 %1834, %v1653
        %v1836 = vpop.permute.xlu0 %1835
        %1839 = vset.pattern.permute.xlu0 0
        %1840 = vperm.xlu0 %1839, %v1654
        %v1841 = vpop.permute.xlu0 %1840
        %1844 = vset.pattern.permute.xlu0 0
        %1845 = vperm.xlu0 %1844, %v1655
        %v1846 = vpop.permute.xlu0 %1845
        %1849 = vset.pattern.permute.xlu0 0
        %1850 = vperm.xlu0 %1849, %v1656
        %v1851 = vpop.permute.xlu0 %1850
        %1854 = vset.pattern.permute.xlu0 0
        %1855 = vperm.xlu0 %1854, %v1657
        %v1856 = vpop.permute.xlu0 %1855
        %1859 = vset.pattern.permute.xlu0 0
        %1860 = vperm.xlu0 %1859, %v1658
        %v1861 = vpop.permute.xlu0 %1860
        %1864 = vset.pattern.permute.xlu0 0
        %1865 = vperm.xlu0 %1864, %v1659
        %v1866 = vpop.permute.xlu0 %1865
        %1869 = vset.pattern.permute.xlu0 0
        %1870 = vperm.xlu0 %1869, %v1660
        %v1871 = vpop.permute.xlu0 %1870
        %1874 = vset.pattern.permute.xlu0 0
        %1875 = vperm.xlu0 %1874, %v1661
        %v1876 = vpop.permute.xlu0 %1875
        %1879 = vset.pattern.permute.xlu0 0
        %1880 = vperm.xlu0 %1879, %v1662
        %v1881 = vpop.permute.xlu0 %1880
        %1884 = vset.pattern.permute.xlu0 0
        %1885 = vperm.xlu0 %1884, %v1663
        %v1886 = vpop.permute.xlu0 %1885
        %v1888 = vsub.f32 %v1368, %v1731
        %v1889 = vsub.f32 %v1457, %v1731
        %v1890 = vsub.f32 %v1370, %v1736
        %v1891 = vsub.f32 %v1459, %v1736
        %v1892 = vsub.f32 %v1373, %v1741
        %v1893 = vsub.f32 %v1462, %v1741
        %v1894 = vsub.f32 %v1375, %v1746
        %v1895 = vsub.f32 %v1464, %v1746
        %v1896 = vsub.f32 %v1378, %v1751
        %v1897 = vsub.f32 %v1467, %v1751
        %v1898 = vsub.f32 %v1380, %v1756
        %v1899 = vsub.f32 %v1469, %v1756
        %v1900 = vsub.f32 %v1383, %v1761
        %v1901 = vsub.f32 %v1472, %v1761
        %v1902 = vsub.f32 %v1385, %v1766
        %v1903 = vsub.f32 %v1474, %v1766
        %v1904 = vsub.f32 %v1388, %v1771
        %v1905 = vsub.f32 %v1477, %v1771
        %v1906 = vsub.f32 %v1390, %v1776
        %v1907 = vsub.f32 %v1479, %v1776
        %v1908 = vsub.f32 %v1393, %v1781
        %v1909 = vsub.f32 %v1482, %v1781
        %v1910 = vsub.f32 %v1395, %v1786
        %v1911 = vsub.f32 %v1484, %v1786
        %v1912 = vsub.f32 %v1398, %v1791
        %v1913 = vsub.f32 %v1487, %v1791
        %v1914 = vsub.f32 %v1400, %v1796
        %v1915 = vsub.f32 %v1489, %v1796
        %v1916 = vsub.f32 %v1403, %v1801
        %v1917 = vsub.f32 %v1492, %v1801
        %v1918 = vsub.f32 %v1405, %v1806
        %v1919 = vsub.f32 %v1494, %v1806
        %v1920 = vsub.f32 %v1408, %v1811
        %v1921 = vsub.f32 %v1497, %v1811
        %v1922 = vsub.f32 %v1410, %v1816
        %v1923 = vsub.f32 %v1499, %v1816
        %v1924 = vsub.f32 %v1413, %v1821
        %v1925 = vsub.f32 %v1502, %v1821
        %v1926 = vsub.f32 %v1415, %v1826
        %v1927 = vsub.f32 %v1504, %v1826
        %v1928 = vsub.f32 %v1418, %v1831
        %v1929 = vsub.f32 %v1507, %v1831
        %v1930 = vsub.f32 %v1420, %v1836
        %v1931 = vsub.f32 %v1509, %v1836
        %v1932 = vsub.f32 %v1423, %v1841
        %v1933 = vsub.f32 %v1512, %v1841
        %v1934 = vsub.f32 %v1425, %v1846
        %v1935 = vsub.f32 %v1514, %v1846
        %v1936 = vsub.f32 %v1428, %v1851
        %v1937 = vsub.f32 %v1517, %v1851
        %v1938 = vsub.f32 %v1430, %v1856
        %v1939 = vsub.f32 %v1519, %v1856
        %v1940 = vsub.f32 %v1433, %v1861
        %v1941 = vsub.f32 %v1522, %v1861
        %v1942 = vsub.f32 %v1435, %v1866
        %v1943 = vsub.f32 %v1524, %v1866
        %v1944 = vsub.f32 %v1438, %v1871
        %v1945 = vsub.f32 %v1527, %v1871
        %v1946 = vsub.f32 %v1440, %v1876
        %v1947 = vsub.f32 %v1529, %v1876
        %v1948 = vsub.f32 %v1443, %v1881
        %v1949 = vsub.f32 %v1532, %v1881
        %v1950 = vsub.f32 %v1445, %v1886
        %v1951 = vsub.f32 %v1534, %v1886
        %v1952 = vpow.pop %v1888
        %v1953 = vpow.pop %v1889
        %v1954 = vpow.pop %v1890
        %v1955 = vpow.pop %v1891
        %v1956 = vpow.pop %v1892
        %v1957 = vpow.pop %v1893
        %v1958 = vpow.pop %v1894
        %v1959 = vpow.pop %v1895
        %v1960 = vpow.pop %v1896
        %v1961 = vpow.pop %v1897
        %v1962 = vpow.pop %v1898
        %v1963 = vpow.pop %v1899
        %v1964 = vpow.pop %v1900
        %v1965 = vpow.pop %v1901
        %v1966 = vpow.pop %v1902
        %v1967 = vpow.pop %v1903
        %v1968 = vpow.pop %v1904
        %v1969 = vpow.pop %v1905
        %v1970 = vpow.pop %v1906
        %v1971 = vpow.pop %v1907
        %v1972 = vpow.pop %v1908
        %v1973 = vpow.pop %v1909
        %v1974 = vpow.pop %v1910
        %v1975 = vpow.pop %v1911
        %v1976 = vpow.pop %v1912
        %v1977 = vpow.pop %v1913
        %v1978 = vpow.pop %v1914
        %v1979 = vpow.pop %v1915
        %v1980 = vpow.pop %v1916
        %v1981 = vpow.pop %v1917
        %v1982 = vpow.pop %v1918
        %v1983 = vpow.pop %v1919
        %v1984 = vpow.pop %v1920
        %v1985 = vpow.pop %v1921
        %v1986 = vpow.pop %v1922
        %v1987 = vpow.pop %v1923
        %v1988 = vpow.pop %v1924
        %v1989 = vpow.pop %v1925
        %v1990 = vpow.pop %v1926
        %v1991 = vpow.pop %v1927
        %v1992 = vpow.pop %v1928
        %v1993 = vpow.pop %v1929
        %v1994 = vpow.pop %v1930
        %v1995 = vpow.pop %v1931
        %v1996 = vpow.pop %v1932
        %v1997 = vpow.pop %v1933
        %v1998 = vpow.pop %v1934
        %v1999 = vpow.pop %v1935
        %v2000 = vpow.pop %v1936
        %v2001 = vpow.pop %v1937
        %v2002 = vpow.pop %v1938
        %v2003 = vpow.pop %v1939
        %v2004 = vpow.pop %v1940
        %v2005 = vpow.pop %v1941
        %v2006 = vpow.pop %v1942
        %v2007 = vpow.pop %v1943
        %v2008 = vpow.pop %v1944
        %v2009 = vpow.pop %v1945
        %v2010 = vpow.pop %v1946
        %v2011 = vpow.pop %v1947
        %v2012 = vpow.pop %v1948
        %v2013 = vpow.pop %v1949
        %v2014 = vpow.pop %v1950
        %v2015 = vpow.pop %v1951
        %v2016 = vmul.f32 %v1696, %v1037
        %v2017 = vmul.f32 %v1697, %v1038
        %v2018 = vmul.f32 %v1698, %v1039
        %v2019 = vmul.f32 %v1699, %v1040
        %v2020 = vmul.f32 %v1700, %v1041
        %v2021 = vmul.f32 %v1701, %v1042
        %v2022 = vmul.f32 %v1702, %v1043
        %v2023 = vmul.f32 %v1703, %v1044
        %v2024 = vmul.f32 %v1704, %v1045
        %v2025 = vmul.f32 %v1705, %v1046
        %v2026 = vmul.f32 %v1706, %v1047
        %v2027 = vmul.f32 %v1707, %v1048
        %v2028 = vmul.f32 %v1708, %v1049
        %v2029 = vmul.f32 %v1709, %v1050
        %v2030 = vmul.f32 %v1710, %v1051
        %v2031 = vmul.f32 %v1711, %v1052
        %v2032 = vmul.f32 %v1712, %v1053
        %v2033 = vmul.f32 %v1713, %v1054
        %v2034 = vmul.f32 %v1714, %v1055
        %v2035 = vmul.f32 %v1715, %v1056
        %v2036 = vmul.f32 %v1716, %v1057
        %v2037 = vmul.f32 %v1717, %v1058
        %v2038 = vmul.f32 %v1718, %v1059
        %v2039 = vmul.f32 %v1719, %v1060
        %v2040 = vmul.f32 %v1720, %v1061
        %v2041 = vmul.f32 %v1721, %v1062
        %v2042 = vmul.f32 %v1722, %v1063
        %v2043 = vmul.f32 %v1723, %v1064
        %v2044 = vmul.f32 %v1724, %v1065
        %v2045 = vmul.f32 %v1725, %v1066
        %v2046 = vmul.f32 %v1726, %v1067
        %v2047 = vmul.f32 %v1727, %v1068
        %v2048 = vadd.f32 %v1952, %v1953
        %2049 = vadd.xlane.f32.xlu0 %v2048
        %v2050 = vpop.xlane.xlu0 %2049
        %v2051 = vadd.f32 %v1954, %v1955
        %2052 = vadd.xlane.f32.xlu0 %v2051
        %v2053 = vpop.xlane.xlu0 %2052
        %v2054 = vadd.f32 %v1956, %v1957
        %2055 = vadd.xlane.f32.xlu0 %v2054
        %v2056 = vpop.xlane.xlu0 %2055
        %v2057 = vadd.f32 %v1958, %v1959
        %2058 = vadd.xlane.f32.xlu0 %v2057
        %v2059 = vpop.xlane.xlu0 %2058
        %v2060 = vadd.f32 %v1960, %v1961
        %2061 = vadd.xlane.f32.xlu0 %v2060
        %v2062 = vpop.xlane.xlu0 %2061
        %v2063 = vadd.f32 %v1962, %v1963
        %2064 = vadd.xlane.f32.xlu0 %v2063
        %v2065 = vpop.xlane.xlu0 %2064
        %v2066 = vadd.f32 %v1964, %v1965
        %2067 = vadd.xlane.f32.xlu0 %v2066
        %v2068 = vpop.xlane.xlu0 %2067
        %v2069 = vadd.f32 %v1966, %v1967
        %2070 = vadd.xlane.f32.xlu0 %v2069
        %v2071 = vpop.xlane.xlu0 %2070
        %v2072 = vadd.f32 %v1968, %v1969
        %2073 = vadd.xlane.f32.xlu0 %v2072
        %v2074 = vpop.xlane.xlu0 %2073
        %v2075 = vadd.f32 %v1970, %v1971
        %2076 = vadd.xlane.f32.xlu0 %v2075
        %v2077 = vpop.xlane.xlu0 %2076
        %v2078 = vadd.f32 %v1972, %v1973
        %2079 = vadd.xlane.f32.xlu0 %v2078
        %v2080 = vpop.xlane.xlu0 %2079
        %v2081 = vadd.f32 %v1974, %v1975
        %2082 = vadd.xlane.f32.xlu0 %v2081
        %v2083 = vpop.xlane.xlu0 %2082
        %v2084 = vadd.f32 %v1976, %v1977
        %2085 = vadd.xlane.f32.xlu0 %v2084
        %v2086 = vpop.xlane.xlu0 %2085
        %v2087 = vadd.f32 %v1978, %v1979
        %2088 = vadd.xlane.f32.xlu0 %v2087
        %v2089 = vpop.xlane.xlu0 %2088
        %v2090 = vadd.f32 %v1980, %v1981
        %2091 = vadd.xlane.f32.xlu0 %v2090
        %v2092 = vpop.xlane.xlu0 %2091
        %v2093 = vadd.f32 %v1982, %v1983
        %2094 = vadd.xlane.f32.xlu0 %v2093
        %v2095 = vpop.xlane.xlu0 %2094
        %v2096 = vadd.f32 %v1984, %v1985
        %2097 = vadd.xlane.f32.xlu0 %v2096
        %v2098 = vpop.xlane.xlu0 %2097
        %v2099 = vadd.f32 %v1986, %v1987
        %2100 = vadd.xlane.f32.xlu0 %v2099
        %v2101 = vpop.xlane.xlu0 %2100
        %v2102 = vadd.f32 %v1988, %v1989
        %2103 = vadd.xlane.f32.xlu0 %v2102
        %v2104 = vpop.xlane.xlu0 %2103
        %v2105 = vadd.f32 %v1990, %v1991
        %2106 = vadd.xlane.f32.xlu0 %v2105
        %v2107 = vpop.xlane.xlu0 %2106
        %v2108 = vadd.f32 %v1992, %v1993
        %2109 = vadd.xlane.f32.xlu0 %v2108
        %v2110 = vpop.xlane.xlu0 %2109
        %v2111 = vadd.f32 %v1994, %v1995
        %2112 = vadd.xlane.f32.xlu0 %v2111
        %v2113 = vpop.xlane.xlu0 %2112
        %v2114 = vadd.f32 %v1996, %v1997
        %2115 = vadd.xlane.f32.xlu0 %v2114
        %v2116 = vpop.xlane.xlu0 %2115
        %v2117 = vadd.f32 %v1998, %v1999
        %2118 = vadd.xlane.f32.xlu0 %v2117
        %v2119 = vpop.xlane.xlu0 %2118
        %v2120 = vadd.f32 %v2000, %v2001
        %2121 = vadd.xlane.f32.xlu0 %v2120
        %v2122 = vpop.xlane.xlu0 %2121
        %v2123 = vadd.f32 %v2002, %v2003
        %2124 = vadd.xlane.f32.xlu0 %v2123
        %v2125 = vpop.xlane.xlu0 %2124
        %v2126 = vadd.f32 %v2004, %v2005
        %2127 = vadd.xlane.f32.xlu0 %v2126
        %v2128 = vpop.xlane.xlu0 %2127
        %v2129 = vadd.f32 %v2006, %v2007
        %2130 = vadd.xlane.f32.xlu0 %v2129
        %v2131 = vpop.xlane.xlu0 %2130
        %v2132 = vadd.f32 %v2008, %v2009
        %2133 = vadd.xlane.f32.xlu0 %v2132
        %v2134 = vpop.xlane.xlu0 %2133
        %v2135 = vadd.f32 %v2010, %v2011
        %2136 = vadd.xlane.f32.xlu0 %v2135
        %v2137 = vpop.xlane.xlu0 %2136
        %v2138 = vadd.f32 %v2012, %v2013
        %2139 = vadd.xlane.f32.xlu0 %v2138
        %v2140 = vpop.xlane.xlu0 %2139
        %v2141 = vadd.f32 %v2014, %v2015
        %2142 = vadd.xlane.f32.xlu0 %v2141
        %v2143 = vpop.xlane.xlu0 %2142
        %v2144 = vadd.f32 %v2016, %v2050
        %v2145 = vadd.f32 %v2017, %v2053
        %v2146 = vadd.f32 %v2018, %v2056
        %v2147 = vadd.f32 %v2019, %v2059
        %v2148 = vadd.f32 %v2020, %v2062
        %v2149 = vadd.f32 %v2021, %v2065
        %v2150 = vadd.f32 %v2022, %v2068
        %v2151 = vadd.f32 %v2023, %v2071
        %v2152 = vadd.f32 %v2024, %v2074
        %v2153 = vadd.f32 %v2025, %v2077
        %v2154 = vadd.f32 %v2026, %v2080
        %v2155 = vadd.f32 %v2027, %v2083
        %v2156 = vadd.f32 %v2028, %v2086
        %v2157 = vadd.f32 %v2029, %v2089
        %v2158 = vadd.f32 %v2030, %v2092
        %v2159 = vadd.f32 %v2031, %v2095
        %v2160 = vadd.f32 %v2032, %v2098
        %v2161 = vadd.f32 %v2033, %v2101
        %v2162 = vadd.f32 %v2034, %v2104
        %v2163 = vadd.f32 %v2035, %v2107
        %v2164 = vadd.f32 %v2036, %v2110
        %v2165 = vadd.f32 %v2037, %v2113
        %v2166 = vadd.f32 %v2038, %v2116
        %v2167 = vadd.f32 %v2039, %v2119
        %v2168 = vadd.f32 %v2040, %v2122
        %v2169 = vadd.f32 %v2041, %v2125
        %v2170 = vadd.f32 %v2042, %v2128
        %v2171 = vadd.f32 %v2043, %v2131
        %v2172 = vadd.f32 %v2044, %v2134
        %v2173 = vadd.f32 %v2045, %v2137
        %v2174 = vadd.f32 %v2046, %v2140
        %v2175 = vadd.f32 %v2047, %v2143
        %2177 = vset.pattern.permute.xlu0 0
        %2178 = vperm.xlu0 %2177, %v1696
        %v2179 = vpop.permute.xlu0 %2178
        %2182 = vset.pattern.permute.xlu0 0
        %2183 = vperm.xlu0 %2182, %v1697
        %v2184 = vpop.permute.xlu0 %2183
        %2187 = vset.pattern.permute.xlu0 0
        %2188 = vperm.xlu0 %2187, %v1698
        %v2189 = vpop.permute.xlu0 %2188
        %2192 = vset.pattern.permute.xlu0 0
        %2193 = vperm.xlu0 %2192, %v1699
        %v2194 = vpop.permute.xlu0 %2193
        %2197 = vset.pattern.permute.xlu0 0
        %2198 = vperm.xlu0 %2197, %v1700
        %v2199 = vpop.permute.xlu0 %2198
        %2202 = vset.pattern.permute.xlu0 0
        %2203 = vperm.xlu0 %2202, %v1701
        %v2204 = vpop.permute.xlu0 %2203
        %2207 = vset.pattern.permute.xlu0 0
        %2208 = vperm.xlu0 %2207, %v1702
        %v2209 = vpop.permute.xlu0 %2208
        %2212 = vset.pattern.permute.xlu0 0
        %2213 = vperm.xlu0 %2212, %v1703
        %v2214 = vpop.permute.xlu0 %2213
        %2217 = vset.pattern.permute.xlu0 0
        %2218 = vperm.xlu0 %2217, %v1704
        %v2219 = vpop.permute.xlu0 %2218
        %2222 = vset.pattern.permute.xlu0 0
        %2223 = vperm.xlu0 %2222, %v1705
        %v2224 = vpop.permute.xlu0 %2223
        %2227 = vset.pattern.permute.xlu0 0
        %2228 = vperm.xlu0 %2227, %v1706
        %v2229 = vpop.permute.xlu0 %2228
        %2232 = vset.pattern.permute.xlu0 0
        %2233 = vperm.xlu0 %2232, %v1707
        %v2234 = vpop.permute.xlu0 %2233
        %2237 = vset.pattern.permute.xlu0 0
        %2238 = vperm.xlu0 %2237, %v1708
        %v2239 = vpop.permute.xlu0 %2238
        %2242 = vset.pattern.permute.xlu0 0
        %2243 = vperm.xlu0 %2242, %v1709
        %v2244 = vpop.permute.xlu0 %2243
        %2247 = vset.pattern.permute.xlu0 0
        %2248 = vperm.xlu0 %2247, %v1710
        %v2249 = vpop.permute.xlu0 %2248
        %2252 = vset.pattern.permute.xlu0 0
        %2253 = vperm.xlu0 %2252, %v1711
        %v2254 = vpop.permute.xlu0 %2253
        %2257 = vset.pattern.permute.xlu0 0
        %2258 = vperm.xlu0 %2257, %v1712
        %v2259 = vpop.permute.xlu0 %2258
        %2262 = vset.pattern.permute.xlu0 0
        %2263 = vperm.xlu0 %2262, %v1713
        %v2264 = vpop.permute.xlu0 %2263
        %2267 = vset.pattern.permute.xlu0 0
        %2268 = vperm.xlu0 %2267, %v1714
        %v2269 = vpop.permute.xlu0 %2268
        %2272 = vset.pattern.permute.xlu0 0
        %2273 = vperm.xlu0 %2272, %v1715
        %v2274 = vpop.permute.xlu0 %2273
        %2277 = vset.pattern.permute.xlu0 0
        %2278 = vperm.xlu0 %2277, %v1716
        %v2279 = vpop.permute.xlu0 %2278
        %2282 = vset.pattern.permute.xlu0 0
        %2283 = vperm.xlu0 %2282, %v1717
        %v2284 = vpop.permute.xlu0 %2283
        %2287 = vset.pattern.permute.xlu0 0
        %2288 = vperm.xlu0 %2287, %v1718
        %v2289 = vpop.permute.xlu0 %2288
        %2292 = vset.pattern.permute.xlu0 0
        %2293 = vperm.xlu0 %2292, %v1719
        %v2294 = vpop.permute.xlu0 %2293
        %2297 = vset.pattern.permute.xlu0 0
        %2298 = vperm.xlu0 %2297, %v1720
        %v2299 = vpop.permute.xlu0 %2298
        %2302 = vset.pattern.permute.xlu0 0
        %2303 = vperm.xlu0 %2302, %v1721
        %v2304 = vpop.permute.xlu0 %2303
        %2307 = vset.pattern.permute.xlu0 0
        %2308 = vperm.xlu0 %2307, %v1722
        %v2309 = vpop.permute.xlu0 %2308
        %2312 = vset.pattern.permute.xlu0 0
        %2313 = vperm.xlu0 %2312, %v1723
        %v2314 = vpop.permute.xlu0 %2313
        %2317 = vset.pattern.permute.xlu0 0
        %2318 = vperm.xlu0 %2317, %v1724
        %v2319 = vpop.permute.xlu0 %2318
        %2322 = vset.pattern.permute.xlu0 0
        %2323 = vperm.xlu0 %2322, %v1725
        %v2324 = vpop.permute.xlu0 %2323
        %2327 = vset.pattern.permute.xlu0 0
        %2328 = vperm.xlu0 %2327, %v1726
        %v2329 = vpop.permute.xlu0 %2328
        %2332 = vset.pattern.permute.xlu0 0
        %2333 = vperm.xlu0 %2332, %v1727
        %v2334 = vpop.permute.xlu0 %2333
        %v2336 = vmul.f32 %v2179, %v1069
        %v2337 = vmul.f32 %v2184, %v1070
        %v2338 = vmul.f32 %v2189, %v1071
        %v2339 = vmul.f32 %v2194, %v1072
        %v2340 = vmul.f32 %v2199, %v1073
        %v2341 = vmul.f32 %v2204, %v1074
        %v2342 = vmul.f32 %v2209, %v1075
        %v2343 = vmul.f32 %v2214, %v1076
        %v2344 = vmul.f32 %v2219, %v1077
        %v2345 = vmul.f32 %v2224, %v1078
        %v2346 = vmul.f32 %v2229, %v1079
        %v2347 = vmul.f32 %v2234, %v1080
        %v2348 = vmul.f32 %v2239, %v1081
        %v2349 = vmul.f32 %v2244, %v1082
        %v2350 = vmul.f32 %v2249, %v1083
        %v2351 = vmul.f32 %v2254, %v1084
        %v2352 = vmul.f32 %v2259, %v1085
        %v2353 = vmul.f32 %v2264, %v1086
        %v2354 = vmul.f32 %v2269, %v1087
        %v2355 = vmul.f32 %v2274, %v1088
        %v2356 = vmul.f32 %v2279, %v1089
        %v2357 = vmul.f32 %v2284, %v1090
        %v2358 = vmul.f32 %v2289, %v1091
        %v2359 = vmul.f32 %v2294, %v1092
        %v2360 = vmul.f32 %v2299, %v1093
        %v2361 = vmul.f32 %v2304, %v1094
        %v2362 = vmul.f32 %v2309, %v1095
        %v2363 = vmul.f32 %v2314, %v1096
        %v2364 = vmul.f32 %v2319, %v1097
        %v2365 = vmul.f32 %v2324, %v1098
        %v2366 = vmul.f32 %v2329, %v1099
        %v2367 = vmul.f32 %v2334, %v1100
        %v2368 = vpack.c.bf16 %v1954, %v1952
        %v2369 = vpack.c.bf16 %v1955, %v1953
        %v2370 = vpack.c.bf16 %v1958, %v1956
        %v2371 = vpack.c.bf16 %v1959, %v1957
        %v2372 = vpack.c.bf16 %v1962, %v1960
        %v2373 = vpack.c.bf16 %v1963, %v1961
        %v2374 = vpack.c.bf16 %v1966, %v1964
        %v2375 = vpack.c.bf16 %v1967, %v1965
        %v2376 = vpack.c.bf16 %v1970, %v1968
        %v2377 = vpack.c.bf16 %v1971, %v1969
        %v2378 = vpack.c.bf16 %v1974, %v1972
        %v2379 = vpack.c.bf16 %v1975, %v1973
        %v2380 = vpack.c.bf16 %v1978, %v1976
        %v2381 = vpack.c.bf16 %v1979, %v1977
        %v2382 = vpack.c.bf16 %v1982, %v1980
        %v2383 = vpack.c.bf16 %v1983, %v1981
        %v2384 = vpack.c.bf16 %v1986, %v1984
        %v2385 = vpack.c.bf16 %v1987, %v1985
        %v2386 = vpack.c.bf16 %v1990, %v1988
        %v2387 = vpack.c.bf16 %v1991, %v1989
        %v2388 = vpack.c.bf16 %v1994, %v1992
        %v2389 = vpack.c.bf16 %v1995, %v1993
        %v2390 = vpack.c.bf16 %v1998, %v1996
        %v2391 = vpack.c.bf16 %v1999, %v1997
        %v2392 = vpack.c.bf16 %v2002, %v2000
        %v2393 = vpack.c.bf16 %v2003, %v2001
        %v2394 = vpack.c.bf16 %v2006, %v2004
        %v2395 = vpack.c.bf16 %v2007, %v2005
        %v2396 = vpack.c.bf16 %v2010, %v2008
        %v2397 = vpack.c.bf16 %v2011, %v2009
        %v2398 = vpack.c.bf16 %v2014, %v2012
        %v2399 = vpack.c.bf16 %v2015, %v2013
        %v2432 = vunpack.c.l.b16 %v973
        %v2433 = vunpack.c.l.b16 %v974
        %v2434 = vunpack.c.l.b16 %v975
        %v2435 = vunpack.c.l.b16 %v976
        %v2436 = vunpack.c.l.b16 %v977
        %v2437 = vunpack.c.l.b16 %v978
        %v2438 = vunpack.c.l.b16 %v979
        %v2439 = vunpack.c.l.b16 %v980
        %v2440 = vunpack.c.l.b16 %v981
        %v2441 = vunpack.c.l.b16 %v982
        %v2442 = vunpack.c.l.b16 %v983
        %v2443 = vunpack.c.l.b16 %v984
        %v2444 = vunpack.c.l.b16 %v985
        %v2445 = vunpack.c.l.b16 %v986
        %v2446 = vunpack.c.l.b16 %v987
        %v2447 = vunpack.c.l.b16 %v988
        %v2448 = vunpack.c.l.b16 %v989
        %v2449 = vunpack.c.l.b16 %v990
        %v2450 = vunpack.c.l.b16 %v991
        %v2451 = vunpack.c.l.b16 %v992
        %v2452 = vunpack.c.l.b16 %v993
        %v2453 = vunpack.c.l.b16 %v994
        %v2454 = vunpack.c.l.b16 %v995
        %v2455 = vunpack.c.l.b16 %v996
        %v2456 = vunpack.c.l.b16 %v997
        %v2457 = vunpack.c.l.b16 %v998
        %v2458 = vunpack.c.l.b16 %v999
        %v2459 = vunpack.c.l.b16 %v1000
        %v2460 = vunpack.c.l.b16 %v1001
        %v2461 = vunpack.c.l.b16 %v1002
        %v2462 = vunpack.c.l.b16 %v1003
        %v2463 = vunpack.c.l.b16 %v1004
        %v2464 = vpack.c.b16 %v2433, %v2432
        %v2465 = vpack.c.b16 %v2435, %v2434
        %v2466 = vpack.c.b16 %v2437, %v2436
        %v2467 = vpack.c.b16 %v2439, %v2438
        %v2468 = vpack.c.b16 %v2441, %v2440
        %v2469 = vpack.c.b16 %v2443, %v2442
        %v2470 = vpack.c.b16 %v2445, %v2444
        %v2471 = vpack.c.b16 %v2447, %v2446
        %v2472 = vpack.c.b16 %v2449, %v2448
        %v2473 = vpack.c.b16 %v2451, %v2450
        %v2474 = vpack.c.b16 %v2453, %v2452
        %v2475 = vpack.c.b16 %v2455, %v2454
        %v2476 = vpack.c.b16 %v2457, %v2456
        %v2477 = vpack.c.b16 %v2459, %v2458
        %v2478 = vpack.c.b16 %v2461, %v2460
        %v2479 = vpack.c.b16 %v2463, %v2462
        %2496 = vmatpush.bf16.msra.mxu0 %v2471
        %2497 = vmatpush.bf16.msra.mxu0 %v2470
        %2498 = vmatpush.bf16.msra.mxu0 %v2469
        %2499 = vmatpush.bf16.msra.mxu0 %v2468
        %2500 = vmatpush.bf16.msra.mxu0 %v2467
        %2501 = vmatpush.bf16.msra.mxu0 %v2466
        %2502 = vmatpush.bf16.msra.mxu0 %v2465
        %2503 = vmatpush.bf16.msra.mxu0 %v2464
        %2504 = vmatmul.bf16.gmra.mxu0 %v2368
        %v2505 = vpop.f32.mrf.mxu0
        %v2506 = vadd.f32 0.0, %v2505
        %v2507 = vpop.f32.mrf.mxu0
        %v2508 = vadd.f32 0.0, %v2507
        %2509 = vmatmul.bf16.gmra.mxu0 %v2370
        %v2510 = vpop.f32.mrf.mxu0
        %v2511 = vadd.f32 0.0, %v2510
        %v2512 = vpop.f32.mrf.mxu0
        %v2513 = vadd.f32 0.0, %v2512
        %2514 = vmatmul.bf16.gmra.mxu0 %v2372
        %v2515 = vpop.f32.mrf.mxu0
        %v2516 = vadd.f32 0.0, %v2515
        %v2517 = vpop.f32.mrf.mxu0
        %v2518 = vadd.f32 0.0, %v2517
        %2519 = vmatmul.bf16.gmra.mxu0 %v2374
        %v2520 = vpop.f32.mrf.mxu0
        %v2521 = vadd.f32 0.0, %v2520
        %v2522 = vpop.f32.mrf.mxu0
        %v2523 = vadd.f32 0.0, %v2522
        %2524 = vmatmul.bf16.gmra.mxu0 %v2376
        %v2525 = vpop.f32.mrf.mxu0
        %v2526 = vadd.f32 0.0, %v2525
        %v2527 = vpop.f32.mrf.mxu0
        %v2528 = vadd.f32 0.0, %v2527
        %2529 = vmatmul.bf16.gmra.mxu0 %v2378
        %v2530 = vpop.f32.mrf.mxu0
        %v2531 = vadd.f32 0.0, %v2530
        %v2532 = vpop.f32.mrf.mxu0
        %v2533 = vadd.f32 0.0, %v2532
        %2534 = vmatmul.bf16.gmra.mxu0 %v2380
        %v2535 = vpop.f32.mrf.mxu0
        %v2536 = vadd.f32 0.0, %v2535
        %v2537 = vpop.f32.mrf.mxu0
        %v2538 = vadd.f32 0.0, %v2537
        %2539 = vmatmul.bf16.gmra.mxu0 %v2382
        %v2540 = vpop.f32.mrf.mxu0
        %v2541 = vadd.f32 0.0, %v2540
        %v2542 = vpop.f32.mrf.mxu0
        %v2543 = vadd.f32 0.0, %v2542
        %2544 = vmatmul.bf16.gmra.mxu0 %v2384
        %v2545 = vpop.f32.mrf.mxu0
        %v2546 = vadd.f32 0.0, %v2545
        %v2547 = vpop.f32.mrf.mxu0
        %v2548 = vadd.f32 0.0, %v2547
        %2549 = vmatmul.bf16.gmra.mxu0 %v2386
        %v2550 = vpop.f32.mrf.mxu0
        %v2551 = vadd.f32 0.0, %v2550
        %v2552 = vpop.f32.mrf.mxu0
        %v2553 = vadd.f32 0.0, %v2552
        %2554 = vmatmul.bf16.gmra.mxu0 %v2388
        %v2555 = vpop.f32.mrf.mxu0
        %v2556 = vadd.f32 0.0, %v2555
        %v2557 = vpop.f32.mrf.mxu0
        %v2558 = vadd.f32 0.0, %v2557
        %2559 = vmatmul.bf16.gmra.mxu0 %v2390
        %v2560 = vpop.f32.mrf.mxu0
        %v2561 = vadd.f32 0.0, %v2560
        %v2562 = vpop.f32.mrf.mxu0
        %v2563 = vadd.f32 0.0, %v2562
        %2564 = vmatmul.bf16.gmra.mxu0 %v2392
        %v2565 = vpop.f32.mrf.mxu0
        %v2566 = vadd.f32 0.0, %v2565
        %v2567 = vpop.f32.mrf.mxu0
        %v2568 = vadd.f32 0.0, %v2567
        %2569 = vmatmul.bf16.gmra.mxu0 %v2394
        %v2570 = vpop.f32.mrf.mxu0
        %v2571 = vadd.f32 0.0, %v2570
        %v2572 = vpop.f32.mrf.mxu0
        %v2573 = vadd.f32 0.0, %v2572
        %2574 = vmatmul.bf16.gmra.mxu0 %v2396
        %v2575 = vpop.f32.mrf.mxu0
        %v2576 = vadd.f32 0.0, %v2575
        %v2577 = vpop.f32.mrf.mxu0
        %v2578 = vadd.f32 0.0, %v2577
        %2579 = vmatmul.bf16.gmra.mxu0 %v2398
        %v2580 = vpop.f32.mrf.mxu0
        %v2581 = vadd.f32 0.0, %v2580
        %v2582 = vpop.f32.mrf.mxu0
        %v2583 = vadd.f32 0.0, %v2582
        %2584 = vdwg.mxu0
        %2585 = vmatpush.bf16.msra.mxu0 %v2479
        %2586 = vmatpush.bf16.msra.mxu0 %v2478
        %2587 = vmatpush.bf16.msra.mxu0 %v2477
        %2588 = vmatpush.bf16.msra.mxu0 %v2476
        %2589 = vmatpush.bf16.msra.mxu0 %v2475
        %2590 = vmatpush.bf16.msra.mxu0 %v2474
        %2591 = vmatpush.bf16.msra.mxu0 %v2473
        %2592 = vmatpush.bf16.msra.mxu0 %v2472
        %2593 = vmatmul.bf16.gmra.mxu0 %v2369
        %v2594 = vpop.f32.mrf.mxu0
        %v2595 = vadd.f32 %v2506, %v2594
        %v2596 = vpop.f32.mrf.mxu0
        %v2597 = vadd.f32 %v2508, %v2596
        %2598 = vmatmul.bf16.gmra.mxu0 %v2371
        %v2599 = vpop.f32.mrf.mxu0
        %v2600 = vadd.f32 %v2511, %v2599
        %v2601 = vpop.f32.mrf.mxu0
        %v2602 = vadd.f32 %v2513, %v2601
        %2603 = vmatmul.bf16.gmra.mxu0 %v2373
        %v2604 = vpop.f32.mrf.mxu0
        %v2605 = vadd.f32 %v2516, %v2604
        %v2606 = vpop.f32.mrf.mxu0
        %v2607 = vadd.f32 %v2518, %v2606
        %2608 = vmatmul.bf16.gmra.mxu0 %v2375
        %v2609 = vpop.f32.mrf.mxu0
        %v2610 = vadd.f32 %v2521, %v2609
        %v2611 = vpop.f32.mrf.mxu0
        %v2612 = vadd.f32 %v2523, %v2611
        %2613 = vmatmul.bf16.gmra.mxu0 %v2377
        %v2614 = vpop.f32.mrf.mxu0
        %v2615 = vadd.f32 %v2526, %v2614
        %v2616 = vpop.f32.mrf.mxu0
        %v2617 = vadd.f32 %v2528, %v2616
        %2618 = vmatmul.bf16.gmra.mxu0 %v2379
        %v2619 = vpop.f32.mrf.mxu0
        %v2620 = vadd.f32 %v2531, %v2619
        %v2621 = vpop.f32.mrf.mxu0
        %v2622 = vadd.f32 %v2533, %v2621
        %2623 = vmatmul.bf16.gmra.mxu0 %v2381
        %v2624 = vpop.f32.mrf.mxu0
        %v2625 = vadd.f32 %v2536, %v2624
        %v2626 = vpop.f32.mrf.mxu0
        %v2627 = vadd.f32 %v2538, %v2626
        %2628 = vmatmul.bf16.gmra.mxu0 %v2383
        %v2629 = vpop.f32.mrf.mxu0
        %v2630 = vadd.f32 %v2541, %v2629
        %v2631 = vpop.f32.mrf.mxu0
        %v2632 = vadd.f32 %v2543, %v2631
        %2633 = vmatmul.bf16.gmra.mxu0 %v2385
        %v2634 = vpop.f32.mrf.mxu0
        %v2635 = vadd.f32 %v2546, %v2634
        %v2636 = vpop.f32.mrf.mxu0
        %v2637 = vadd.f32 %v2548, %v2636
        %2638 = vmatmul.bf16.gmra.mxu0 %v2387
        %v2639 = vpop.f32.mrf.mxu0
        %v2640 = vadd.f32 %v2551, %v2639
        %v2641 = vpop.f32.mrf.mxu0
        %v2642 = vadd.f32 %v2553, %v2641
        %2643 = vmatmul.bf16.gmra.mxu0 %v2389
        %v2644 = vpop.f32.mrf.mxu0
        %v2645 = vadd.f32 %v2556, %v2644
        %v2646 = vpop.f32.mrf.mxu0
        %v2647 = vadd.f32 %v2558, %v2646
        %2648 = vmatmul.bf16.gmra.mxu0 %v2391
        %v2649 = vpop.f32.mrf.mxu0
        %v2650 = vadd.f32 %v2561, %v2649
        %v2651 = vpop.f32.mrf.mxu0
        %v2652 = vadd.f32 %v2563, %v2651
        %2653 = vmatmul.bf16.gmra.mxu0 %v2393
        %v2654 = vpop.f32.mrf.mxu0
        %v2655 = vadd.f32 %v2566, %v2654
        %v2656 = vpop.f32.mrf.mxu0
        %v2657 = vadd.f32 %v2568, %v2656
        %2658 = vmatmul.bf16.gmra.mxu0 %v2395
        %v2659 = vpop.f32.mrf.mxu0
        %v2660 = vadd.f32 %v2571, %v2659
        %v2661 = vpop.f32.mrf.mxu0
        %v2662 = vadd.f32 %v2573, %v2661
        %2663 = vmatmul.bf16.gmra.mxu0 %v2397
        %v2664 = vpop.f32.mrf.mxu0
        %v2665 = vadd.f32 %v2576, %v2664
        %v2666 = vpop.f32.mrf.mxu0
        %v2667 = vadd.f32 %v2578, %v2666
        %2668 = vmatmul.bf16.gmra.mxu0 %v2399
        %v2669 = vpop.f32.mrf.mxu0
        %v2670 = vadd.f32 %v2581, %v2669
        %v2671 = vpop.f32.mrf.mxu0
        %v2672 = vadd.f32 %v2583, %v2671
        %2673 = vdwg.mxu0
        %v2674 = vadd.f32 %v2336, %v2595
        %v2675 = vadd.f32 %v2337, %v2597
        %v2676 = vadd.f32 %v2338, %v2600
        %v2677 = vadd.f32 %v2339, %v2602
        %v2678 = vadd.f32 %v2340, %v2605
        %v2679 = vadd.f32 %v2341, %v2607
        %v2680 = vadd.f32 %v2342, %v2610
        %v2681 = vadd.f32 %v2343, %v2612
        %v2682 = vadd.f32 %v2344, %v2615
        %v2683 = vadd.f32 %v2345, %v2617
        %v2684 = vadd.f32 %v2346, %v2620
        %v2685 = vadd.f32 %v2347, %v2622
        %v2686 = vadd.f32 %v2348, %v2625
        %v2687 = vadd.f32 %v2349, %v2627
        %v2688 = vadd.f32 %v2350, %v2630
        %v2689 = vadd.f32 %v2351, %v2632
        %v2690 = vadd.f32 %v2352, %v2635
        %v2691 = vadd.f32 %v2353, %v2637
        %v2692 = vadd.f32 %v2354, %v2640
        %v2693 = vadd.f32 %v2355, %v2642
        %v2694 = vadd.f32 %v2356, %v2645
        %v2695 = vadd.f32 %v2357, %v2647
        %v2696 = vadd.f32 %v2358, %v2650
        %v2697 = vadd.f32 %v2359, %v2652
        %v2698 = vadd.f32 %v2360, %v2655
        %v2699 = vadd.f32 %v2361, %v2657
        %v2700 = vadd.f32 %v2362, %v2660
        %v2701 = vadd.f32 %v2363, %v2662
        %v2702 = vadd.f32 %v2364, %v2665
        %v2703 = vadd.f32 %v2365, %v2667
        %v2704 = vadd.f32 %v2366, %v2670
        %v2705 = vadd.f32 %v2367, %v2672
        %2707 = vset.pattern.permute.xlu0 0
        %2708 = vperm.xlu0 %2707, %v2144
        %v2709 = vpop.permute.xlu0 %2708
        %2712 = vset.pattern.permute.xlu0 0
        %2713 = vperm.xlu0 %2712, %v2145
        %v2714 = vpop.permute.xlu0 %2713
        %2717 = vset.pattern.permute.xlu0 0
        %2718 = vperm.xlu0 %2717, %v2146
        %v2719 = vpop.permute.xlu0 %2718
        %2722 = vset.pattern.permute.xlu0 0
        %2723 = vperm.xlu0 %2722, %v2147
        %v2724 = vpop.permute.xlu0 %2723
        %2727 = vset.pattern.permute.xlu0 0
        %2728 = vperm.xlu0 %2727, %v2148
        %v2729 = vpop.permute.xlu0 %2728
        %2732 = vset.pattern.permute.xlu0 0
        %2733 = vperm.xlu0 %2732, %v2149
        %v2734 = vpop.permute.xlu0 %2733
        %2737 = vset.pattern.permute.xlu0 0
        %2738 = vperm.xlu0 %2737, %v2150
        %v2739 = vpop.permute.xlu0 %2738
        %2742 = vset.pattern.permute.xlu0 0
        %2743 = vperm.xlu0 %2742, %v2151
        %v2744 = vpop.permute.xlu0 %2743
        %2747 = vset.pattern.permute.xlu0 0
        %2748 = vperm.xlu0 %2747, %v2152
        %v2749 = vpop.permute.xlu0 %2748
        %2752 = vset.pattern.permute.xlu0 0
        %2753 = vperm.xlu0 %2752, %v2153
        %v2754 = vpop.permute.xlu0 %2753
        %2757 = vset.pattern.permute.xlu0 0
        %2758 = vperm.xlu0 %2757, %v2154
        %v2759 = vpop.permute.xlu0 %2758
        %2762 = vset.pattern.permute.xlu0 0
        %2763 = vperm.xlu0 %2762, %v2155
        %v2764 = vpop.permute.xlu0 %2763
        %2767 = vset.pattern.permute.xlu0 0
        %2768 = vperm.xlu0 %2767, %v2156
        %v2769 = vpop.permute.xlu0 %2768
        %2772 = vset.pattern.permute.xlu0 0
        %2773 = vperm.xlu0 %2772, %v2157
        %v2774 = vpop.permute.xlu0 %2773
        %2777 = vset.pattern.permute.xlu0 0
        %2778 = vperm.xlu0 %2777, %v2158
        %v2779 = vpop.permute.xlu0 %2778
        %2782 = vset.pattern.permute.xlu0 0
        %2783 = vperm.xlu0 %2782, %v2159
        %v2784 = vpop.permute.xlu0 %2783
        %2787 = vset.pattern.permute.xlu0 0
        %2788 = vperm.xlu0 %2787, %v2160
        %v2789 = vpop.permute.xlu0 %2788
        %2792 = vset.pattern.permute.xlu0 0
        %2793 = vperm.xlu0 %2792, %v2161
        %v2794 = vpop.permute.xlu0 %2793
        %2797 = vset.pattern.permute.xlu0 0
        %2798 = vperm.xlu0 %2797, %v2162
        %v2799 = vpop.permute.xlu0 %2798
        %2802 = vset.pattern.permute.xlu0 0
        %2803 = vperm.xlu0 %2802, %v2163
        %v2804 = vpop.permute.xlu0 %2803
        %2807 = vset.pattern.permute.xlu0 0
        %2808 = vperm.xlu0 %2807, %v2164
        %v2809 = vpop.permute.xlu0 %2808
        %2812 = vset.pattern.permute.xlu0 0
        %2813 = vperm.xlu0 %2812, %v2165
        %v2814 = vpop.permute.xlu0 %2813
        %2817 = vset.pattern.permute.xlu0 0
        %2818 = vperm.xlu0 %2817, %v2166
        %v2819 = vpop.permute.xlu0 %2818
        %2822 = vset.pattern.permute.xlu0 0
        %2823 = vperm.xlu0 %2822, %v2167
        %v2824 = vpop.permute.xlu0 %2823
        %2827 = vset.pattern.permute.xlu0 0
        %2828 = vperm.xlu0 %2827, %v2168
        %v2829 = vpop.permute.xlu0 %2828
        %2832 = vset.pattern.permute.xlu0 0
        %2833 = vperm.xlu0 %2832, %v2169
        %v2834 = vpop.permute.xlu0 %2833
        %2837 = vset.pattern.permute.xlu0 0
        %2838 = vperm.xlu0 %2837, %v2170
        %v2839 = vpop.permute.xlu0 %2838
        %2842 = vset.pattern.permute.xlu0 0
        %2843 = vperm.xlu0 %2842, %v2171
        %v2844 = vpop.permute.xlu0 %2843
        %2847 = vset.pattern.permute.xlu0 0
        %2848 = vperm.xlu0 %2847, %v2172
        %v2849 = vpop.permute.xlu0 %2848
        %2852 = vset.pattern.permute.xlu0 0
        %2853 = vperm.xlu0 %2852, %v2173
        %v2854 = vpop.permute.xlu0 %2853
        %2857 = vset.pattern.permute.xlu0 0
        %2858 = vperm.xlu0 %2857, %v2174
        %v2859 = vpop.permute.xlu0 %2858
        %2862 = vset.pattern.permute.xlu0 0
        %2863 = vperm.xlu0 %2862, %v2175
        %v2864 = vpop.permute.xlu0 %2863
        %2866 = vrot.lane.b32.xlu0 %v1165, 96
        %v2867 = vpop.permute.xlu0 %2866
        %2868 = vrot.lane.b32.xlu0 %v1166, 96
        %v2869 = vpop.permute.xlu0 %2868
        %2870 = vrot.lane.b32.xlu0 %v1167, 96
        %v2871 = vpop.permute.xlu0 %2870
        %2872 = vrot.lane.b32.xlu0 %v1168, 96
        %v2873 = vpop.permute.xlu0 %2872
        %2874 = vrot.lane.b32.xlu0 %v1169, 96
        %v2875 = vpop.permute.xlu0 %2874
        %2876 = vrot.lane.b32.xlu0 %v1170, 96
        %v2877 = vpop.permute.xlu0 %2876
        %2878 = vrot.lane.b32.xlu0 %v1171, 96
        %v2879 = vpop.permute.xlu0 %2878
        %2880 = vrot.lane.b32.xlu0 %v1172, 96
        %v2881 = vpop.permute.xlu0 %2880
        %2882 = vrot.lane.b32.xlu0 %v1173, 96
        %v2883 = vpop.permute.xlu0 %2882
        %2884 = vrot.lane.b32.xlu0 %v1174, 96
        %v2885 = vpop.permute.xlu0 %2884
        %2886 = vrot.lane.b32.xlu0 %v1175, 96
        %v2887 = vpop.permute.xlu0 %2886
        %2888 = vrot.lane.b32.xlu0 %v1176, 96
        %v2889 = vpop.permute.xlu0 %2888
        %2890 = vrot.lane.b32.xlu0 %v1177, 96
        %v2891 = vpop.permute.xlu0 %2890
        %2892 = vrot.lane.b32.xlu0 %v1178, 96
        %v2893 = vpop.permute.xlu0 %2892
        %2894 = vrot.lane.b32.xlu0 %v1179, 96
        %v2895 = vpop.permute.xlu0 %2894
        %2896 = vrot.lane.b32.xlu0 %v1180, 96
        %v2897 = vpop.permute.xlu0 %2896
        %2898 = vrot.lane.b32.xlu0 %v1245, 96
        %v2899 = vpop.permute.xlu0 %2898
        %2900 = vrot.lane.b32.xlu0 %v1246, 96
        %v2901 = vpop.permute.xlu0 %2900
        %2902 = vrot.lane.b32.xlu0 %v1247, 96
        %v2903 = vpop.permute.xlu0 %2902
        %2904 = vrot.lane.b32.xlu0 %v1248, 96
        %v2905 = vpop.permute.xlu0 %2904
        %2906 = vrot.lane.b32.xlu0 %v1249, 96
        %v2907 = vpop.permute.xlu0 %2906
        %2908 = vrot.lane.b32.xlu0 %v1250, 96
        %v2909 = vpop.permute.xlu0 %2908
        %2910 = vrot.lane.b32.xlu0 %v1251, 96
        %v2911 = vpop.permute.xlu0 %2910
        %2912 = vrot.lane.b32.xlu0 %v1252, 96
        %v2913 = vpop.permute.xlu0 %2912
        %2914 = vrot.lane.b32.xlu0 %v1253, 96
        %v2915 = vpop.permute.xlu0 %2914
        %2916 = vrot.lane.b32.xlu0 %v1254, 96
        %v2917 = vpop.permute.xlu0 %2916
        %2918 = vrot.lane.b32.xlu0 %v1255, 96
        %v2919 = vpop.permute.xlu0 %2918
        %2920 = vrot.lane.b32.xlu0 %v1256, 96
        %v2921 = vpop.permute.xlu0 %2920
        %2922 = vrot.lane.b32.xlu0 %v1257, 96
        %v2923 = vpop.permute.xlu0 %2922
        %2924 = vrot.lane.b32.xlu0 %v1258, 96
        %v2925 = vpop.permute.xlu0 %2924
        %2926 = vrot.lane.b32.xlu0 %v1259, 96
        %v2927 = vpop.permute.xlu0 %2926
        %2928 = vrot.lane.b32.xlu0 %v1260, 96
        %v2929 = vpop.permute.xlu0 %2928
        %v2931 = vsel %vm1261, %v2867, 0
        %v2934 = vsel %vm1261, %v2869, 0
        %v2937 = vsel %vm1261, %v2871, 0
        %v2940 = vsel %vm1261, %v2873, 0
        %v2943 = vsel %vm1261, %v2875, 0
        %v2946 = vsel %vm1261, %v2877, 0
        %v2949 = vsel %vm1261, %v2879, 0
        %v2952 = vsel %vm1261, %v2881, 0
        %v2955 = vsel %vm1261, %v2883, 0
        %v2958 = vsel %vm1261, %v2885, 0
        %v2961 = vsel %vm1261, %v2887, 0
        %v2964 = vsel %vm1261, %v2889, 0
        %v2967 = vsel %vm1261, %v2891, 0
        %v2970 = vsel %vm1261, %v2893, 0
        %v2973 = vsel %vm1261, %v2895, 0
        %v2976 = vsel %vm1261, %v2897, 0
        %v2979 = vsel %vm1261, %v2899, 0
        %v2982 = vsel %vm1261, %v2901, 0
        %v2985 = vsel %vm1261, %v2903, 0
        %v2988 = vsel %vm1261, %v2905, 0
        %v2991 = vsel %vm1261, %v2907, 0
        %v2994 = vsel %vm1261, %v2909, 0
        %v2997 = vsel %vm1261, %v2911, 0
        %v3000 = vsel %vm1261, %v2913, 0
        %v3003 = vsel %vm1261, %v2915, 0
        %v3006 = vsel %vm1261, %v2917, 0
        %v3009 = vsel %vm1261, %v2919, 0
        %v3012 = vsel %vm1261, %v2921, 0
        %v3015 = vsel %vm1261, %v2923, 0
        %v3018 = vsel %vm1261, %v2925, 0
        %v3021 = vsel %vm1261, %v2927, 0
        %v3024 = vsel %vm1261, %v2929, 0
        %3026 = vmatpush.bf16.xpose.msra.mxu0 %v3000
        %3027 = vmatpush.bf16.xpose.msra.mxu0 %v2997
        %3028 = vmatpush.bf16.xpose.msra.mxu0 %v2994
        %3029 = vmatpush.bf16.xpose.msra.mxu0 %v2991
        %3030 = vmatpush.bf16.xpose.msra.mxu0 %v2988
        %3031 = vmatpush.bf16.xpose.msra.mxu0 %v2985
        %3032 = vmatpush.bf16.xpose.msra.mxu0 %v2982
        %3033 = vmatpush.bf16.xpose.msra.mxu0 %v2979
        %3034 = vmatmul.bf16.gmra.mxu0 %v2931
        %v3035 = vpop.f32.mrf.mxu0
        %v3036 = vadd.f32 0.0, %v3035
        %v3037 = vpop.f32.mrf.mxu0
        %v3038 = vadd.f32 0.0, %v3037
        %3039 = vmatmul.bf16.gmra.mxu0 %v2934
        %v3040 = vpop.f32.mrf.mxu0
        %v3041 = vadd.f32 0.0, %v3040
        %v3042 = vpop.f32.mrf.mxu0
        %v3043 = vadd.f32 0.0, %v3042
        %3044 = vmatmul.bf16.gmra.mxu0 %v2937
        %v3045 = vpop.f32.mrf.mxu0
        %v3046 = vadd.f32 0.0, %v3045
        %v3047 = vpop.f32.mrf.mxu0
        %v3048 = vadd.f32 0.0, %v3047
        %3049 = vmatmul.bf16.gmra.mxu0 %v2940
        %v3050 = vpop.f32.mrf.mxu0
        %v3051 = vadd.f32 0.0, %v3050
        %v3052 = vpop.f32.mrf.mxu0
        %v3053 = vadd.f32 0.0, %v3052
        %3054 = vmatmul.bf16.gmra.mxu0 %v2943
        %v3055 = vpop.f32.mrf.mxu0
        %v3056 = vadd.f32 0.0, %v3055
        %v3057 = vpop.f32.mrf.mxu0
        %v3058 = vadd.f32 0.0, %v3057
        %3059 = vmatmul.bf16.gmra.mxu0 %v2946
        %v3060 = vpop.f32.mrf.mxu0
        %v3061 = vadd.f32 0.0, %v3060
        %v3062 = vpop.f32.mrf.mxu0
        %v3063 = vadd.f32 0.0, %v3062
        %3064 = vmatmul.bf16.gmra.mxu0 %v2949
        %v3065 = vpop.f32.mrf.mxu0
        %v3066 = vadd.f32 0.0, %v3065
        %v3067 = vpop.f32.mrf.mxu0
        %v3068 = vadd.f32 0.0, %v3067
        %3069 = vmatmul.bf16.gmra.mxu0 %v2952
        %v3070 = vpop.f32.mrf.mxu0
        %v3071 = vadd.f32 0.0, %v3070
        %v3072 = vpop.f32.mrf.mxu0
        %v3073 = vadd.f32 0.0, %v3072
        %3074 = vmatmul.bf16.gmra.mxu0 %v2955
        %v3075 = vpop.f32.mrf.mxu0
        %v3076 = vadd.f32 0.0, %v3075
        %v3077 = vpop.f32.mrf.mxu0
        %v3078 = vadd.f32 0.0, %v3077
        %3079 = vmatmul.bf16.gmra.mxu0 %v2958
        %v3080 = vpop.f32.mrf.mxu0
        %v3081 = vadd.f32 0.0, %v3080
        %v3082 = vpop.f32.mrf.mxu0
        %v3083 = vadd.f32 0.0, %v3082
        %3084 = vmatmul.bf16.gmra.mxu0 %v2961
        %v3085 = vpop.f32.mrf.mxu0
        %v3086 = vadd.f32 0.0, %v3085
        %v3087 = vpop.f32.mrf.mxu0
        %v3088 = vadd.f32 0.0, %v3087
        %3089 = vmatmul.bf16.gmra.mxu0 %v2964
        %v3090 = vpop.f32.mrf.mxu0
        %v3091 = vadd.f32 0.0, %v3090
        %v3092 = vpop.f32.mrf.mxu0
        %v3093 = vadd.f32 0.0, %v3092
        %3094 = vmatmul.bf16.gmra.mxu0 %v2967
        %v3095 = vpop.f32.mrf.mxu0
        %v3096 = vadd.f32 0.0, %v3095
        %v3097 = vpop.f32.mrf.mxu0
        %v3098 = vadd.f32 0.0, %v3097
        %3099 = vmatmul.bf16.gmra.mxu0 %v2970
        %v3100 = vpop.f32.mrf.mxu0
        %v3101 = vadd.f32 0.0, %v3100
        %v3102 = vpop.f32.mrf.mxu0
        %v3103 = vadd.f32 0.0, %v3102
        %3104 = vmatmul.bf16.gmra.mxu0 %v2973
        %v3105 = vpop.f32.mrf.mxu0
        %v3106 = vadd.f32 0.0, %v3105
        %v3107 = vpop.f32.mrf.mxu0
        %v3108 = vadd.f32 0.0, %v3107
        %3109 = vmatmul.bf16.gmra.mxu0 %v2976
        %v3110 = vpop.f32.mrf.mxu0
        %v3111 = vadd.f32 0.0, %v3110
        %v3112 = vpop.f32.mrf.mxu0
        %v3113 = vadd.f32 0.0, %v3112
        %3114 = vdwg.mxu0
        %3115 = vmatpush.bf16.xpose.msra.mxu0 %v3024
        %3116 = vmatpush.bf16.xpose.msra.mxu0 %v3021
        %3117 = vmatpush.bf16.xpose.msra.mxu0 %v3018
        %3118 = vmatpush.bf16.xpose.msra.mxu0 %v3015
        %3119 = vmatpush.bf16.xpose.msra.mxu0 %v3012
        %3120 = vmatpush.bf16.xpose.msra.mxu0 %v3009
        %3121 = vmatpush.bf16.xpose.msra.mxu0 %v3006
        %3122 = vmatpush.bf16.xpose.msra.mxu0 %v3003
        %3123 = vmatmul.bf16.gmra.mxu0 %v2931
        %v3124 = vpop.f32.mrf.mxu0
        %v3125 = vadd.f32 0.0, %v3124
        %v3126 = vpop.f32.mrf.mxu0
        %v3127 = vadd.f32 0.0, %v3126
        %3128 = vmatmul.bf16.gmra.mxu0 %v2934
        %v3129 = vpop.f32.mrf.mxu0
        %v3130 = vadd.f32 0.0, %v3129
        %v3131 = vpop.f32.mrf.mxu0
        %v3132 = vadd.f32 0.0, %v3131
        %3133 = vmatmul.bf16.gmra.mxu0 %v2937
        %v3134 = vpop.f32.mrf.mxu0
        %v3135 = vadd.f32 0.0, %v3134
        %v3136 = vpop.f32.mrf.mxu0
        %v3137 = vadd.f32 0.0, %v3136
        %3138 = vmatmul.bf16.gmra.mxu0 %v2940
        %v3139 = vpop.f32.mrf.mxu0
        %v3140 = vadd.f32 0.0, %v3139
        %v3141 = vpop.f32.mrf.mxu0
        %v3142 = vadd.f32 0.0, %v3141
        %3143 = vmatmul.bf16.gmra.mxu0 %v2943
        %v3144 = vpop.f32.mrf.mxu0
        %v3145 = vadd.f32 0.0, %v3144
        %v3146 = vpop.f32.mrf.mxu0
        %v3147 = vadd.f32 0.0, %v3146
        %3148 = vmatmul.bf16.gmra.mxu0 %v2946
        %v3149 = vpop.f32.mrf.mxu0
        %v3150 = vadd.f32 0.0, %v3149
        %v3151 = vpop.f32.mrf.mxu0
        %v3152 = vadd.f32 0.0, %v3151
        %3153 = vmatmul.bf16.gmra.mxu0 %v2949
        %v3154 = vpop.f32.mrf.mxu0
        %v3155 = vadd.f32 0.0, %v3154
        %v3156 = vpop.f32.mrf.mxu0
        %v3157 = vadd.f32 0.0, %v3156
        %3158 = vmatmul.bf16.gmra.mxu0 %v2952
        %v3159 = vpop.f32.mrf.mxu0
        %v3160 = vadd.f32 0.0, %v3159
        %v3161 = vpop.f32.mrf.mxu0
        %v3162 = vadd.f32 0.0, %v3161
        %3163 = vmatmul.bf16.gmra.mxu0 %v2955
        %v3164 = vpop.f32.mrf.mxu0
        %v3165 = vadd.f32 0.0, %v3164
        %v3166 = vpop.f32.mrf.mxu0
        %v3167 = vadd.f32 0.0, %v3166
        %3168 = vmatmul.bf16.gmra.mxu0 %v2958
        %v3169 = vpop.f32.mrf.mxu0
        %v3170 = vadd.f32 0.0, %v3169
        %v3171 = vpop.f32.mrf.mxu0
        %v3172 = vadd.f32 0.0, %v3171
        %3173 = vmatmul.bf16.gmra.mxu0 %v2961
        %v3174 = vpop.f32.mrf.mxu0
        %v3175 = vadd.f32 0.0, %v3174
        %v3176 = vpop.f32.mrf.mxu0
        %v3177 = vadd.f32 0.0, %v3176
        %3178 = vmatmul.bf16.gmra.mxu0 %v2964
        %v3179 = vpop.f32.mrf.mxu0
        %v3180 = vadd.f32 0.0, %v3179
        %v3181 = vpop.f32.mrf.mxu0
        %v3182 = vadd.f32 0.0, %v3181
        %3183 = vmatmul.bf16.gmra.mxu0 %v2967
        %v3184 = vpop.f32.mrf.mxu0
        %v3185 = vadd.f32 0.0, %v3184
        %v3186 = vpop.f32.mrf.mxu0
        %v3187 = vadd.f32 0.0, %v3186
        %3188 = vmatmul.bf16.gmra.mxu0 %v2970
        %v3189 = vpop.f32.mrf.mxu0
        %v3190 = vadd.f32 0.0, %v3189
        %v3191 = vpop.f32.mrf.mxu0
        %v3192 = vadd.f32 0.0, %v3191
        %3193 = vmatmul.bf16.gmra.mxu0 %v2973
        %v3194 = vpop.f32.mrf.mxu0
        %v3195 = vadd.f32 0.0, %v3194
        %v3196 = vpop.f32.mrf.mxu0
        %v3197 = vadd.f32 0.0, %v3196
        %3198 = vmatmul.bf16.gmra.mxu0 %v2976
        %v3199 = vpop.f32.mrf.mxu0
        %v3200 = vadd.f32 0.0, %v3199
        %v3201 = vpop.f32.mrf.mxu0
        %v3202 = vadd.f32 0.0, %v3201
        %3203 = vdwg.mxu0
        %v3204 = vmax.f32 %v3036, %v3125
        %3205 = vmax.xlane.f32.xlu0 %v3204
        %v3206 = vpop.xlane.xlu0 %3205
        %v3207 = vmax.f32 %v3038, %v3127
        %3208 = vmax.xlane.f32.xlu0 %v3207
        %v3209 = vpop.xlane.xlu0 %3208
        %v3210 = vmax.f32 %v3041, %v3130
        %3211 = vmax.xlane.f32.xlu0 %v3210
        %v3212 = vpop.xlane.xlu0 %3211
        %v3213 = vmax.f32 %v3043, %v3132
        %3214 = vmax.xlane.f32.xlu0 %v3213
        %v3215 = vpop.xlane.xlu0 %3214
        %v3216 = vmax.f32 %v3046, %v3135
        %3217 = vmax.xlane.f32.xlu0 %v3216
        %v3218 = vpop.xlane.xlu0 %3217
        %v3219 = vmax.f32 %v3048, %v3137
        %3220 = vmax.xlane.f32.xlu0 %v3219
        %v3221 = vpop.xlane.xlu0 %3220
        %v3222 = vmax.f32 %v3051, %v3140
        %3223 = vmax.xlane.f32.xlu0 %v3222
        %v3224 = vpop.xlane.xlu0 %3223
        %v3225 = vmax.f32 %v3053, %v3142
        %3226 = vmax.xlane.f32.xlu0 %v3225
        %v3227 = vpop.xlane.xlu0 %3226
        %v3228 = vmax.f32 %v3056, %v3145
        %3229 = vmax.xlane.f32.xlu0 %v3228
        %v3230 = vpop.xlane.xlu0 %3229
        %v3231 = vmax.f32 %v3058, %v3147
        %3232 = vmax.xlane.f32.xlu0 %v3231
        %v3233 = vpop.xlane.xlu0 %3232
        %v3234 = vmax.f32 %v3061, %v3150
        %3235 = vmax.xlane.f32.xlu0 %v3234
        %v3236 = vpop.xlane.xlu0 %3235
        %v3237 = vmax.f32 %v3063, %v3152
        %3238 = vmax.xlane.f32.xlu0 %v3237
        %v3239 = vpop.xlane.xlu0 %3238
        %v3240 = vmax.f32 %v3066, %v3155
        %3241 = vmax.xlane.f32.xlu0 %v3240
        %v3242 = vpop.xlane.xlu0 %3241
        %v3243 = vmax.f32 %v3068, %v3157
        %3244 = vmax.xlane.f32.xlu0 %v3243
        %v3245 = vpop.xlane.xlu0 %3244
        %v3246 = vmax.f32 %v3071, %v3160
        %3247 = vmax.xlane.f32.xlu0 %v3246
        %v3248 = vpop.xlane.xlu0 %3247
        %v3249 = vmax.f32 %v3073, %v3162
        %3250 = vmax.xlane.f32.xlu0 %v3249
        %v3251 = vpop.xlane.xlu0 %3250
        %v3252 = vmax.f32 %v3076, %v3165
        %3253 = vmax.xlane.f32.xlu0 %v3252
        %v3254 = vpop.xlane.xlu0 %3253
        %v3255 = vmax.f32 %v3078, %v3167
        %3256 = vmax.xlane.f32.xlu0 %v3255
        %v3257 = vpop.xlane.xlu0 %3256
        %v3258 = vmax.f32 %v3081, %v3170
        %3259 = vmax.xlane.f32.xlu0 %v3258
        %v3260 = vpop.xlane.xlu0 %3259
        %v3261 = vmax.f32 %v3083, %v3172
        %3262 = vmax.xlane.f32.xlu0 %v3261
        %v3263 = vpop.xlane.xlu0 %3262
        %v3264 = vmax.f32 %v3086, %v3175
        %3265 = vmax.xlane.f32.xlu0 %v3264
        %v3266 = vpop.xlane.xlu0 %3265
        %v3267 = vmax.f32 %v3088, %v3177
        %3268 = vmax.xlane.f32.xlu0 %v3267
        %v3269 = vpop.xlane.xlu0 %3268
        %v3270 = vmax.f32 %v3091, %v3180
        %3271 = vmax.xlane.f32.xlu0 %v3270
        %v3272 = vpop.xlane.xlu0 %3271
        %v3273 = vmax.f32 %v3093, %v3182
        %3274 = vmax.xlane.f32.xlu0 %v3273
        %v3275 = vpop.xlane.xlu0 %3274
        %v3276 = vmax.f32 %v3096, %v3185
        %3277 = vmax.xlane.f32.xlu0 %v3276
        %v3278 = vpop.xlane.xlu0 %3277
        %v3279 = vmax.f32 %v3098, %v3187
        %3280 = vmax.xlane.f32.xlu0 %v3279
        %v3281 = vpop.xlane.xlu0 %3280
        %v3282 = vmax.f32 %v3101, %v3190
        %3283 = vmax.xlane.f32.xlu0 %v3282
        %v3284 = vpop.xlane.xlu0 %3283
        %v3285 = vmax.f32 %v3103, %v3192
        %3286 = vmax.xlane.f32.xlu0 %v3285
        %v3287 = vpop.xlane.xlu0 %3286
        %v3288 = vmax.f32 %v3106, %v3195
        %3289 = vmax.xlane.f32.xlu0 %v3288
        %v3290 = vpop.xlane.xlu0 %3289
        %v3291 = vmax.f32 %v3108, %v3197
        %3292 = vmax.xlane.f32.xlu0 %v3291
        %v3293 = vpop.xlane.xlu0 %3292
        %v3294 = vmax.f32 %v3111, %v3200
        %3295 = vmax.xlane.f32.xlu0 %v3294
        %v3296 = vpop.xlane.xlu0 %3295
        %v3297 = vmax.f32 %v3113, %v3202
        %3298 = vmax.xlane.f32.xlu0 %v3297
        %v3299 = vpop.xlane.xlu0 %3298
        %v3300 = vmax.f32 %v1005, %v3206
        %v3301 = vmax.f32 %v1006, %v3209
        %v3302 = vmax.f32 %v1007, %v3212
        %v3303 = vmax.f32 %v1008, %v3215
        %v3304 = vmax.f32 %v1009, %v3218
        %v3305 = vmax.f32 %v1010, %v3221
        %v3306 = vmax.f32 %v1011, %v3224
        %v3307 = vmax.f32 %v1012, %v3227
        %v3308 = vmax.f32 %v1013, %v3230
        %v3309 = vmax.f32 %v1014, %v3233
        %v3310 = vmax.f32 %v1015, %v3236
        %v3311 = vmax.f32 %v1016, %v3239
        %v3312 = vmax.f32 %v1017, %v3242
        %v3313 = vmax.f32 %v1018, %v3245
        %v3314 = vmax.f32 %v1019, %v3248
        %v3315 = vmax.f32 %v1020, %v3251
        %v3316 = vmax.f32 %v1021, %v3254
        %v3317 = vmax.f32 %v1022, %v3257
        %v3318 = vmax.f32 %v1023, %v3260
        %v3319 = vmax.f32 %v1024, %v3263
        %v3320 = vmax.f32 %v1025, %v3266
        %v3321 = vmax.f32 %v1026, %v3269
        %v3322 = vmax.f32 %v1027, %v3272
        %v3323 = vmax.f32 %v1028, %v3275
        %v3324 = vmax.f32 %v1029, %v3278
        %v3325 = vmax.f32 %v1030, %v3281
        %v3326 = vmax.f32 %v1031, %v3284
        %v3327 = vmax.f32 %v1032, %v3287
        %v3328 = vmax.f32 %v1033, %v3290
        %v3329 = vmax.f32 %v1034, %v3293
        %v3330 = vmax.f32 %v1035, %v3296
        %v3331 = vmax.f32 %v1036, %v3299
        %v3332 = vsub.f32 %v1005, %v3300
        %v3333 = vsub.f32 %v1006, %v3301
        %v3334 = vsub.f32 %v1007, %v3302
        %v3335 = vsub.f32 %v1008, %v3303
        %v3336 = vsub.f32 %v1009, %v3304
        %v3337 = vsub.f32 %v1010, %v3305
        %v3338 = vsub.f32 %v1011, %v3306
        %v3339 = vsub.f32 %v1012, %v3307
        %v3340 = vsub.f32 %v1013, %v3308
        %v3341 = vsub.f32 %v1014, %v3309
        %v3342 = vsub.f32 %v1015, %v3310
        %v3343 = vsub.f32 %v1016, %v3311
        %v3344 = vsub.f32 %v1017, %v3312
        %v3345 = vsub.f32 %v1018, %v3313
        %v3346 = vsub.f32 %v1019, %v3314
        %v3347 = vsub.f32 %v1020, %v3315
        %v3348 = vsub.f32 %v1021, %v3316
        %v3349 = vsub.f32 %v1022, %v3317
        %v3350 = vsub.f32 %v1023, %v3318
        %v3351 = vsub.f32 %v1024, %v3319
        %v3352 = vsub.f32 %v1025, %v3320
        %v3353 = vsub.f32 %v1026, %v3321
        %v3354 = vsub.f32 %v1027, %v3322
        %v3355 = vsub.f32 %v1028, %v3323
        %v3356 = vsub.f32 %v1029, %v3324
        %v3357 = vsub.f32 %v1030, %v3325
        %v3358 = vsub.f32 %v1031, %v3326
        %v3359 = vsub.f32 %v1032, %v3327
        %v3360 = vsub.f32 %v1033, %v3328
        %v3361 = vsub.f32 %v1034, %v3329
        %v3362 = vsub.f32 %v1035, %v3330
        %v3363 = vsub.f32 %v1036, %v3331
        %v3364 = vpow.pop %v3332
        %v3365 = vpow.pop %v3333
        %v3366 = vpow.pop %v3334
        %v3367 = vpow.pop %v3335
        %v3368 = vpow.pop %v3336
        %v3369 = vpow.pop %v3337
        %v3370 = vpow.pop %v3338
        %v3371 = vpow.pop %v3339
        %v3372 = vpow.pop %v3340
        %v3373 = vpow.pop %v3341
        %v3374 = vpow.pop %v3342
        %v3375 = vpow.pop %v3343
        %v3376 = vpow.pop %v3344
        %v3377 = vpow.pop %v3345
        %v3378 = vpow.pop %v3346
        %v3379 = vpow.pop %v3347
        %v3380 = vpow.pop %v3348
        %v3381 = vpow.pop %v3349
        %v3382 = vpow.pop %v3350
        %v3383 = vpow.pop %v3351
        %v3384 = vpow.pop %v3352
        %v3385 = vpow.pop %v3353
        %v3386 = vpow.pop %v3354
        %v3387 = vpow.pop %v3355
        %v3388 = vpow.pop %v3356
        %v3389 = vpow.pop %v3357
        %v3390 = vpow.pop %v3358
        %v3391 = vpow.pop %v3359
        %v3392 = vpow.pop %v3360
        %v3393 = vpow.pop %v3361
        %v3394 = vpow.pop %v3362
        %v3395 = vpow.pop %v3363
        %3397 = vset.pattern.permute.xlu0 32
        %3398 = vperm.xlu0 %3397, %v3300
        %v3399 = vpop.permute.xlu0 %3398
        %3402 = vset.pattern.permute.xlu0 32
        %3403 = vperm.xlu0 %3402, %v3301
        %v3404 = vpop.permute.xlu0 %3403
        %3407 = vset.pattern.permute.xlu0 32
        %3408 = vperm.xlu0 %3407, %v3302
        %v3409 = vpop.permute.xlu0 %3408
        %3412 = vset.pattern.permute.xlu0 32
        %3413 = vperm.xlu0 %3412, %v3303
        %v3414 = vpop.permute.xlu0 %3413
        %3417 = vset.pattern.permute.xlu0 32
        %3418 = vperm.xlu0 %3417, %v3304
        %v3419 = vpop.permute.xlu0 %3418
        %3422 = vset.pattern.permute.xlu0 32
        %3423 = vperm.xlu0 %3422, %v3305
        %v3424 = vpop.permute.xlu0 %3423
        %3427 = vset.pattern.permute.xlu0 32
        %3428 = vperm.xlu0 %3427, %v3306
        %v3429 = vpop.permute.xlu0 %3428
        %3432 = vset.pattern.permute.xlu0 32
        %3433 = vperm.xlu0 %3432, %v3307
        %v3434 = vpop.permute.xlu0 %3433
        %3437 = vset.pattern.permute.xlu0 32
        %3438 = vperm.xlu0 %3437, %v3308
        %v3439 = vpop.permute.xlu0 %3438
        %3442 = vset.pattern.permute.xlu0 32
        %3443 = vperm.xlu0 %3442, %v3309
        %v3444 = vpop.permute.xlu0 %3443
        %3447 = vset.pattern.permute.xlu0 32
        %3448 = vperm.xlu0 %3447, %v3310
        %v3449 = vpop.permute.xlu0 %3448
        %3452 = vset.pattern.permute.xlu0 32
        %3453 = vperm.xlu0 %3452, %v3311
        %v3454 = vpop.permute.xlu0 %3453
        %3457 = vset.pattern.permute.xlu0 32
        %3458 = vperm.xlu0 %3457, %v3312
        %v3459 = vpop.permute.xlu0 %3458
        %3462 = vset.pattern.permute.xlu0 32
        %3463 = vperm.xlu0 %3462, %v3313
        %v3464 = vpop.permute.xlu0 %3463
        %3467 = vset.pattern.permute.xlu0 32
        %3468 = vperm.xlu0 %3467, %v3314
        %v3469 = vpop.permute.xlu0 %3468
        %3472 = vset.pattern.permute.xlu0 32
        %3473 = vperm.xlu0 %3472, %v3315
        %v3474 = vpop.permute.xlu0 %3473
        %3477 = vset.pattern.permute.xlu0 32
        %3478 = vperm.xlu0 %3477, %v3316
        %v3479 = vpop.permute.xlu0 %3478
        %3482 = vset.pattern.permute.xlu0 32
        %3483 = vperm.xlu0 %3482, %v3317
        %v3484 = vpop.permute.xlu0 %3483
        %3487 = vset.pattern.permute.xlu0 32
        %3488 = vperm.xlu0 %3487, %v3318
        %v3489 = vpop.permute.xlu0 %3488
        %3492 = vset.pattern.permute.xlu0 32
        %3493 = vperm.xlu0 %3492, %v3319
        %v3494 = vpop.permute.xlu0 %3493
        %3497 = vset.pattern.permute.xlu0 32
        %3498 = vperm.xlu0 %3497, %v3320
        %v3499 = vpop.permute.xlu0 %3498
        %3502 = vset.pattern.permute.xlu0 32
        %3503 = vperm.xlu0 %3502, %v3321
        %v3504 = vpop.permute.xlu0 %3503
        %3507 = vset.pattern.permute.xlu0 32
        %3508 = vperm.xlu0 %3507, %v3322
        %v3509 = vpop.permute.xlu0 %3508
        %3512 = vset.pattern.permute.xlu0 32
        %3513 = vperm.xlu0 %3512, %v3323
        %v3514 = vpop.permute.xlu0 %3513
        %3517 = vset.pattern.permute.xlu0 32
        %3518 = vperm.xlu0 %3517, %v3324
        %v3519 = vpop.permute.xlu0 %3518
        %3522 = vset.pattern.permute.xlu0 32
        %3523 = vperm.xlu0 %3522, %v3325
        %v3524 = vpop.permute.xlu0 %3523
        %3527 = vset.pattern.permute.xlu0 32
        %3528 = vperm.xlu0 %3527, %v3326
        %v3529 = vpop.permute.xlu0 %3528
        %3532 = vset.pattern.permute.xlu0 32
        %3533 = vperm.xlu0 %3532, %v3327
        %v3534 = vpop.permute.xlu0 %3533
        %3537 = vset.pattern.permute.xlu0 32
        %3538 = vperm.xlu0 %3537, %v3328
        %v3539 = vpop.permute.xlu0 %3538
        %3542 = vset.pattern.permute.xlu0 32
        %3543 = vperm.xlu0 %3542, %v3329
        %v3544 = vpop.permute.xlu0 %3543
        %3547 = vset.pattern.permute.xlu0 32
        %3548 = vperm.xlu0 %3547, %v3330
        %v3549 = vpop.permute.xlu0 %3548
        %3552 = vset.pattern.permute.xlu0 32
        %3553 = vperm.xlu0 %3552, %v3331
        %v3554 = vpop.permute.xlu0 %3553
        %v3556 = vsub.f32 %v3036, %v3399
        %v3557 = vsub.f32 %v3125, %v3399
        %v3558 = vsub.f32 %v3038, %v3404
        %v3559 = vsub.f32 %v3127, %v3404
        %v3560 = vsub.f32 %v3041, %v3409
        %v3561 = vsub.f32 %v3130, %v3409
        %v3562 = vsub.f32 %v3043, %v3414
        %v3563 = vsub.f32 %v3132, %v3414
        %v3564 = vsub.f32 %v3046, %v3419
        %v3565 = vsub.f32 %v3135, %v3419
        %v3566 = vsub.f32 %v3048, %v3424
        %v3567 = vsub.f32 %v3137, %v3424
        %v3568 = vsub.f32 %v3051, %v3429
        %v3569 = vsub.f32 %v3140, %v3429
        %v3570 = vsub.f32 %v3053, %v3434
        %v3571 = vsub.f32 %v3142, %v3434
        %v3572 = vsub.f32 %v3056, %v3439
        %v3573 = vsub.f32 %v3145, %v3439
        %v3574 = vsub.f32 %v3058, %v3444
        %v3575 = vsub.f32 %v3147, %v3444
        %v3576 = vsub.f32 %v3061, %v3449
        %v3577 = vsub.f32 %v3150, %v3449
        %v3578 = vsub.f32 %v3063, %v3454
        %v3579 = vsub.f32 %v3152, %v3454
        %v3580 = vsub.f32 %v3066, %v3459
        %v3581 = vsub.f32 %v3155, %v3459
        %v3582 = vsub.f32 %v3068, %v3464
        %v3583 = vsub.f32 %v3157, %v3464
        %v3584 = vsub.f32 %v3071, %v3469
        %v3585 = vsub.f32 %v3160, %v3469
        %v3586 = vsub.f32 %v3073, %v3474
        %v3587 = vsub.f32 %v3162, %v3474
        %v3588 = vsub.f32 %v3076, %v3479
        %v3589 = vsub.f32 %v3165, %v3479
        %v3590 = vsub.f32 %v3078, %v3484
        %v3591 = vsub.f32 %v3167, %v3484
        %v3592 = vsub.f32 %v3081, %v3489
        %v3593 = vsub.f32 %v3170, %v3489
        %v3594 = vsub.f32 %v3083, %v3494
        %v3595 = vsub.f32 %v3172, %v3494
        %v3596 = vsub.f32 %v3086, %v3499
        %v3597 = vsub.f32 %v3175, %v3499
        %v3598 = vsub.f32 %v3088, %v3504
        %v3599 = vsub.f32 %v3177, %v3504
        %v3600 = vsub.f32 %v3091, %v3509
        %v3601 = vsub.f32 %v3180, %v3509
        %v3602 = vsub.f32 %v3093, %v3514
        %v3603 = vsub.f32 %v3182, %v3514
        %v3604 = vsub.f32 %v3096, %v3519
        %v3605 = vsub.f32 %v3185, %v3519
        %v3606 = vsub.f32 %v3098, %v3524
        %v3607 = vsub.f32 %v3187, %v3524
        %v3608 = vsub.f32 %v3101, %v3529
        %v3609 = vsub.f32 %v3190, %v3529
        %v3610 = vsub.f32 %v3103, %v3534
        %v3611 = vsub.f32 %v3192, %v3534
        %v3612 = vsub.f32 %v3106, %v3539
        %v3613 = vsub.f32 %v3195, %v3539
        %v3614 = vsub.f32 %v3108, %v3544
        %v3615 = vsub.f32 %v3197, %v3544
        %v3616 = vsub.f32 %v3111, %v3549
        %v3617 = vsub.f32 %v3200, %v3549
        %v3618 = vsub.f32 %v3113, %v3554
        %v3619 = vsub.f32 %v3202, %v3554
        %v3620 = vpow.pop %v3556
        %v3621 = vpow.pop %v3557
        %v3622 = vpow.pop %v3558
        %v3623 = vpow.pop %v3559
        %v3624 = vpow.pop %v3560
        %v3625 = vpow.pop %v3561
        %v3626 = vpow.pop %v3562
        %v3627 = vpow.pop %v3563
        %v3628 = vpow.pop %v3564
        %v3629 = vpow.pop %v3565
        %v3630 = vpow.pop %v3566
        %v3631 = vpow.pop %v3567
        %v3632 = vpow.pop %v3568
        %v3633 = vpow.pop %v3569
        %v3634 = vpow.pop %v3570
        %v3635 = vpow.pop %v3571
        %v3636 = vpow.pop %v3572
        %v3637 = vpow.pop %v3573
        %v3638 = vpow.pop %v3574
        %v3639 = vpow.pop %v3575
        %v3640 = vpow.pop %v3576
        %v3641 = vpow.pop %v3577
        %v3642 = vpow.pop %v3578
        %v3643 = vpow.pop %v3579
        %v3644 = vpow.pop %v3580
        %v3645 = vpow.pop %v3581
        %v3646 = vpow.pop %v3582
        %v3647 = vpow.pop %v3583
        %v3648 = vpow.pop %v3584
        %v3649 = vpow.pop %v3585
        %v3650 = vpow.pop %v3586
        %v3651 = vpow.pop %v3587
        %v3652 = vpow.pop %v3588
        %v3653 = vpow.pop %v3589
        %v3654 = vpow.pop %v3590
        %v3655 = vpow.pop %v3591
        %v3656 = vpow.pop %v3592
        %v3657 = vpow.pop %v3593
        %v3658 = vpow.pop %v3594
        %v3659 = vpow.pop %v3595
        %v3660 = vpow.pop %v3596
        %v3661 = vpow.pop %v3597
        %v3662 = vpow.pop %v3598
        %v3663 = vpow.pop %v3599
        %v3664 = vpow.pop %v3600
        %v3665 = vpow.pop %v3601
        %v3666 = vpow.pop %v3602
        %v3667 = vpow.pop %v3603
        %v3668 = vpow.pop %v3604
        %v3669 = vpow.pop %v3605
        %v3670 = vpow.pop %v3606
        %v3671 = vpow.pop %v3607
        %v3672 = vpow.pop %v3608
        %v3673 = vpow.pop %v3609
        %v3674 = vpow.pop %v3610
        %v3675 = vpow.pop %v3611
        %v3676 = vpow.pop %v3612
        %v3677 = vpow.pop %v3613
        %v3678 = vpow.pop %v3614
        %v3679 = vpow.pop %v3615
        %v3680 = vpow.pop %v3616
        %v3681 = vpow.pop %v3617
        %v3682 = vpow.pop %v3618
        %v3683 = vpow.pop %v3619
        %v3684 = vmul.f32 %v3364, %v1037
        %v3685 = vmul.f32 %v3365, %v1038
        %v3686 = vmul.f32 %v3366, %v1039
        %v3687 = vmul.f32 %v3367, %v1040
        %v3688 = vmul.f32 %v3368, %v1041
        %v3689 = vmul.f32 %v3369, %v1042
        %v3690 = vmul.f32 %v3370, %v1043
        %v3691 = vmul.f32 %v3371, %v1044
        %v3692 = vmul.f32 %v3372, %v1045
        %v3693 = vmul.f32 %v3373, %v1046
        %v3694 = vmul.f32 %v3374, %v1047
        %v3695 = vmul.f32 %v3375, %v1048
        %v3696 = vmul.f32 %v3376, %v1049
        %v3697 = vmul.f32 %v3377, %v1050
        %v3698 = vmul.f32 %v3378, %v1051
        %v3699 = vmul.f32 %v3379, %v1052
        %v3700 = vmul.f32 %v3380, %v1053
        %v3701 = vmul.f32 %v3381, %v1054
        %v3702 = vmul.f32 %v3382, %v1055
        %v3703 = vmul.f32 %v3383, %v1056
        %v3704 = vmul.f32 %v3384, %v1057
        %v3705 = vmul.f32 %v3385, %v1058
        %v3706 = vmul.f32 %v3386, %v1059
        %v3707 = vmul.f32 %v3387, %v1060
        %v3708 = vmul.f32 %v3388, %v1061
        %v3709 = vmul.f32 %v3389, %v1062
        %v3710 = vmul.f32 %v3390, %v1063
        %v3711 = vmul.f32 %v3391, %v1064
        %v3712 = vmul.f32 %v3392, %v1065
        %v3713 = vmul.f32 %v3393, %v1066
        %v3714 = vmul.f32 %v3394, %v1067
        %v3715 = vmul.f32 %v3395, %v1068
        %v3716 = vadd.f32 %v3620, %v3621
        %3717 = vadd.xlane.f32.xlu0 %v3716
        %v3718 = vpop.xlane.xlu0 %3717
        %v3719 = vadd.f32 %v3622, %v3623
        %3720 = vadd.xlane.f32.xlu0 %v3719
        %v3721 = vpop.xlane.xlu0 %3720
        %v3722 = vadd.f32 %v3624, %v3625
        %3723 = vadd.xlane.f32.xlu0 %v3722
        %v3724 = vpop.xlane.xlu0 %3723
        %v3725 = vadd.f32 %v3626, %v3627
        %3726 = vadd.xlane.f32.xlu0 %v3725
        %v3727 = vpop.xlane.xlu0 %3726
        %v3728 = vadd.f32 %v3628, %v3629
        %3729 = vadd.xlane.f32.xlu0 %v3728
        %v3730 = vpop.xlane.xlu0 %3729
        %v3731 = vadd.f32 %v3630, %v3631
        %3732 = vadd.xlane.f32.xlu0 %v3731
        %v3733 = vpop.xlane.xlu0 %3732
        %v3734 = vadd.f32 %v3632, %v3633
        %3735 = vadd.xlane.f32.xlu0 %v3734
        %v3736 = vpop.xlane.xlu0 %3735
        %v3737 = vadd.f32 %v3634, %v3635
        %3738 = vadd.xlane.f32.xlu0 %v3737
        %v3739 = vpop.xlane.xlu0 %3738
        %v3740 = vadd.f32 %v3636, %v3637
        %3741 = vadd.xlane.f32.xlu0 %v3740
        %v3742 = vpop.xlane.xlu0 %3741
        %v3743 = vadd.f32 %v3638, %v3639
        %3744 = vadd.xlane.f32.xlu0 %v3743
        %v3745 = vpop.xlane.xlu0 %3744
        %v3746 = vadd.f32 %v3640, %v3641
        %3747 = vadd.xlane.f32.xlu0 %v3746
        %v3748 = vpop.xlane.xlu0 %3747
        %v3749 = vadd.f32 %v3642, %v3643
        %3750 = vadd.xlane.f32.xlu0 %v3749
        %v3751 = vpop.xlane.xlu0 %3750
        %v3752 = vadd.f32 %v3644, %v3645
        %3753 = vadd.xlane.f32.xlu0 %v3752
        %v3754 = vpop.xlane.xlu0 %3753
        %v3755 = vadd.f32 %v3646, %v3647
        %3756 = vadd.xlane.f32.xlu0 %v3755
        %v3757 = vpop.xlane.xlu0 %3756
        %v3758 = vadd.f32 %v3648, %v3649
        %3759 = vadd.xlane.f32.xlu0 %v3758
        %v3760 = vpop.xlane.xlu0 %3759
        %v3761 = vadd.f32 %v3650, %v3651
        %3762 = vadd.xlane.f32.xlu0 %v3761
        %v3763 = vpop.xlane.xlu0 %3762
        %v3764 = vadd.f32 %v3652, %v3653
        %3765 = vadd.xlane.f32.xlu0 %v3764
        %v3766 = vpop.xlane.xlu0 %3765
        %v3767 = vadd.f32 %v3654, %v3655
        %3768 = vadd.xlane.f32.xlu0 %v3767
        %v3769 = vpop.xlane.xlu0 %3768
        %v3770 = vadd.f32 %v3656, %v3657
        %3771 = vadd.xlane.f32.xlu0 %v3770
        %v3772 = vpop.xlane.xlu0 %3771
        %v3773 = vadd.f32 %v3658, %v3659
        %3774 = vadd.xlane.f32.xlu0 %v3773
        %v3775 = vpop.xlane.xlu0 %3774
        %v3776 = vadd.f32 %v3660, %v3661
        %3777 = vadd.xlane.f32.xlu0 %v3776
        %v3778 = vpop.xlane.xlu0 %3777
        %v3779 = vadd.f32 %v3662, %v3663
        %3780 = vadd.xlane.f32.xlu0 %v3779
        %v3781 = vpop.xlane.xlu0 %3780
        %v3782 = vadd.f32 %v3664, %v3665
        %3783 = vadd.xlane.f32.xlu0 %v3782
        %v3784 = vpop.xlane.xlu0 %3783
        %v3785 = vadd.f32 %v3666, %v3667
        %3786 = vadd.xlane.f32.xlu0 %v3785
        %v3787 = vpop.xlane.xlu0 %3786
        %v3788 = vadd.f32 %v3668, %v3669
        %3789 = vadd.xlane.f32.xlu0 %v3788
        %v3790 = vpop.xlane.xlu0 %3789
        %v3791 = vadd.f32 %v3670, %v3671
        %3792 = vadd.xlane.f32.xlu0 %v3791
        %v3793 = vpop.xlane.xlu0 %3792
        %v3794 = vadd.f32 %v3672, %v3673
        %3795 = vadd.xlane.f32.xlu0 %v3794
        %v3796 = vpop.xlane.xlu0 %3795
        %v3797 = vadd.f32 %v3674, %v3675
        %3798 = vadd.xlane.f32.xlu0 %v3797
        %v3799 = vpop.xlane.xlu0 %3798
        %v3800 = vadd.f32 %v3676, %v3677
        %3801 = vadd.xlane.f32.xlu0 %v3800
        %v3802 = vpop.xlane.xlu0 %3801
        %v3803 = vadd.f32 %v3678, %v3679
        %3804 = vadd.xlane.f32.xlu0 %v3803
        %v3805 = vpop.xlane.xlu0 %3804
        %v3806 = vadd.f32 %v3680, %v3681
        %3807 = vadd.xlane.f32.xlu0 %v3806
        %v3808 = vpop.xlane.xlu0 %3807
        %v3809 = vadd.f32 %v3682, %v3683
        %3810 = vadd.xlane.f32.xlu0 %v3809
        %v3811 = vpop.xlane.xlu0 %3810
        %v3812 = vadd.f32 %v3684, %v3718
        %v3813 = vadd.f32 %v3685, %v3721
        %v3814 = vadd.f32 %v3686, %v3724
        %v3815 = vadd.f32 %v3687, %v3727
        %v3816 = vadd.f32 %v3688, %v3730
        %v3817 = vadd.f32 %v3689, %v3733
        %v3818 = vadd.f32 %v3690, %v3736
        %v3819 = vadd.f32 %v3691, %v3739
        %v3820 = vadd.f32 %v3692, %v3742
        %v3821 = vadd.f32 %v3693, %v3745
        %v3822 = vadd.f32 %v3694, %v3748
        %v3823 = vadd.f32 %v3695, %v3751
        %v3824 = vadd.f32 %v3696, %v3754
        %v3825 = vadd.f32 %v3697, %v3757
        %v3826 = vadd.f32 %v3698, %v3760
        %v3827 = vadd.f32 %v3699, %v3763
        %v3828 = vadd.f32 %v3700, %v3766
        %v3829 = vadd.f32 %v3701, %v3769
        %v3830 = vadd.f32 %v3702, %v3772
        %v3831 = vadd.f32 %v3703, %v3775
        %v3832 = vadd.f32 %v3704, %v3778
        %v3833 = vadd.f32 %v3705, %v3781
        %v3834 = vadd.f32 %v3706, %v3784
        %v3835 = vadd.f32 %v3707, %v3787
        %v3836 = vadd.f32 %v3708, %v3790
        %v3837 = vadd.f32 %v3709, %v3793
        %v3838 = vadd.f32 %v3710, %v3796
        %v3839 = vadd.f32 %v3711, %v3799
        %v3840 = vadd.f32 %v3712, %v3802
        %v3841 = vadd.f32 %v3713, %v3805
        %v3842 = vadd.f32 %v3714, %v3808
        %v3843 = vadd.f32 %v3715, %v3811
        %3845 = vset.pattern.permute.xlu0 32
        %3846 = vperm.xlu0 %3845, %v3364
        %v3847 = vpop.permute.xlu0 %3846
        %3850 = vset.pattern.permute.xlu0 32
        %3851 = vperm.xlu0 %3850, %v3365
        %v3852 = vpop.permute.xlu0 %3851
        %3855 = vset.pattern.permute.xlu0 32
        %3856 = vperm.xlu0 %3855, %v3366
        %v3857 = vpop.permute.xlu0 %3856
        %3860 = vset.pattern.permute.xlu0 32
        %3861 = vperm.xlu0 %3860, %v3367
        %v3862 = vpop.permute.xlu0 %3861
        %3865 = vset.pattern.permute.xlu0 32
        %3866 = vperm.xlu0 %3865, %v3368
        %v3867 = vpop.permute.xlu0 %3866
        %3870 = vset.pattern.permute.xlu0 32
        %3871 = vperm.xlu0 %3870, %v3369
        %v3872 = vpop.permute.xlu0 %3871
        %3875 = vset.pattern.permute.xlu0 32
        %3876 = vperm.xlu0 %3875, %v3370
        %v3877 = vpop.permute.xlu0 %3876
        %3880 = vset.pattern.permute.xlu0 32
        %3881 = vperm.xlu0 %3880, %v3371
        %v3882 = vpop.permute.xlu0 %3881
        %3885 = vset.pattern.permute.xlu0 32
        %3886 = vperm.xlu0 %3885, %v3372
        %v3887 = vpop.permute.xlu0 %3886
        %3890 = vset.pattern.permute.xlu0 32
        %3891 = vperm.xlu0 %3890, %v3373
        %v3892 = vpop.permute.xlu0 %3891
        %3895 = vset.pattern.permute.xlu0 32
        %3896 = vperm.xlu0 %3895, %v3374
        %v3897 = vpop.permute.xlu0 %3896
        %3900 = vset.pattern.permute.xlu0 32
        %3901 = vperm.xlu0 %3900, %v3375
        %v3902 = vpop.permute.xlu0 %3901
        %3905 = vset.pattern.permute.xlu0 32
        %3906 = vperm.xlu0 %3905, %v3376
        %v3907 = vpop.permute.xlu0 %3906
        %3910 = vset.pattern.permute.xlu0 32
        %3911 = vperm.xlu0 %3910, %v3377
        %v3912 = vpop.permute.xlu0 %3911
        %3915 = vset.pattern.permute.xlu0 32
        %3916 = vperm.xlu0 %3915, %v3378
        %v3917 = vpop.permute.xlu0 %3916
        %3920 = vset.pattern.permute.xlu0 32
        %3921 = vperm.xlu0 %3920, %v3379
        %v3922 = vpop.permute.xlu0 %3921
        %3925 = vset.pattern.permute.xlu0 32
        %3926 = vperm.xlu0 %3925, %v3380
        %v3927 = vpop.permute.xlu0 %3926
        %3930 = vset.pattern.permute.xlu0 32
        %3931 = vperm.xlu0 %3930, %v3381
        %v3932 = vpop.permute.xlu0 %3931
        %3935 = vset.pattern.permute.xlu0 32
        %3936 = vperm.xlu0 %3935, %v3382
        %v3937 = vpop.permute.xlu0 %3936
        %3940 = vset.pattern.permute.xlu0 32
        %3941 = vperm.xlu0 %3940, %v3383
        %v3942 = vpop.permute.xlu0 %3941
        %3945 = vset.pattern.permute.xlu0 32
        %3946 = vperm.xlu0 %3945, %v3384
        %v3947 = vpop.permute.xlu0 %3946
        %3950 = vset.pattern.permute.xlu0 32
        %3951 = vperm.xlu0 %3950, %v3385
        %v3952 = vpop.permute.xlu0 %3951
        %3955 = vset.pattern.permute.xlu0 32
        %3956 = vperm.xlu0 %3955, %v3386
        %v3957 = vpop.permute.xlu0 %3956
        %3960 = vset.pattern.permute.xlu0 32
        %3961 = vperm.xlu0 %3960, %v3387
        %v3962 = vpop.permute.xlu0 %3961
        %3965 = vset.pattern.permute.xlu0 32
        %3966 = vperm.xlu0 %3965, %v3388
        %v3967 = vpop.permute.xlu0 %3966
        %3970 = vset.pattern.permute.xlu0 32
        %3971 = vperm.xlu0 %3970, %v3389
        %v3972 = vpop.permute.xlu0 %3971
        %3975 = vset.pattern.permute.xlu0 32
        %3976 = vperm.xlu0 %3975, %v3390
        %v3977 = vpop.permute.xlu0 %3976
        %3980 = vset.pattern.permute.xlu0 32
        %3981 = vperm.xlu0 %3980, %v3391
        %v3982 = vpop.permute.xlu0 %3981
        %3985 = vset.pattern.permute.xlu0 32
        %3986 = vperm.xlu0 %3985, %v3392
        %v3987 = vpop.permute.xlu0 %3986
        %3990 = vset.pattern.permute.xlu0 32
        %3991 = vperm.xlu0 %3990, %v3393
        %v3992 = vpop.permute.xlu0 %3991
        %3995 = vset.pattern.permute.xlu0 32
        %3996 = vperm.xlu0 %3995, %v3394
        %v3997 = vpop.permute.xlu0 %3996
        %4000 = vset.pattern.permute.xlu0 32
        %4001 = vperm.xlu0 %4000, %v3395
        %v4002 = vpop.permute.xlu0 %4001
        %v4004 = vmul.f32 %v3847, %v1069
        %v4005 = vmul.f32 %v3852, %v1070
        %v4006 = vmul.f32 %v3857, %v1071
        %v4007 = vmul.f32 %v3862, %v1072
        %v4008 = vmul.f32 %v3867, %v1073
        %v4009 = vmul.f32 %v3872, %v1074
        %v4010 = vmul.f32 %v3877, %v1075
        %v4011 = vmul.f32 %v3882, %v1076
        %v4012 = vmul.f32 %v3887, %v1077
        %v4013 = vmul.f32 %v3892, %v1078
        %v4014 = vmul.f32 %v3897, %v1079
        %v4015 = vmul.f32 %v3902, %v1080
        %v4016 = vmul.f32 %v3907, %v1081
        %v4017 = vmul.f32 %v3912, %v1082
        %v4018 = vmul.f32 %v3917, %v1083
        %v4019 = vmul.f32 %v3922, %v1084
        %v4020 = vmul.f32 %v3927, %v1085
        %v4021 = vmul.f32 %v3932, %v1086
        %v4022 = vmul.f32 %v3937, %v1087
        %v4023 = vmul.f32 %v3942, %v1088
        %v4024 = vmul.f32 %v3947, %v1089
        %v4025 = vmul.f32 %v3952, %v1090
        %v4026 = vmul.f32 %v3957, %v1091
        %v4027 = vmul.f32 %v3962, %v1092
        %v4028 = vmul.f32 %v3967, %v1093
        %v4029 = vmul.f32 %v3972, %v1094
        %v4030 = vmul.f32 %v3977, %v1095
        %v4031 = vmul.f32 %v3982, %v1096
        %v4032 = vmul.f32 %v3987, %v1097
        %v4033 = vmul.f32 %v3992, %v1098
        %v4034 = vmul.f32 %v3997, %v1099
        %v4035 = vmul.f32 %v4002, %v1100
        %v4036 = vpack.c.bf16 %v3622, %v3620
        %v4037 = vpack.c.bf16 %v3623, %v3621
        %v4038 = vpack.c.bf16 %v3626, %v3624
        %v4039 = vpack.c.bf16 %v3627, %v3625
        %v4040 = vpack.c.bf16 %v3630, %v3628
        %v4041 = vpack.c.bf16 %v3631, %v3629
        %v4042 = vpack.c.bf16 %v3634, %v3632
        %v4043 = vpack.c.bf16 %v3635, %v3633
        %v4044 = vpack.c.bf16 %v3638, %v3636
        %v4045 = vpack.c.bf16 %v3639, %v3637
        %v4046 = vpack.c.bf16 %v3642, %v3640
        %v4047 = vpack.c.bf16 %v3643, %v3641
        %v4048 = vpack.c.bf16 %v3646, %v3644
        %v4049 = vpack.c.bf16 %v3647, %v3645
        %v4050 = vpack.c.bf16 %v3650, %v3648
        %v4051 = vpack.c.bf16 %v3651, %v3649
        %v4052 = vpack.c.bf16 %v3654, %v3652
        %v4053 = vpack.c.bf16 %v3655, %v3653
        %v4054 = vpack.c.bf16 %v3658, %v3656
        %v4055 = vpack.c.bf16 %v3659, %v3657
        %v4056 = vpack.c.bf16 %v3662, %v3660
        %v4057 = vpack.c.bf16 %v3663, %v3661
        %v4058 = vpack.c.bf16 %v3666, %v3664
        %v4059 = vpack.c.bf16 %v3667, %v3665
        %v4060 = vpack.c.bf16 %v3670, %v3668
        %v4061 = vpack.c.bf16 %v3671, %v3669
        %v4062 = vpack.c.bf16 %v3674, %v3672
        %v4063 = vpack.c.bf16 %v3675, %v3673
        %v4064 = vpack.c.bf16 %v3678, %v3676
        %v4065 = vpack.c.bf16 %v3679, %v3677
        %v4066 = vpack.c.bf16 %v3682, %v3680
        %v4067 = vpack.c.bf16 %v3683, %v3681
        %4068 = vrot.lane.b32.xlu0 %v2464, 96
        %v4069 = vpop.permute.xlu0 %4068
        %4070 = vrot.lane.b32.xlu0 %v2465, 96
        %v4071 = vpop.permute.xlu0 %4070
        %4072 = vrot.lane.b32.xlu0 %v2466, 96
        %v4073 = vpop.permute.xlu0 %4072
        %4074 = vrot.lane.b32.xlu0 %v2467, 96
        %v4075 = vpop.permute.xlu0 %4074
        %4076 = vrot.lane.b32.xlu0 %v2468, 96
        %v4077 = vpop.permute.xlu0 %4076
        %4078 = vrot.lane.b32.xlu0 %v2469, 96
        %v4079 = vpop.permute.xlu0 %4078
        %4080 = vrot.lane.b32.xlu0 %v2470, 96
        %v4081 = vpop.permute.xlu0 %4080
        %4082 = vrot.lane.b32.xlu0 %v2471, 96
        %v4083 = vpop.permute.xlu0 %4082
        %4084 = vrot.lane.b32.xlu0 %v2472, 96
        %v4085 = vpop.permute.xlu0 %4084
        %4086 = vrot.lane.b32.xlu0 %v2473, 96
        %v4087 = vpop.permute.xlu0 %4086
        %4088 = vrot.lane.b32.xlu0 %v2474, 96
        %v4089 = vpop.permute.xlu0 %4088
        %4090 = vrot.lane.b32.xlu0 %v2475, 96
        %v4091 = vpop.permute.xlu0 %4090
        %4092 = vrot.lane.b32.xlu0 %v2476, 96
        %v4093 = vpop.permute.xlu0 %4092
        %4094 = vrot.lane.b32.xlu0 %v2477, 96
        %v4095 = vpop.permute.xlu0 %4094
        %4096 = vrot.lane.b32.xlu0 %v2478, 96
        %v4097 = vpop.permute.xlu0 %4096
        %4098 = vrot.lane.b32.xlu0 %v2479, 96
        %v4099 = vpop.permute.xlu0 %4098
        %4116 = vmatpush.bf16.msra.mxu0 %v4083
        %4117 = vmatpush.bf16.msra.mxu0 %v4081
        %4118 = vmatpush.bf16.msra.mxu0 %v4079
        %4119 = vmatpush.bf16.msra.mxu0 %v4077
        %4120 = vmatpush.bf16.msra.mxu0 %v4075
        %4121 = vmatpush.bf16.msra.mxu0 %v4073
        %4122 = vmatpush.bf16.msra.mxu0 %v4071
        %4123 = vmatpush.bf16.msra.mxu0 %v4069
        %4124 = vmatmul.bf16.gmra.mxu0 %v4036
        %v4125 = vpop.f32.mrf.mxu0
        %v4126 = vadd.f32 0.0, %v4125
        %v4127 = vpop.f32.mrf.mxu0
        %v4128 = vadd.f32 0.0, %v4127
        %4129 = vmatmul.bf16.gmra.mxu0 %v4038
        %v4130 = vpop.f32.mrf.mxu0
        %v4131 = vadd.f32 0.0, %v4130
        %v4132 = vpop.f32.mrf.mxu0
        %v4133 = vadd.f32 0.0, %v4132
        %4134 = vmatmul.bf16.gmra.mxu0 %v4040
        %v4135 = vpop.f32.mrf.mxu0
        %v4136 = vadd.f32 0.0, %v4135
        %v4137 = vpop.f32.mrf.mxu0
        %v4138 = vadd.f32 0.0, %v4137
        %4139 = vmatmul.bf16.gmra.mxu0 %v4042
        %v4140 = vpop.f32.mrf.mxu0
        %v4141 = vadd.f32 0.0, %v4140
        %v4142 = vpop.f32.mrf.mxu0
        %v4143 = vadd.f32 0.0, %v4142
        %4144 = vmatmul.bf16.gmra.mxu0 %v4044
        %v4145 = vpop.f32.mrf.mxu0
        %v4146 = vadd.f32 0.0, %v4145
        %v4147 = vpop.f32.mrf.mxu0
        %v4148 = vadd.f32 0.0, %v4147
        %4149 = vmatmul.bf16.gmra.mxu0 %v4046
        %v4150 = vpop.f32.mrf.mxu0
        %v4151 = vadd.f32 0.0, %v4150
        %v4152 = vpop.f32.mrf.mxu0
        %v4153 = vadd.f32 0.0, %v4152
        %4154 = vmatmul.bf16.gmra.mxu0 %v4048
        %v4155 = vpop.f32.mrf.mxu0
        %v4156 = vadd.f32 0.0, %v4155
        %v4157 = vpop.f32.mrf.mxu0
        %v4158 = vadd.f32 0.0, %v4157
        %4159 = vmatmul.bf16.gmra.mxu0 %v4050
        %v4160 = vpop.f32.mrf.mxu0
        %v4161 = vadd.f32 0.0, %v4160
        %v4162 = vpop.f32.mrf.mxu0
        %v4163 = vadd.f32 0.0, %v4162
        %4164 = vmatmul.bf16.gmra.mxu0 %v4052
        %v4165 = vpop.f32.mrf.mxu0
        %v4166 = vadd.f32 0.0, %v4165
        %v4167 = vpop.f32.mrf.mxu0
        %v4168 = vadd.f32 0.0, %v4167
        %4169 = vmatmul.bf16.gmra.mxu0 %v4054
        %v4170 = vpop.f32.mrf.mxu0
        %v4171 = vadd.f32 0.0, %v4170
        %v4172 = vpop.f32.mrf.mxu0
        %v4173 = vadd.f32 0.0, %v4172
        %4174 = vmatmul.bf16.gmra.mxu0 %v4056
        %v4175 = vpop.f32.mrf.mxu0
        %v4176 = vadd.f32 0.0, %v4175
        %v4177 = vpop.f32.mrf.mxu0
        %v4178 = vadd.f32 0.0, %v4177
        %4179 = vmatmul.bf16.gmra.mxu0 %v4058
        %v4180 = vpop.f32.mrf.mxu0
        %v4181 = vadd.f32 0.0, %v4180
        %v4182 = vpop.f32.mrf.mxu0
        %v4183 = vadd.f32 0.0, %v4182
        %4184 = vmatmul.bf16.gmra.mxu0 %v4060
        %v4185 = vpop.f32.mrf.mxu0
        %v4186 = vadd.f32 0.0, %v4185
        %v4187 = vpop.f32.mrf.mxu0
        %v4188 = vadd.f32 0.0, %v4187
        %4189 = vmatmul.bf16.gmra.mxu0 %v4062
        %v4190 = vpop.f32.mrf.mxu0
        %v4191 = vadd.f32 0.0, %v4190
        %v4192 = vpop.f32.mrf.mxu0
        %v4193 = vadd.f32 0.0, %v4192
        %4194 = vmatmul.bf16.gmra.mxu0 %v4064
        %v4195 = vpop.f32.mrf.mxu0
        %v4196 = vadd.f32 0.0, %v4195
        %v4197 = vpop.f32.mrf.mxu0
        %v4198 = vadd.f32 0.0, %v4197
        %4199 = vmatmul.bf16.gmra.mxu0 %v4066
        %v4200 = vpop.f32.mrf.mxu0
        %v4201 = vadd.f32 0.0, %v4200
        %v4202 = vpop.f32.mrf.mxu0
        %v4203 = vadd.f32 0.0, %v4202
        %4204 = vdwg.mxu0
        %4205 = vmatpush.bf16.msra.mxu0 %v4099
        %4206 = vmatpush.bf16.msra.mxu0 %v4097
        %4207 = vmatpush.bf16.msra.mxu0 %v4095
        %4208 = vmatpush.bf16.msra.mxu0 %v4093
        %4209 = vmatpush.bf16.msra.mxu0 %v4091
        %4210 = vmatpush.bf16.msra.mxu0 %v4089
        %4211 = vmatpush.bf16.msra.mxu0 %v4087
        %4212 = vmatpush.bf16.msra.mxu0 %v4085
        %4213 = vmatmul.bf16.gmra.mxu0 %v4037
        %v4214 = vpop.f32.mrf.mxu0
        %v4215 = vadd.f32 %v4126, %v4214
        %v4216 = vpop.f32.mrf.mxu0
        %v4217 = vadd.f32 %v4128, %v4216
        %4218 = vmatmul.bf16.gmra.mxu0 %v4039
        %v4219 = vpop.f32.mrf.mxu0
        %v4220 = vadd.f32 %v4131, %v4219
        %v4221 = vpop.f32.mrf.mxu0
        %v4222 = vadd.f32 %v4133, %v4221
        %4223 = vmatmul.bf16.gmra.mxu0 %v4041
        %v4224 = vpop.f32.mrf.mxu0
        %v4225 = vadd.f32 %v4136, %v4224
        %v4226 = vpop.f32.mrf.mxu0
        %v4227 = vadd.f32 %v4138, %v4226
        %4228 = vmatmul.bf16.gmra.mxu0 %v4043
        %v4229 = vpop.f32.mrf.mxu0
        %v4230 = vadd.f32 %v4141, %v4229
        %v4231 = vpop.f32.mrf.mxu0
        %v4232 = vadd.f32 %v4143, %v4231
        %4233 = vmatmul.bf16.gmra.mxu0 %v4045
        %v4234 = vpop.f32.mrf.mxu0
        %v4235 = vadd.f32 %v4146, %v4234
        %v4236 = vpop.f32.mrf.mxu0
        %v4237 = vadd.f32 %v4148, %v4236
        %4238 = vmatmul.bf16.gmra.mxu0 %v4047
        %v4239 = vpop.f32.mrf.mxu0
        %v4240 = vadd.f32 %v4151, %v4239
        %v4241 = vpop.f32.mrf.mxu0
        %v4242 = vadd.f32 %v4153, %v4241
        %4243 = vmatmul.bf16.gmra.mxu0 %v4049
        %v4244 = vpop.f32.mrf.mxu0
        %v4245 = vadd.f32 %v4156, %v4244
        %v4246 = vpop.f32.mrf.mxu0
        %v4247 = vadd.f32 %v4158, %v4246
        %4248 = vmatmul.bf16.gmra.mxu0 %v4051
        %v4249 = vpop.f32.mrf.mxu0
        %v4250 = vadd.f32 %v4161, %v4249
        %v4251 = vpop.f32.mrf.mxu0
        %v4252 = vadd.f32 %v4163, %v4251
        %4253 = vmatmul.bf16.gmra.mxu0 %v4053
        %v4254 = vpop.f32.mrf.mxu0
        %v4255 = vadd.f32 %v4166, %v4254
        %v4256 = vpop.f32.mrf.mxu0
        %v4257 = vadd.f32 %v4168, %v4256
        %4258 = vmatmul.bf16.gmra.mxu0 %v4055
        %v4259 = vpop.f32.mrf.mxu0
        %v4260 = vadd.f32 %v4171, %v4259
        %v4261 = vpop.f32.mrf.mxu0
        %v4262 = vadd.f32 %v4173, %v4261
        %4263 = vmatmul.bf16.gmra.mxu0 %v4057
        %v4264 = vpop.f32.mrf.mxu0
        %v4265 = vadd.f32 %v4176, %v4264
        %v4266 = vpop.f32.mrf.mxu0
        %v4267 = vadd.f32 %v4178, %v4266
        %4268 = vmatmul.bf16.gmra.mxu0 %v4059
        %v4269 = vpop.f32.mrf.mxu0
        %v4270 = vadd.f32 %v4181, %v4269
        %v4271 = vpop.f32.mrf.mxu0
        %v4272 = vadd.f32 %v4183, %v4271
        %4273 = vmatmul.bf16.gmra.mxu0 %v4061
        %v4274 = vpop.f32.mrf.mxu0
        %v4275 = vadd.f32 %v4186, %v4274
        %v4276 = vpop.f32.mrf.mxu0
        %v4277 = vadd.f32 %v4188, %v4276
        %4278 = vmatmul.bf16.gmra.mxu0 %v4063
        %v4279 = vpop.f32.mrf.mxu0
        %v4280 = vadd.f32 %v4191, %v4279
        %v4281 = vpop.f32.mrf.mxu0
        %v4282 = vadd.f32 %v4193, %v4281
        %4283 = vmatmul.bf16.gmra.mxu0 %v4065
        %v4284 = vpop.f32.mrf.mxu0
        %v4285 = vadd.f32 %v4196, %v4284
        %v4286 = vpop.f32.mrf.mxu0
        %v4287 = vadd.f32 %v4198, %v4286
        %4288 = vmatmul.bf16.gmra.mxu0 %v4067
        %v4289 = vpop.f32.mrf.mxu0
        %v4290 = vadd.f32 %v4201, %v4289
        %v4291 = vpop.f32.mrf.mxu0
        %v4292 = vadd.f32 %v4203, %v4291
        %4293 = vdwg.mxu0
        %4326 = vrot.lane.b32.xlu0 %v4215, 32
        %v4327 = vpop.permute.xlu0 %4326
        %4328 = vrot.lane.b32.xlu0 %v4217, 32
        %v4329 = vpop.permute.xlu0 %4328
        %4330 = vrot.lane.b32.xlu0 %v4220, 32
        %v4331 = vpop.permute.xlu0 %4330
        %4332 = vrot.lane.b32.xlu0 %v4222, 32
        %v4333 = vpop.permute.xlu0 %4332
        %4334 = vrot.lane.b32.xlu0 %v4225, 32
        %v4335 = vpop.permute.xlu0 %4334
        %4336 = vrot.lane.b32.xlu0 %v4227, 32
        %v4337 = vpop.permute.xlu0 %4336
        %4338 = vrot.lane.b32.xlu0 %v4230, 32
        %v4339 = vpop.permute.xlu0 %4338
        %4340 = vrot.lane.b32.xlu0 %v4232, 32
        %v4341 = vpop.permute.xlu0 %4340
        %4342 = vrot.lane.b32.xlu0 %v4235, 32
        %v4343 = vpop.permute.xlu0 %4342
        %4344 = vrot.lane.b32.xlu0 %v4237, 32
        %v4345 = vpop.permute.xlu0 %4344
        %4346 = vrot.lane.b32.xlu0 %v4240, 32
        %v4347 = vpop.permute.xlu0 %4346
        %4348 = vrot.lane.b32.xlu0 %v4242, 32
        %v4349 = vpop.permute.xlu0 %4348
        %4350 = vrot.lane.b32.xlu0 %v4245, 32
        %v4351 = vpop.permute.xlu0 %4350
        %4352 = vrot.lane.b32.xlu0 %v4247, 32
        %v4353 = vpop.permute.xlu0 %4352
        %4354 = vrot.lane.b32.xlu0 %v4250, 32
        %v4355 = vpop.permute.xlu0 %4354
        %4356 = vrot.lane.b32.xlu0 %v4252, 32
        %v4357 = vpop.permute.xlu0 %4356
        %4358 = vrot.lane.b32.xlu0 %v4255, 32
        %v4359 = vpop.permute.xlu0 %4358
        %4360 = vrot.lane.b32.xlu0 %v4257, 32
        %v4361 = vpop.permute.xlu0 %4360
        %4362 = vrot.lane.b32.xlu0 %v4260, 32
        %v4363 = vpop.permute.xlu0 %4362
        %4364 = vrot.lane.b32.xlu0 %v4262, 32
        %v4365 = vpop.permute.xlu0 %4364
        %4366 = vrot.lane.b32.xlu0 %v4265, 32
        %v4367 = vpop.permute.xlu0 %4366
        %4368 = vrot.lane.b32.xlu0 %v4267, 32
        %v4369 = vpop.permute.xlu0 %4368
        %4370 = vrot.lane.b32.xlu0 %v4270, 32
        %v4371 = vpop.permute.xlu0 %4370
        %4372 = vrot.lane.b32.xlu0 %v4272, 32
        %v4373 = vpop.permute.xlu0 %4372
        %4374 = vrot.lane.b32.xlu0 %v4275, 32
        %v4375 = vpop.permute.xlu0 %4374
        %4376 = vrot.lane.b32.xlu0 %v4277, 32
        %v4377 = vpop.permute.xlu0 %4376
        %4378 = vrot.lane.b32.xlu0 %v4280, 32
        %v4379 = vpop.permute.xlu0 %4378
        %4380 = vrot.lane.b32.xlu0 %v4282, 32
        %v4381 = vpop.permute.xlu0 %4380
        %4382 = vrot.lane.b32.xlu0 %v4285, 32
        %v4383 = vpop.permute.xlu0 %4382
        %4384 = vrot.lane.b32.xlu0 %v4287, 32
        %v4385 = vpop.permute.xlu0 %4384
        %4386 = vrot.lane.b32.xlu0 %v4290, 32
        %v4387 = vpop.permute.xlu0 %4386
        %4388 = vrot.lane.b32.xlu0 %v4292, 32
        %v4389 = vpop.permute.xlu0 %4388
        %v4422 = vadd.f32 %v4004, %v4327
        %v4423 = vadd.f32 %v4005, %v4329
        %v4424 = vadd.f32 %v4006, %v4331
        %v4425 = vadd.f32 %v4007, %v4333
        %v4426 = vadd.f32 %v4008, %v4335
        %v4427 = vadd.f32 %v4009, %v4337
        %v4428 = vadd.f32 %v4010, %v4339
        %v4429 = vadd.f32 %v4011, %v4341
        %v4430 = vadd.f32 %v4012, %v4343
        %v4431 = vadd.f32 %v4013, %v4345
        %v4432 = vadd.f32 %v4014, %v4347
        %v4433 = vadd.f32 %v4015, %v4349
        %v4434 = vadd.f32 %v4016, %v4351
        %v4435 = vadd.f32 %v4017, %v4353
        %v4436 = vadd.f32 %v4018, %v4355
        %v4437 = vadd.f32 %v4019, %v4357
        %v4438 = vadd.f32 %v4020, %v4359
        %v4439 = vadd.f32 %v4021, %v4361
        %v4440 = vadd.f32 %v4022, %v4363
        %v4441 = vadd.f32 %v4023, %v4365
        %v4442 = vadd.f32 %v4024, %v4367
        %v4443 = vadd.f32 %v4025, %v4369
        %v4444 = vadd.f32 %v4026, %v4371
        %v4445 = vadd.f32 %v4027, %v4373
        %v4446 = vadd.f32 %v4028, %v4375
        %v4447 = vadd.f32 %v4029, %v4377
        %v4448 = vadd.f32 %v4030, %v4379
        %v4449 = vadd.f32 %v4031, %v4381
        %v4450 = vadd.f32 %v4032, %v4383
        %v4451 = vadd.f32 %v4033, %v4385
        %v4452 = vadd.f32 %v4034, %v4387
        %v4453 = vadd.f32 %v4035, %v4389
        %4455 = vset.pattern.permute.xlu0 32
        %4456 = vperm.xlu0 %4455, %v3812
        %v4457 = vpop.permute.xlu0 %4456
        %4460 = vset.pattern.permute.xlu0 32
        %4461 = vperm.xlu0 %4460, %v3813
        %v4462 = vpop.permute.xlu0 %4461
        %4465 = vset.pattern.permute.xlu0 32
        %4466 = vperm.xlu0 %4465, %v3814
        %v4467 = vpop.permute.xlu0 %4466
        %4470 = vset.pattern.permute.xlu0 32
        %4471 = vperm.xlu0 %4470, %v3815
        %v4472 = vpop.permute.xlu0 %4471
        %4475 = vset.pattern.permute.xlu0 32
        %4476 = vperm.xlu0 %4475, %v3816
        %v4477 = vpop.permute.xlu0 %4476
        %4480 = vset.pattern.permute.xlu0 32
        %4481 = vperm.xlu0 %4480, %v3817
        %v4482 = vpop.permute.xlu0 %4481
        %4485 = vset.pattern.permute.xlu0 32
        %4486 = vperm.xlu0 %4485, %v3818
        %v4487 = vpop.permute.xlu0 %4486
        %4490 = vset.pattern.permute.xlu0 32
        %4491 = vperm.xlu0 %4490, %v3819
        %v4492 = vpop.permute.xlu0 %4491
        %4495 = vset.pattern.permute.xlu0 32
        %4496 = vperm.xlu0 %4495, %v3820
        %v4497 = vpop.permute.xlu0 %4496
        %4500 = vset.pattern.permute.xlu0 32
        %4501 = vperm.xlu0 %4500, %v3821
        %v4502 = vpop.permute.xlu0 %4501
        %4505 = vset.pattern.permute.xlu0 32
        %4506 = vperm.xlu0 %4505, %v3822
        %v4507 = vpop.permute.xlu0 %4506
        %4510 = vset.pattern.permute.xlu0 32
        %4511 = vperm.xlu0 %4510, %v3823
        %v4512 = vpop.permute.xlu0 %4511
        %4515 = vset.pattern.permute.xlu0 32
        %4516 = vperm.xlu0 %4515, %v3824
        %v4517 = vpop.permute.xlu0 %4516
        %4520 = vset.pattern.permute.xlu0 32
        %4521 = vperm.xlu0 %4520, %v3825
        %v4522 = vpop.permute.xlu0 %4521
        %4525 = vset.pattern.permute.xlu0 32
        %4526 = vperm.xlu0 %4525, %v3826
        %v4527 = vpop.permute.xlu0 %4526
        %4530 = vset.pattern.permute.xlu0 32
        %4531 = vperm.xlu0 %4530, %v3827
        %v4532 = vpop.permute.xlu0 %4531
        %4535 = vset.pattern.permute.xlu0 32
        %4536 = vperm.xlu0 %4535, %v3828
        %v4537 = vpop.permute.xlu0 %4536
        %4540 = vset.pattern.permute.xlu0 32
        %4541 = vperm.xlu0 %4540, %v3829
        %v4542 = vpop.permute.xlu0 %4541
        %4545 = vset.pattern.permute.xlu0 32
        %4546 = vperm.xlu0 %4545, %v3830
        %v4547 = vpop.permute.xlu0 %4546
        %4550 = vset.pattern.permute.xlu0 32
        %4551 = vperm.xlu0 %4550, %v3831
        %v4552 = vpop.permute.xlu0 %4551
        %4555 = vset.pattern.permute.xlu0 32
        %4556 = vperm.xlu0 %4555, %v3832
        %v4557 = vpop.permute.xlu0 %4556
        %4560 = vset.pattern.permute.xlu0 32
        %4561 = vperm.xlu0 %4560, %v3833
        %v4562 = vpop.permute.xlu0 %4561
        %4565 = vset.pattern.permute.xlu0 32
        %4566 = vperm.xlu0 %4565, %v3834
        %v4567 = vpop.permute.xlu0 %4566
        %4570 = vset.pattern.permute.xlu0 32
        %4571 = vperm.xlu0 %4570, %v3835
        %v4572 = vpop.permute.xlu0 %4571
        %4575 = vset.pattern.permute.xlu0 32
        %4576 = vperm.xlu0 %4575, %v3836
        %v4577 = vpop.permute.xlu0 %4576
        %4580 = vset.pattern.permute.xlu0 32
        %4581 = vperm.xlu0 %4580, %v3837
        %v4582 = vpop.permute.xlu0 %4581
        %4585 = vset.pattern.permute.xlu0 32
        %4586 = vperm.xlu0 %4585, %v3838
        %v4587 = vpop.permute.xlu0 %4586
        %4590 = vset.pattern.permute.xlu0 32
        %4591 = vperm.xlu0 %4590, %v3839
        %v4592 = vpop.permute.xlu0 %4591
        %4595 = vset.pattern.permute.xlu0 32
        %4596 = vperm.xlu0 %4595, %v3840
        %v4597 = vpop.permute.xlu0 %4596
        %4600 = vset.pattern.permute.xlu0 32
        %4601 = vperm.xlu0 %4600, %v3841
        %v4602 = vpop.permute.xlu0 %4601
        %4605 = vset.pattern.permute.xlu0 32
        %4606 = vperm.xlu0 %4605, %v3842
        %v4607 = vpop.permute.xlu0 %4606
        %4610 = vset.pattern.permute.xlu0 32
        %4611 = vperm.xlu0 %4610, %v3843
        %v4612 = vpop.permute.xlu0 %4611
        %4614 = vrot.lane.b32.xlu0 %v1165, 64
        %v4615 = vpop.permute.xlu0 %4614
        %4616 = vrot.lane.b32.xlu0 %v1166, 64
        %v4617 = vpop.permute.xlu0 %4616
        %4618 = vrot.lane.b32.xlu0 %v1167, 64
        %v4619 = vpop.permute.xlu0 %4618
        %4620 = vrot.lane.b32.xlu0 %v1168, 64
        %v4621 = vpop.permute.xlu0 %4620
        %4622 = vrot.lane.b32.xlu0 %v1169, 64
        %v4623 = vpop.permute.xlu0 %4622
        %4624 = vrot.lane.b32.xlu0 %v1170, 64
        %v4625 = vpop.permute.xlu0 %4624
        %4626 = vrot.lane.b32.xlu0 %v1171, 64
        %v4627 = vpop.permute.xlu0 %4626
        %4628 = vrot.lane.b32.xlu0 %v1172, 64
        %v4629 = vpop.permute.xlu0 %4628
        %4630 = vrot.lane.b32.xlu0 %v1173, 64
        %v4631 = vpop.permute.xlu0 %4630
        %4632 = vrot.lane.b32.xlu0 %v1174, 64
        %v4633 = vpop.permute.xlu0 %4632
        %4634 = vrot.lane.b32.xlu0 %v1175, 64
        %v4635 = vpop.permute.xlu0 %4634
        %4636 = vrot.lane.b32.xlu0 %v1176, 64
        %v4637 = vpop.permute.xlu0 %4636
        %4638 = vrot.lane.b32.xlu0 %v1177, 64
        %v4639 = vpop.permute.xlu0 %4638
        %4640 = vrot.lane.b32.xlu0 %v1178, 64
        %v4641 = vpop.permute.xlu0 %4640
        %4642 = vrot.lane.b32.xlu0 %v1179, 64
        %v4643 = vpop.permute.xlu0 %4642
        %4644 = vrot.lane.b32.xlu0 %v1180, 64
        %v4645 = vpop.permute.xlu0 %4644
        %4646 = vrot.lane.b32.xlu0 %v1245, 64
        %v4647 = vpop.permute.xlu0 %4646
        %4648 = vrot.lane.b32.xlu0 %v1246, 64
        %v4649 = vpop.permute.xlu0 %4648
        %4650 = vrot.lane.b32.xlu0 %v1247, 64
        %v4651 = vpop.permute.xlu0 %4650
        %4652 = vrot.lane.b32.xlu0 %v1248, 64
        %v4653 = vpop.permute.xlu0 %4652
        %4654 = vrot.lane.b32.xlu0 %v1249, 64
        %v4655 = vpop.permute.xlu0 %4654
        %4656 = vrot.lane.b32.xlu0 %v1250, 64
        %v4657 = vpop.permute.xlu0 %4656
        %4658 = vrot.lane.b32.xlu0 %v1251, 64
        %v4659 = vpop.permute.xlu0 %4658
        %4660 = vrot.lane.b32.xlu0 %v1252, 64
        %v4661 = vpop.permute.xlu0 %4660
        %4662 = vrot.lane.b32.xlu0 %v1253, 64
        %v4663 = vpop.permute.xlu0 %4662
        %4664 = vrot.lane.b32.xlu0 %v1254, 64
        %v4665 = vpop.permute.xlu0 %4664
        %4666 = vrot.lane.b32.xlu0 %v1255, 64
        %v4667 = vpop.permute.xlu0 %4666
        %4668 = vrot.lane.b32.xlu0 %v1256, 64
        %v4669 = vpop.permute.xlu0 %4668
        %4670 = vrot.lane.b32.xlu0 %v1257, 64
        %v4671 = vpop.permute.xlu0 %4670
        %4672 = vrot.lane.b32.xlu0 %v1258, 64
        %v4673 = vpop.permute.xlu0 %4672
        %4674 = vrot.lane.b32.xlu0 %v1259, 64
        %v4675 = vpop.permute.xlu0 %4674
        %4676 = vrot.lane.b32.xlu0 %v1260, 64
        %v4677 = vpop.permute.xlu0 %4676
        %v4679 = vsel %vm1261, %v4615, 0
        %v4682 = vsel %vm1261, %v4617, 0
        %v4685 = vsel %vm1261, %v4619, 0
        %v4688 = vsel %vm1261, %v4621, 0
        %v4691 = vsel %vm1261, %v4623, 0
        %v4694 = vsel %vm1261, %v4625, 0
        %v4697 = vsel %vm1261, %v4627, 0
        %v4700 = vsel %vm1261, %v4629, 0
        %v4703 = vsel %vm1261, %v4631, 0
        %v4706 = vsel %vm1261, %v4633, 0
        %v4709 = vsel %vm1261, %v4635, 0
        %v4712 = vsel %vm1261, %v4637, 0
        %v4715 = vsel %vm1261, %v4639, 0
        %v4718 = vsel %vm1261, %v4641, 0
        %v4721 = vsel %vm1261, %v4643, 0
        %v4724 = vsel %vm1261, %v4645, 0
        %v4727 = vsel %vm1261, %v4647, 0
        %v4730 = vsel %vm1261, %v4649, 0
        %v4733 = vsel %vm1261, %v4651, 0
        %v4736 = vsel %vm1261, %v4653, 0
        %v4739 = vsel %vm1261, %v4655, 0
        %v4742 = vsel %vm1261, %v4657, 0
        %v4745 = vsel %vm1261, %v4659, 0
        %v4748 = vsel %vm1261, %v4661, 0
        %v4751 = vsel %vm1261, %v4663, 0
        %v4754 = vsel %vm1261, %v4665, 0
        %v4757 = vsel %vm1261, %v4667, 0
        %v4760 = vsel %vm1261, %v4669, 0
        %v4763 = vsel %vm1261, %v4671, 0
        %v4766 = vsel %vm1261, %v4673, 0
        %v4769 = vsel %vm1261, %v4675, 0
        %v4772 = vsel %vm1261, %v4677, 0
        %4774 = vmatpush.bf16.xpose.msra.mxu0 %v4748
        %4775 = vmatpush.bf16.xpose.msra.mxu0 %v4745
        %4776 = vmatpush.bf16.xpose.msra.mxu0 %v4742
        %4777 = vmatpush.bf16.xpose.msra.mxu0 %v4739
        %4778 = vmatpush.bf16.xpose.msra.mxu0 %v4736
        %4779 = vmatpush.bf16.xpose.msra.mxu0 %v4733
        %4780 = vmatpush.bf16.xpose.msra.mxu0 %v4730
        %4781 = vmatpush.bf16.xpose.msra.mxu0 %v4727
        %4782 = vmatmul.bf16.gmra.mxu0 %v4679
        %v4783 = vpop.f32.mrf.mxu0
        %v4784 = vadd.f32 0.0, %v4783
        %v4785 = vpop.f32.mrf.mxu0
        %v4786 = vadd.f32 0.0, %v4785
        %4787 = vmatmul.bf16.gmra.mxu0 %v4682
        %v4788 = vpop.f32.mrf.mxu0
        %v4789 = vadd.f32 0.0, %v4788
        %v4790 = vpop.f32.mrf.mxu0
        %v4791 = vadd.f32 0.0, %v4790
        %4792 = vmatmul.bf16.gmra.mxu0 %v4685
        %v4793 = vpop.f32.mrf.mxu0
        %v4794 = vadd.f32 0.0, %v4793
        %v4795 = vpop.f32.mrf.mxu0
        %v4796 = vadd.f32 0.0, %v4795
        %4797 = vmatmul.bf16.gmra.mxu0 %v4688
        %v4798 = vpop.f32.mrf.mxu0
        %v4799 = vadd.f32 0.0, %v4798
        %v4800 = vpop.f32.mrf.mxu0
        %v4801 = vadd.f32 0.0, %v4800
        %4802 = vmatmul.bf16.gmra.mxu0 %v4691
        %v4803 = vpop.f32.mrf.mxu0
        %v4804 = vadd.f32 0.0, %v4803
        %v4805 = vpop.f32.mrf.mxu0
        %v4806 = vadd.f32 0.0, %v4805
        %4807 = vmatmul.bf16.gmra.mxu0 %v4694
        %v4808 = vpop.f32.mrf.mxu0
        %v4809 = vadd.f32 0.0, %v4808
        %v4810 = vpop.f32.mrf.mxu0
        %v4811 = vadd.f32 0.0, %v4810
        %4812 = vmatmul.bf16.gmra.mxu0 %v4697
        %v4813 = vpop.f32.mrf.mxu0
        %v4814 = vadd.f32 0.0, %v4813
        %v4815 = vpop.f32.mrf.mxu0
        %v4816 = vadd.f32 0.0, %v4815
        %4817 = vmatmul.bf16.gmra.mxu0 %v4700
        %v4818 = vpop.f32.mrf.mxu0
        %v4819 = vadd.f32 0.0, %v4818
        %v4820 = vpop.f32.mrf.mxu0
        %v4821 = vadd.f32 0.0, %v4820
        %4822 = vmatmul.bf16.gmra.mxu0 %v4703
        %v4823 = vpop.f32.mrf.mxu0
        %v4824 = vadd.f32 0.0, %v4823
        %v4825 = vpop.f32.mrf.mxu0
        %v4826 = vadd.f32 0.0, %v4825
        %4827 = vmatmul.bf16.gmra.mxu0 %v4706
        %v4828 = vpop.f32.mrf.mxu0
        %v4829 = vadd.f32 0.0, %v4828
        %v4830 = vpop.f32.mrf.mxu0
        %v4831 = vadd.f32 0.0, %v4830
        %4832 = vmatmul.bf16.gmra.mxu0 %v4709
        %v4833 = vpop.f32.mrf.mxu0
        %v4834 = vadd.f32 0.0, %v4833
        %v4835 = vpop.f32.mrf.mxu0
        %v4836 = vadd.f32 0.0, %v4835
        %4837 = vmatmul.bf16.gmra.mxu0 %v4712
        %v4838 = vpop.f32.mrf.mxu0
        %v4839 = vadd.f32 0.0, %v4838
        %v4840 = vpop.f32.mrf.mxu0
        %v4841 = vadd.f32 0.0, %v4840
        %4842 = vmatmul.bf16.gmra.mxu0 %v4715
        %v4843 = vpop.f32.mrf.mxu0
        %v4844 = vadd.f32 0.0, %v4843
        %v4845 = vpop.f32.mrf.mxu0
        %v4846 = vadd.f32 0.0, %v4845
        %4847 = vmatmul.bf16.gmra.mxu0 %v4718
        %v4848 = vpop.f32.mrf.mxu0
        %v4849 = vadd.f32 0.0, %v4848
        %v4850 = vpop.f32.mrf.mxu0
        %v4851 = vadd.f32 0.0, %v4850
        %4852 = vmatmul.bf16.gmra.mxu0 %v4721
        %v4853 = vpop.f32.mrf.mxu0
        %v4854 = vadd.f32 0.0, %v4853
        %v4855 = vpop.f32.mrf.mxu0
        %v4856 = vadd.f32 0.0, %v4855
        %4857 = vmatmul.bf16.gmra.mxu0 %v4724
        %v4858 = vpop.f32.mrf.mxu0
        %v4859 = vadd.f32 0.0, %v4858
        %v4860 = vpop.f32.mrf.mxu0
        %v4861 = vadd.f32 0.0, %v4860
        %4862 = vdwg.mxu0
        %4863 = vmatpush.bf16.xpose.msra.mxu0 %v4772
        %4864 = vmatpush.bf16.xpose.msra.mxu0 %v4769
        %4865 = vmatpush.bf16.xpose.msra.mxu0 %v4766
        %4866 = vmatpush.bf16.xpose.msra.mxu0 %v4763
        %4867 = vmatpush.bf16.xpose.msra.mxu0 %v4760
        %4868 = vmatpush.bf16.xpose.msra.mxu0 %v4757
        %4869 = vmatpush.bf16.xpose.msra.mxu0 %v4754
        %4870 = vmatpush.bf16.xpose.msra.mxu0 %v4751
        %4871 = vmatmul.bf16.gmra.mxu0 %v4679
        %v4872 = vpop.f32.mrf.mxu0
        %v4873 = vadd.f32 0.0, %v4872
        %v4874 = vpop.f32.mrf.mxu0
        %v4875 = vadd.f32 0.0, %v4874
        %4876 = vmatmul.bf16.gmra.mxu0 %v4682
        %v4877 = vpop.f32.mrf.mxu0
        %v4878 = vadd.f32 0.0, %v4877
        %v4879 = vpop.f32.mrf.mxu0
        %v4880 = vadd.f32 0.0, %v4879
        %4881 = vmatmul.bf16.gmra.mxu0 %v4685
        %v4882 = vpop.f32.mrf.mxu0
        %v4883 = vadd.f32 0.0, %v4882
        %v4884 = vpop.f32.mrf.mxu0
        %v4885 = vadd.f32 0.0, %v4884
        %4886 = vmatmul.bf16.gmra.mxu0 %v4688
        %v4887 = vpop.f32.mrf.mxu0
        %v4888 = vadd.f32 0.0, %v4887
        %v4889 = vpop.f32.mrf.mxu0
        %v4890 = vadd.f32 0.0, %v4889
        %4891 = vmatmul.bf16.gmra.mxu0 %v4691
        %v4892 = vpop.f32.mrf.mxu0
        %v4893 = vadd.f32 0.0, %v4892
        %v4894 = vpop.f32.mrf.mxu0
        %v4895 = vadd.f32 0.0, %v4894
        %4896 = vmatmul.bf16.gmra.mxu0 %v4694
        %v4897 = vpop.f32.mrf.mxu0
        %v4898 = vadd.f32 0.0, %v4897
        %v4899 = vpop.f32.mrf.mxu0
        %v4900 = vadd.f32 0.0, %v4899
        %4901 = vmatmul.bf16.gmra.mxu0 %v4697
        %v4902 = vpop.f32.mrf.mxu0
        %v4903 = vadd.f32 0.0, %v4902
        %v4904 = vpop.f32.mrf.mxu0
        %v4905 = vadd.f32 0.0, %v4904
        %4906 = vmatmul.bf16.gmra.mxu0 %v4700
        %v4907 = vpop.f32.mrf.mxu0
        %v4908 = vadd.f32 0.0, %v4907
        %v4909 = vpop.f32.mrf.mxu0
        %v4910 = vadd.f32 0.0, %v4909
        %4911 = vmatmul.bf16.gmra.mxu0 %v4703
        %v4912 = vpop.f32.mrf.mxu0
        %v4913 = vadd.f32 0.0, %v4912
        %v4914 = vpop.f32.mrf.mxu0
        %v4915 = vadd.f32 0.0, %v4914
        %4916 = vmatmul.bf16.gmra.mxu0 %v4706
        %v4917 = vpop.f32.mrf.mxu0
        %v4918 = vadd.f32 0.0, %v4917
        %v4919 = vpop.f32.mrf.mxu0
        %v4920 = vadd.f32 0.0, %v4919
        %4921 = vmatmul.bf16.gmra.mxu0 %v4709
        %v4922 = vpop.f32.mrf.mxu0
        %v4923 = vadd.f32 0.0, %v4922
        %v4924 = vpop.f32.mrf.mxu0
        %v4925 = vadd.f32 0.0, %v4924
        %4926 = vmatmul.bf16.gmra.mxu0 %v4712
        %v4927 = vpop.f32.mrf.mxu0
        %v4928 = vadd.f32 0.0, %v4927
        %v4929 = vpop.f32.mrf.mxu0
        %v4930 = vadd.f32 0.0, %v4929
        %4931 = vmatmul.bf16.gmra.mxu0 %v4715
        %v4932 = vpop.f32.mrf.mxu0
        %v4933 = vadd.f32 0.0, %v4932
        %v4934 = vpop.f32.mrf.mxu0
        %v4935 = vadd.f32 0.0, %v4934
        %4936 = vmatmul.bf16.gmra.mxu0 %v4718
        %v4937 = vpop.f32.mrf.mxu0
        %v4938 = vadd.f32 0.0, %v4937
        %v4939 = vpop.f32.mrf.mxu0
        %v4940 = vadd.f32 0.0, %v4939
        %4941 = vmatmul.bf16.gmra.mxu0 %v4721
        %v4942 = vpop.f32.mrf.mxu0
        %v4943 = vadd.f32 0.0, %v4942
        %v4944 = vpop.f32.mrf.mxu0
        %v4945 = vadd.f32 0.0, %v4944
        %4946 = vmatmul.bf16.gmra.mxu0 %v4724
        %v4947 = vpop.f32.mrf.mxu0
        %v4948 = vadd.f32 0.0, %v4947
        %v4949 = vpop.f32.mrf.mxu0
        %v4950 = vadd.f32 0.0, %v4949
        %4951 = vdwg.mxu0
        %v4952 = vmax.f32 %v4784, %v4873
        %4953 = vmax.xlane.f32.xlu0 %v4952
        %v4954 = vpop.xlane.xlu0 %4953
        %v4955 = vmax.f32 %v4786, %v4875
        %4956 = vmax.xlane.f32.xlu0 %v4955
        %v4957 = vpop.xlane.xlu0 %4956
        %v4958 = vmax.f32 %v4789, %v4878
        %4959 = vmax.xlane.f32.xlu0 %v4958
        %v4960 = vpop.xlane.xlu0 %4959
        %v4961 = vmax.f32 %v4791, %v4880
        %4962 = vmax.xlane.f32.xlu0 %v4961
        %v4963 = vpop.xlane.xlu0 %4962
        %v4964 = vmax.f32 %v4794, %v4883
        %4965 = vmax.xlane.f32.xlu0 %v4964
        %v4966 = vpop.xlane.xlu0 %4965
        %v4967 = vmax.f32 %v4796, %v4885
        %4968 = vmax.xlane.f32.xlu0 %v4967
        %v4969 = vpop.xlane.xlu0 %4968
        %v4970 = vmax.f32 %v4799, %v4888
        %4971 = vmax.xlane.f32.xlu0 %v4970
        %v4972 = vpop.xlane.xlu0 %4971
        %v4973 = vmax.f32 %v4801, %v4890
        %4974 = vmax.xlane.f32.xlu0 %v4973
        %v4975 = vpop.xlane.xlu0 %4974
        %v4976 = vmax.f32 %v4804, %v4893
        %4977 = vmax.xlane.f32.xlu0 %v4976
        %v4978 = vpop.xlane.xlu0 %4977
        %v4979 = vmax.f32 %v4806, %v4895
        %4980 = vmax.xlane.f32.xlu0 %v4979
        %v4981 = vpop.xlane.xlu0 %4980
        %v4982 = vmax.f32 %v4809, %v4898
        %4983 = vmax.xlane.f32.xlu0 %v4982
        %v4984 = vpop.xlane.xlu0 %4983
        %v4985 = vmax.f32 %v4811, %v4900
        %4986 = vmax.xlane.f32.xlu0 %v4985
        %v4987 = vpop.xlane.xlu0 %4986
        %v4988 = vmax.f32 %v4814, %v4903
        %4989 = vmax.xlane.f32.xlu0 %v4988
        %v4990 = vpop.xlane.xlu0 %4989
        %v4991 = vmax.f32 %v4816, %v4905
        %4992 = vmax.xlane.f32.xlu0 %v4991
        %v4993 = vpop.xlane.xlu0 %4992
        %v4994 = vmax.f32 %v4819, %v4908
        %4995 = vmax.xlane.f32.xlu0 %v4994
        %v4996 = vpop.xlane.xlu0 %4995
        %v4997 = vmax.f32 %v4821, %v4910
        %4998 = vmax.xlane.f32.xlu0 %v4997
        %v4999 = vpop.xlane.xlu0 %4998
        %v5000 = vmax.f32 %v4824, %v4913
        %5001 = vmax.xlane.f32.xlu0 %v5000
        %v5002 = vpop.xlane.xlu0 %5001
        %v5003 = vmax.f32 %v4826, %v4915
        %5004 = vmax.xlane.f32.xlu0 %v5003
        %v5005 = vpop.xlane.xlu0 %5004
        %v5006 = vmax.f32 %v4829, %v4918
        %5007 = vmax.xlane.f32.xlu0 %v5006
        %v5008 = vpop.xlane.xlu0 %5007
        %v5009 = vmax.f32 %v4831, %v4920
        %5010 = vmax.xlane.f32.xlu0 %v5009
        %v5011 = vpop.xlane.xlu0 %5010
        %v5012 = vmax.f32 %v4834, %v4923
        %5013 = vmax.xlane.f32.xlu0 %v5012
        %v5014 = vpop.xlane.xlu0 %5013
        %v5015 = vmax.f32 %v4836, %v4925
        %5016 = vmax.xlane.f32.xlu0 %v5015
        %v5017 = vpop.xlane.xlu0 %5016
        %v5018 = vmax.f32 %v4839, %v4928
        %5019 = vmax.xlane.f32.xlu0 %v5018
        %v5020 = vpop.xlane.xlu0 %5019
        %v5021 = vmax.f32 %v4841, %v4930
        %5022 = vmax.xlane.f32.xlu0 %v5021
        %v5023 = vpop.xlane.xlu0 %5022
        %v5024 = vmax.f32 %v4844, %v4933
        %5025 = vmax.xlane.f32.xlu0 %v5024
        %v5026 = vpop.xlane.xlu0 %5025
        %v5027 = vmax.f32 %v4846, %v4935
        %5028 = vmax.xlane.f32.xlu0 %v5027
        %v5029 = vpop.xlane.xlu0 %5028
        %v5030 = vmax.f32 %v4849, %v4938
        %5031 = vmax.xlane.f32.xlu0 %v5030
        %v5032 = vpop.xlane.xlu0 %5031
        %v5033 = vmax.f32 %v4851, %v4940
        %5034 = vmax.xlane.f32.xlu0 %v5033
        %v5035 = vpop.xlane.xlu0 %5034
        %v5036 = vmax.f32 %v4854, %v4943
        %5037 = vmax.xlane.f32.xlu0 %v5036
        %v5038 = vpop.xlane.xlu0 %5037
        %v5039 = vmax.f32 %v4856, %v4945
        %5040 = vmax.xlane.f32.xlu0 %v5039
        %v5041 = vpop.xlane.xlu0 %5040
        %v5042 = vmax.f32 %v4859, %v4948
        %5043 = vmax.xlane.f32.xlu0 %v5042
        %v5044 = vpop.xlane.xlu0 %5043
        %v5045 = vmax.f32 %v4861, %v4950
        %5046 = vmax.xlane.f32.xlu0 %v5045
        %v5047 = vpop.xlane.xlu0 %5046
        %v5048 = vmax.f32 %v1005, %v4954
        %v5049 = vmax.f32 %v1006, %v4957
        %v5050 = vmax.f32 %v1007, %v4960
        %v5051 = vmax.f32 %v1008, %v4963
        %v5052 = vmax.f32 %v1009, %v4966
        %v5053 = vmax.f32 %v1010, %v4969
        %v5054 = vmax.f32 %v1011, %v4972
        %v5055 = vmax.f32 %v1012, %v4975
        %v5056 = vmax.f32 %v1013, %v4978
        %v5057 = vmax.f32 %v1014, %v4981
        %v5058 = vmax.f32 %v1015, %v4984
        %v5059 = vmax.f32 %v1016, %v4987
        %v5060 = vmax.f32 %v1017, %v4990
        %v5061 = vmax.f32 %v1018, %v4993
        %v5062 = vmax.f32 %v1019, %v4996
        %v5063 = vmax.f32 %v1020, %v4999
        %v5064 = vmax.f32 %v1021, %v5002
        %v5065 = vmax.f32 %v1022, %v5005
        %v5066 = vmax.f32 %v1023, %v5008
        %v5067 = vmax.f32 %v1024, %v5011
        %v5068 = vmax.f32 %v1025, %v5014
        %v5069 = vmax.f32 %v1026, %v5017
        %v5070 = vmax.f32 %v1027, %v5020
        %v5071 = vmax.f32 %v1028, %v5023
        %v5072 = vmax.f32 %v1029, %v5026
        %v5073 = vmax.f32 %v1030, %v5029
        %v5074 = vmax.f32 %v1031, %v5032
        %v5075 = vmax.f32 %v1032, %v5035
        %v5076 = vmax.f32 %v1033, %v5038
        %v5077 = vmax.f32 %v1034, %v5041
        %v5078 = vmax.f32 %v1035, %v5044
        %v5079 = vmax.f32 %v1036, %v5047
        %v5080 = vsub.f32 %v1005, %v5048
        %v5081 = vsub.f32 %v1006, %v5049
        %v5082 = vsub.f32 %v1007, %v5050
        %v5083 = vsub.f32 %v1008, %v5051
        %v5084 = vsub.f32 %v1009, %v5052
        %v5085 = vsub.f32 %v1010, %v5053
        %v5086 = vsub.f32 %v1011, %v5054
        %v5087 = vsub.f32 %v1012, %v5055
        %v5088 = vsub.f32 %v1013, %v5056
        %v5089 = vsub.f32 %v1014, %v5057
        %v5090 = vsub.f32 %v1015, %v5058
        %v5091 = vsub.f32 %v1016, %v5059
        %v5092 = vsub.f32 %v1017, %v5060
        %v5093 = vsub.f32 %v1018, %v5061
        %v5094 = vsub.f32 %v1019, %v5062
        %v5095 = vsub.f32 %v1020, %v5063
        %v5096 = vsub.f32 %v1021, %v5064
        %v5097 = vsub.f32 %v1022, %v5065
        %v5098 = vsub.f32 %v1023, %v5066
        %v5099 = vsub.f32 %v1024, %v5067
        %v5100 = vsub.f32 %v1025, %v5068
        %v5101 = vsub.f32 %v1026, %v5069
        %v5102 = vsub.f32 %v1027, %v5070
        %v5103 = vsub.f32 %v1028, %v5071
        %v5104 = vsub.f32 %v1029, %v5072
        %v5105 = vsub.f32 %v1030, %v5073
        %v5106 = vsub.f32 %v1031, %v5074
        %v5107 = vsub.f32 %v1032, %v5075
        %v5108 = vsub.f32 %v1033, %v5076
        %v5109 = vsub.f32 %v1034, %v5077
        %v5110 = vsub.f32 %v1035, %v5078
        %v5111 = vsub.f32 %v1036, %v5079
        %v5112 = vpow.pop %v5080
        %v5113 = vpow.pop %v5081
        %v5114 = vpow.pop %v5082
        %v5115 = vpow.pop %v5083
        %v5116 = vpow.pop %v5084
        %v5117 = vpow.pop %v5085
        %v5118 = vpow.pop %v5086
        %v5119 = vpow.pop %v5087
        %v5120 = vpow.pop %v5088
        %v5121 = vpow.pop %v5089
        %v5122 = vpow.pop %v5090
        %v5123 = vpow.pop %v5091
        %v5124 = vpow.pop %v5092
        %v5125 = vpow.pop %v5093
        %v5126 = vpow.pop %v5094
        %v5127 = vpow.pop %v5095
        %v5128 = vpow.pop %v5096
        %v5129 = vpow.pop %v5097
        %v5130 = vpow.pop %v5098
        %v5131 = vpow.pop %v5099
        %v5132 = vpow.pop %v5100
        %v5133 = vpow.pop %v5101
        %v5134 = vpow.pop %v5102
        %v5135 = vpow.pop %v5103
        %v5136 = vpow.pop %v5104
        %v5137 = vpow.pop %v5105
        %v5138 = vpow.pop %v5106
        %v5139 = vpow.pop %v5107
        %v5140 = vpow.pop %v5108
        %v5141 = vpow.pop %v5109
        %v5142 = vpow.pop %v5110
        %v5143 = vpow.pop %v5111
        %5145 = vset.pattern.permute.xlu0 64
        %5146 = vperm.xlu0 %5145, %v5048
        %v5147 = vpop.permute.xlu0 %5146
        %5150 = vset.pattern.permute.xlu0 64
        %5151 = vperm.xlu0 %5150, %v5049
        %v5152 = vpop.permute.xlu0 %5151
        %5155 = vset.pattern.permute.xlu0 64
        %5156 = vperm.xlu0 %5155, %v5050
        %v5157 = vpop.permute.xlu0 %5156
        %5160 = vset.pattern.permute.xlu0 64
        %5161 = vperm.xlu0 %5160, %v5051
        %v5162 = vpop.permute.xlu0 %5161
        %5165 = vset.pattern.permute.xlu0 64
        %5166 = vperm.xlu0 %5165, %v5052
        %v5167 = vpop.permute.xlu0 %5166
        %5170 = vset.pattern.permute.xlu0 64
        %5171 = vperm.xlu0 %5170, %v5053
        %v5172 = vpop.permute.xlu0 %5171
        %5175 = vset.pattern.permute.xlu0 64
        %5176 = vperm.xlu0 %5175, %v5054
        %v5177 = vpop.permute.xlu0 %5176
        %5180 = vset.pattern.permute.xlu0 64
        %5181 = vperm.xlu0 %5180, %v5055
        %v5182 = vpop.permute.xlu0 %5181
        %5185 = vset.pattern.permute.xlu0 64
        %5186 = vperm.xlu0 %5185, %v5056
        %v5187 = vpop.permute.xlu0 %5186
        %5190 = vset.pattern.permute.xlu0 64
        %5191 = vperm.xlu0 %5190, %v5057
        %v5192 = vpop.permute.xlu0 %5191
        %5195 = vset.pattern.permute.xlu0 64
        %5196 = vperm.xlu0 %5195, %v5058
        %v5197 = vpop.permute.xlu0 %5196
        %5200 = vset.pattern.permute.xlu0 64
        %5201 = vperm.xlu0 %5200, %v5059
        %v5202 = vpop.permute.xlu0 %5201
        %5205 = vset.pattern.permute.xlu0 64
        %5206 = vperm.xlu0 %5205, %v5060
        %v5207 = vpop.permute.xlu0 %5206
        %5210 = vset.pattern.permute.xlu0 64
        %5211 = vperm.xlu0 %5210, %v5061
        %v5212 = vpop.permute.xlu0 %5211
        %5215 = vset.pattern.permute.xlu0 64
        %5216 = vperm.xlu0 %5215, %v5062
        %v5217 = vpop.permute.xlu0 %5216
        %5220 = vset.pattern.permute.xlu0 64
        %5221 = vperm.xlu0 %5220, %v5063
        %v5222 = vpop.permute.xlu0 %5221
        %5225 = vset.pattern.permute.xlu0 64
        %5226 = vperm.xlu0 %5225, %v5064
        %v5227 = vpop.permute.xlu0 %5226
        %5230 = vset.pattern.permute.xlu0 64
        %5231 = vperm.xlu0 %5230, %v5065
        %v5232 = vpop.permute.xlu0 %5231
        %5235 = vset.pattern.permute.xlu0 64
        %5236 = vperm.xlu0 %5235, %v5066
        %v5237 = vpop.permute.xlu0 %5236
        %5240 = vset.pattern.permute.xlu0 64
        %5241 = vperm.xlu0 %5240, %v5067
        %v5242 = vpop.permute.xlu0 %5241
        %5245 = vset.pattern.permute.xlu0 64
        %5246 = vperm.xlu0 %5245, %v5068
        %v5247 = vpop.permute.xlu0 %5246
        %5250 = vset.pattern.permute.xlu0 64
        %5251 = vperm.xlu0 %5250, %v5069
        %v5252 = vpop.permute.xlu0 %5251
        %5255 = vset.pattern.permute.xlu0 64
        %5256 = vperm.xlu0 %5255, %v5070
        %v5257 = vpop.permute.xlu0 %5256
        %5260 = vset.pattern.permute.xlu0 64
        %5261 = vperm.xlu0 %5260, %v5071
        %v5262 = vpop.permute.xlu0 %5261
        %5265 = vset.pattern.permute.xlu0 64
        %5266 = vperm.xlu0 %5265, %v5072
        %v5267 = vpop.permute.xlu0 %5266
        %5270 = vset.pattern.permute.xlu0 64
        %5271 = vperm.xlu0 %5270, %v5073
        %v5272 = vpop.permute.xlu0 %5271
        %5275 = vset.pattern.permute.xlu0 64
        %5276 = vperm.xlu0 %5275, %v5074
        %v5277 = vpop.permute.xlu0 %5276
        %5280 = vset.pattern.permute.xlu0 64
        %5281 = vperm.xlu0 %5280, %v5075
        %v5282 = vpop.permute.xlu0 %5281
        %5285 = vset.pattern.permute.xlu0 64
        %5286 = vperm.xlu0 %5285, %v5076
        %v5287 = vpop.permute.xlu0 %5286
        %5290 = vset.pattern.permute.xlu0 64
        %5291 = vperm.xlu0 %5290, %v5077
        %v5292 = vpop.permute.xlu0 %5291
        %5295 = vset.pattern.permute.xlu0 64
        %5296 = vperm.xlu0 %5295, %v5078
        %v5297 = vpop.permute.xlu0 %5296
        %5300 = vset.pattern.permute.xlu0 64
        %5301 = vperm.xlu0 %5300, %v5079
        %v5302 = vpop.permute.xlu0 %5301
        %v5304 = vsub.f32 %v4784, %v5147
        %v5305 = vsub.f32 %v4873, %v5147
        %v5306 = vsub.f32 %v4786, %v5152
        %v5307 = vsub.f32 %v4875, %v5152
        %v5308 = vsub.f32 %v4789, %v5157
        %v5309 = vsub.f32 %v4878, %v5157
        %v5310 = vsub.f32 %v4791, %v5162
        %v5311 = vsub.f32 %v4880, %v5162
        %v5312 = vsub.f32 %v4794, %v5167
        %v5313 = vsub.f32 %v4883, %v5167
        %v5314 = vsub.f32 %v4796, %v5172
        %v5315 = vsub.f32 %v4885, %v5172
        %v5316 = vsub.f32 %v4799, %v5177
        %v5317 = vsub.f32 %v4888, %v5177
        %v5318 = vsub.f32 %v4801, %v5182
        %v5319 = vsub.f32 %v4890, %v5182
        %v5320 = vsub.f32 %v4804, %v5187
        %v5321 = vsub.f32 %v4893, %v5187
        %v5322 = vsub.f32 %v4806, %v5192
        %v5323 = vsub.f32 %v4895, %v5192
        %v5324 = vsub.f32 %v4809, %v5197
        %v5325 = vsub.f32 %v4898, %v5197
        %v5326 = vsub.f32 %v4811, %v5202
        %v5327 = vsub.f32 %v4900, %v5202
        %v5328 = vsub.f32 %v4814, %v5207
        %v5329 = vsub.f32 %v4903, %v5207
        %v5330 = vsub.f32 %v4816, %v5212
        %v5331 = vsub.f32 %v4905, %v5212
        %v5332 = vsub.f32 %v4819, %v5217
        %v5333 = vsub.f32 %v4908, %v5217
        %v5334 = vsub.f32 %v4821, %v5222
        %v5335 = vsub.f32 %v4910, %v5222
        %v5336 = vsub.f32 %v4824, %v5227
        %v5337 = vsub.f32 %v4913, %v5227
        %v5338 = vsub.f32 %v4826, %v5232
        %v5339 = vsub.f32 %v4915, %v5232
        %v5340 = vsub.f32 %v4829, %v5237
        %v5341 = vsub.f32 %v4918, %v5237
        %v5342 = vsub.f32 %v4831, %v5242
        %v5343 = vsub.f32 %v4920, %v5242
        %v5344 = vsub.f32 %v4834, %v5247
        %v5345 = vsub.f32 %v4923, %v5247
        %v5346 = vsub.f32 %v4836, %v5252
        %v5347 = vsub.f32 %v4925, %v5252
        %v5348 = vsub.f32 %v4839, %v5257
        %v5349 = vsub.f32 %v4928, %v5257
        %v5350 = vsub.f32 %v4841, %v5262
        %v5351 = vsub.f32 %v4930, %v5262
        %v5352 = vsub.f32 %v4844, %v5267
        %v5353 = vsub.f32 %v4933, %v5267
        %v5354 = vsub.f32 %v4846, %v5272
        %v5355 = vsub.f32 %v4935, %v5272
        %v5356 = vsub.f32 %v4849, %v5277
        %v5357 = vsub.f32 %v4938, %v5277
        %v5358 = vsub.f32 %v4851, %v5282
        %v5359 = vsub.f32 %v4940, %v5282
        %v5360 = vsub.f32 %v4854, %v5287
        %v5361 = vsub.f32 %v4943, %v5287
        %v5362 = vsub.f32 %v4856, %v5292
        %v5363 = vsub.f32 %v4945, %v5292
        %v5364 = vsub.f32 %v4859, %v5297
        %v5365 = vsub.f32 %v4948, %v5297
        %v5366 = vsub.f32 %v4861, %v5302
        %v5367 = vsub.f32 %v4950, %v5302
        %v5368 = vpow.pop %v5304
        %v5369 = vpow.pop %v5305
        %v5370 = vpow.pop %v5306
        %v5371 = vpow.pop %v5307
        %v5372 = vpow.pop %v5308
        %v5373 = vpow.pop %v5309
        %v5374 = vpow.pop %v5310
        %v5375 = vpow.pop %v5311
        %v5376 = vpow.pop %v5312
        %v5377 = vpow.pop %v5313
        %v5378 = vpow.pop %v5314
        %v5379 = vpow.pop %v5315
        %v5380 = vpow.pop %v5316
        %v5381 = vpow.pop %v5317
        %v5382 = vpow.pop %v5318
        %v5383 = vpow.pop %v5319
        %v5384 = vpow.pop %v5320
        %v5385 = vpow.pop %v5321
        %v5386 = vpow.pop %v5322
        %v5387 = vpow.pop %v5323
        %v5388 = vpow.pop %v5324
        %v5389 = vpow.pop %v5325
        %v5390 = vpow.pop %v5326
        %v5391 = vpow.pop %v5327
        %v5392 = vpow.pop %v5328
        %v5393 = vpow.pop %v5329
        %v5394 = vpow.pop %v5330
        %v5395 = vpow.pop %v5331
        %v5396 = vpow.pop %v5332
        %v5397 = vpow.pop %v5333
        %v5398 = vpow.pop %v5334
        %v5399 = vpow.pop %v5335
        %v5400 = vpow.pop %v5336
        %v5401 = vpow.pop %v5337
        %v5402 = vpow.pop %v5338
        %v5403 = vpow.pop %v5339
        %v5404 = vpow.pop %v5340
        %v5405 = vpow.pop %v5341
        %v5406 = vpow.pop %v5342
        %v5407 = vpow.pop %v5343
        %v5408 = vpow.pop %v5344
        %v5409 = vpow.pop %v5345
        %v5410 = vpow.pop %v5346
        %v5411 = vpow.pop %v5347
        %v5412 = vpow.pop %v5348
        %v5413 = vpow.pop %v5349
        %v5414 = vpow.pop %v5350
        %v5415 = vpow.pop %v5351
        %v5416 = vpow.pop %v5352
        %v5417 = vpow.pop %v5353
        %v5418 = vpow.pop %v5354
        %v5419 = vpow.pop %v5355
        %v5420 = vpow.pop %v5356
        %v5421 = vpow.pop %v5357
        %v5422 = vpow.pop %v5358
        %v5423 = vpow.pop %v5359
        %v5424 = vpow.pop %v5360
        %v5425 = vpow.pop %v5361
        %v5426 = vpow.pop %v5362
        %v5427 = vpow.pop %v5363
        %v5428 = vpow.pop %v5364
        %v5429 = vpow.pop %v5365
        %v5430 = vpow.pop %v5366
        %v5431 = vpow.pop %v5367
        %v5432 = vmul.f32 %v5112, %v1037
        %v5433 = vmul.f32 %v5113, %v1038
        %v5434 = vmul.f32 %v5114, %v1039
        %v5435 = vmul.f32 %v5115, %v1040
        %v5436 = vmul.f32 %v5116, %v1041
        %v5437 = vmul.f32 %v5117, %v1042
        %v5438 = vmul.f32 %v5118, %v1043
        %v5439 = vmul.f32 %v5119, %v1044
        %v5440 = vmul.f32 %v5120, %v1045
        %v5441 = vmul.f32 %v5121, %v1046
        %v5442 = vmul.f32 %v5122, %v1047
        %v5443 = vmul.f32 %v5123, %v1048
        %v5444 = vmul.f32 %v5124, %v1049
        %v5445 = vmul.f32 %v5125, %v1050
        %v5446 = vmul.f32 %v5126, %v1051
        %v5447 = vmul.f32 %v5127, %v1052
        %v5448 = vmul.f32 %v5128, %v1053
        %v5449 = vmul.f32 %v5129, %v1054
        %v5450 = vmul.f32 %v5130, %v1055
        %v5451 = vmul.f32 %v5131, %v1056
        %v5452 = vmul.f32 %v5132, %v1057
        %v5453 = vmul.f32 %v5133, %v1058
        %v5454 = vmul.f32 %v5134, %v1059
        %v5455 = vmul.f32 %v5135, %v1060
        %v5456 = vmul.f32 %v5136, %v1061
        %v5457 = vmul.f32 %v5137, %v1062
        %v5458 = vmul.f32 %v5138, %v1063
        %v5459 = vmul.f32 %v5139, %v1064
        %v5460 = vmul.f32 %v5140, %v1065
        %v5461 = vmul.f32 %v5141, %v1066
        %v5462 = vmul.f32 %v5142, %v1067
        %v5463 = vmul.f32 %v5143, %v1068
        %v5464 = vadd.f32 %v5368, %v5369
        %5465 = vadd.xlane.f32.xlu0 %v5464
        %v5466 = vpop.xlane.xlu0 %5465
        %v5467 = vadd.f32 %v5370, %v5371
        %5468 = vadd.xlane.f32.xlu0 %v5467
        %v5469 = vpop.xlane.xlu0 %5468
        %v5470 = vadd.f32 %v5372, %v5373
        %5471 = vadd.xlane.f32.xlu0 %v5470
        %v5472 = vpop.xlane.xlu0 %5471
        %v5473 = vadd.f32 %v5374, %v5375
        %5474 = vadd.xlane.f32.xlu0 %v5473
        %v5475 = vpop.xlane.xlu0 %5474
        %v5476 = vadd.f32 %v5376, %v5377
        %5477 = vadd.xlane.f32.xlu0 %v5476
        %v5478 = vpop.xlane.xlu0 %5477
        %v5479 = vadd.f32 %v5378, %v5379
        %5480 = vadd.xlane.f32.xlu0 %v5479
        %v5481 = vpop.xlane.xlu0 %5480
        %v5482 = vadd.f32 %v5380, %v5381
        %5483 = vadd.xlane.f32.xlu0 %v5482
        %v5484 = vpop.xlane.xlu0 %5483
        %v5485 = vadd.f32 %v5382, %v5383
        %5486 = vadd.xlane.f32.xlu0 %v5485
        %v5487 = vpop.xlane.xlu0 %5486
        %v5488 = vadd.f32 %v5384, %v5385
        %5489 = vadd.xlane.f32.xlu0 %v5488
        %v5490 = vpop.xlane.xlu0 %5489
        %v5491 = vadd.f32 %v5386, %v5387
        %5492 = vadd.xlane.f32.xlu0 %v5491
        %v5493 = vpop.xlane.xlu0 %5492
        %v5494 = vadd.f32 %v5388, %v5389
        %5495 = vadd.xlane.f32.xlu0 %v5494
        %v5496 = vpop.xlane.xlu0 %5495
        %v5497 = vadd.f32 %v5390, %v5391
        %5498 = vadd.xlane.f32.xlu0 %v5497
        %v5499 = vpop.xlane.xlu0 %5498
        %v5500 = vadd.f32 %v5392, %v5393
        %5501 = vadd.xlane.f32.xlu0 %v5500
        %v5502 = vpop.xlane.xlu0 %5501
        %v5503 = vadd.f32 %v5394, %v5395
        %5504 = vadd.xlane.f32.xlu0 %v5503
        %v5505 = vpop.xlane.xlu0 %5504
        %v5506 = vadd.f32 %v5396, %v5397
        %5507 = vadd.xlane.f32.xlu0 %v5506
        %v5508 = vpop.xlane.xlu0 %5507
        %v5509 = vadd.f32 %v5398, %v5399
        %5510 = vadd.xlane.f32.xlu0 %v5509
        %v5511 = vpop.xlane.xlu0 %5510
        %v5512 = vadd.f32 %v5400, %v5401
        %5513 = vadd.xlane.f32.xlu0 %v5512
        %v5514 = vpop.xlane.xlu0 %5513
        %v5515 = vadd.f32 %v5402, %v5403
        %5516 = vadd.xlane.f32.xlu0 %v5515
        %v5517 = vpop.xlane.xlu0 %5516
        %v5518 = vadd.f32 %v5404, %v5405
        %5519 = vadd.xlane.f32.xlu0 %v5518
        %v5520 = vpop.xlane.xlu0 %5519
        %v5521 = vadd.f32 %v5406, %v5407
        %5522 = vadd.xlane.f32.xlu0 %v5521
        %v5523 = vpop.xlane.xlu0 %5522
        %v5524 = vadd.f32 %v5408, %v5409
        %5525 = vadd.xlane.f32.xlu0 %v5524
        %v5526 = vpop.xlane.xlu0 %5525
        %v5527 = vadd.f32 %v5410, %v5411
        %5528 = vadd.xlane.f32.xlu0 %v5527
        %v5529 = vpop.xlane.xlu0 %5528
        %v5530 = vadd.f32 %v5412, %v5413
        %5531 = vadd.xlane.f32.xlu0 %v5530
        %v5532 = vpop.xlane.xlu0 %5531
        %v5533 = vadd.f32 %v5414, %v5415
        %5534 = vadd.xlane.f32.xlu0 %v5533
        %v5535 = vpop.xlane.xlu0 %5534
        %v5536 = vadd.f32 %v5416, %v5417
        %5537 = vadd.xlane.f32.xlu0 %v5536
        %v5538 = vpop.xlane.xlu0 %5537
        %v5539 = vadd.f32 %v5418, %v5419
        %5540 = vadd.xlane.f32.xlu0 %v5539
        %v5541 = vpop.xlane.xlu0 %5540
        %v5542 = vadd.f32 %v5420, %v5421
        %5543 = vadd.xlane.f32.xlu0 %v5542
        %v5544 = vpop.xlane.xlu0 %5543
        %v5545 = vadd.f32 %v5422, %v5423
        %5546 = vadd.xlane.f32.xlu0 %v5545
        %v5547 = vpop.xlane.xlu0 %5546
        %v5548 = vadd.f32 %v5424, %v5425
        %5549 = vadd.xlane.f32.xlu0 %v5548
        %v5550 = vpop.xlane.xlu0 %5549
        %v5551 = vadd.f32 %v5426, %v5427
        %5552 = vadd.xlane.f32.xlu0 %v5551
        %v5553 = vpop.xlane.xlu0 %5552
        %v5554 = vadd.f32 %v5428, %v5429
        %5555 = vadd.xlane.f32.xlu0 %v5554
        %v5556 = vpop.xlane.xlu0 %5555
        %v5557 = vadd.f32 %v5430, %v5431
        %5558 = vadd.xlane.f32.xlu0 %v5557
        %v5559 = vpop.xlane.xlu0 %5558
        %v5560 = vadd.f32 %v5432, %v5466
        %v5561 = vadd.f32 %v5433, %v5469
        %v5562 = vadd.f32 %v5434, %v5472
        %v5563 = vadd.f32 %v5435, %v5475
        %v5564 = vadd.f32 %v5436, %v5478
        %v5565 = vadd.f32 %v5437, %v5481
        %v5566 = vadd.f32 %v5438, %v5484
        %v5567 = vadd.f32 %v5439, %v5487
        %v5568 = vadd.f32 %v5440, %v5490
        %v5569 = vadd.f32 %v5441, %v5493
        %v5570 = vadd.f32 %v5442, %v5496
        %v5571 = vadd.f32 %v5443, %v5499
        %v5572 = vadd.f32 %v5444, %v5502
        %v5573 = vadd.f32 %v5445, %v5505
        %v5574 = vadd.f32 %v5446, %v5508
        %v5575 = vadd.f32 %v5447, %v5511
        %v5576 = vadd.f32 %v5448, %v5514
        %v5577 = vadd.f32 %v5449, %v5517
        %v5578 = vadd.f32 %v5450, %v5520
        %v5579 = vadd.f32 %v5451, %v5523
        %v5580 = vadd.f32 %v5452, %v5526
        %v5581 = vadd.f32 %v5453, %v5529
        %v5582 = vadd.f32 %v5454, %v5532
        %v5583 = vadd.f32 %v5455, %v5535
        %v5584 = vadd.f32 %v5456, %v5538
        %v5585 = vadd.f32 %v5457, %v5541
        %v5586 = vadd.f32 %v5458, %v5544
        %v5587 = vadd.f32 %v5459, %v5547
        %v5588 = vadd.f32 %v5460, %v5550
        %v5589 = vadd.f32 %v5461, %v5553
        %v5590 = vadd.f32 %v5462, %v5556
        %v5591 = vadd.f32 %v5463, %v5559
        %5593 = vset.pattern.permute.xlu0 64
        %5594 = vperm.xlu0 %5593, %v5112
        %v5595 = vpop.permute.xlu0 %5594
        %5598 = vset.pattern.permute.xlu0 64
        %5599 = vperm.xlu0 %5598, %v5113
        %v5600 = vpop.permute.xlu0 %5599
        %5603 = vset.pattern.permute.xlu0 64
        %5604 = vperm.xlu0 %5603, %v5114
        %v5605 = vpop.permute.xlu0 %5604
        %5608 = vset.pattern.permute.xlu0 64
        %5609 = vperm.xlu0 %5608, %v5115
        %v5610 = vpop.permute.xlu0 %5609
        %5613 = vset.pattern.permute.xlu0 64
        %5614 = vperm.xlu0 %5613, %v5116
        %v5615 = vpop.permute.xlu0 %5614
        %5618 = vset.pattern.permute.xlu0 64
        %5619 = vperm.xlu0 %5618, %v5117
        %v5620 = vpop.permute.xlu0 %5619
        %5623 = vset.pattern.permute.xlu0 64
        %5624 = vperm.xlu0 %5623, %v5118
        %v5625 = vpop.permute.xlu0 %5624
        %5628 = vset.pattern.permute.xlu0 64
        %5629 = vperm.xlu0 %5628, %v5119
        %v5630 = vpop.permute.xlu0 %5629
        %5633 = vset.pattern.permute.xlu0 64
        %5634 = vperm.xlu0 %5633, %v5120
        %v5635 = vpop.permute.xlu0 %5634
        %5638 = vset.pattern.permute.xlu0 64
        %5639 = vperm.xlu0 %5638, %v5121
        %v5640 = vpop.permute.xlu0 %5639
        %5643 = vset.pattern.permute.xlu0 64
        %5644 = vperm.xlu0 %5643, %v5122
        %v5645 = vpop.permute.xlu0 %5644
        %5648 = vset.pattern.permute.xlu0 64
        %5649 = vperm.xlu0 %5648, %v5123
        %v5650 = vpop.permute.xlu0 %5649
        %5653 = vset.pattern.permute.xlu0 64
        %5654 = vperm.xlu0 %5653, %v5124
        %v5655 = vpop.permute.xlu0 %5654
        %5658 = vset.pattern.permute.xlu0 64
        %5659 = vperm.xlu0 %5658, %v5125
        %v5660 = vpop.permute.xlu0 %5659
        %5663 = vset.pattern.permute.xlu0 64
        %5664 = vperm.xlu0 %5663, %v5126
        %v5665 = vpop.permute.xlu0 %5664
        %5668 = vset.pattern.permute.xlu0 64
        %5669 = vperm.xlu0 %5668, %v5127
        %v5670 = vpop.permute.xlu0 %5669
        %5673 = vset.pattern.permute.xlu0 64
        %5674 = vperm.xlu0 %5673, %v5128
        %v5675 = vpop.permute.xlu0 %5674
        %5678 = vset.pattern.permute.xlu0 64
        %5679 = vperm.xlu0 %5678, %v5129
        %v5680 = vpop.permute.xlu0 %5679
        %5683 = vset.pattern.permute.xlu0 64
        %5684 = vperm.xlu0 %5683, %v5130
        %v5685 = vpop.permute.xlu0 %5684
        %5688 = vset.pattern.permute.xlu0 64
        %5689 = vperm.xlu0 %5688, %v5131
        %v5690 = vpop.permute.xlu0 %5689
        %5693 = vset.pattern.permute.xlu0 64
        %5694 = vperm.xlu0 %5693, %v5132
        %v5695 = vpop.permute.xlu0 %5694
        %5698 = vset.pattern.permute.xlu0 64
        %5699 = vperm.xlu0 %5698, %v5133
        %v5700 = vpop.permute.xlu0 %5699
        %5703 = vset.pattern.permute.xlu0 64
        %5704 = vperm.xlu0 %5703, %v5134
        %v5705 = vpop.permute.xlu0 %5704
        %5708 = vset.pattern.permute.xlu0 64
        %5709 = vperm.xlu0 %5708, %v5135
        %v5710 = vpop.permute.xlu0 %5709
        %5713 = vset.pattern.permute.xlu0 64
        %5714 = vperm.xlu0 %5713, %v5136
        %v5715 = vpop.permute.xlu0 %5714
        %5718 = vset.pattern.permute.xlu0 64
        %5719 = vperm.xlu0 %5718, %v5137
        %v5720 = vpop.permute.xlu0 %5719
        %5723 = vset.pattern.permute.xlu0 64
        %5724 = vperm.xlu0 %5723, %v5138
        %v5725 = vpop.permute.xlu0 %5724
        %5728 = vset.pattern.permute.xlu0 64
        %5729 = vperm.xlu0 %5728, %v5139
        %v5730 = vpop.permute.xlu0 %5729
        %5733 = vset.pattern.permute.xlu0 64
        %5734 = vperm.xlu0 %5733, %v5140
        %v5735 = vpop.permute.xlu0 %5734
        %5738 = vset.pattern.permute.xlu0 64
        %5739 = vperm.xlu0 %5738, %v5141
        %v5740 = vpop.permute.xlu0 %5739
        %5743 = vset.pattern.permute.xlu0 64
        %5744 = vperm.xlu0 %5743, %v5142
        %v5745 = vpop.permute.xlu0 %5744
        %5748 = vset.pattern.permute.xlu0 64
        %5749 = vperm.xlu0 %5748, %v5143
        %v5750 = vpop.permute.xlu0 %5749
        %v5752 = vmul.f32 %v5595, %v1069
        %v5753 = vmul.f32 %v5600, %v1070
        %v5754 = vmul.f32 %v5605, %v1071
        %v5755 = vmul.f32 %v5610, %v1072
        %v5756 = vmul.f32 %v5615, %v1073
        %v5757 = vmul.f32 %v5620, %v1074
        %v5758 = vmul.f32 %v5625, %v1075
        %v5759 = vmul.f32 %v5630, %v1076
        %v5760 = vmul.f32 %v5635, %v1077
        %v5761 = vmul.f32 %v5640, %v1078
        %v5762 = vmul.f32 %v5645, %v1079
        %v5763 = vmul.f32 %v5650, %v1080
        %v5764 = vmul.f32 %v5655, %v1081
        %v5765 = vmul.f32 %v5660, %v1082
        %v5766 = vmul.f32 %v5665, %v1083
        %v5767 = vmul.f32 %v5670, %v1084
        %v5768 = vmul.f32 %v5675, %v1085
        %v5769 = vmul.f32 %v5680, %v1086
        %v5770 = vmul.f32 %v5685, %v1087
        %v5771 = vmul.f32 %v5690, %v1088
        %v5772 = vmul.f32 %v5695, %v1089
        %v5773 = vmul.f32 %v5700, %v1090
        %v5774 = vmul.f32 %v5705, %v1091
        %v5775 = vmul.f32 %v5710, %v1092
        %v5776 = vmul.f32 %v5715, %v1093
        %v5777 = vmul.f32 %v5720, %v1094
        %v5778 = vmul.f32 %v5725, %v1095
        %v5779 = vmul.f32 %v5730, %v1096
        %v5780 = vmul.f32 %v5735, %v1097
        %v5781 = vmul.f32 %v5740, %v1098
        %v5782 = vmul.f32 %v5745, %v1099
        %v5783 = vmul.f32 %v5750, %v1100
        %v5784 = vpack.c.bf16 %v5370, %v5368
        %v5785 = vpack.c.bf16 %v5371, %v5369
        %v5786 = vpack.c.bf16 %v5374, %v5372
        %v5787 = vpack.c.bf16 %v5375, %v5373
        %v5788 = vpack.c.bf16 %v5378, %v5376
        %v5789 = vpack.c.bf16 %v5379, %v5377
        %v5790 = vpack.c.bf16 %v5382, %v5380
        %v5791 = vpack.c.bf16 %v5383, %v5381
        %v5792 = vpack.c.bf16 %v5386, %v5384
        %v5793 = vpack.c.bf16 %v5387, %v5385
        %v5794 = vpack.c.bf16 %v5390, %v5388
        %v5795 = vpack.c.bf16 %v5391, %v5389
        %v5796 = vpack.c.bf16 %v5394, %v5392
        %v5797 = vpack.c.bf16 %v5395, %v5393
        %v5798 = vpack.c.bf16 %v5398, %v5396
        %v5799 = vpack.c.bf16 %v5399, %v5397
        %v5800 = vpack.c.bf16 %v5402, %v5400
        %v5801 = vpack.c.bf16 %v5403, %v5401
        %v5802 = vpack.c.bf16 %v5406, %v5404
        %v5803 = vpack.c.bf16 %v5407, %v5405
        %v5804 = vpack.c.bf16 %v5410, %v5408
        %v5805 = vpack.c.bf16 %v5411, %v5409
        %v5806 = vpack.c.bf16 %v5414, %v5412
        %v5807 = vpack.c.bf16 %v5415, %v5413
        %v5808 = vpack.c.bf16 %v5418, %v5416
        %v5809 = vpack.c.bf16 %v5419, %v5417
        %v5810 = vpack.c.bf16 %v5422, %v5420
        %v5811 = vpack.c.bf16 %v5423, %v5421
        %v5812 = vpack.c.bf16 %v5426, %v5424
        %v5813 = vpack.c.bf16 %v5427, %v5425
        %v5814 = vpack.c.bf16 %v5430, %v5428
        %v5815 = vpack.c.bf16 %v5431, %v5429
        %5816 = vrot.lane.b32.xlu0 %v2464, 64
        %v5817 = vpop.permute.xlu0 %5816
        %5818 = vrot.lane.b32.xlu0 %v2465, 64
        %v5819 = vpop.permute.xlu0 %5818
        %5820 = vrot.lane.b32.xlu0 %v2466, 64
        %v5821 = vpop.permute.xlu0 %5820
        %5822 = vrot.lane.b32.xlu0 %v2467, 64
        %v5823 = vpop.permute.xlu0 %5822
        %5824 = vrot.lane.b32.xlu0 %v2468, 64
        %v5825 = vpop.permute.xlu0 %5824
        %5826 = vrot.lane.b32.xlu0 %v2469, 64
        %v5827 = vpop.permute.xlu0 %5826
        %5828 = vrot.lane.b32.xlu0 %v2470, 64
        %v5829 = vpop.permute.xlu0 %5828
        %5830 = vrot.lane.b32.xlu0 %v2471, 64
        %v5831 = vpop.permute.xlu0 %5830
        %5832 = vrot.lane.b32.xlu0 %v2472, 64
        %v5833 = vpop.permute.xlu0 %5832
        %5834 = vrot.lane.b32.xlu0 %v2473, 64
        %v5835 = vpop.permute.xlu0 %5834
        %5836 = vrot.lane.b32.xlu0 %v2474, 64
        %v5837 = vpop.permute.xlu0 %5836
        %5838 = vrot.lane.b32.xlu0 %v2475, 64
        %v5839 = vpop.permute.xlu0 %5838
        %5840 = vrot.lane.b32.xlu0 %v2476, 64
        %v5841 = vpop.permute.xlu0 %5840
        %5842 = vrot.lane.b32.xlu0 %v2477, 64
        %v5843 = vpop.permute.xlu0 %5842
        %5844 = vrot.lane.b32.xlu0 %v2478, 64
        %v5845 = vpop.permute.xlu0 %5844
        %5846 = vrot.lane.b32.xlu0 %v2479, 64
        %v5847 = vpop.permute.xlu0 %5846
        %5864 = vmatpush.bf16.msra.mxu0 %v5831
        %5865 = vmatpush.bf16.msra.mxu0 %v5829
        %5866 = vmatpush.bf16.msra.mxu0 %v5827
        %5867 = vmatpush.bf16.msra.mxu0 %v5825
        %5868 = vmatpush.bf16.msra.mxu0 %v5823
        %5869 = vmatpush.bf16.msra.mxu0 %v5821
        %5870 = vmatpush.bf16.msra.mxu0 %v5819
        %5871 = vmatpush.bf16.msra.mxu0 %v5817
        %5872 = vmatmul.bf16.gmra.mxu0 %v5784
        %v5873 = vpop.f32.mrf.mxu0
        %v5874 = vadd.f32 0.0, %v5873
        %v5875 = vpop.f32.mrf.mxu0
        %v5876 = vadd.f32 0.0, %v5875
        %5877 = vmatmul.bf16.gmra.mxu0 %v5786
        %v5878 = vpop.f32.mrf.mxu0
        %v5879 = vadd.f32 0.0, %v5878
        %v5880 = vpop.f32.mrf.mxu0
        %v5881 = vadd.f32 0.0, %v5880
        %5882 = vmatmul.bf16.gmra.mxu0 %v5788
        %v5883 = vpop.f32.mrf.mxu0
        %v5884 = vadd.f32 0.0, %v5883
        %v5885 = vpop.f32.mrf.mxu0
        %v5886 = vadd.f32 0.0, %v5885
        %5887 = vmatmul.bf16.gmra.mxu0 %v5790
        %v5888 = vpop.f32.mrf.mxu0
        %v5889 = vadd.f32 0.0, %v5888
        %v5890 = vpop.f32.mrf.mxu0
        %v5891 = vadd.f32 0.0, %v5890
        %5892 = vmatmul.bf16.gmra.mxu0 %v5792
        %v5893 = vpop.f32.mrf.mxu0
        %v5894 = vadd.f32 0.0, %v5893
        %v5895 = vpop.f32.mrf.mxu0
        %v5896 = vadd.f32 0.0, %v5895
        %5897 = vmatmul.bf16.gmra.mxu0 %v5794
        %v5898 = vpop.f32.mrf.mxu0
        %v5899 = vadd.f32 0.0, %v5898
        %v5900 = vpop.f32.mrf.mxu0
        %v5901 = vadd.f32 0.0, %v5900
        %5902 = vmatmul.bf16.gmra.mxu0 %v5796
        %v5903 = vpop.f32.mrf.mxu0
        %v5904 = vadd.f32 0.0, %v5903
        %v5905 = vpop.f32.mrf.mxu0
        %v5906 = vadd.f32 0.0, %v5905
        %5907 = vmatmul.bf16.gmra.mxu0 %v5798
        %v5908 = vpop.f32.mrf.mxu0
        %v5909 = vadd.f32 0.0, %v5908
        %v5910 = vpop.f32.mrf.mxu0
        %v5911 = vadd.f32 0.0, %v5910
        %5912 = vmatmul.bf16.gmra.mxu0 %v5800
        %v5913 = vpop.f32.mrf.mxu0
        %v5914 = vadd.f32 0.0, %v5913
        %v5915 = vpop.f32.mrf.mxu0
        %v5916 = vadd.f32 0.0, %v5915
        %5917 = vmatmul.bf16.gmra.mxu0 %v5802
        %v5918 = vpop.f32.mrf.mxu0
        %v5919 = vadd.f32 0.0, %v5918
        %v5920 = vpop.f32.mrf.mxu0
        %v5921 = vadd.f32 0.0, %v5920
        %5922 = vmatmul.bf16.gmra.mxu0 %v5804
        %v5923 = vpop.f32.mrf.mxu0
        %v5924 = vadd.f32 0.0, %v5923
        %v5925 = vpop.f32.mrf.mxu0
        %v5926 = vadd.f32 0.0, %v5925
        %5927 = vmatmul.bf16.gmra.mxu0 %v5806
        %v5928 = vpop.f32.mrf.mxu0
        %v5929 = vadd.f32 0.0, %v5928
        %v5930 = vpop.f32.mrf.mxu0
        %v5931 = vadd.f32 0.0, %v5930
        %5932 = vmatmul.bf16.gmra.mxu0 %v5808
        %v5933 = vpop.f32.mrf.mxu0
        %v5934 = vadd.f32 0.0, %v5933
        %v5935 = vpop.f32.mrf.mxu0
        %v5936 = vadd.f32 0.0, %v5935
        %5937 = vmatmul.bf16.gmra.mxu0 %v5810
        %v5938 = vpop.f32.mrf.mxu0
        %v5939 = vadd.f32 0.0, %v5938
        %v5940 = vpop.f32.mrf.mxu0
        %v5941 = vadd.f32 0.0, %v5940
        %5942 = vmatmul.bf16.gmra.mxu0 %v5812
        %v5943 = vpop.f32.mrf.mxu0
        %v5944 = vadd.f32 0.0, %v5943
        %v5945 = vpop.f32.mrf.mxu0
        %v5946 = vadd.f32 0.0, %v5945
        %5947 = vmatmul.bf16.gmra.mxu0 %v5814
        %v5948 = vpop.f32.mrf.mxu0
        %v5949 = vadd.f32 0.0, %v5948
        %v5950 = vpop.f32.mrf.mxu0
        %v5951 = vadd.f32 0.0, %v5950
        %5952 = vdwg.mxu0
        %5953 = vmatpush.bf16.msra.mxu0 %v5847
        %5954 = vmatpush.bf16.msra.mxu0 %v5845
        %5955 = vmatpush.bf16.msra.mxu0 %v5843
        %5956 = vmatpush.bf16.msra.mxu0 %v5841
        %5957 = vmatpush.bf16.msra.mxu0 %v5839
        %5958 = vmatpush.bf16.msra.mxu0 %v5837
        %5959 = vmatpush.bf16.msra.mxu0 %v5835
        %5960 = vmatpush.bf16.msra.mxu0 %v5833
        %5961 = vmatmul.bf16.gmra.mxu0 %v5785
        %v5962 = vpop.f32.mrf.mxu0
        %v5963 = vadd.f32 %v5874, %v5962
        %v5964 = vpop.f32.mrf.mxu0
        %v5965 = vadd.f32 %v5876, %v5964
        %5966 = vmatmul.bf16.gmra.mxu0 %v5787
        %v5967 = vpop.f32.mrf.mxu0
        %v5968 = vadd.f32 %v5879, %v5967
        %v5969 = vpop.f32.mrf.mxu0
        %v5970 = vadd.f32 %v5881, %v5969
        %5971 = vmatmul.bf16.gmra.mxu0 %v5789
        %v5972 = vpop.f32.mrf.mxu0
        %v5973 = vadd.f32 %v5884, %v5972
        %v5974 = vpop.f32.mrf.mxu0
        %v5975 = vadd.f32 %v5886, %v5974
        %5976 = vmatmul.bf16.gmra.mxu0 %v5791
        %v5977 = vpop.f32.mrf.mxu0
        %v5978 = vadd.f32 %v5889, %v5977
        %v5979 = vpop.f32.mrf.mxu0
        %v5980 = vadd.f32 %v5891, %v5979
        %5981 = vmatmul.bf16.gmra.mxu0 %v5793
        %v5982 = vpop.f32.mrf.mxu0
        %v5983 = vadd.f32 %v5894, %v5982
        %v5984 = vpop.f32.mrf.mxu0
        %v5985 = vadd.f32 %v5896, %v5984
        %5986 = vmatmul.bf16.gmra.mxu0 %v5795
        %v5987 = vpop.f32.mrf.mxu0
        %v5988 = vadd.f32 %v5899, %v5987
        %v5989 = vpop.f32.mrf.mxu0
        %v5990 = vadd.f32 %v5901, %v5989
        %5991 = vmatmul.bf16.gmra.mxu0 %v5797
        %v5992 = vpop.f32.mrf.mxu0
        %v5993 = vadd.f32 %v5904, %v5992
        %v5994 = vpop.f32.mrf.mxu0
        %v5995 = vadd.f32 %v5906, %v5994
        %5996 = vmatmul.bf16.gmra.mxu0 %v5799
        %v5997 = vpop.f32.mrf.mxu0
        %v5998 = vadd.f32 %v5909, %v5997
        %v5999 = vpop.f32.mrf.mxu0
        %v6000 = vadd.f32 %v5911, %v5999
        %6001 = vmatmul.bf16.gmra.mxu0 %v5801
        %v6002 = vpop.f32.mrf.mxu0
        %v6003 = vadd.f32 %v5914, %v6002
        %v6004 = vpop.f32.mrf.mxu0
        %v6005 = vadd.f32 %v5916, %v6004
        %6006 = vmatmul.bf16.gmra.mxu0 %v5803
        %v6007 = vpop.f32.mrf.mxu0
        %v6008 = vadd.f32 %v5919, %v6007
        %v6009 = vpop.f32.mrf.mxu0
        %v6010 = vadd.f32 %v5921, %v6009
        %6011 = vmatmul.bf16.gmra.mxu0 %v5805
        %v6012 = vpop.f32.mrf.mxu0
        %v6013 = vadd.f32 %v5924, %v6012
        %v6014 = vpop.f32.mrf.mxu0
        %v6015 = vadd.f32 %v5926, %v6014
        %6016 = vmatmul.bf16.gmra.mxu0 %v5807
        %v6017 = vpop.f32.mrf.mxu0
        %v6018 = vadd.f32 %v5929, %v6017
        %v6019 = vpop.f32.mrf.mxu0
        %v6020 = vadd.f32 %v5931, %v6019
        %6021 = vmatmul.bf16.gmra.mxu0 %v5809
        %v6022 = vpop.f32.mrf.mxu0
        %v6023 = vadd.f32 %v5934, %v6022
        %v6024 = vpop.f32.mrf.mxu0
        %v6025 = vadd.f32 %v5936, %v6024
        %6026 = vmatmul.bf16.gmra.mxu0 %v5811
        %v6027 = vpop.f32.mrf.mxu0
        %v6028 = vadd.f32 %v5939, %v6027
        %v6029 = vpop.f32.mrf.mxu0
        %v6030 = vadd.f32 %v5941, %v6029
        %6031 = vmatmul.bf16.gmra.mxu0 %v5813
        %v6032 = vpop.f32.mrf.mxu0
        %v6033 = vadd.f32 %v5944, %v6032
        %v6034 = vpop.f32.mrf.mxu0
        %v6035 = vadd.f32 %v5946, %v6034
        %6036 = vmatmul.bf16.gmra.mxu0 %v5815
        %v6037 = vpop.f32.mrf.mxu0
        %v6038 = vadd.f32 %v5949, %v6037
        %v6039 = vpop.f32.mrf.mxu0
        %v6040 = vadd.f32 %v5951, %v6039
        %6041 = vdwg.mxu0
        %6074 = vrot.lane.b32.xlu0 %v5963, 64
        %v6075 = vpop.permute.xlu0 %6074
        %6076 = vrot.lane.b32.xlu0 %v5965, 64
        %v6077 = vpop.permute.xlu0 %6076
        %6078 = vrot.lane.b32.xlu0 %v5968, 64
        %v6079 = vpop.permute.xlu0 %6078
        %6080 = vrot.lane.b32.xlu0 %v5970, 64
        %v6081 = vpop.permute.xlu0 %6080
        %6082 = vrot.lane.b32.xlu0 %v5973, 64
        %v6083 = vpop.permute.xlu0 %6082
        %6084 = vrot.lane.b32.xlu0 %v5975, 64
        %v6085 = vpop.permute.xlu0 %6084
        %6086 = vrot.lane.b32.xlu0 %v5978, 64
        %v6087 = vpop.permute.xlu0 %6086
        %6088 = vrot.lane.b32.xlu0 %v5980, 64
        %v6089 = vpop.permute.xlu0 %6088
        %6090 = vrot.lane.b32.xlu0 %v5983, 64
        %v6091 = vpop.permute.xlu0 %6090
        %6092 = vrot.lane.b32.xlu0 %v5985, 64
        %v6093 = vpop.permute.xlu0 %6092
        %6094 = vrot.lane.b32.xlu0 %v5988, 64
        %v6095 = vpop.permute.xlu0 %6094
        %6096 = vrot.lane.b32.xlu0 %v5990, 64
        %v6097 = vpop.permute.xlu0 %6096
        %6098 = vrot.lane.b32.xlu0 %v5993, 64
        %v6099 = vpop.permute.xlu0 %6098
        %6100 = vrot.lane.b32.xlu0 %v5995, 64
        %v6101 = vpop.permute.xlu0 %6100
        %6102 = vrot.lane.b32.xlu0 %v5998, 64
        %v6103 = vpop.permute.xlu0 %6102
        %6104 = vrot.lane.b32.xlu0 %v6000, 64
        %v6105 = vpop.permute.xlu0 %6104
        %6106 = vrot.lane.b32.xlu0 %v6003, 64
        %v6107 = vpop.permute.xlu0 %6106
        %6108 = vrot.lane.b32.xlu0 %v6005, 64
        %v6109 = vpop.permute.xlu0 %6108
        %6110 = vrot.lane.b32.xlu0 %v6008, 64
        %v6111 = vpop.permute.xlu0 %6110
        %6112 = vrot.lane.b32.xlu0 %v6010, 64
        %v6113 = vpop.permute.xlu0 %6112
        %6114 = vrot.lane.b32.xlu0 %v6013, 64
        %v6115 = vpop.permute.xlu0 %6114
        %6116 = vrot.lane.b32.xlu0 %v6015, 64
        %v6117 = vpop.permute.xlu0 %6116
        %6118 = vrot.lane.b32.xlu0 %v6018, 64
        %v6119 = vpop.permute.xlu0 %6118
        %6120 = vrot.lane.b32.xlu0 %v6020, 64
        %v6121 = vpop.permute.xlu0 %6120
        %6122 = vrot.lane.b32.xlu0 %v6023, 64
        %v6123 = vpop.permute.xlu0 %6122
        %6124 = vrot.lane.b32.xlu0 %v6025, 64
        %v6125 = vpop.permute.xlu0 %6124
        %6126 = vrot.lane.b32.xlu0 %v6028, 64
        %v6127 = vpop.permute.xlu0 %6126
        %6128 = vrot.lane.b32.xlu0 %v6030, 64
        %v6129 = vpop.permute.xlu0 %6128
        %6130 = vrot.lane.b32.xlu0 %v6033, 64
        %v6131 = vpop.permute.xlu0 %6130
        %6132 = vrot.lane.b32.xlu0 %v6035, 64
        %v6133 = vpop.permute.xlu0 %6132
        %6134 = vrot.lane.b32.xlu0 %v6038, 64
        %v6135 = vpop.permute.xlu0 %6134
        %6136 = vrot.lane.b32.xlu0 %v6040, 64
        %v6137 = vpop.permute.xlu0 %6136
        %v6170 = vadd.f32 %v5752, %v6075
        %v6171 = vadd.f32 %v5753, %v6077
        %v6172 = vadd.f32 %v5754, %v6079
        %v6173 = vadd.f32 %v5755, %v6081
        %v6174 = vadd.f32 %v5756, %v6083
        %v6175 = vadd.f32 %v5757, %v6085
        %v6176 = vadd.f32 %v5758, %v6087
        %v6177 = vadd.f32 %v5759, %v6089
        %v6178 = vadd.f32 %v5760, %v6091
        %v6179 = vadd.f32 %v5761, %v6093
        %v6180 = vadd.f32 %v5762, %v6095
        %v6181 = vadd.f32 %v5763, %v6097
        %v6182 = vadd.f32 %v5764, %v6099
        %v6183 = vadd.f32 %v5765, %v6101
        %v6184 = vadd.f32 %v5766, %v6103
        %v6185 = vadd.f32 %v5767, %v6105
        %v6186 = vadd.f32 %v5768, %v6107
        %v6187 = vadd.f32 %v5769, %v6109
        %v6188 = vadd.f32 %v5770, %v6111
        %v6189 = vadd.f32 %v5771, %v6113
        %v6190 = vadd.f32 %v5772, %v6115
        %v6191 = vadd.f32 %v5773, %v6117
        %v6192 = vadd.f32 %v5774, %v6119
        %v6193 = vadd.f32 %v5775, %v6121
        %v6194 = vadd.f32 %v5776, %v6123
        %v6195 = vadd.f32 %v5777, %v6125
        %v6196 = vadd.f32 %v5778, %v6127
        %v6197 = vadd.f32 %v5779, %v6129
        %v6198 = vadd.f32 %v5780, %v6131
        %v6199 = vadd.f32 %v5781, %v6133
        %v6200 = vadd.f32 %v5782, %v6135
        %v6201 = vadd.f32 %v5783, %v6137
        %6203 = vset.pattern.permute.xlu0 64
        %6204 = vperm.xlu0 %6203, %v5560
        %v6205 = vpop.permute.xlu0 %6204
        %6208 = vset.pattern.permute.xlu0 64
        %6209 = vperm.xlu0 %6208, %v5561
        %v6210 = vpop.permute.xlu0 %6209
        %6213 = vset.pattern.permute.xlu0 64
        %6214 = vperm.xlu0 %6213, %v5562
        %v6215 = vpop.permute.xlu0 %6214
        %6218 = vset.pattern.permute.xlu0 64
        %6219 = vperm.xlu0 %6218, %v5563
        %v6220 = vpop.permute.xlu0 %6219
        %6223 = vset.pattern.permute.xlu0 64
        %6224 = vperm.xlu0 %6223, %v5564
        %v6225 = vpop.permute.xlu0 %6224
        %6228 = vset.pattern.permute.xlu0 64
        %6229 = vperm.xlu0 %6228, %v5565
        %v6230 = vpop.permute.xlu0 %6229
        %6233 = vset.pattern.permute.xlu0 64
        %6234 = vperm.xlu0 %6233, %v5566
        %v6235 = vpop.permute.xlu0 %6234
        %6238 = vset.pattern.permute.xlu0 64
        %6239 = vperm.xlu0 %6238, %v5567
        %v6240 = vpop.permute.xlu0 %6239
        %6243 = vset.pattern.permute.xlu0 64
        %6244 = vperm.xlu0 %6243, %v5568
        %v6245 = vpop.permute.xlu0 %6244
        %6248 = vset.pattern.permute.xlu0 64
        %6249 = vperm.xlu0 %6248, %v5569
        %v6250 = vpop.permute.xlu0 %6249
        %6253 = vset.pattern.permute.xlu0 64
        %6254 = vperm.xlu0 %6253, %v5570
        %v6255 = vpop.permute.xlu0 %6254
        %6258 = vset.pattern.permute.xlu0 64
        %6259 = vperm.xlu0 %6258, %v5571
        %v6260 = vpop.permute.xlu0 %6259
        %6263 = vset.pattern.permute.xlu0 64
        %6264 = vperm.xlu0 %6263, %v5572
        %v6265 = vpop.permute.xlu0 %6264
        %6268 = vset.pattern.permute.xlu0 64
        %6269 = vperm.xlu0 %6268, %v5573
        %v6270 = vpop.permute.xlu0 %6269
        %6273 = vset.pattern.permute.xlu0 64
        %6274 = vperm.xlu0 %6273, %v5574
        %v6275 = vpop.permute.xlu0 %6274
        %6278 = vset.pattern.permute.xlu0 64
        %6279 = vperm.xlu0 %6278, %v5575
        %v6280 = vpop.permute.xlu0 %6279
        %6283 = vset.pattern.permute.xlu0 64
        %6284 = vperm.xlu0 %6283, %v5576
        %v6285 = vpop.permute.xlu0 %6284
        %6288 = vset.pattern.permute.xlu0 64
        %6289 = vperm.xlu0 %6288, %v5577
        %v6290 = vpop.permute.xlu0 %6289
        %6293 = vset.pattern.permute.xlu0 64
        %6294 = vperm.xlu0 %6293, %v5578
        %v6295 = vpop.permute.xlu0 %6294
        %6298 = vset.pattern.permute.xlu0 64
        %6299 = vperm.xlu0 %6298, %v5579
        %v6300 = vpop.permute.xlu0 %6299
        %6303 = vset.pattern.permute.xlu0 64
        %6304 = vperm.xlu0 %6303, %v5580
        %v6305 = vpop.permute.xlu0 %6304
        %6308 = vset.pattern.permute.xlu0 64
        %6309 = vperm.xlu0 %6308, %v5581
        %v6310 = vpop.permute.xlu0 %6309
        %6313 = vset.pattern.permute.xlu0 64
        %6314 = vperm.xlu0 %6313, %v5582
        %v6315 = vpop.permute.xlu0 %6314
        %6318 = vset.pattern.permute.xlu0 64
        %6319 = vperm.xlu0 %6318, %v5583
        %v6320 = vpop.permute.xlu0 %6319
        %6323 = vset.pattern.permute.xlu0 64
        %6324 = vperm.xlu0 %6323, %v5584
        %v6325 = vpop.permute.xlu0 %6324
        %6328 = vset.pattern.permute.xlu0 64
        %6329 = vperm.xlu0 %6328, %v5585
        %v6330 = vpop.permute.xlu0 %6329
        %6333 = vset.pattern.permute.xlu0 64
        %6334 = vperm.xlu0 %6333, %v5586
        %v6335 = vpop.permute.xlu0 %6334
        %6338 = vset.pattern.permute.xlu0 64
        %6339 = vperm.xlu0 %6338, %v5587
        %v6340 = vpop.permute.xlu0 %6339
        %6343 = vset.pattern.permute.xlu0 64
        %6344 = vperm.xlu0 %6343, %v5588
        %v6345 = vpop.permute.xlu0 %6344
        %6348 = vset.pattern.permute.xlu0 64
        %6349 = vperm.xlu0 %6348, %v5589
        %v6350 = vpop.permute.xlu0 %6349
        %6353 = vset.pattern.permute.xlu0 64
        %6354 = vperm.xlu0 %6353, %v5590
        %v6355 = vpop.permute.xlu0 %6354
        %6358 = vset.pattern.permute.xlu0 64
        %6359 = vperm.xlu0 %6358, %v5591
        %v6360 = vpop.permute.xlu0 %6359
        %6362 = vrot.lane.b32.xlu0 %v1165, 32
        %v6363 = vpop.permute.xlu0 %6362
        %6364 = vrot.lane.b32.xlu0 %v1166, 32
        %v6365 = vpop.permute.xlu0 %6364
        %6366 = vrot.lane.b32.xlu0 %v1167, 32
        %v6367 = vpop.permute.xlu0 %6366
        %6368 = vrot.lane.b32.xlu0 %v1168, 32
        %v6369 = vpop.permute.xlu0 %6368
        %6370 = vrot.lane.b32.xlu0 %v1169, 32
        %v6371 = vpop.permute.xlu0 %6370
        %6372 = vrot.lane.b32.xlu0 %v1170, 32
        %v6373 = vpop.permute.xlu0 %6372
        %6374 = vrot.lane.b32.xlu0 %v1171, 32
        %v6375 = vpop.permute.xlu0 %6374
        %6376 = vrot.lane.b32.xlu0 %v1172, 32
        %v6377 = vpop.permute.xlu0 %6376
        %6378 = vrot.lane.b32.xlu0 %v1173, 32
        %v6379 = vpop.permute.xlu0 %6378
        %6380 = vrot.lane.b32.xlu0 %v1174, 32
        %v6381 = vpop.permute.xlu0 %6380
        %6382 = vrot.lane.b32.xlu0 %v1175, 32
        %v6383 = vpop.permute.xlu0 %6382
        %6384 = vrot.lane.b32.xlu0 %v1176, 32
        %v6385 = vpop.permute.xlu0 %6384
        %6386 = vrot.lane.b32.xlu0 %v1177, 32
        %v6387 = vpop.permute.xlu0 %6386
        %6388 = vrot.lane.b32.xlu0 %v1178, 32
        %v6389 = vpop.permute.xlu0 %6388
        %6390 = vrot.lane.b32.xlu0 %v1179, 32
        %v6391 = vpop.permute.xlu0 %6390
        %6392 = vrot.lane.b32.xlu0 %v1180, 32
        %v6393 = vpop.permute.xlu0 %6392
        %6394 = vrot.lane.b32.xlu0 %v1245, 32
        %v6395 = vpop.permute.xlu0 %6394
        %6396 = vrot.lane.b32.xlu0 %v1246, 32
        %v6397 = vpop.permute.xlu0 %6396
        %6398 = vrot.lane.b32.xlu0 %v1247, 32
        %v6399 = vpop.permute.xlu0 %6398
        %6400 = vrot.lane.b32.xlu0 %v1248, 32
        %v6401 = vpop.permute.xlu0 %6400
        %6402 = vrot.lane.b32.xlu0 %v1249, 32
        %v6403 = vpop.permute.xlu0 %6402
        %6404 = vrot.lane.b32.xlu0 %v1250, 32
        %v6405 = vpop.permute.xlu0 %6404
        %6406 = vrot.lane.b32.xlu0 %v1251, 32
        %v6407 = vpop.permute.xlu0 %6406
        %6408 = vrot.lane.b32.xlu0 %v1252, 32
        %v6409 = vpop.permute.xlu0 %6408
        %6410 = vrot.lane.b32.xlu0 %v1253, 32
        %v6411 = vpop.permute.xlu0 %6410
        %6412 = vrot.lane.b32.xlu0 %v1254, 32
        %v6413 = vpop.permute.xlu0 %6412
        %6414 = vrot.lane.b32.xlu0 %v1255, 32
        %v6415 = vpop.permute.xlu0 %6414
        %6416 = vrot.lane.b32.xlu0 %v1256, 32
        %v6417 = vpop.permute.xlu0 %6416
        %6418 = vrot.lane.b32.xlu0 %v1257, 32
        %v6419 = vpop.permute.xlu0 %6418
        %6420 = vrot.lane.b32.xlu0 %v1258, 32
        %v6421 = vpop.permute.xlu0 %6420
        %6422 = vrot.lane.b32.xlu0 %v1259, 32
        %v6423 = vpop.permute.xlu0 %6422
        %6424 = vrot.lane.b32.xlu0 %v1260, 32
        %v6425 = vpop.permute.xlu0 %6424
        %v6427 = vsel %vm1261, %v6363, 0
        %v6430 = vsel %vm1261, %v6365, 0
        %v6433 = vsel %vm1261, %v6367, 0
        %v6436 = vsel %vm1261, %v6369, 0
        %v6439 = vsel %vm1261, %v6371, 0
        %v6442 = vsel %vm1261, %v6373, 0
        %v6445 = vsel %vm1261, %v6375, 0
        %v6448 = vsel %vm1261, %v6377, 0
        %v6451 = vsel %vm1261, %v6379, 0
        %v6454 = vsel %vm1261, %v6381, 0
        %v6457 = vsel %vm1261, %v6383, 0
        %v6460 = vsel %vm1261, %v6385, 0
        %v6463 = vsel %vm1261, %v6387, 0
        %v6466 = vsel %vm1261, %v6389, 0
        %v6469 = vsel %vm1261, %v6391, 0
        %v6472 = vsel %vm1261, %v6393, 0
        %v6475 = vsel %vm1261, %v6395, 0
        %v6478 = vsel %vm1261, %v6397, 0
        %v6481 = vsel %vm1261, %v6399, 0
        %v6484 = vsel %vm1261, %v6401, 0
        %v6487 = vsel %vm1261, %v6403, 0
        %v6490 = vsel %vm1261, %v6405, 0
        %v6493 = vsel %vm1261, %v6407, 0
        %v6496 = vsel %vm1261, %v6409, 0
        %v6499 = vsel %vm1261, %v6411, 0
        %v6502 = vsel %vm1261, %v6413, 0
        %v6505 = vsel %vm1261, %v6415, 0
        %v6508 = vsel %vm1261, %v6417, 0
        %v6511 = vsel %vm1261, %v6419, 0
        %v6514 = vsel %vm1261, %v6421, 0
        %v6517 = vsel %vm1261, %v6423, 0
        %v6520 = vsel %vm1261, %v6425, 0
        %6522 = vmatpush.bf16.xpose.msra.mxu0 %v6496
        %6523 = vmatpush.bf16.xpose.msra.mxu0 %v6493
        %6524 = vmatpush.bf16.xpose.msra.mxu0 %v6490
        %6525 = vmatpush.bf16.xpose.msra.mxu0 %v6487
        %6526 = vmatpush.bf16.xpose.msra.mxu0 %v6484
        %6527 = vmatpush.bf16.xpose.msra.mxu0 %v6481
        %6528 = vmatpush.bf16.xpose.msra.mxu0 %v6478
        %6529 = vmatpush.bf16.xpose.msra.mxu0 %v6475
        %6530 = vmatmul.bf16.gmra.mxu0 %v6427
        %v6531 = vpop.f32.mrf.mxu0
        %v6532 = vadd.f32 0.0, %v6531
        %v6533 = vpop.f32.mrf.mxu0
        %v6534 = vadd.f32 0.0, %v6533
        %6535 = vmatmul.bf16.gmra.mxu0 %v6430
        %v6536 = vpop.f32.mrf.mxu0
        %v6537 = vadd.f32 0.0, %v6536
        %v6538 = vpop.f32.mrf.mxu0
        %v6539 = vadd.f32 0.0, %v6538
        %6540 = vmatmul.bf16.gmra.mxu0 %v6433
        %v6541 = vpop.f32.mrf.mxu0
        %v6542 = vadd.f32 0.0, %v6541
        %v6543 = vpop.f32.mrf.mxu0
        %v6544 = vadd.f32 0.0, %v6543
        %6545 = vmatmul.bf16.gmra.mxu0 %v6436
        %v6546 = vpop.f32.mrf.mxu0
        %v6547 = vadd.f32 0.0, %v6546
        %v6548 = vpop.f32.mrf.mxu0
        %v6549 = vadd.f32 0.0, %v6548
        %6550 = vmatmul.bf16.gmra.mxu0 %v6439
        %v6551 = vpop.f32.mrf.mxu0
        %v6552 = vadd.f32 0.0, %v6551
        %v6553 = vpop.f32.mrf.mxu0
        %v6554 = vadd.f32 0.0, %v6553
        %6555 = vmatmul.bf16.gmra.mxu0 %v6442
        %v6556 = vpop.f32.mrf.mxu0
        %v6557 = vadd.f32 0.0, %v6556
        %v6558 = vpop.f32.mrf.mxu0
        %v6559 = vadd.f32 0.0, %v6558
        %6560 = vmatmul.bf16.gmra.mxu0 %v6445
        %v6561 = vpop.f32.mrf.mxu0
        %v6562 = vadd.f32 0.0, %v6561
        %v6563 = vpop.f32.mrf.mxu0
        %v6564 = vadd.f32 0.0, %v6563
        %6565 = vmatmul.bf16.gmra.mxu0 %v6448
        %v6566 = vpop.f32.mrf.mxu0
        %v6567 = vadd.f32 0.0, %v6566
        %v6568 = vpop.f32.mrf.mxu0
        %v6569 = vadd.f32 0.0, %v6568
        %6570 = vmatmul.bf16.gmra.mxu0 %v6451
        %v6571 = vpop.f32.mrf.mxu0
        %v6572 = vadd.f32 0.0, %v6571
        %v6573 = vpop.f32.mrf.mxu0
        %v6574 = vadd.f32 0.0, %v6573
        %6575 = vmatmul.bf16.gmra.mxu0 %v6454
        %v6576 = vpop.f32.mrf.mxu0
        %v6577 = vadd.f32 0.0, %v6576
        %v6578 = vpop.f32.mrf.mxu0
        %v6579 = vadd.f32 0.0, %v6578
        %6580 = vmatmul.bf16.gmra.mxu0 %v6457
        %v6581 = vpop.f32.mrf.mxu0
        %v6582 = vadd.f32 0.0, %v6581
        %v6583 = vpop.f32.mrf.mxu0
        %v6584 = vadd.f32 0.0, %v6583
        %6585 = vmatmul.bf16.gmra.mxu0 %v6460
        %v6586 = vpop.f32.mrf.mxu0
        %v6587 = vadd.f32 0.0, %v6586
        %v6588 = vpop.f32.mrf.mxu0
        %v6589 = vadd.f32 0.0, %v6588
        %6590 = vmatmul.bf16.gmra.mxu0 %v6463
        %v6591 = vpop.f32.mrf.mxu0
        %v6592 = vadd.f32 0.0, %v6591
        %v6593 = vpop.f32.mrf.mxu0
        %v6594 = vadd.f32 0.0, %v6593
        %6595 = vmatmul.bf16.gmra.mxu0 %v6466
        %v6596 = vpop.f32.mrf.mxu0
        %v6597 = vadd.f32 0.0, %v6596
        %v6598 = vpop.f32.mrf.mxu0
        %v6599 = vadd.f32 0.0, %v6598
        %6600 = vmatmul.bf16.gmra.mxu0 %v6469
        %v6601 = vpop.f32.mrf.mxu0
        %v6602 = vadd.f32 0.0, %v6601
        %v6603 = vpop.f32.mrf.mxu0
        %v6604 = vadd.f32 0.0, %v6603
        %6605 = vmatmul.bf16.gmra.mxu0 %v6472
        %v6606 = vpop.f32.mrf.mxu0
        %v6607 = vadd.f32 0.0, %v6606
        %v6608 = vpop.f32.mrf.mxu0
        %v6609 = vadd.f32 0.0, %v6608
        %6610 = vdwg.mxu0
        %6611 = vmatpush.bf16.xpose.msra.mxu0 %v6520
        %6612 = vmatpush.bf16.xpose.msra.mxu0 %v6517
        %6613 = vmatpush.bf16.xpose.msra.mxu0 %v6514
        %6614 = vmatpush.bf16.xpose.msra.mxu0 %v6511
        %6615 = vmatpush.bf16.xpose.msra.mxu0 %v6508
        %6616 = vmatpush.bf16.xpose.msra.mxu0 %v6505
        %6617 = vmatpush.bf16.xpose.msra.mxu0 %v6502
        %6618 = vmatpush.bf16.xpose.msra.mxu0 %v6499
        %6619 = vmatmul.bf16.gmra.mxu0 %v6427
        %v6620 = vpop.f32.mrf.mxu0
        %v6621 = vadd.f32 0.0, %v6620
        %v6622 = vpop.f32.mrf.mxu0
        %v6623 = vadd.f32 0.0, %v6622
        %6624 = vmatmul.bf16.gmra.mxu0 %v6430
        %v6625 = vpop.f32.mrf.mxu0
        %v6626 = vadd.f32 0.0, %v6625
        %v6627 = vpop.f32.mrf.mxu0
        %v6628 = vadd.f32 0.0, %v6627
        %6629 = vmatmul.bf16.gmra.mxu0 %v6433
        %v6630 = vpop.f32.mrf.mxu0
        %v6631 = vadd.f32 0.0, %v6630
        %v6632 = vpop.f32.mrf.mxu0
        %v6633 = vadd.f32 0.0, %v6632
        %6634 = vmatmul.bf16.gmra.mxu0 %v6436
        %v6635 = vpop.f32.mrf.mxu0
        %v6636 = vadd.f32 0.0, %v6635
        %v6637 = vpop.f32.mrf.mxu0
        %v6638 = vadd.f32 0.0, %v6637
        %6639 = vmatmul.bf16.gmra.mxu0 %v6439
        %v6640 = vpop.f32.mrf.mxu0
        %v6641 = vadd.f32 0.0, %v6640
        %v6642 = vpop.f32.mrf.mxu0
        %v6643 = vadd.f32 0.0, %v6642
        %6644 = vmatmul.bf16.gmra.mxu0 %v6442
        %v6645 = vpop.f32.mrf.mxu0
        %v6646 = vadd.f32 0.0, %v6645
        %v6647 = vpop.f32.mrf.mxu0
        %v6648 = vadd.f32 0.0, %v6647
        %6649 = vmatmul.bf16.gmra.mxu0 %v6445
        %v6650 = vpop.f32.mrf.mxu0
        %v6651 = vadd.f32 0.0, %v6650
        %v6652 = vpop.f32.mrf.mxu0
        %v6653 = vadd.f32 0.0, %v6652
        %6654 = vmatmul.bf16.gmra.mxu0 %v6448
        %v6655 = vpop.f32.mrf.mxu0
        %v6656 = vadd.f32 0.0, %v6655
        %v6657 = vpop.f32.mrf.mxu0
        %v6658 = vadd.f32 0.0, %v6657
        %6659 = vmatmul.bf16.gmra.mxu0 %v6451
        %v6660 = vpop.f32.mrf.mxu0
        %v6661 = vadd.f32 0.0, %v6660
        %v6662 = vpop.f32.mrf.mxu0
        %v6663 = vadd.f32 0.0, %v6662
        %6664 = vmatmul.bf16.gmra.mxu0 %v6454
        %v6665 = vpop.f32.mrf.mxu0
        %v6666 = vadd.f32 0.0, %v6665
        %v6667 = vpop.f32.mrf.mxu0
        %v6668 = vadd.f32 0.0, %v6667
        %6669 = vmatmul.bf16.gmra.mxu0 %v6457
        %v6670 = vpop.f32.mrf.mxu0
        %v6671 = vadd.f32 0.0, %v6670
        %v6672 = vpop.f32.mrf.mxu0
        %v6673 = vadd.f32 0.0, %v6672
        %6674 = vmatmul.bf16.gmra.mxu0 %v6460
        %v6675 = vpop.f32.mrf.mxu0
        %v6676 = vadd.f32 0.0, %v6675
        %v6677 = vpop.f32.mrf.mxu0
        %v6678 = vadd.f32 0.0, %v6677
        %6679 = vmatmul.bf16.gmra.mxu0 %v6463
        %v6680 = vpop.f32.mrf.mxu0
        %v6681 = vadd.f32 0.0, %v6680
        %v6682 = vpop.f32.mrf.mxu0
        %v6683 = vadd.f32 0.0, %v6682
        %6684 = vmatmul.bf16.gmra.mxu0 %v6466
        %v6685 = vpop.f32.mrf.mxu0
        %v6686 = vadd.f32 0.0, %v6685
        %v6687 = vpop.f32.mrf.mxu0
        %v6688 = vadd.f32 0.0, %v6687
        %6689 = vmatmul.bf16.gmra.mxu0 %v6469
        %v6690 = vpop.f32.mrf.mxu0
        %v6691 = vadd.f32 0.0, %v6690
        %v6692 = vpop.f32.mrf.mxu0
        %v6693 = vadd.f32 0.0, %v6692
        %6694 = vmatmul.bf16.gmra.mxu0 %v6472
        %v6695 = vpop.f32.mrf.mxu0
        %v6696 = vadd.f32 0.0, %v6695
        %v6697 = vpop.f32.mrf.mxu0
        %v6698 = vadd.f32 0.0, %v6697
        %6699 = vdwg.mxu0
        %v6700 = vmax.f32 %v6532, %v6621
        %6701 = vmax.xlane.f32.xlu0 %v6700
        %v6702 = vpop.xlane.xlu0 %6701
        %v6703 = vmax.f32 %v6534, %v6623
        %6704 = vmax.xlane.f32.xlu0 %v6703
        %v6705 = vpop.xlane.xlu0 %6704
        %v6706 = vmax.f32 %v6537, %v6626
        %6707 = vmax.xlane.f32.xlu0 %v6706
        %v6708 = vpop.xlane.xlu0 %6707
        %v6709 = vmax.f32 %v6539, %v6628
        %6710 = vmax.xlane.f32.xlu0 %v6709
        %v6711 = vpop.xlane.xlu0 %6710
        %v6712 = vmax.f32 %v6542, %v6631
        %6713 = vmax.xlane.f32.xlu0 %v6712
        %v6714 = vpop.xlane.xlu0 %6713
        %v6715 = vmax.f32 %v6544, %v6633
        %6716 = vmax.xlane.f32.xlu0 %v6715
        %v6717 = vpop.xlane.xlu0 %6716
        %v6718 = vmax.f32 %v6547, %v6636
        %6719 = vmax.xlane.f32.xlu0 %v6718
        %v6720 = vpop.xlane.xlu0 %6719
        %v6721 = vmax.f32 %v6549, %v6638
        %6722 = vmax.xlane.f32.xlu0 %v6721
        %v6723 = vpop.xlane.xlu0 %6722
        %v6724 = vmax.f32 %v6552, %v6641
        %6725 = vmax.xlane.f32.xlu0 %v6724
        %v6726 = vpop.xlane.xlu0 %6725
        %v6727 = vmax.f32 %v6554, %v6643
        %6728 = vmax.xlane.f32.xlu0 %v6727
        %v6729 = vpop.xlane.xlu0 %6728
        %v6730 = vmax.f32 %v6557, %v6646
        %6731 = vmax.xlane.f32.xlu0 %v6730
        %v6732 = vpop.xlane.xlu0 %6731
        %v6733 = vmax.f32 %v6559, %v6648
        %6734 = vmax.xlane.f32.xlu0 %v6733
        %v6735 = vpop.xlane.xlu0 %6734
        %v6736 = vmax.f32 %v6562, %v6651
        %6737 = vmax.xlane.f32.xlu0 %v6736
        %v6738 = vpop.xlane.xlu0 %6737
        %v6739 = vmax.f32 %v6564, %v6653
        %6740 = vmax.xlane.f32.xlu0 %v6739
        %v6741 = vpop.xlane.xlu0 %6740
        %v6742 = vmax.f32 %v6567, %v6656
        %6743 = vmax.xlane.f32.xlu0 %v6742
        %v6744 = vpop.xlane.xlu0 %6743
        %v6745 = vmax.f32 %v6569, %v6658
        %6746 = vmax.xlane.f32.xlu0 %v6745
        %v6747 = vpop.xlane.xlu0 %6746
        %v6748 = vmax.f32 %v6572, %v6661
        %6749 = vmax.xlane.f32.xlu0 %v6748
        %v6750 = vpop.xlane.xlu0 %6749
        %v6751 = vmax.f32 %v6574, %v6663
        %6752 = vmax.xlane.f32.xlu0 %v6751
        %v6753 = vpop.xlane.xlu0 %6752
        %v6754 = vmax.f32 %v6577, %v6666
        %6755 = vmax.xlane.f32.xlu0 %v6754
        %v6756 = vpop.xlane.xlu0 %6755
        %v6757 = vmax.f32 %v6579, %v6668
        %6758 = vmax.xlane.f32.xlu0 %v6757
        %v6759 = vpop.xlane.xlu0 %6758
        %v6760 = vmax.f32 %v6582, %v6671
        %6761 = vmax.xlane.f32.xlu0 %v6760
        %v6762 = vpop.xlane.xlu0 %6761
        %v6763 = vmax.f32 %v6584, %v6673
        %6764 = vmax.xlane.f32.xlu0 %v6763
        %v6765 = vpop.xlane.xlu0 %6764
        %v6766 = vmax.f32 %v6587, %v6676
        %6767 = vmax.xlane.f32.xlu0 %v6766
        %v6768 = vpop.xlane.xlu0 %6767
        %v6769 = vmax.f32 %v6589, %v6678
        %6770 = vmax.xlane.f32.xlu0 %v6769
        %v6771 = vpop.xlane.xlu0 %6770
        %v6772 = vmax.f32 %v6592, %v6681
        %6773 = vmax.xlane.f32.xlu0 %v6772
        %v6774 = vpop.xlane.xlu0 %6773
        %v6775 = vmax.f32 %v6594, %v6683
        %6776 = vmax.xlane.f32.xlu0 %v6775
        %v6777 = vpop.xlane.xlu0 %6776
        %v6778 = vmax.f32 %v6597, %v6686
        %6779 = vmax.xlane.f32.xlu0 %v6778
        %v6780 = vpop.xlane.xlu0 %6779
        %v6781 = vmax.f32 %v6599, %v6688
        %6782 = vmax.xlane.f32.xlu0 %v6781
        %v6783 = vpop.xlane.xlu0 %6782
        %v6784 = vmax.f32 %v6602, %v6691
        %6785 = vmax.xlane.f32.xlu0 %v6784
        %v6786 = vpop.xlane.xlu0 %6785
        %v6787 = vmax.f32 %v6604, %v6693
        %6788 = vmax.xlane.f32.xlu0 %v6787
        %v6789 = vpop.xlane.xlu0 %6788
        %v6790 = vmax.f32 %v6607, %v6696
        %6791 = vmax.xlane.f32.xlu0 %v6790
        %v6792 = vpop.xlane.xlu0 %6791
        %v6793 = vmax.f32 %v6609, %v6698
        %6794 = vmax.xlane.f32.xlu0 %v6793
        %v6795 = vpop.xlane.xlu0 %6794
        %v6796 = vmax.f32 %v1005, %v6702
        %v6797 = vmax.f32 %v1006, %v6705
        %v6798 = vmax.f32 %v1007, %v6708
        %v6799 = vmax.f32 %v1008, %v6711
        %v6800 = vmax.f32 %v1009, %v6714
        %v6801 = vmax.f32 %v1010, %v6717
        %v6802 = vmax.f32 %v1011, %v6720
        %v6803 = vmax.f32 %v1012, %v6723
        %v6804 = vmax.f32 %v1013, %v6726
        %v6805 = vmax.f32 %v1014, %v6729
        %v6806 = vmax.f32 %v1015, %v6732
        %v6807 = vmax.f32 %v1016, %v6735
        %v6808 = vmax.f32 %v1017, %v6738
        %v6809 = vmax.f32 %v1018, %v6741
        %v6810 = vmax.f32 %v1019, %v6744
        %v6811 = vmax.f32 %v1020, %v6747
        %v6812 = vmax.f32 %v1021, %v6750
        %v6813 = vmax.f32 %v1022, %v6753
        %v6814 = vmax.f32 %v1023, %v6756
        %v6815 = vmax.f32 %v1024, %v6759
        %v6816 = vmax.f32 %v1025, %v6762
        %v6817 = vmax.f32 %v1026, %v6765
        %v6818 = vmax.f32 %v1027, %v6768
        %v6819 = vmax.f32 %v1028, %v6771
        %v6820 = vmax.f32 %v1029, %v6774
        %v6821 = vmax.f32 %v1030, %v6777
        %v6822 = vmax.f32 %v1031, %v6780
        %v6823 = vmax.f32 %v1032, %v6783
        %v6824 = vmax.f32 %v1033, %v6786
        %v6825 = vmax.f32 %v1034, %v6789
        %v6826 = vmax.f32 %v1035, %v6792
        %v6827 = vmax.f32 %v1036, %v6795
        %v6828 = vsub.f32 %v1005, %v6796
        %v6829 = vsub.f32 %v1006, %v6797
        %v6830 = vsub.f32 %v1007, %v6798
        %v6831 = vsub.f32 %v1008, %v6799
        %v6832 = vsub.f32 %v1009, %v6800
        %v6833 = vsub.f32 %v1010, %v6801
        %v6834 = vsub.f32 %v1011, %v6802
        %v6835 = vsub.f32 %v1012, %v6803
        %v6836 = vsub.f32 %v1013, %v6804
        %v6837 = vsub.f32 %v1014, %v6805
        %v6838 = vsub.f32 %v1015, %v6806
        %v6839 = vsub.f32 %v1016, %v6807
        %v6840 = vsub.f32 %v1017, %v6808
        %v6841 = vsub.f32 %v1018, %v6809
        %v6842 = vsub.f32 %v1019, %v6810
        %v6843 = vsub.f32 %v1020, %v6811
        %v6844 = vsub.f32 %v1021, %v6812
        %v6845 = vsub.f32 %v1022, %v6813
        %v6846 = vsub.f32 %v1023, %v6814
        %v6847 = vsub.f32 %v1024, %v6815
        %v6848 = vsub.f32 %v1025, %v6816
        %v6849 = vsub.f32 %v1026, %v6817
        %v6850 = vsub.f32 %v1027, %v6818
        %v6851 = vsub.f32 %v1028, %v6819
        %v6852 = vsub.f32 %v1029, %v6820
        %v6853 = vsub.f32 %v1030, %v6821
        %v6854 = vsub.f32 %v1031, %v6822
        %v6855 = vsub.f32 %v1032, %v6823
        %v6856 = vsub.f32 %v1033, %v6824
        %v6857 = vsub.f32 %v1034, %v6825
        %v6858 = vsub.f32 %v1035, %v6826
        %v6859 = vsub.f32 %v1036, %v6827
        %v6860 = vpow.pop %v6828
        %v6861 = vpow.pop %v6829
        %v6862 = vpow.pop %v6830
        %v6863 = vpow.pop %v6831
        %v6864 = vpow.pop %v6832
        %v6865 = vpow.pop %v6833
        %v6866 = vpow.pop %v6834
        %v6867 = vpow.pop %v6835
        %v6868 = vpow.pop %v6836
        %v6869 = vpow.pop %v6837
        %v6870 = vpow.pop %v6838
        %v6871 = vpow.pop %v6839
        %v6872 = vpow.pop %v6840
        %v6873 = vpow.pop %v6841
        %v6874 = vpow.pop %v6842
        %v6875 = vpow.pop %v6843
        %v6876 = vpow.pop %v6844
        %v6877 = vpow.pop %v6845
        %v6878 = vpow.pop %v6846
        %v6879 = vpow.pop %v6847
        %v6880 = vpow.pop %v6848
        %v6881 = vpow.pop %v6849
        %v6882 = vpow.pop %v6850
        %v6883 = vpow.pop %v6851
        %v6884 = vpow.pop %v6852
        %v6885 = vpow.pop %v6853
        %v6886 = vpow.pop %v6854
        %v6887 = vpow.pop %v6855
        %v6888 = vpow.pop %v6856
        %v6889 = vpow.pop %v6857
        %v6890 = vpow.pop %v6858
        %v6891 = vpow.pop %v6859
        %6893 = vset.pattern.permute.xlu0 96
        %6894 = vperm.xlu0 %6893, %v6796
        %v6895 = vpop.permute.xlu0 %6894
        %6898 = vset.pattern.permute.xlu0 96
        %6899 = vperm.xlu0 %6898, %v6797
        %v6900 = vpop.permute.xlu0 %6899
        %6903 = vset.pattern.permute.xlu0 96
        %6904 = vperm.xlu0 %6903, %v6798
        %v6905 = vpop.permute.xlu0 %6904
        %6908 = vset.pattern.permute.xlu0 96
        %6909 = vperm.xlu0 %6908, %v6799
        %v6910 = vpop.permute.xlu0 %6909
        %6913 = vset.pattern.permute.xlu0 96
        %6914 = vperm.xlu0 %6913, %v6800
        %v6915 = vpop.permute.xlu0 %6914
        %6918 = vset.pattern.permute.xlu0 96
        %6919 = vperm.xlu0 %6918, %v6801
        %v6920 = vpop.permute.xlu0 %6919
        %6923 = vset.pattern.permute.xlu0 96
        %6924 = vperm.xlu0 %6923, %v6802
        %v6925 = vpop.permute.xlu0 %6924
        %6928 = vset.pattern.permute.xlu0 96
        %6929 = vperm.xlu0 %6928, %v6803
        %v6930 = vpop.permute.xlu0 %6929
        %6933 = vset.pattern.permute.xlu0 96
        %6934 = vperm.xlu0 %6933, %v6804
        %v6935 = vpop.permute.xlu0 %6934
        %6938 = vset.pattern.permute.xlu0 96
        %6939 = vperm.xlu0 %6938, %v6805
        %v6940 = vpop.permute.xlu0 %6939
        %6943 = vset.pattern.permute.xlu0 96
        %6944 = vperm.xlu0 %6943, %v6806
        %v6945 = vpop.permute.xlu0 %6944
        %6948 = vset.pattern.permute.xlu0 96
        %6949 = vperm.xlu0 %6948, %v6807
        %v6950 = vpop.permute.xlu0 %6949
        %6953 = vset.pattern.permute.xlu0 96
        %6954 = vperm.xlu0 %6953, %v6808
        %v6955 = vpop.permute.xlu0 %6954
        %6958 = vset.pattern.permute.xlu0 96
        %6959 = vperm.xlu0 %6958, %v6809
        %v6960 = vpop.permute.xlu0 %6959
        %6963 = vset.pattern.permute.xlu0 96
        %6964 = vperm.xlu0 %6963, %v6810
        %v6965 = vpop.permute.xlu0 %6964
        %6968 = vset.pattern.permute.xlu0 96
        %6969 = vperm.xlu0 %6968, %v6811
        %v6970 = vpop.permute.xlu0 %6969
        %6973 = vset.pattern.permute.xlu0 96
        %6974 = vperm.xlu0 %6973, %v6812
        %v6975 = vpop.permute.xlu0 %6974
        %6978 = vset.pattern.permute.xlu0 96
        %6979 = vperm.xlu0 %6978, %v6813
        %v6980 = vpop.permute.xlu0 %6979
        %6983 = vset.pattern.permute.xlu0 96
        %6984 = vperm.xlu0 %6983, %v6814
        %v6985 = vpop.permute.xlu0 %6984
        %6988 = vset.pattern.permute.xlu0 96
        %6989 = vperm.xlu0 %6988, %v6815
        %v6990 = vpop.permute.xlu0 %6989
        %6993 = vset.pattern.permute.xlu0 96
        %6994 = vperm.xlu0 %6993, %v6816
        %v6995 = vpop.permute.xlu0 %6994
        %6998 = vset.pattern.permute.xlu0 96
        %6999 = vperm.xlu0 %6998, %v6817
        %v7000 = vpop.permute.xlu0 %6999
        %7003 = vset.pattern.permute.xlu0 96
        %7004 = vperm.xlu0 %7003, %v6818
        %v7005 = vpop.permute.xlu0 %7004
        %7008 = vset.pattern.permute.xlu0 96
        %7009 = vperm.xlu0 %7008, %v6819
        %v7010 = vpop.permute.xlu0 %7009
        %7013 = vset.pattern.permute.xlu0 96
        %7014 = vperm.xlu0 %7013, %v6820
        %v7015 = vpop.permute.xlu0 %7014
        %7018 = vset.pattern.permute.xlu0 96
        %7019 = vperm.xlu0 %7018, %v6821
        %v7020 = vpop.permute.xlu0 %7019
        %7023 = vset.pattern.permute.xlu0 96
        %7024 = vperm.xlu0 %7023, %v6822
        %v7025 = vpop.permute.xlu0 %7024
        %7028 = vset.pattern.permute.xlu0 96
        %7029 = vperm.xlu0 %7028, %v6823
        %v7030 = vpop.permute.xlu0 %7029
        %7033 = vset.pattern.permute.xlu0 96
        %7034 = vperm.xlu0 %7033, %v6824
        %v7035 = vpop.permute.xlu0 %7034
        %7038 = vset.pattern.permute.xlu0 96
        %7039 = vperm.xlu0 %7038, %v6825
        %v7040 = vpop.permute.xlu0 %7039
        %7043 = vset.pattern.permute.xlu0 96
        %7044 = vperm.xlu0 %7043, %v6826
        %v7045 = vpop.permute.xlu0 %7044
        %7048 = vset.pattern.permute.xlu0 96
        %7049 = vperm.xlu0 %7048, %v6827
        %v7050 = vpop.permute.xlu0 %7049
        %v7052 = vsub.f32 %v6532, %v6895
        %v7053 = vsub.f32 %v6621, %v6895
        %v7054 = vsub.f32 %v6534, %v6900
        %v7055 = vsub.f32 %v6623, %v6900
        %v7056 = vsub.f32 %v6537, %v6905
        %v7057 = vsub.f32 %v6626, %v6905
        %v7058 = vsub.f32 %v6539, %v6910
        %v7059 = vsub.f32 %v6628, %v6910
        %v7060 = vsub.f32 %v6542, %v6915
        %v7061 = vsub.f32 %v6631, %v6915
        %v7062 = vsub.f32 %v6544, %v6920
        %v7063 = vsub.f32 %v6633, %v6920
        %v7064 = vsub.f32 %v6547, %v6925
        %v7065 = vsub.f32 %v6636, %v6925
        %v7066 = vsub.f32 %v6549, %v6930
        %v7067 = vsub.f32 %v6638, %v6930
        %v7068 = vsub.f32 %v6552, %v6935
        %v7069 = vsub.f32 %v6641, %v6935
        %v7070 = vsub.f32 %v6554, %v6940
        %v7071 = vsub.f32 %v6643, %v6940
        %v7072 = vsub.f32 %v6557, %v6945
        %v7073 = vsub.f32 %v6646, %v6945
        %v7074 = vsub.f32 %v6559, %v6950
        %v7075 = vsub.f32 %v6648, %v6950
        %v7076 = vsub.f32 %v6562, %v6955
        %v7077 = vsub.f32 %v6651, %v6955
        %v7078 = vsub.f32 %v6564, %v6960
        %v7079 = vsub.f32 %v6653, %v6960
        %v7080 = vsub.f32 %v6567, %v6965
        %v7081 = vsub.f32 %v6656, %v6965
        %v7082 = vsub.f32 %v6569, %v6970
        %v7083 = vsub.f32 %v6658, %v6970
        %v7084 = vsub.f32 %v6572, %v6975
        %v7085 = vsub.f32 %v6661, %v6975
        %v7086 = vsub.f32 %v6574, %v6980
        %v7087 = vsub.f32 %v6663, %v6980
        %v7088 = vsub.f32 %v6577, %v6985
        %v7089 = vsub.f32 %v6666, %v6985
        %v7090 = vsub.f32 %v6579, %v6990
        %v7091 = vsub.f32 %v6668, %v6990
        %v7092 = vsub.f32 %v6582, %v6995
        %v7093 = vsub.f32 %v6671, %v6995
        %v7094 = vsub.f32 %v6584, %v7000
        %v7095 = vsub.f32 %v6673, %v7000
        %v7096 = vsub.f32 %v6587, %v7005
        %v7097 = vsub.f32 %v6676, %v7005
        %v7098 = vsub.f32 %v6589, %v7010
        %v7099 = vsub.f32 %v6678, %v7010
        %v7100 = vsub.f32 %v6592, %v7015
        %v7101 = vsub.f32 %v6681, %v7015
        %v7102 = vsub.f32 %v6594, %v7020
        %v7103 = vsub.f32 %v6683, %v7020
        %v7104 = vsub.f32 %v6597, %v7025
        %v7105 = vsub.f32 %v6686, %v7025
        %v7106 = vsub.f32 %v6599, %v7030
        %v7107 = vsub.f32 %v6688, %v7030
        %v7108 = vsub.f32 %v6602, %v7035
        %v7109 = vsub.f32 %v6691, %v7035
        %v7110 = vsub.f32 %v6604, %v7040
        %v7111 = vsub.f32 %v6693, %v7040
        %v7112 = vsub.f32 %v6607, %v7045
        %v7113 = vsub.f32 %v6696, %v7045
        %v7114 = vsub.f32 %v6609, %v7050
        %v7115 = vsub.f32 %v6698, %v7050
        %v7116 = vpow.pop %v7052
        %v7117 = vpow.pop %v7053
        %v7118 = vpow.pop %v7054
        %v7119 = vpow.pop %v7055
        %v7120 = vpow.pop %v7056
        %v7121 = vpow.pop %v7057
        %v7122 = vpow.pop %v7058
        %v7123 = vpow.pop %v7059
        %v7124 = vpow.pop %v7060
        %v7125 = vpow.pop %v7061
        %v7126 = vpow.pop %v7062
        %v7127 = vpow.pop %v7063
        %v7128 = vpow.pop %v7064
        %v7129 = vpow.pop %v7065
        %v7130 = vpow.pop %v7066
        %v7131 = vpow.pop %v7067
        %v7132 = vpow.pop %v7068
        %v7133 = vpow.pop %v7069
        %v7134 = vpow.pop %v7070
        %v7135 = vpow.pop %v7071
        %v7136 = vpow.pop %v7072
        %v7137 = vpow.pop %v7073
        %v7138 = vpow.pop %v7074
        %v7139 = vpow.pop %v7075
        %v7140 = vpow.pop %v7076
        %v7141 = vpow.pop %v7077
        %v7142 = vpow.pop %v7078
        %v7143 = vpow.pop %v7079
        %v7144 = vpow.pop %v7080
        %v7145 = vpow.pop %v7081
        %v7146 = vpow.pop %v7082
        %v7147 = vpow.pop %v7083
        %v7148 = vpow.pop %v7084
        %v7149 = vpow.pop %v7085
        %v7150 = vpow.pop %v7086
        %v7151 = vpow.pop %v7087
        %v7152 = vpow.pop %v7088
        %v7153 = vpow.pop %v7089
        %v7154 = vpow.pop %v7090
        %v7155 = vpow.pop %v7091
        %v7156 = vpow.pop %v7092
        %v7157 = vpow.pop %v7093
        %v7158 = vpow.pop %v7094
        %v7159 = vpow.pop %v7095
        %v7160 = vpow.pop %v7096
        %v7161 = vpow.pop %v7097
        %v7162 = vpow.pop %v7098
        %v7163 = vpow.pop %v7099
        %v7164 = vpow.pop %v7100
        %v7165 = vpow.pop %v7101
        %v7166 = vpow.pop %v7102
        %v7167 = vpow.pop %v7103
        %v7168 = vpow.pop %v7104
        %v7169 = vpow.pop %v7105
        %v7170 = vpow.pop %v7106
        %v7171 = vpow.pop %v7107
        %v7172 = vpow.pop %v7108
        %v7173 = vpow.pop %v7109
        %v7174 = vpow.pop %v7110
        %v7175 = vpow.pop %v7111
        %v7176 = vpow.pop %v7112
        %v7177 = vpow.pop %v7113
        %v7178 = vpow.pop %v7114
        %v7179 = vpow.pop %v7115
        %v7180 = vmul.f32 %v6860, %v1037
        %v7181 = vmul.f32 %v6861, %v1038
        %v7182 = vmul.f32 %v6862, %v1039
        %v7183 = vmul.f32 %v6863, %v1040
        %v7184 = vmul.f32 %v6864, %v1041
        %v7185 = vmul.f32 %v6865, %v1042
        %v7186 = vmul.f32 %v6866, %v1043
        %v7187 = vmul.f32 %v6867, %v1044
        %v7188 = vmul.f32 %v6868, %v1045
        %v7189 = vmul.f32 %v6869, %v1046
        %v7190 = vmul.f32 %v6870, %v1047
        %v7191 = vmul.f32 %v6871, %v1048
        %v7192 = vmul.f32 %v6872, %v1049
        %v7193 = vmul.f32 %v6873, %v1050
        %v7194 = vmul.f32 %v6874, %v1051
        %v7195 = vmul.f32 %v6875, %v1052
        %v7196 = vmul.f32 %v6876, %v1053
        %v7197 = vmul.f32 %v6877, %v1054
        %v7198 = vmul.f32 %v6878, %v1055
        %v7199 = vmul.f32 %v6879, %v1056
        %v7200 = vmul.f32 %v6880, %v1057
        %v7201 = vmul.f32 %v6881, %v1058
        %v7202 = vmul.f32 %v6882, %v1059
        %v7203 = vmul.f32 %v6883, %v1060
        %v7204 = vmul.f32 %v6884, %v1061
        %v7205 = vmul.f32 %v6885, %v1062
        %v7206 = vmul.f32 %v6886, %v1063
        %v7207 = vmul.f32 %v6887, %v1064
        %v7208 = vmul.f32 %v6888, %v1065
        %v7209 = vmul.f32 %v6889, %v1066
        %v7210 = vmul.f32 %v6890, %v1067
        %v7211 = vmul.f32 %v6891, %v1068
        %v7212 = vadd.f32 %v7116, %v7117
        %7213 = vadd.xlane.f32.xlu0 %v7212
        %v7214 = vpop.xlane.xlu0 %7213
        %v7215 = vadd.f32 %v7118, %v7119
        %7216 = vadd.xlane.f32.xlu0 %v7215
        %v7217 = vpop.xlane.xlu0 %7216
        %v7218 = vadd.f32 %v7120, %v7121
        %7219 = vadd.xlane.f32.xlu0 %v7218
        %v7220 = vpop.xlane.xlu0 %7219
        %v7221 = vadd.f32 %v7122, %v7123
        %7222 = vadd.xlane.f32.xlu0 %v7221
        %v7223 = vpop.xlane.xlu0 %7222
        %v7224 = vadd.f32 %v7124, %v7125
        %7225 = vadd.xlane.f32.xlu0 %v7224
        %v7226 = vpop.xlane.xlu0 %7225
        %v7227 = vadd.f32 %v7126, %v7127
        %7228 = vadd.xlane.f32.xlu0 %v7227
        %v7229 = vpop.xlane.xlu0 %7228
        %v7230 = vadd.f32 %v7128, %v7129
        %7231 = vadd.xlane.f32.xlu0 %v7230
        %v7232 = vpop.xlane.xlu0 %7231
        %v7233 = vadd.f32 %v7130, %v7131
        %7234 = vadd.xlane.f32.xlu0 %v7233
        %v7235 = vpop.xlane.xlu0 %7234
        %v7236 = vadd.f32 %v7132, %v7133
        %7237 = vadd.xlane.f32.xlu0 %v7236
        %v7238 = vpop.xlane.xlu0 %7237
        %v7239 = vadd.f32 %v7134, %v7135
        %7240 = vadd.xlane.f32.xlu0 %v7239
        %v7241 = vpop.xlane.xlu0 %7240
        %v7242 = vadd.f32 %v7136, %v7137
        %7243 = vadd.xlane.f32.xlu0 %v7242
        %v7244 = vpop.xlane.xlu0 %7243
        %v7245 = vadd.f32 %v7138, %v7139
        %7246 = vadd.xlane.f32.xlu0 %v7245
        %v7247 = vpop.xlane.xlu0 %7246
        %v7248 = vadd.f32 %v7140, %v7141
        %7249 = vadd.xlane.f32.xlu0 %v7248
        %v7250 = vpop.xlane.xlu0 %7249
        %v7251 = vadd.f32 %v7142, %v7143
        %7252 = vadd.xlane.f32.xlu0 %v7251
        %v7253 = vpop.xlane.xlu0 %7252
        %v7254 = vadd.f32 %v7144, %v7145
        %7255 = vadd.xlane.f32.xlu0 %v7254
        %v7256 = vpop.xlane.xlu0 %7255
        %v7257 = vadd.f32 %v7146, %v7147
        %7258 = vadd.xlane.f32.xlu0 %v7257
        %v7259 = vpop.xlane.xlu0 %7258
        %v7260 = vadd.f32 %v7148, %v7149
        %7261 = vadd.xlane.f32.xlu0 %v7260
        %v7262 = vpop.xlane.xlu0 %7261
        %v7263 = vadd.f32 %v7150, %v7151
        %7264 = vadd.xlane.f32.xlu0 %v7263
        %v7265 = vpop.xlane.xlu0 %7264
        %v7266 = vadd.f32 %v7152, %v7153
        %7267 = vadd.xlane.f32.xlu0 %v7266
        %v7268 = vpop.xlane.xlu0 %7267
        %v7269 = vadd.f32 %v7154, %v7155
        %7270 = vadd.xlane.f32.xlu0 %v7269
        %v7271 = vpop.xlane.xlu0 %7270
        %v7272 = vadd.f32 %v7156, %v7157
        %7273 = vadd.xlane.f32.xlu0 %v7272
        %v7274 = vpop.xlane.xlu0 %7273
        %v7275 = vadd.f32 %v7158, %v7159
        %7276 = vadd.xlane.f32.xlu0 %v7275
        %v7277 = vpop.xlane.xlu0 %7276
        %v7278 = vadd.f32 %v7160, %v7161
        %7279 = vadd.xlane.f32.xlu0 %v7278
        %v7280 = vpop.xlane.xlu0 %7279
        %v7281 = vadd.f32 %v7162, %v7163
        %7282 = vadd.xlane.f32.xlu0 %v7281
        %v7283 = vpop.xlane.xlu0 %7282
        %v7284 = vadd.f32 %v7164, %v7165
        %7285 = vadd.xlane.f32.xlu0 %v7284
        %v7286 = vpop.xlane.xlu0 %7285
        %v7287 = vadd.f32 %v7166, %v7167
        %7288 = vadd.xlane.f32.xlu0 %v7287
        %v7289 = vpop.xlane.xlu0 %7288
        %v7290 = vadd.f32 %v7168, %v7169
        %7291 = vadd.xlane.f32.xlu0 %v7290
        %v7292 = vpop.xlane.xlu0 %7291
        %v7293 = vadd.f32 %v7170, %v7171
        %7294 = vadd.xlane.f32.xlu0 %v7293
        %v7295 = vpop.xlane.xlu0 %7294
        %v7296 = vadd.f32 %v7172, %v7173
        %7297 = vadd.xlane.f32.xlu0 %v7296
        %v7298 = vpop.xlane.xlu0 %7297
        %v7299 = vadd.f32 %v7174, %v7175
        %7300 = vadd.xlane.f32.xlu0 %v7299
        %v7301 = vpop.xlane.xlu0 %7300
        %v7302 = vadd.f32 %v7176, %v7177
        %7303 = vadd.xlane.f32.xlu0 %v7302
        %v7304 = vpop.xlane.xlu0 %7303
        %v7305 = vadd.f32 %v7178, %v7179
        %7306 = vadd.xlane.f32.xlu0 %v7305
        %v7307 = vpop.xlane.xlu0 %7306
        %v7308 = vadd.f32 %v7180, %v7214
        %v7309 = vadd.f32 %v7181, %v7217
        %v7310 = vadd.f32 %v7182, %v7220
        %v7311 = vadd.f32 %v7183, %v7223
        %v7312 = vadd.f32 %v7184, %v7226
        %v7313 = vadd.f32 %v7185, %v7229
        %v7314 = vadd.f32 %v7186, %v7232
        %v7315 = vadd.f32 %v7187, %v7235
        %v7316 = vadd.f32 %v7188, %v7238
        %v7317 = vadd.f32 %v7189, %v7241
        %v7318 = vadd.f32 %v7190, %v7244
        %v7319 = vadd.f32 %v7191, %v7247
        %v7320 = vadd.f32 %v7192, %v7250
        %v7321 = vadd.f32 %v7193, %v7253
        %v7322 = vadd.f32 %v7194, %v7256
        %v7323 = vadd.f32 %v7195, %v7259
        %v7324 = vadd.f32 %v7196, %v7262
        %v7325 = vadd.f32 %v7197, %v7265
        %v7326 = vadd.f32 %v7198, %v7268
        %v7327 = vadd.f32 %v7199, %v7271
        %v7328 = vadd.f32 %v7200, %v7274
        %v7329 = vadd.f32 %v7201, %v7277
        %v7330 = vadd.f32 %v7202, %v7280
        %v7331 = vadd.f32 %v7203, %v7283
        %v7332 = vadd.f32 %v7204, %v7286
        %v7333 = vadd.f32 %v7205, %v7289
        %v7334 = vadd.f32 %v7206, %v7292
        %v7335 = vadd.f32 %v7207, %v7295
        %v7336 = vadd.f32 %v7208, %v7298
        %v7337 = vadd.f32 %v7209, %v7301
        %v7338 = vadd.f32 %v7210, %v7304
        %v7339 = vadd.f32 %v7211, %v7307
        %7341 = vset.pattern.permute.xlu0 96
        %7342 = vperm.xlu0 %7341, %v6860
        %v7343 = vpop.permute.xlu0 %7342
        %7346 = vset.pattern.permute.xlu0 96
        %7347 = vperm.xlu0 %7346, %v6861
        %v7348 = vpop.permute.xlu0 %7347
        %7351 = vset.pattern.permute.xlu0 96
        %7352 = vperm.xlu0 %7351, %v6862
        %v7353 = vpop.permute.xlu0 %7352
        %7356 = vset.pattern.permute.xlu0 96
        %7357 = vperm.xlu0 %7356, %v6863
        %v7358 = vpop.permute.xlu0 %7357
        %7361 = vset.pattern.permute.xlu0 96
        %7362 = vperm.xlu0 %7361, %v6864
        %v7363 = vpop.permute.xlu0 %7362
        %7366 = vset.pattern.permute.xlu0 96
        %7367 = vperm.xlu0 %7366, %v6865
        %v7368 = vpop.permute.xlu0 %7367
        %7371 = vset.pattern.permute.xlu0 96
        %7372 = vperm.xlu0 %7371, %v6866
        %v7373 = vpop.permute.xlu0 %7372
        %7376 = vset.pattern.permute.xlu0 96
        %7377 = vperm.xlu0 %7376, %v6867
        %v7378 = vpop.permute.xlu0 %7377
        %7381 = vset.pattern.permute.xlu0 96
        %7382 = vperm.xlu0 %7381, %v6868
        %v7383 = vpop.permute.xlu0 %7382
        %7386 = vset.pattern.permute.xlu0 96
        %7387 = vperm.xlu0 %7386, %v6869
        %v7388 = vpop.permute.xlu0 %7387
        %7391 = vset.pattern.permute.xlu0 96
        %7392 = vperm.xlu0 %7391, %v6870
        %v7393 = vpop.permute.xlu0 %7392
        %7396 = vset.pattern.permute.xlu0 96
        %7397 = vperm.xlu0 %7396, %v6871
        %v7398 = vpop.permute.xlu0 %7397
        %7401 = vset.pattern.permute.xlu0 96
        %7402 = vperm.xlu0 %7401, %v6872
        %v7403 = vpop.permute.xlu0 %7402
        %7406 = vset.pattern.permute.xlu0 96
        %7407 = vperm.xlu0 %7406, %v6873
        %v7408 = vpop.permute.xlu0 %7407
        %7411 = vset.pattern.permute.xlu0 96
        %7412 = vperm.xlu0 %7411, %v6874
        %v7413 = vpop.permute.xlu0 %7412
        %7416 = vset.pattern.permute.xlu0 96
        %7417 = vperm.xlu0 %7416, %v6875
        %v7418 = vpop.permute.xlu0 %7417
        %7421 = vset.pattern.permute.xlu0 96
        %7422 = vperm.xlu0 %7421, %v6876
        %v7423 = vpop.permute.xlu0 %7422
        %7426 = vset.pattern.permute.xlu0 96
        %7427 = vperm.xlu0 %7426, %v6877
        %v7428 = vpop.permute.xlu0 %7427
        %7431 = vset.pattern.permute.xlu0 96
        %7432 = vperm.xlu0 %7431, %v6878
        %v7433 = vpop.permute.xlu0 %7432
        %7436 = vset.pattern.permute.xlu0 96
        %7437 = vperm.xlu0 %7436, %v6879
        %v7438 = vpop.permute.xlu0 %7437
        %7441 = vset.pattern.permute.xlu0 96
        %7442 = vperm.xlu0 %7441, %v6880
        %v7443 = vpop.permute.xlu0 %7442
        %7446 = vset.pattern.permute.xlu0 96
        %7447 = vperm.xlu0 %7446, %v6881
        %v7448 = vpop.permute.xlu0 %7447
        %7451 = vset.pattern.permute.xlu0 96
        %7452 = vperm.xlu0 %7451, %v6882
        %v7453 = vpop.permute.xlu0 %7452
        %7456 = vset.pattern.permute.xlu0 96
        %7457 = vperm.xlu0 %7456, %v6883
        %v7458 = vpop.permute.xlu0 %7457
        %7461 = vset.pattern.permute.xlu0 96
        %7462 = vperm.xlu0 %7461, %v6884
        %v7463 = vpop.permute.xlu0 %7462
        %7466 = vset.pattern.permute.xlu0 96
        %7467 = vperm.xlu0 %7466, %v6885
        %v7468 = vpop.permute.xlu0 %7467
        %7471 = vset.pattern.permute.xlu0 96
        %7472 = vperm.xlu0 %7471, %v6886
        %v7473 = vpop.permute.xlu0 %7472
        %7476 = vset.pattern.permute.xlu0 96
        %7477 = vperm.xlu0 %7476, %v6887
        %v7478 = vpop.permute.xlu0 %7477
        %7481 = vset.pattern.permute.xlu0 96
        %7482 = vperm.xlu0 %7481, %v6888
        %v7483 = vpop.permute.xlu0 %7482
        %7486 = vset.pattern.permute.xlu0 96
        %7487 = vperm.xlu0 %7486, %v6889
        %v7488 = vpop.permute.xlu0 %7487
        %7491 = vset.pattern.permute.xlu0 96
        %7492 = vperm.xlu0 %7491, %v6890
        %v7493 = vpop.permute.xlu0 %7492
        %7496 = vset.pattern.permute.xlu0 96
        %7497 = vperm.xlu0 %7496, %v6891
        %v7498 = vpop.permute.xlu0 %7497
        %v7500 = vmul.f32 %v7343, %v1069
        %v7501 = vmul.f32 %v7348, %v1070
        %v7502 = vmul.f32 %v7353, %v1071
        %v7503 = vmul.f32 %v7358, %v1072
        %v7504 = vmul.f32 %v7363, %v1073
        %v7505 = vmul.f32 %v7368, %v1074
        %v7506 = vmul.f32 %v7373, %v1075
        %v7507 = vmul.f32 %v7378, %v1076
        %v7508 = vmul.f32 %v7383, %v1077
        %v7509 = vmul.f32 %v7388, %v1078
        %v7510 = vmul.f32 %v7393, %v1079
        %v7511 = vmul.f32 %v7398, %v1080
        %v7512 = vmul.f32 %v7403, %v1081
        %v7513 = vmul.f32 %v7408, %v1082
        %v7514 = vmul.f32 %v7413, %v1083
        %v7515 = vmul.f32 %v7418, %v1084
        %v7516 = vmul.f32 %v7423, %v1085
        %v7517 = vmul.f32 %v7428, %v1086
        %v7518 = vmul.f32 %v7433, %v1087
        %v7519 = vmul.f32 %v7438, %v1088
        %v7520 = vmul.f32 %v7443, %v1089
        %v7521 = vmul.f32 %v7448, %v1090
        %v7522 = vmul.f32 %v7453, %v1091
        %v7523 = vmul.f32 %v7458, %v1092
        %v7524 = vmul.f32 %v7463, %v1093
        %v7525 = vmul.f32 %v7468, %v1094
        %v7526 = vmul.f32 %v7473, %v1095
        %v7527 = vmul.f32 %v7478, %v1096
        %v7528 = vmul.f32 %v7483, %v1097
        %v7529 = vmul.f32 %v7488, %v1098
        %v7530 = vmul.f32 %v7493, %v1099
        %v7531 = vmul.f32 %v7498, %v1100
        %v7532 = vpack.c.bf16 %v7118, %v7116
        %v7533 = vpack.c.bf16 %v7119, %v7117
        %v7534 = vpack.c.bf16 %v7122, %v7120
        %v7535 = vpack.c.bf16 %v7123, %v7121
        %v7536 = vpack.c.bf16 %v7126, %v7124
        %v7537 = vpack.c.bf16 %v7127, %v7125
        %v7538 = vpack.c.bf16 %v7130, %v7128
        %v7539 = vpack.c.bf16 %v7131, %v7129
        %v7540 = vpack.c.bf16 %v7134, %v7132
        %v7541 = vpack.c.bf16 %v7135, %v7133
        %v7542 = vpack.c.bf16 %v7138, %v7136
        %v7543 = vpack.c.bf16 %v7139, %v7137
        %v7544 = vpack.c.bf16 %v7142, %v7140
        %v7545 = vpack.c.bf16 %v7143, %v7141
        %v7546 = vpack.c.bf16 %v7146, %v7144
        %v7547 = vpack.c.bf16 %v7147, %v7145
        %v7548 = vpack.c.bf16 %v7150, %v7148
        %v7549 = vpack.c.bf16 %v7151, %v7149
        %v7550 = vpack.c.bf16 %v7154, %v7152
        %v7551 = vpack.c.bf16 %v7155, %v7153
        %v7552 = vpack.c.bf16 %v7158, %v7156
        %v7553 = vpack.c.bf16 %v7159, %v7157
        %v7554 = vpack.c.bf16 %v7162, %v7160
        %v7555 = vpack.c.bf16 %v7163, %v7161
        %v7556 = vpack.c.bf16 %v7166, %v7164
        %v7557 = vpack.c.bf16 %v7167, %v7165
        %v7558 = vpack.c.bf16 %v7170, %v7168
        %v7559 = vpack.c.bf16 %v7171, %v7169
        %v7560 = vpack.c.bf16 %v7174, %v7172
        %v7561 = vpack.c.bf16 %v7175, %v7173
        %v7562 = vpack.c.bf16 %v7178, %v7176
        %v7563 = vpack.c.bf16 %v7179, %v7177
        %7564 = vrot.lane.b32.xlu0 %v2464, 32
        %v7565 = vpop.permute.xlu0 %7564
        %7566 = vrot.lane.b32.xlu0 %v2465, 32
        %v7567 = vpop.permute.xlu0 %7566
        %7568 = vrot.lane.b32.xlu0 %v2466, 32
        %v7569 = vpop.permute.xlu0 %7568
        %7570 = vrot.lane.b32.xlu0 %v2467, 32
        %v7571 = vpop.permute.xlu0 %7570
        %7572 = vrot.lane.b32.xlu0 %v2468, 32
        %v7573 = vpop.permute.xlu0 %7572
        %7574 = vrot.lane.b32.xlu0 %v2469, 32
        %v7575 = vpop.permute.xlu0 %7574
        %7576 = vrot.lane.b32.xlu0 %v2470, 32
        %v7577 = vpop.permute.xlu0 %7576
        %7578 = vrot.lane.b32.xlu0 %v2471, 32
        %v7579 = vpop.permute.xlu0 %7578
        %7580 = vrot.lane.b32.xlu0 %v2472, 32
        %v7581 = vpop.permute.xlu0 %7580
        %7582 = vrot.lane.b32.xlu0 %v2473, 32
        %v7583 = vpop.permute.xlu0 %7582
        %7584 = vrot.lane.b32.xlu0 %v2474, 32
        %v7585 = vpop.permute.xlu0 %7584
        %7586 = vrot.lane.b32.xlu0 %v2475, 32
        %v7587 = vpop.permute.xlu0 %7586
        %7588 = vrot.lane.b32.xlu0 %v2476, 32
        %v7589 = vpop.permute.xlu0 %7588
        %7590 = vrot.lane.b32.xlu0 %v2477, 32
        %v7591 = vpop.permute.xlu0 %7590
        %7592 = vrot.lane.b32.xlu0 %v2478, 32
        %v7593 = vpop.permute.xlu0 %7592
        %7594 = vrot.lane.b32.xlu0 %v2479, 32
        %v7595 = vpop.permute.xlu0 %7594
        %7612 = vmatpush.bf16.msra.mxu0 %v7579
        %7613 = vmatpush.bf16.msra.mxu0 %v7577
        %7614 = vmatpush.bf16.msra.mxu0 %v7575
        %7615 = vmatpush.bf16.msra.mxu0 %v7573
        %7616 = vmatpush.bf16.msra.mxu0 %v7571
        %7617 = vmatpush.bf16.msra.mxu0 %v7569
        %7618 = vmatpush.bf16.msra.mxu0 %v7567
        %7619 = vmatpush.bf16.msra.mxu0 %v7565
        %7620 = vmatmul.bf16.gmra.mxu0 %v7532
        %v7621 = vpop.f32.mrf.mxu0
        %v7622 = vadd.f32 0.0, %v7621
        %v7623 = vpop.f32.mrf.mxu0
        %v7624 = vadd.f32 0.0, %v7623
        %7625 = vmatmul.bf16.gmra.mxu0 %v7534
        %v7626 = vpop.f32.mrf.mxu0
        %v7627 = vadd.f32 0.0, %v7626
        %v7628 = vpop.f32.mrf.mxu0
        %v7629 = vadd.f32 0.0, %v7628
        %7630 = vmatmul.bf16.gmra.mxu0 %v7536
        %v7631 = vpop.f32.mrf.mxu0
        %v7632 = vadd.f32 0.0, %v7631
        %v7633 = vpop.f32.mrf.mxu0
        %v7634 = vadd.f32 0.0, %v7633
        %7635 = vmatmul.bf16.gmra.mxu0 %v7538
        %v7636 = vpop.f32.mrf.mxu0
        %v7637 = vadd.f32 0.0, %v7636
        %v7638 = vpop.f32.mrf.mxu0
        %v7639 = vadd.f32 0.0, %v7638
        %7640 = vmatmul.bf16.gmra.mxu0 %v7540
        %v7641 = vpop.f32.mrf.mxu0
        %v7642 = vadd.f32 0.0, %v7641
        %v7643 = vpop.f32.mrf.mxu0
        %v7644 = vadd.f32 0.0, %v7643
        %7645 = vmatmul.bf16.gmra.mxu0 %v7542
        %v7646 = vpop.f32.mrf.mxu0
        %v7647 = vadd.f32 0.0, %v7646
        %v7648 = vpop.f32.mrf.mxu0
        %v7649 = vadd.f32 0.0, %v7648
        %7650 = vmatmul.bf16.gmra.mxu0 %v7544
        %v7651 = vpop.f32.mrf.mxu0
        %v7652 = vadd.f32 0.0, %v7651
        %v7653 = vpop.f32.mrf.mxu0
        %v7654 = vadd.f32 0.0, %v7653
        %7655 = vmatmul.bf16.gmra.mxu0 %v7546
        %v7656 = vpop.f32.mrf.mxu0
        %v7657 = vadd.f32 0.0, %v7656
        %v7658 = vpop.f32.mrf.mxu0
        %v7659 = vadd.f32 0.0, %v7658
        %7660 = vmatmul.bf16.gmra.mxu0 %v7548
        %v7661 = vpop.f32.mrf.mxu0
        %v7662 = vadd.f32 0.0, %v7661
        %v7663 = vpop.f32.mrf.mxu0
        %v7664 = vadd.f32 0.0, %v7663
        %7665 = vmatmul.bf16.gmra.mxu0 %v7550
        %v7666 = vpop.f32.mrf.mxu0
        %v7667 = vadd.f32 0.0, %v7666
        %v7668 = vpop.f32.mrf.mxu0
        %v7669 = vadd.f32 0.0, %v7668
        %7670 = vmatmul.bf16.gmra.mxu0 %v7552
        %v7671 = vpop.f32.mrf.mxu0
        %v7672 = vadd.f32 0.0, %v7671
        %v7673 = vpop.f32.mrf.mxu0
        %v7674 = vadd.f32 0.0, %v7673
        %7675 = vmatmul.bf16.gmra.mxu0 %v7554
        %v7676 = vpop.f32.mrf.mxu0
        %v7677 = vadd.f32 0.0, %v7676
        %v7678 = vpop.f32.mrf.mxu0
        %v7679 = vadd.f32 0.0, %v7678
        %7680 = vmatmul.bf16.gmra.mxu0 %v7556
        %v7681 = vpop.f32.mrf.mxu0
        %v7682 = vadd.f32 0.0, %v7681
        %v7683 = vpop.f32.mrf.mxu0
        %v7684 = vadd.f32 0.0, %v7683
        %7685 = vmatmul.bf16.gmra.mxu0 %v7558
        %v7686 = vpop.f32.mrf.mxu0
        %v7687 = vadd.f32 0.0, %v7686
        %v7688 = vpop.f32.mrf.mxu0
        %v7689 = vadd.f32 0.0, %v7688
        %7690 = vmatmul.bf16.gmra.mxu0 %v7560
        %v7691 = vpop.f32.mrf.mxu0
        %v7692 = vadd.f32 0.0, %v7691
        %v7693 = vpop.f32.mrf.mxu0
        %v7694 = vadd.f32 0.0, %v7693
        %7695 = vmatmul.bf16.gmra.mxu0 %v7562
        %v7696 = vpop.f32.mrf.mxu0
        %v7697 = vadd.f32 0.0, %v7696
        %v7698 = vpop.f32.mrf.mxu0
        %v7699 = vadd.f32 0.0, %v7698
        %7700 = vdwg.mxu0
        %7701 = vmatpush.bf16.msra.mxu0 %v7595
        %7702 = vmatpush.bf16.msra.mxu0 %v7593
        %7703 = vmatpush.bf16.msra.mxu0 %v7591
        %7704 = vmatpush.bf16.msra.mxu0 %v7589
        %7705 = vmatpush.bf16.msra.mxu0 %v7587
        %7706 = vmatpush.bf16.msra.mxu0 %v7585
        %7707 = vmatpush.bf16.msra.mxu0 %v7583
        %7708 = vmatpush.bf16.msra.mxu0 %v7581
        %7709 = vmatmul.bf16.gmra.mxu0 %v7533
        %v7710 = vpop.f32.mrf.mxu0
        %v7711 = vadd.f32 %v7622, %v7710
        %v7712 = vpop.f32.mrf.mxu0
        %v7713 = vadd.f32 %v7624, %v7712
        %7714 = vmatmul.bf16.gmra.mxu0 %v7535
        %v7715 = vpop.f32.mrf.mxu0
        %v7716 = vadd.f32 %v7627, %v7715
        %v7717 = vpop.f32.mrf.mxu0
        %v7718 = vadd.f32 %v7629, %v7717
        %7719 = vmatmul.bf16.gmra.mxu0 %v7537
        %v7720 = vpop.f32.mrf.mxu0
        %v7721 = vadd.f32 %v7632, %v7720
        %v7722 = vpop.f32.mrf.mxu0
        %v7723 = vadd.f32 %v7634, %v7722
        %7724 = vmatmul.bf16.gmra.mxu0 %v7539
        %v7725 = vpop.f32.mrf.mxu0
        %v7726 = vadd.f32 %v7637, %v7725
        %v7727 = vpop.f32.mrf.mxu0
        %v7728 = vadd.f32 %v7639, %v7727
        %7729 = vmatmul.bf16.gmra.mxu0 %v7541
        %v7730 = vpop.f32.mrf.mxu0
        %v7731 = vadd.f32 %v7642, %v7730
        %v7732 = vpop.f32.mrf.mxu0
        %v7733 = vadd.f32 %v7644, %v7732
        %7734 = vmatmul.bf16.gmra.mxu0 %v7543
        %v7735 = vpop.f32.mrf.mxu0
        %v7736 = vadd.f32 %v7647, %v7735
        %v7737 = vpop.f32.mrf.mxu0
        %v7738 = vadd.f32 %v7649, %v7737
        %7739 = vmatmul.bf16.gmra.mxu0 %v7545
        %v7740 = vpop.f32.mrf.mxu0
        %v7741 = vadd.f32 %v7652, %v7740
        %v7742 = vpop.f32.mrf.mxu0
        %v7743 = vadd.f32 %v7654, %v7742
        %7744 = vmatmul.bf16.gmra.mxu0 %v7547
        %v7745 = vpop.f32.mrf.mxu0
        %v7746 = vadd.f32 %v7657, %v7745
        %v7747 = vpop.f32.mrf.mxu0
        %v7748 = vadd.f32 %v7659, %v7747
        %7749 = vmatmul.bf16.gmra.mxu0 %v7549
        %v7750 = vpop.f32.mrf.mxu0
        %v7751 = vadd.f32 %v7662, %v7750
        %v7752 = vpop.f32.mrf.mxu0
        %v7753 = vadd.f32 %v7664, %v7752
        %7754 = vmatmul.bf16.gmra.mxu0 %v7551
        %v7755 = vpop.f32.mrf.mxu0
        %v7756 = vadd.f32 %v7667, %v7755
        %v7757 = vpop.f32.mrf.mxu0
        %v7758 = vadd.f32 %v7669, %v7757
        %7759 = vmatmul.bf16.gmra.mxu0 %v7553
        %v7760 = vpop.f32.mrf.mxu0
        %v7761 = vadd.f32 %v7672, %v7760
        %v7762 = vpop.f32.mrf.mxu0
        %v7763 = vadd.f32 %v7674, %v7762
        %7764 = vmatmul.bf16.gmra.mxu0 %v7555
        %v7765 = vpop.f32.mrf.mxu0
        %v7766 = vadd.f32 %v7677, %v7765
        %v7767 = vpop.f32.mrf.mxu0
        %v7768 = vadd.f32 %v7679, %v7767
        %7769 = vmatmul.bf16.gmra.mxu0 %v7557
        %v7770 = vpop.f32.mrf.mxu0
        %v7771 = vadd.f32 %v7682, %v7770
        %v7772 = vpop.f32.mrf.mxu0
        %v7773 = vadd.f32 %v7684, %v7772
        %7774 = vmatmul.bf16.gmra.mxu0 %v7559
        %v7775 = vpop.f32.mrf.mxu0
        %v7776 = vadd.f32 %v7687, %v7775
        %v7777 = vpop.f32.mrf.mxu0
        %v7778 = vadd.f32 %v7689, %v7777
        %7779 = vmatmul.bf16.gmra.mxu0 %v7561
        %v7780 = vpop.f32.mrf.mxu0
        %v7781 = vadd.f32 %v7692, %v7780
        %v7782 = vpop.f32.mrf.mxu0
        %v7783 = vadd.f32 %v7694, %v7782
        %7784 = vmatmul.bf16.gmra.mxu0 %v7563
        %v7785 = vpop.f32.mrf.mxu0
        %v7786 = vadd.f32 %v7697, %v7785
        %v7787 = vpop.f32.mrf.mxu0
        %v7788 = vadd.f32 %v7699, %v7787
        %7789 = vdwg.mxu0
        %7822 = vrot.lane.b32.xlu0 %v7711, 96
        %v7823 = vpop.permute.xlu0 %7822
        %7824 = vrot.lane.b32.xlu0 %v7713, 96
        %v7825 = vpop.permute.xlu0 %7824
        %7826 = vrot.lane.b32.xlu0 %v7716, 96
        %v7827 = vpop.permute.xlu0 %7826
        %7828 = vrot.lane.b32.xlu0 %v7718, 96
        %v7829 = vpop.permute.xlu0 %7828
        %7830 = vrot.lane.b32.xlu0 %v7721, 96
        %v7831 = vpop.permute.xlu0 %7830
        %7832 = vrot.lane.b32.xlu0 %v7723, 96
        %v7833 = vpop.permute.xlu0 %7832
        %7834 = vrot.lane.b32.xlu0 %v7726, 96
        %v7835 = vpop.permute.xlu0 %7834
        %7836 = vrot.lane.b32.xlu0 %v7728, 96
        %v7837 = vpop.permute.xlu0 %7836
        %7838 = vrot.lane.b32.xlu0 %v7731, 96
        %v7839 = vpop.permute.xlu0 %7838
        %7840 = vrot.lane.b32.xlu0 %v7733, 96
        %v7841 = vpop.permute.xlu0 %7840
        %7842 = vrot.lane.b32.xlu0 %v7736, 96
        %v7843 = vpop.permute.xlu0 %7842
        %7844 = vrot.lane.b32.xlu0 %v7738, 96
        %v7845 = vpop.permute.xlu0 %7844
        %7846 = vrot.lane.b32.xlu0 %v7741, 96
        %v7847 = vpop.permute.xlu0 %7846
        %7848 = vrot.lane.b32.xlu0 %v7743, 96
        %v7849 = vpop.permute.xlu0 %7848
        %7850 = vrot.lane.b32.xlu0 %v7746, 96
        %v7851 = vpop.permute.xlu0 %7850
        %7852 = vrot.lane.b32.xlu0 %v7748, 96
        %v7853 = vpop.permute.xlu0 %7852
        %7854 = vrot.lane.b32.xlu0 %v7751, 96
        %v7855 = vpop.permute.xlu0 %7854
        %7856 = vrot.lane.b32.xlu0 %v7753, 96
        %v7857 = vpop.permute.xlu0 %7856
        %7858 = vrot.lane.b32.xlu0 %v7756, 96
        %v7859 = vpop.permute.xlu0 %7858
        %7860 = vrot.lane.b32.xlu0 %v7758, 96
        %v7861 = vpop.permute.xlu0 %7860
        %7862 = vrot.lane.b32.xlu0 %v7761, 96
        %v7863 = vpop.permute.xlu0 %7862
        %7864 = vrot.lane.b32.xlu0 %v7763, 96
        %v7865 = vpop.permute.xlu0 %7864
        %7866 = vrot.lane.b32.xlu0 %v7766, 96
        %v7867 = vpop.permute.xlu0 %7866
        %7868 = vrot.lane.b32.xlu0 %v7768, 96
        %v7869 = vpop.permute.xlu0 %7868
        %7870 = vrot.lane.b32.xlu0 %v7771, 96
        %v7871 = vpop.permute.xlu0 %7870
        %7872 = vrot.lane.b32.xlu0 %v7773, 96
        %v7873 = vpop.permute.xlu0 %7872
        %7874 = vrot.lane.b32.xlu0 %v7776, 96
        %v7875 = vpop.permute.xlu0 %7874
        %7876 = vrot.lane.b32.xlu0 %v7778, 96
        %v7877 = vpop.permute.xlu0 %7876
        %7878 = vrot.lane.b32.xlu0 %v7781, 96
        %v7879 = vpop.permute.xlu0 %7878
        %7880 = vrot.lane.b32.xlu0 %v7783, 96
        %v7881 = vpop.permute.xlu0 %7880
        %7882 = vrot.lane.b32.xlu0 %v7786, 96
        %v7883 = vpop.permute.xlu0 %7882
        %7884 = vrot.lane.b32.xlu0 %v7788, 96
        %v7885 = vpop.permute.xlu0 %7884
        %v7918 = vadd.f32 %v7500, %v7823
        %v7919 = vadd.f32 %v7501, %v7825
        %v7920 = vadd.f32 %v7502, %v7827
        %v7921 = vadd.f32 %v7503, %v7829
        %v7922 = vadd.f32 %v7504, %v7831
        %v7923 = vadd.f32 %v7505, %v7833
        %v7924 = vadd.f32 %v7506, %v7835
        %v7925 = vadd.f32 %v7507, %v7837
        %v7926 = vadd.f32 %v7508, %v7839
        %v7927 = vadd.f32 %v7509, %v7841
        %v7928 = vadd.f32 %v7510, %v7843
        %v7929 = vadd.f32 %v7511, %v7845
        %v7930 = vadd.f32 %v7512, %v7847
        %v7931 = vadd.f32 %v7513, %v7849
        %v7932 = vadd.f32 %v7514, %v7851
        %v7933 = vadd.f32 %v7515, %v7853
        %v7934 = vadd.f32 %v7516, %v7855
        %v7935 = vadd.f32 %v7517, %v7857
        %v7936 = vadd.f32 %v7518, %v7859
        %v7937 = vadd.f32 %v7519, %v7861
        %v7938 = vadd.f32 %v7520, %v7863
        %v7939 = vadd.f32 %v7521, %v7865
        %v7940 = vadd.f32 %v7522, %v7867
        %v7941 = vadd.f32 %v7523, %v7869
        %v7942 = vadd.f32 %v7524, %v7871
        %v7943 = vadd.f32 %v7525, %v7873
        %v7944 = vadd.f32 %v7526, %v7875
        %v7945 = vadd.f32 %v7527, %v7877
        %v7946 = vadd.f32 %v7528, %v7879
        %v7947 = vadd.f32 %v7529, %v7881
        %v7948 = vadd.f32 %v7530, %v7883
        %v7949 = vadd.f32 %v7531, %v7885
        %7951 = vset.pattern.permute.xlu0 96
        %7952 = vperm.xlu0 %7951, %v7308
        %v7953 = vpop.permute.xlu0 %7952
        %7956 = vset.pattern.permute.xlu0 96
        %7957 = vperm.xlu0 %7956, %v7309
        %v7958 = vpop.permute.xlu0 %7957
        %7961 = vset.pattern.permute.xlu0 96
        %7962 = vperm.xlu0 %7961, %v7310
        %v7963 = vpop.permute.xlu0 %7962
        %7966 = vset.pattern.permute.xlu0 96
        %7967 = vperm.xlu0 %7966, %v7311
        %v7968 = vpop.permute.xlu0 %7967
        %7971 = vset.pattern.permute.xlu0 96
        %7972 = vperm.xlu0 %7971, %v7312
        %v7973 = vpop.permute.xlu0 %7972
        %7976 = vset.pattern.permute.xlu0 96
        %7977 = vperm.xlu0 %7976, %v7313
        %v7978 = vpop.permute.xlu0 %7977
        %7981 = vset.pattern.permute.xlu0 96
        %7982 = vperm.xlu0 %7981, %v7314
        %v7983 = vpop.permute.xlu0 %7982
        %7986 = vset.pattern.permute.xlu0 96
        %7987 = vperm.xlu0 %7986, %v7315
        %v7988 = vpop.permute.xlu0 %7987
        %7991 = vset.pattern.permute.xlu0 96
        %7992 = vperm.xlu0 %7991, %v7316
        %v7993 = vpop.permute.xlu0 %7992
        %7996 = vset.pattern.permute.xlu0 96
        %7997 = vperm.xlu0 %7996, %v7317
        %v7998 = vpop.permute.xlu0 %7997
        %8001 = vset.pattern.permute.xlu0 96
        %8002 = vperm.xlu0 %8001, %v7318
        %v8003 = vpop.permute.xlu0 %8002
        %8006 = vset.pattern.permute.xlu0 96
        %8007 = vperm.xlu0 %8006, %v7319
        %v8008 = vpop.permute.xlu0 %8007
        %8011 = vset.pattern.permute.xlu0 96
        %8012 = vperm.xlu0 %8011, %v7320
        %v8013 = vpop.permute.xlu0 %8012
        %8016 = vset.pattern.permute.xlu0 96
        %8017 = vperm.xlu0 %8016, %v7321
        %v8018 = vpop.permute.xlu0 %8017
        %8021 = vset.pattern.permute.xlu0 96
        %8022 = vperm.xlu0 %8021, %v7322
        %v8023 = vpop.permute.xlu0 %8022
        %8026 = vset.pattern.permute.xlu0 96
        %8027 = vperm.xlu0 %8026, %v7323
        %v8028 = vpop.permute.xlu0 %8027
        %8031 = vset.pattern.permute.xlu0 96
        %8032 = vperm.xlu0 %8031, %v7324
        %v8033 = vpop.permute.xlu0 %8032
        %8036 = vset.pattern.permute.xlu0 96
        %8037 = vperm.xlu0 %8036, %v7325
        %v8038 = vpop.permute.xlu0 %8037
        %8041 = vset.pattern.permute.xlu0 96
        %8042 = vperm.xlu0 %8041, %v7326
        %v8043 = vpop.permute.xlu0 %8042
        %8046 = vset.pattern.permute.xlu0 96
        %8047 = vperm.xlu0 %8046, %v7327
        %v8048 = vpop.permute.xlu0 %8047
        %8051 = vset.pattern.permute.xlu0 96
        %8052 = vperm.xlu0 %8051, %v7328
        %v8053 = vpop.permute.xlu0 %8052
        %8056 = vset.pattern.permute.xlu0 96
        %8057 = vperm.xlu0 %8056, %v7329
        %v8058 = vpop.permute.xlu0 %8057
        %8061 = vset.pattern.permute.xlu0 96
        %8062 = vperm.xlu0 %8061, %v7330
        %v8063 = vpop.permute.xlu0 %8062
        %8066 = vset.pattern.permute.xlu0 96
        %8067 = vperm.xlu0 %8066, %v7331
        %v8068 = vpop.permute.xlu0 %8067
        %8071 = vset.pattern.permute.xlu0 96
        %8072 = vperm.xlu0 %8071, %v7332
        %v8073 = vpop.permute.xlu0 %8072
        %8076 = vset.pattern.permute.xlu0 96
        %8077 = vperm.xlu0 %8076, %v7333
        %v8078 = vpop.permute.xlu0 %8077
        %8081 = vset.pattern.permute.xlu0 96
        %8082 = vperm.xlu0 %8081, %v7334
        %v8083 = vpop.permute.xlu0 %8082
        %8086 = vset.pattern.permute.xlu0 96
        %8087 = vperm.xlu0 %8086, %v7335
        %v8088 = vpop.permute.xlu0 %8087
        %8091 = vset.pattern.permute.xlu0 96
        %8092 = vperm.xlu0 %8091, %v7336
        %v8093 = vpop.permute.xlu0 %8092
        %8096 = vset.pattern.permute.xlu0 96
        %8097 = vperm.xlu0 %8096, %v7337
        %v8098 = vpop.permute.xlu0 %8097
        %8101 = vset.pattern.permute.xlu0 96
        %8102 = vperm.xlu0 %8101, %v7338
        %v8103 = vpop.permute.xlu0 %8102
        %8106 = vset.pattern.permute.xlu0 96
        %8107 = vperm.xlu0 %8106, %v7339
        %v8108 = vpop.permute.xlu0 %8107
        %v8110 = vsel %vm1261, %v1731, %v3399
        %v8111 = vsel %vm1261, %v1736, %v3404
        %v8112 = vsel %vm1261, %v1741, %v3409
        %v8113 = vsel %vm1261, %v1746, %v3414
        %v8114 = vsel %vm1261, %v1751, %v3419
        %v8115 = vsel %vm1261, %v1756, %v3424
        %v8116 = vsel %vm1261, %v1761, %v3429
        %v8117 = vsel %vm1261, %v1766, %v3434
        %v8118 = vsel %vm1261, %v1771, %v3439
        %v8119 = vsel %vm1261, %v1776, %v3444
        %v8120 = vsel %vm1261, %v1781, %v3449
        %v8121 = vsel %vm1261, %v1786, %v3454
        %v8122 = vsel %vm1261, %v1791, %v3459
        %v8123 = vsel %vm1261, %v1796, %v3464
        %v8124 = vsel %vm1261, %v1801, %v3469
        %v8125 = vsel %vm1261, %v1806, %v3474
        %v8126 = vsel %vm1261, %v1811, %v3479
        %v8127 = vsel %vm1261, %v1816, %v3484
        %v8128 = vsel %vm1261, %v1821, %v3489
        %v8129 = vsel %vm1261, %v1826, %v3494
        %v8130 = vsel %vm1261, %v1831, %v3499
        %v8131 = vsel %vm1261, %v1836, %v3504
        %v8132 = vsel %vm1261, %v1841, %v3509
        %v8133 = vsel %vm1261, %v1846, %v3514
        %v8134 = vsel %vm1261, %v1851, %v3519
        %v8135 = vsel %vm1261, %v1856, %v3524
        %v8136 = vsel %vm1261, %v1861, %v3529
        %v8137 = vsel %vm1261, %v1866, %v3534
        %v8138 = vsel %vm1261, %v1871, %v3539
        %v8139 = vsel %vm1261, %v1876, %v3544
        %v8140 = vsel %vm1261, %v1881, %v3549
        %v8141 = vsel %vm1261, %v1886, %v3554
        %vm8142 = vcmask 523264
        %v8143 = vsel %vm8142, %v8110, %v5147
        %v8144 = vsel %vm8142, %v8111, %v5152
        %v8145 = vsel %vm8142, %v8112, %v5157
        %v8146 = vsel %vm8142, %v8113, %v5162
        %v8147 = vsel %vm8142, %v8114, %v5167
        %v8148 = vsel %vm8142, %v8115, %v5172
        %v8149 = vsel %vm8142, %v8116, %v5177
        %v8150 = vsel %vm8142, %v8117, %v5182
        %v8151 = vsel %vm8142, %v8118, %v5187
        %v8152 = vsel %vm8142, %v8119, %v5192
        %v8153 = vsel %vm8142, %v8120, %v5197
        %v8154 = vsel %vm8142, %v8121, %v5202
        %v8155 = vsel %vm8142, %v8122, %v5207
        %v8156 = vsel %vm8142, %v8123, %v5212
        %v8157 = vsel %vm8142, %v8124, %v5217
        %v8158 = vsel %vm8142, %v8125, %v5222
        %v8159 = vsel %vm8142, %v8126, %v5227
        %v8160 = vsel %vm8142, %v8127, %v5232
        %v8161 = vsel %vm8142, %v8128, %v5237
        %v8162 = vsel %vm8142, %v8129, %v5242
        %v8163 = vsel %vm8142, %v8130, %v5247
        %v8164 = vsel %vm8142, %v8131, %v5252
        %v8165 = vsel %vm8142, %v8132, %v5257
        %v8166 = vsel %vm8142, %v8133, %v5262
        %v8167 = vsel %vm8142, %v8134, %v5267
        %v8168 = vsel %vm8142, %v8135, %v5272
        %v8169 = vsel %vm8142, %v8136, %v5277
        %v8170 = vsel %vm8142, %v8137, %v5282
        %v8171 = vsel %vm8142, %v8138, %v5287
        %v8172 = vsel %vm8142, %v8139, %v5292
        %v8173 = vsel %vm8142, %v8140, %v5297
        %v8174 = vsel %vm8142, %v8141, %v5302
        %vm8175 = vcmask 785408
        %v8176 = vsel %vm8175, %v8143, %v6895
        %v8177 = vsel %vm8175, %v8144, %v6900
        %v8178 = vsel %vm8175, %v8145, %v6905
        %v8179 = vsel %vm8175, %v8146, %v6910
        %v8180 = vsel %vm8175, %v8147, %v6915
        %v8181 = vsel %vm8175, %v8148, %v6920
        %v8182 = vsel %vm8175, %v8149, %v6925
        %v8183 = vsel %vm8175, %v8150, %v6930
        %v8184 = vsel %vm8175, %v8151, %v6935
        %v8185 = vsel %vm8175, %v8152, %v6940
        %v8186 = vsel %vm8175, %v8153, %v6945
        %v8187 = vsel %vm8175, %v8154, %v6950
        %v8188 = vsel %vm8175, %v8155, %v6955
        %v8189 = vsel %vm8175, %v8156, %v6960
        %v8190 = vsel %vm8175, %v8157, %v6965
        %v8191 = vsel %vm8175, %v8158, %v6970
        %v8192 = vsel %vm8175, %v8159, %v6975
        %v8193 = vsel %vm8175, %v8160, %v6980
        %v8194 = vsel %vm8175, %v8161, %v6985
        %v8195 = vsel %vm8175, %v8162, %v6990
        %v8196 = vsel %vm8175, %v8163, %v6995
        %v8197 = vsel %vm8175, %v8164, %v7000
        %v8198 = vsel %vm8175, %v8165, %v7005
        %v8199 = vsel %vm8175, %v8166, %v7010
        %v8200 = vsel %vm8175, %v8167, %v7015
        %v8201 = vsel %vm8175, %v8168, %v7020
        %v8202 = vsel %vm8175, %v8169, %v7025
        %v8203 = vsel %vm8175, %v8170, %v7030
        %v8204 = vsel %vm8175, %v8171, %v7035
        %v8205 = vsel %vm8175, %v8172, %v7040
        %v8206 = vsel %vm8175, %v8173, %v7045
        %v8207 = vsel %vm8175, %v8174, %v7050
        %v8208 = vsel %vm1261, %v2709, %v4457
        %v8209 = vsel %vm1261, %v2714, %v4462
        %v8210 = vsel %vm1261, %v2719, %v4467
        %v8211 = vsel %vm1261, %v2724, %v4472
        %v8212 = vsel %vm1261, %v2729, %v4477
        %v8213 = vsel %vm1261, %v2734, %v4482
        %v8214 = vsel %vm1261, %v2739, %v4487
        %v8215 = vsel %vm1261, %v2744, %v4492
        %v8216 = vsel %vm1261, %v2749, %v4497
        %v8217 = vsel %vm1261, %v2754, %v4502
        %v8218 = vsel %vm1261, %v2759, %v4507
        %v8219 = vsel %vm1261, %v2764, %v4512
        %v8220 = vsel %vm1261, %v2769, %v4517
        %v8221 = vsel %vm1261, %v2774, %v4522
        %v8222 = vsel %vm1261, %v2779, %v4527
        %v8223 = vsel %vm1261, %v2784, %v4532
        %v8224 = vsel %vm1261, %v2789, %v4537
        %v8225 = vsel %vm1261, %v2794, %v4542
        %v8226 = vsel %vm1261, %v2799, %v4547
        %v8227 = vsel %vm1261, %v2804, %v4552
        %v8228 = vsel %vm1261, %v2809, %v4557
        %v8229 = vsel %vm1261, %v2814, %v4562
        %v8230 = vsel %vm1261, %v2819, %v4567
        %v8231 = vsel %vm1261, %v2824, %v4572
        %v8232 = vsel %vm1261, %v2829, %v4577
        %v8233 = vsel %vm1261, %v2834, %v4582
        %v8234 = vsel %vm1261, %v2839, %v4587
        %v8235 = vsel %vm1261, %v2844, %v4592
        %v8236 = vsel %vm1261, %v2849, %v4597
        %v8237 = vsel %vm1261, %v2854, %v4602
        %v8238 = vsel %vm1261, %v2859, %v4607
        %v8239 = vsel %vm1261, %v2864, %v4612
        %v8240 = vsel %vm8142, %v8208, %v6205
        %v8241 = vsel %vm8142, %v8209, %v6210
        %v8242 = vsel %vm8142, %v8210, %v6215
        %v8243 = vsel %vm8142, %v8211, %v6220
        %v8244 = vsel %vm8142, %v8212, %v6225
        %v8245 = vsel %vm8142, %v8213, %v6230
        %v8246 = vsel %vm8142, %v8214, %v6235
        %v8247 = vsel %vm8142, %v8215, %v6240
        %v8248 = vsel %vm8142, %v8216, %v6245
        %v8249 = vsel %vm8142, %v8217, %v6250
        %v8250 = vsel %vm8142, %v8218, %v6255
        %v8251 = vsel %vm8142, %v8219, %v6260
        %v8252 = vsel %vm8142, %v8220, %v6265
        %v8253 = vsel %vm8142, %v8221, %v6270
        %v8254 = vsel %vm8142, %v8222, %v6275
        %v8255 = vsel %vm8142, %v8223, %v6280
        %v8256 = vsel %vm8142, %v8224, %v6285
        %v8257 = vsel %vm8142, %v8225, %v6290
        %v8258 = vsel %vm8142, %v8226, %v6295
        %v8259 = vsel %vm8142, %v8227, %v6300
        %v8260 = vsel %vm8142, %v8228, %v6305
        %v8261 = vsel %vm8142, %v8229, %v6310
        %v8262 = vsel %vm8142, %v8230, %v6315
        %v8263 = vsel %vm8142, %v8231, %v6320
        %v8264 = vsel %vm8142, %v8232, %v6325
        %v8265 = vsel %vm8142, %v8233, %v6330
        %v8266 = vsel %vm8142, %v8234, %v6335
        %v8267 = vsel %vm8142, %v8235, %v6340
        %v8268 = vsel %vm8142, %v8236, %v6345
        %v8269 = vsel %vm8142, %v8237, %v6350
        %v8270 = vsel %vm8142, %v8238, %v6355
        %v8271 = vsel %vm8142, %v8239, %v6360
        %v8272 = vsel %vm8175, %v8240, %v7953
        %v8273 = vsel %vm8175, %v8241, %v7958
        %v8274 = vsel %vm8175, %v8242, %v7963
        %v8275 = vsel %vm8175, %v8243, %v7968
        %v8276 = vsel %vm8175, %v8244, %v7973
        %v8277 = vsel %vm8175, %v8245, %v7978
        %v8278 = vsel %vm8175, %v8246, %v7983
        %v8279 = vsel %vm8175, %v8247, %v7988
        %v8280 = vsel %vm8175, %v8248, %v7993
        %v8281 = vsel %vm8175, %v8249, %v7998
        %v8282 = vsel %vm8175, %v8250, %v8003
        %v8283 = vsel %vm8175, %v8251, %v8008
        %v8284 = vsel %vm8175, %v8252, %v8013
        %v8285 = vsel %vm8175, %v8253, %v8018
        %v8286 = vsel %vm8175, %v8254, %v8023
        %v8287 = vsel %vm8175, %v8255, %v8028
        %v8288 = vsel %vm8175, %v8256, %v8033
        %v8289 = vsel %vm8175, %v8257, %v8038
        %v8290 = vsel %vm8175, %v8258, %v8043
        %v8291 = vsel %vm8175, %v8259, %v8048
        %v8292 = vsel %vm8175, %v8260, %v8053
        %v8293 = vsel %vm8175, %v8261, %v8058
        %v8294 = vsel %vm8175, %v8262, %v8063
        %v8295 = vsel %vm8175, %v8263, %v8068
        %v8296 = vsel %vm8175, %v8264, %v8073
        %v8297 = vsel %vm8175, %v8265, %v8078
        %v8298 = vsel %vm8175, %v8266, %v8083
        %v8299 = vsel %vm8175, %v8267, %v8088
        %v8300 = vsel %vm8175, %v8268, %v8093
        %v8301 = vsel %vm8175, %v8269, %v8098
        %v8302 = vsel %vm8175, %v8270, %v8103
        %v8303 = vsel %vm8175, %v8271, %v8108
        %v8304 = vsel %vm1261, %v2674, %v4422
        %v8305 = vsel %vm1261, %v2675, %v4423
        %v8306 = vsel %vm1261, %v2676, %v4424
        %v8307 = vsel %vm1261, %v2677, %v4425
        %v8308 = vsel %vm1261, %v2678, %v4426
        %v8309 = vsel %vm1261, %v2679, %v4427
        %v8310 = vsel %vm1261, %v2680, %v4428
        %v8311 = vsel %vm1261, %v2681, %v4429
        %v8312 = vsel %vm1261, %v2682, %v4430
        %v8313 = vsel %vm1261, %v2683, %v4431
        %v8314 = vsel %vm1261, %v2684, %v4432
        %v8315 = vsel %vm1261, %v2685, %v4433
        %v8316 = vsel %vm1261, %v2686, %v4434
        %v8317 = vsel %vm1261, %v2687, %v4435
        %v8318 = vsel %vm1261, %v2688, %v4436
        %v8319 = vsel %vm1261, %v2689, %v4437
        %v8320 = vsel %vm1261, %v2690, %v4438
        %v8321 = vsel %vm1261, %v2691, %v4439
        %v8322 = vsel %vm1261, %v2692, %v4440
        %v8323 = vsel %vm1261, %v2693, %v4441
        %v8324 = vsel %vm1261, %v2694, %v4442
        %v8325 = vsel %vm1261, %v2695, %v4443
        %v8326 = vsel %vm1261, %v2696, %v4444
        %v8327 = vsel %vm1261, %v2697, %v4445
        %v8328 = vsel %vm1261, %v2698, %v4446
        %v8329 = vsel %vm1261, %v2699, %v4447
        %v8330 = vsel %vm1261, %v2700, %v4448
        %v8331 = vsel %vm1261, %v2701, %v4449
        %v8332 = vsel %vm1261, %v2702, %v4450
        %v8333 = vsel %vm1261, %v2703, %v4451
        %v8334 = vsel %vm1261, %v2704, %v4452
        %v8335 = vsel %vm1261, %v2705, %v4453
        %v8336 = vsel %vm8142, %v8304, %v6170
        %v8337 = vsel %vm8142, %v8305, %v6171
        %v8338 = vsel %vm8142, %v8306, %v6172
        %v8339 = vsel %vm8142, %v8307, %v6173
        %v8340 = vsel %vm8142, %v8308, %v6174
        %v8341 = vsel %vm8142, %v8309, %v6175
        %v8342 = vsel %vm8142, %v8310, %v6176
        %v8343 = vsel %vm8142, %v8311, %v6177
        %v8344 = vsel %vm8142, %v8312, %v6178
        %v8345 = vsel %vm8142, %v8313, %v6179
        %v8346 = vsel %vm8142, %v8314, %v6180
        %v8347 = vsel %vm8142, %v8315, %v6181
        %v8348 = vsel %vm8142, %v8316, %v6182
        %v8349 = vsel %vm8142, %v8317, %v6183
        %v8350 = vsel %vm8142, %v8318, %v6184
        %v8351 = vsel %vm8142, %v8319, %v6185
        %v8352 = vsel %vm8142, %v8320, %v6186
        %v8353 = vsel %vm8142, %v8321, %v6187
        %v8354 = vsel %vm8142, %v8322, %v6188
        %v8355 = vsel %vm8142, %v8323, %v6189
        %v8356 = vsel %vm8142, %v8324, %v6190
        %v8357 = vsel %vm8142, %v8325, %v6191
        %v8358 = vsel %vm8142, %v8326, %v6192
        %v8359 = vsel %vm8142, %v8327, %v6193
        %v8360 = vsel %vm8142, %v8328, %v6194
        %v8361 = vsel %vm8142, %v8329, %v6195
        %v8362 = vsel %vm8142, %v8330, %v6196
        %v8363 = vsel %vm8142, %v8331, %v6197
        %v8364 = vsel %vm8142, %v8332, %v6198
        %v8365 = vsel %vm8142, %v8333, %v6199
        %v8366 = vsel %vm8142, %v8334, %v6200
        %v8367 = vsel %vm8142, %v8335, %v6201
        %v8368 = vsel %vm8175, %v8336, %v7918
        %v8369 = vsel %vm8175, %v8337, %v7919
        %v8370 = vsel %vm8175, %v8338, %v7920
        %v8371 = vsel %vm8175, %v8339, %v7921
        %v8372 = vsel %vm8175, %v8340, %v7922
        %v8373 = vsel %vm8175, %v8341, %v7923
        %v8374 = vsel %vm8175, %v8342, %v7924
        %v8375 = vsel %vm8175, %v8343, %v7925
        %v8376 = vsel %vm8175, %v8344, %v7926
        %v8377 = vsel %vm8175, %v8345, %v7927
        %v8378 = vsel %vm8175, %v8346, %v7928
        %v8379 = vsel %vm8175, %v8347, %v7929
        %v8380 = vsel %vm8175, %v8348, %v7930
        %v8381 = vsel %vm8175, %v8349, %v7931
        %v8382 = vsel %vm8175, %v8350, %v7932
        %v8383 = vsel %vm8175, %v8351, %v7933
        %v8384 = vsel %vm8175, %v8352, %v7934
        %v8385 = vsel %vm8175, %v8353, %v7935
        %v8386 = vsel %vm8175, %v8354, %v7936
        %v8387 = vsel %vm8175, %v8355, %v7937
        %v8388 = vsel %vm8175, %v8356, %v7938
        %v8389 = vsel %vm8175, %v8357, %v7939
        %v8390 = vsel %vm8175, %v8358, %v7940
        %v8391 = vsel %vm8175, %v8359, %v7941
        %v8392 = vsel %vm8175, %v8360, %v7942
        %v8393 = vsel %vm8175, %v8361, %v7943
        %v8394 = vsel %vm8175, %v8362, %v7944
        %v8395 = vsel %vm8175, %v8363, %v7945
        %v8396 = vsel %vm8175, %v8364, %v7946
        %v8397 = vsel %vm8175, %v8365, %v7947
        %v8398 = vsel %vm8175, %v8366, %v7948
        %v8399 = vsel %vm8175, %v8367, %v7949
        %8400 = vst [vmem:[#allocation2] sm:$0xff] %v8176
        %8401 = vst [vmem:[#allocation2 + $0x8] sm:$0xff] %v8177
        %8402 = vst [vmem:[#allocation2 + $0x10] sm:$0xff] %v8178
        %8403 = vst [vmem:[#allocation2 + $0x18] sm:$0xff] %v8179
        %8404 = vst [vmem:[#allocation2 + $0x20] sm:$0xff] %v8180
        %8405 = vst [vmem:[#allocation2 + $0x28] sm:$0xff] %v8181
        %8406 = vst [vmem:[#allocation2 + $0x30] sm:$0xff] %v8182
        %8407 = vst [vmem:[#allocation2 + $0x38] sm:$0xff] %v8183
        %8408 = vst [vmem:[#allocation2 + $0x40] sm:$0xff] %v8184
        %8409 = vst [vmem:[#allocation2 + $0x48] sm:$0xff] %v8185
        %8410 = vst [vmem:[#allocation2 + $0x50] sm:$0xff] %v8186
        %8411 = vst [vmem:[#allocation2 + $0x58] sm:$0xff] %v8187
        %8412 = vst [vmem:[#allocation2 + $0x60] sm:$0xff] %v8188
        %8413 = vst [vmem:[#allocation2 + $0x68] sm:$0xff] %v8189
        %8414 = vst [vmem:[#allocation2 + $0x70] sm:$0xff] %v8190
        %8415 = vst [vmem:[#allocation2 + $0x78] sm:$0xff] %v8191
        %8416 = vst [vmem:[#allocation2 + $0x80] sm:$0xff] %v8192
        %8417 = vst [vmem:[#allocation2 + $0x88] sm:$0xff] %v8193
        %8418 = vst [vmem:[#allocation2 + $0x90] sm:$0xff] %v8194
        %8419 = vst [vmem:[#allocation2 + $0x98] sm:$0xff] %v8195
        %8420 = vst [vmem:[#allocation2 + $0xa0] sm:$0xff] %v8196
        %8421 = vst [vmem:[#allocation2 + $0xa8] sm:$0xff] %v8197
        %8422 = vst [vmem:[#allocation2 + $0xb0] sm:$0xff] %v8198
        %8423 = vst [vmem:[#allocation2 + $0xb8] sm:$0xff] %v8199
        %8424 = vst [vmem:[#allocation2 + $0xc0] sm:$0xff] %v8200
        %8425 = vst [vmem:[#allocation2 + $0xc8] sm:$0xff] %v8201
        %8426 = vst [vmem:[#allocation2 + $0xd0] sm:$0xff] %v8202
        %8427 = vst [vmem:[#allocation2 + $0xd8] sm:$0xff] %v8203
        %8428 = vst [vmem:[#allocation2 + $0xe0] sm:$0xff] %v8204
        %8429 = vst [vmem:[#allocation2 + $0xe8] sm:$0xff] %v8205
        %8430 = vst [vmem:[#allocation2 + $0xf0] sm:$0xff] %v8206
        %8431 = vst [vmem:[#allocation2 + $0xf8] sm:$0xff] %v8207
        %8432 = vst [vmem:[#allocation3] sm:$0xff] %v8272
        %8433 = vst [vmem:[#allocation3 + $0x8] sm:$0xff] %v8273
        %8434 = vst [vmem:[#allocation3 + $0x10] sm:$0xff] %v8274
        %8435 = vst [vmem:[#allocation3 + $0x18] sm:$0xff] %v8275
        %8436 = vst [vmem:[#allocation3 + $0x20] sm:$0xff] %v8276
        %8437 = vst [vmem:[#allocation3 + $0x28] sm:$0xff] %v8277
        %8438 = vst [vmem:[#allocation3 + $0x30] sm:$0xff] %v8278
        %8439 = vst [vmem:[#allocation3 + $0x38] sm:$0xff] %v8279
        %8440 = vst [vmem:[#allocation3 + $0x40] sm:$0xff] %v8280
        %8441 = vst [vmem:[#allocation3 + $0x48] sm:$0xff] %v8281
        %8442 = vst [vmem:[#allocation3 + $0x50] sm:$0xff] %v8282
        %8443 = vst [vmem:[#allocation3 + $0x58] sm:$0xff] %v8283
        %8444 = vst [vmem:[#allocation3 + $0x60] sm:$0xff] %v8284
        %8445 = vst [vmem:[#allocation3 + $0x68] sm:$0xff] %v8285
        %8446 = vst [vmem:[#allocation3 + $0x70] sm:$0xff] %v8286
        %8447 = vst [vmem:[#allocation3 + $0x78] sm:$0xff] %v8287
        %8448 = vst [vmem:[#allocation3 + $0x80] sm:$0xff] %v8288
        %8449 = vst [vmem:[#allocation3 + $0x88] sm:$0xff] %v8289
        %8450 = vst [vmem:[#allocation3 + $0x90] sm:$0xff] %v8290
        %8451 = vst [vmem:[#allocation3 + $0x98] sm:$0xff] %v8291
        %8452 = vst [vmem:[#allocation3 + $0xa0] sm:$0xff] %v8292
        %8453 = vst [vmem:[#allocation3 + $0xa8] sm:$0xff] %v8293
        %8454 = vst [vmem:[#allocation3 + $0xb0] sm:$0xff] %v8294
        %8455 = vst [vmem:[#allocation3 + $0xb8] sm:$0xff] %v8295
        %8456 = vst [vmem:[#allocation3 + $0xc0] sm:$0xff] %v8296
        %8457 = vst [vmem:[#allocation3 + $0xc8] sm:$0xff] %v8297
        %8458 = vst [vmem:[#allocation3 + $0xd0] sm:$0xff] %v8298
        %8459 = vst [vmem:[#allocation3 + $0xd8] sm:$0xff] %v8299
        %8460 = vst [vmem:[#allocation3 + $0xe0] sm:$0xff] %v8300
        %8461 = vst [vmem:[#allocation3 + $0xe8] sm:$0xff] %v8301
        %8462 = vst [vmem:[#allocation3 + $0xf0] sm:$0xff] %v8302
        %8463 = vst [vmem:[#allocation3 + $0xf8] sm:$0xff] %v8303
        %8464 = vst [vmem:[#allocation4] sm:$0xff] %v8368
        %8465 = vst [vmem:[#allocation4 + $0x8] sm:$0xff] %v8369
        %8466 = vst [vmem:[#allocation4 + $0x10] sm:$0xff] %v8370
        %8467 = vst [vmem:[#allocation4 + $0x18] sm:$0xff] %v8371
        %8468 = vst [vmem:[#allocation4 + $0x20] sm:$0xff] %v8372
        %8469 = vst [vmem:[#allocation4 + $0x28] sm:$0xff] %v8373
        %8470 = vst [vmem:[#allocation4 + $0x30] sm:$0xff] %v8374
        %8471 = vst [vmem:[#allocation4 + $0x38] sm:$0xff] %v8375
        %8472 = vst [vmem:[#allocation4 + $0x40] sm:$0xff] %v8376
        %8473 = vst [vmem:[#allocation4 + $0x48] sm:$0xff] %v8377
        %8474 = vst [vmem:[#allocation4 + $0x50] sm:$0xff] %v8378
        %8475 = vst [vmem:[#allocation4 + $0x58] sm:$0xff] %v8379
        %8476 = vst [vmem:[#allocation4 + $0x60] sm:$0xff] %v8380
        %8477 = vst [vmem:[#allocation4 + $0x68] sm:$0xff] %v8381
        %8478 = vst [vmem:[#allocation4 + $0x70] sm:$0xff] %v8382
        %8479 = vst [vmem:[#allocation4 + $0x78] sm:$0xff] %v8383
        %8480 = vst [vmem:[#allocation4 + $0x80] sm:$0xff] %v8384
        %8481 = vst [vmem:[#allocation4 + $0x88] sm:$0xff] %v8385
        %8482 = vst [vmem:[#allocation4 + $0x90] sm:$0xff] %v8386
        %8483 = vst [vmem:[#allocation4 + $0x98] sm:$0xff] %v8387
        %8484 = vst [vmem:[#allocation4 + $0xa0] sm:$0xff] %v8388
        %8485 = vst [vmem:[#allocation4 + $0xa8] sm:$0xff] %v8389
        %8486 = vst [vmem:[#allocation4 + $0xb0] sm:$0xff] %v8390
        %8487 = vst [vmem:[#allocation4 + $0xb8] sm:$0xff] %v8391
        %8488 = vst [vmem:[#allocation4 + $0xc0] sm:$0xff] %v8392
        %8489 = vst [vmem:[#allocation4 + $0xc8] sm:$0xff] %v8393
        %8490 = vst [vmem:[#allocation4 + $0xd0] sm:$0xff] %v8394
        %8491 = vst [vmem:[#allocation4 + $0xd8] sm:$0xff] %v8395
        %8492 = vst [vmem:[#allocation4 + $0xe0] sm:$0xff] %v8396
        %8493 = vst [vmem:[#allocation4 + $0xe8] sm:$0xff] %v8397
        %8494 = vst [vmem:[#allocation4 + $0xf0] sm:$0xff] %v8398
        %8495 = vst [vmem:[#allocation4 + $0xf8] sm:$0xff] %v8399
        // Predicated region
        $region168: #{mha_forward.3} parent=150 // pred_check
          %p8496 = pneg %p809
        $region169: #{mha_forward.3} parent=150 // pred_check_branch
          %8498 = sbr.rel (%p8496) target = $region171
        $region170: #{mha_forward.3} parent=150 // pred_region
          %v8499 = vrcp.pop %v8272
          %v8500 = vrcp.pop %v8273
          %v8501 = vrcp.pop %v8274
          %v8502 = vrcp.pop %v8275
          %v8503 = vrcp.pop %v8276
          %v8504 = vrcp.pop %v8277
          %v8505 = vrcp.pop %v8278
          %v8506 = vrcp.pop %v8279
          %v8507 = vrcp.pop %v8280
          %v8508 = vrcp.pop %v8281
          %v8509 = vrcp.pop %v8282
          %v8510 = vrcp.pop %v8283
          %v8511 = vrcp.pop %v8284
          %v8512 = vrcp.pop %v8285
          %v8513 = vrcp.pop %v8286
          %v8514 = vrcp.pop %v8287
          %v8515 = vrcp.pop %v8288
          %v8516 = vrcp.pop %v8289
          %v8517 = vrcp.pop %v8290
          %v8518 = vrcp.pop %v8291
          %v8519 = vrcp.pop %v8292
          %v8520 = vrcp.pop %v8293
          %v8521 = vrcp.pop %v8294
          %v8522 = vrcp.pop %v8295
          %v8523 = vrcp.pop %v8296
          %v8524 = vrcp.pop %v8297
          %v8525 = vrcp.pop %v8298
          %v8526 = vrcp.pop %v8299
          %v8527 = vrcp.pop %v8300
          %v8528 = vrcp.pop %v8301
          %v8529 = vrcp.pop %v8302
          %v8530 = vrcp.pop %v8303
          %v8531 = vmul.f32 %v8368, %v8499
          %v8532 = vmul.f32 %v8369, %v8500
          %v8533 = vmul.f32 %v8370, %v8501
          %v8534 = vmul.f32 %v8371, %v8502
          %v8535 = vmul.f32 %v8372, %v8503
          %v8536 = vmul.f32 %v8373, %v8504
          %v8537 = vmul.f32 %v8374, %v8505
          %v8538 = vmul.f32 %v8375, %v8506
          %v8539 = vmul.f32 %v8376, %v8507
          %v8540 = vmul.f32 %v8377, %v8508
          %v8541 = vmul.f32 %v8378, %v8509
          %v8542 = vmul.f32 %v8379, %v8510
          %v8543 = vmul.f32 %v8380, %v8511
          %v8544 = vmul.f32 %v8381, %v8512
          %v8545 = vmul.f32 %v8382, %v8513
          %v8546 = vmul.f32 %v8383, %v8514
          %v8547 = vmul.f32 %v8384, %v8515
          %v8548 = vmul.f32 %v8385, %v8516
          %v8549 = vmul.f32 %v8386, %v8517
          %v8550 = vmul.f32 %v8387, %v8518
          %v8551 = vmul.f32 %v8388, %v8519
          %v8552 = vmul.f32 %v8389, %v8520
          %v8553 = vmul.f32 %v8390, %v8521
          %v8554 = vmul.f32 %v8391, %v8522
          %v8555 = vmul.f32 %v8392, %v8523
          %v8556 = vmul.f32 %v8393, %v8524
          %v8557 = vmul.f32 %v8394, %v8525
          %v8558 = vmul.f32 %v8395, %v8526
          %v8559 = vmul.f32 %v8396, %v8527
          %v8560 = vmul.f32 %v8397, %v8528
          %v8561 = vmul.f32 %v8398, %v8529
          %v8562 = vmul.f32 %v8399, %v8530
          %v8563 = vpack.c.bf16 %v8532, %v8531
          %v8564 = vpack.c.bf16 %v8534, %v8533
          %v8565 = vpack.c.bf16 %v8536, %v8535
          %v8566 = vpack.c.bf16 %v8538, %v8537
          %v8567 = vpack.c.bf16 %v8540, %v8539
          %v8568 = vpack.c.bf16 %v8542, %v8541
          %v8569 = vpack.c.bf16 %v8544, %v8543
          %v8570 = vpack.c.bf16 %v8546, %v8545
          %v8571 = vpack.c.bf16 %v8548, %v8547
          %v8572 = vpack.c.bf16 %v8550, %v8549
          %v8573 = vpack.c.bf16 %v8552, %v8551
          %v8574 = vpack.c.bf16 %v8554, %v8553
          %v8575 = vpack.c.bf16 %v8556, %v8555
          %v8576 = vpack.c.bf16 %v8558, %v8557
          %v8577 = vpack.c.bf16 %v8560, %v8559
          %v8578 = vpack.c.bf16 %v8562, %v8561
          %v8579 = vld [vmem:[%s3] sm:$0xf]
          %v8580 = vld [vmem:[%s3 + $0x4] sm:$0xf]
          %v8581 = vld [vmem:[%s3 + $0x8] sm:$0xf]
          %v8582 = vld [vmem:[%s3 + $0xc] sm:$0xf]
          %v8583 = vld [vmem:[%s3 + $0x10] sm:$0xf]
          %v8584 = vld [vmem:[%s3 + $0x14] sm:$0xf]
          %v8585 = vld [vmem:[%s3 + $0x18] sm:$0xf]
          %v8586 = vld [vmem:[%s3 + $0x1c] sm:$0xf]
          %v8587 = vld [vmem:[%s3 + $0x20] sm:$0xf]
          %v8588 = vld [vmem:[%s3 + $0x24] sm:$0xf]
          %v8589 = vld [vmem:[%s3 + $0x28] sm:$0xf]
          %v8590 = vld [vmem:[%s3 + $0x2c] sm:$0xf]
          %v8591 = vld [vmem:[%s3 + $0x30] sm:$0xf]
          %v8592 = vld [vmem:[%s3 + $0x34] sm:$0xf]
          %v8593 = vld [vmem:[%s3 + $0x38] sm:$0xf]
          %v8594 = vld [vmem:[%s3 + $0x3c] sm:$0xf]
          %v8595 = vld [vmem:[%s4] sm:$0x1]
          %v8596 = vunpack.c.l.bf16 %v8595
          %v8597 = vperm.slane %v8596, 0
          %v8614 = vunpack.c.l.b16 %v8579
          %v8615 = vunpack.c.l.b16 %v8580
          %v8616 = vunpack.c.l.b16 %v8581
          %v8617 = vunpack.c.l.b16 %v8582
          %v8618 = vunpack.c.l.b16 %v8583
          %v8619 = vunpack.c.l.b16 %v8584
          %v8620 = vunpack.c.l.b16 %v8585
          %v8621 = vunpack.c.l.b16 %v8586
          %v8622 = vunpack.c.l.b16 %v8587
          %v8623 = vunpack.c.l.b16 %v8588
          %v8624 = vunpack.c.l.b16 %v8589
          %v8625 = vunpack.c.l.b16 %v8590
          %v8626 = vunpack.c.l.b16 %v8591
          %v8627 = vunpack.c.l.b16 %v8592
          %v8628 = vunpack.c.l.b16 %v8593
          %v8629 = vunpack.c.l.b16 %v8594
          %v8630 = vpack.c.b16 %v8615, %v8614
          %v8631 = vpack.c.b16 %v8617, %v8616
          %v8632 = vpack.c.b16 %v8619, %v8618
          %v8633 = vpack.c.b16 %v8621, %v8620
          %v8634 = vpack.c.b16 %v8623, %v8622
          %v8635 = vpack.c.b16 %v8625, %v8624
          %v8636 = vpack.c.b16 %v8627, %v8626
          %v8637 = vpack.c.b16 %v8629, %v8628
          %8646 = vmatpush.bf16.msra.mxu0 %v8637
          %8647 = vmatpush.bf16.msra.mxu0 %v8636
          %8648 = vmatpush.bf16.msra.mxu0 %v8635
          %8649 = vmatpush.bf16.msra.mxu0 %v8634
          %8650 = vmatpush.bf16.msra.mxu0 %v8633
          %8651 = vmatpush.bf16.msra.mxu0 %v8632
          %8652 = vmatpush.bf16.msra.mxu0 %v8631
          %8653 = vmatpush.bf16.msra.mxu0 %v8630
          %8654 = vmatmul.bf16.gmra.mxu0 %v8563
          %v8655 = vpop.f32.mrf.mxu0
          %v8656 = vadd.f32 %v8597, %v8655
          %v8657 = vpop.f32.mrf.mxu0
          %v8658 = vadd.f32 %v8597, %v8657
          %8659 = vmatmul.bf16.gmra.mxu0 %v8564
          %v8660 = vpop.f32.mrf.mxu0
          %v8661 = vadd.f32 %v8597, %v8660
          %v8662 = vpop.f32.mrf.mxu0
          %v8663 = vadd.f32 %v8597, %v8662
          %8664 = vmatmul.bf16.gmra.mxu0 %v8565
          %v8665 = vpop.f32.mrf.mxu0
          %v8666 = vadd.f32 %v8597, %v8665
          %v8667 = vpop.f32.mrf.mxu0
          %v8668 = vadd.f32 %v8597, %v8667
          %8669 = vmatmul.bf16.gmra.mxu0 %v8566
          %v8670 = vpop.f32.mrf.mxu0
          %v8671 = vadd.f32 %v8597, %v8670
          %v8672 = vpop.f32.mrf.mxu0
          %v8673 = vadd.f32 %v8597, %v8672
          %8674 = vmatmul.bf16.gmra.mxu0 %v8567
          %v8675 = vpop.f32.mrf.mxu0
          %v8676 = vadd.f32 %v8597, %v8675
          %v8677 = vpop.f32.mrf.mxu0
          %v8678 = vadd.f32 %v8597, %v8677
          %8679 = vmatmul.bf16.gmra.mxu0 %v8568
          %v8680 = vpop.f32.mrf.mxu0
          %v8681 = vadd.f32 %v8597, %v8680
          %v8682 = vpop.f32.mrf.mxu0
          %v8683 = vadd.f32 %v8597, %v8682
          %8684 = vmatmul.bf16.gmra.mxu0 %v8569
          %v8685 = vpop.f32.mrf.mxu0
          %v8686 = vadd.f32 %v8597, %v8685
          %v8687 = vpop.f32.mrf.mxu0
          %v8688 = vadd.f32 %v8597, %v8687
          %8689 = vmatmul.bf16.gmra.mxu0 %v8570
          %v8690 = vpop.f32.mrf.mxu0
          %v8691 = vadd.f32 %v8597, %v8690
          %v8692 = vpop.f32.mrf.mxu0
          %v8693 = vadd.f32 %v8597, %v8692
          %8694 = vmatmul.bf16.gmra.mxu0 %v8571
          %v8695 = vpop.f32.mrf.mxu0
          %v8696 = vadd.f32 %v8597, %v8695
          %v8697 = vpop.f32.mrf.mxu0
          %v8698 = vadd.f32 %v8597, %v8697
          %8699 = vmatmul.bf16.gmra.mxu0 %v8572
          %v8700 = vpop.f32.mrf.mxu0
          %v8701 = vadd.f32 %v8597, %v8700
          %v8702 = vpop.f32.mrf.mxu0
          %v8703 = vadd.f32 %v8597, %v8702
          %8704 = vmatmul.bf16.gmra.mxu0 %v8573
          %v8705 = vpop.f32.mrf.mxu0
          %v8706 = vadd.f32 %v8597, %v8705
          %v8707 = vpop.f32.mrf.mxu0
          %v8708 = vadd.f32 %v8597, %v8707
          %8709 = vmatmul.bf16.gmra.mxu0 %v8574
          %v8710 = vpop.f32.mrf.mxu0
          %v8711 = vadd.f32 %v8597, %v8710
          %v8712 = vpop.f32.mrf.mxu0
          %v8713 = vadd.f32 %v8597, %v8712
          %8714 = vmatmul.bf16.gmra.mxu0 %v8575
          %v8715 = vpop.f32.mrf.mxu0
          %v8716 = vadd.f32 %v8597, %v8715
          %v8717 = vpop.f32.mrf.mxu0
          %v8718 = vadd.f32 %v8597, %v8717
          %8719 = vmatmul.bf16.gmra.mxu0 %v8576
          %v8720 = vpop.f32.mrf.mxu0
          %v8721 = vadd.f32 %v8597, %v8720
          %v8722 = vpop.f32.mrf.mxu0
          %v8723 = vadd.f32 %v8597, %v8722
          %8724 = vmatmul.bf16.gmra.mxu0 %v8577
          %v8725 = vpop.f32.mrf.mxu0
          %v8726 = vadd.f32 %v8597, %v8725
          %v8727 = vpop.f32.mrf.mxu0
          %v8728 = vadd.f32 %v8597, %v8727
          %8729 = vmatmul.bf16.gmra.mxu0 %v8578
          %v8730 = vpop.f32.mrf.mxu0
          %v8731 = vadd.f32 %v8597, %v8730
          %v8732 = vpop.f32.mrf.mxu0
          %v8733 = vadd.f32 %v8597, %v8732
          %8734 = vdwg.mxu0
          %v8735 = vpack.c.bf16 %v8656, %v8656
          %v8736 = vpack.c.bf16 %v8658, %v8658
          %v8737 = vpack.c.bf16 %v8661, %v8661
          %v8738 = vpack.c.bf16 %v8663, %v8663
          %v8739 = vpack.c.bf16 %v8666, %v8666
          %v8740 = vpack.c.bf16 %v8668, %v8668
          %v8741 = vpack.c.bf16 %v8671, %v8671
          %v8742 = vpack.c.bf16 %v8673, %v8673
          %v8743 = vpack.c.bf16 %v8676, %v8676
          %v8744 = vpack.c.bf16 %v8678, %v8678
          %v8745 = vpack.c.bf16 %v8681, %v8681
          %v8746 = vpack.c.bf16 %v8683, %v8683
          %v8747 = vpack.c.bf16 %v8686, %v8686
          %v8748 = vpack.c.bf16 %v8688, %v8688
          %v8749 = vpack.c.bf16 %v8691, %v8691
          %v8750 = vpack.c.bf16 %v8693, %v8693
          %v8751 = vpack.c.bf16 %v8696, %v8696
          %v8752 = vpack.c.bf16 %v8698, %v8698
          %v8753 = vpack.c.bf16 %v8701, %v8701
          %v8754 = vpack.c.bf16 %v8703, %v8703
          %v8755 = vpack.c.bf16 %v8706, %v8706
          %v8756 = vpack.c.bf16 %v8708, %v8708
          %v8757 = vpack.c.bf16 %v8711, %v8711
          %v8758 = vpack.c.bf16 %v8713, %v8713
          %v8759 = vpack.c.bf16 %v8716, %v8716
          %v8760 = vpack.c.bf16 %v8718, %v8718
          %v8761 = vpack.c.bf16 %v8721, %v8721
          %v8762 = vpack.c.bf16 %v8723, %v8723
          %v8763 = vpack.c.bf16 %v8726, %v8726
          %v8764 = vpack.c.bf16 %v8728, %v8728
          %v8765 = vpack.c.bf16 %v8731, %v8731
          %v8766 = vpack.c.bf16 %v8733, %v8733
          %8767 = vst [vmem:[%s804] sm:$0xf] %v8735
          %8768 = vst [vmem:[%s804 + $0x4] sm:$0xf] %v8736
          %8769 = vst [vmem:[%s804 + $0x8] sm:$0xf] %v8737
          %8770 = vst [vmem:[%s804 + $0xc] sm:$0xf] %v8738
          %8771 = vst [vmem:[%s804 + $0x10] sm:$0xf] %v8739
          %8772 = vst [vmem:[%s804 + $0x14] sm:$0xf] %v8740
          %8773 = vst [vmem:[%s804 + $0x18] sm:$0xf] %v8741
          %8774 = vst [vmem:[%s804 + $0x1c] sm:$0xf] %v8742
          %8775 = vst [vmem:[%s804 + $0x20] sm:$0xf] %v8743
          %8776 = vst [vmem:[%s804 + $0x24] sm:$0xf] %v8744
          %8777 = vst [vmem:[%s804 + $0x28] sm:$0xf] %v8745
          %8778 = vst [vmem:[%s804 + $0x2c] sm:$0xf] %v8746
          %8779 = vst [vmem:[%s804 + $0x30] sm:$0xf] %v8747
          %8780 = vst [vmem:[%s804 + $0x34] sm:$0xf] %v8748
          %8781 = vst [vmem:[%s804 + $0x38] sm:$0xf] %v8749
          %8782 = vst [vmem:[%s804 + $0x3c] sm:$0xf] %v8750
          %8783 = vst [vmem:[%s804 + $0x40] sm:$0xf] %v8751
          %8784 = vst [vmem:[%s804 + $0x44] sm:$0xf] %v8752
          %8785 = vst [vmem:[%s804 + $0x48] sm:$0xf] %v8753
          %8786 = vst [vmem:[%s804 + $0x4c] sm:$0xf] %v8754
          %8787 = vst [vmem:[%s804 + $0x50] sm:$0xf] %v8755
          %8788 = vst [vmem:[%s804 + $0x54] sm:$0xf] %v8756
          %8789 = vst [vmem:[%s804 + $0x58] sm:$0xf] %v8757
          %8790 = vst [vmem:[%s804 + $0x5c] sm:$0xf] %v8758
          %8791 = vst [vmem:[%s804 + $0x60] sm:$0xf] %v8759
          %8792 = vst [vmem:[%s804 + $0x64] sm:$0xf] %v8760
          %8793 = vst [vmem:[%s804 + $0x68] sm:$0xf] %v8761
          %8794 = vst [vmem:[%s804 + $0x6c] sm:$0xf] %v8762
          %8795 = vst [vmem:[%s804 + $0x70] sm:$0xf] %v8763
          %8796 = vst [vmem:[%s804 + $0x74] sm:$0xf] %v8764
          %8797 = vst [vmem:[%s804 + $0x78] sm:$0xf] %v8765
          %8798 = vst [vmem:[%s804 + $0x7c] sm:$0xf] %v8766
        $region171: #{mha_forward.3} parent=150 // pred_fallthru
          _
        %s8799 = sand.u32 %s174, 1
        %s8800 = scalar_lea.sflag [#allocation9], %s8799
        %s8801 = sand.u32 %s174, 1
        %s8802 = smul.addr %s8801, 128
        %s8803 = scalar_lea.vmem [#allocation8], %s8802
        // Predicated region
        $region172: #{mha_forward.3} parent=150 // pred_check
          %p8804 = pneg %p184
        $region173: #{mha_forward.3} parent=150 // pred_check_branch
          %8806 = sbr.rel (%p8804) target = $region175
        $region174: #{mha_forward.3} parent=150 // pred_region
          %s8807 = smul.u32 32, %s25
          %8809 = vsyncadd %s8800, 0
          %s8810 = smul.addr %s24, 32
          %s8811 = sadd.s32 %s8807, %s8810
          %s8812 = smul.addr %s8811, 4
          %s8813 = scalar_lea.hbm %s5, %s8812
          %s8814 = sshll.u32 %s8803, 4
          %s8815 = int_to_ptr.vmem [resolvable:$true] %s8814
          %s8816 = sshll.u32 %s8813, 4
          %s8817 = int_to_ptr.hbm [resolvable:$true] %s8816
          %8822 = dma.vmem_to_hbm [thread:$0]  %s8815, 2048, %s8817, %s8800, 64, 64, 4
        $region175: #{mha_forward.3} parent=150 // pred_fallthru
          _
      $region151: #{mha_forward.3} parent=5 // pred_fallthru
        _
      %p8823 = scmp.le.s32.totalorder 2, %s14
      // Predicated region
      $region176: #{mha_forward.3} parent=5 // pred_check
        %p8824 = pneg %p8823
      $region177: #{mha_forward.3} parent=5 // pred_check_branch
        %8826 = sbr.rel (%p8824) target = $region179
      $region178: #{mha_forward.3} parent=5 // pred_region
        %s8827 = ssub.s32 %s14, 2
        // Predicated region
        $region180: #{mha_forward.3} parent=178 // pred_check
          %p8828 = pneg %p190
        $region181: #{mha_forward.3} parent=178 // pred_check_branch
          %8830 = sbr.rel (%p8828) target = $region183
        $region182: #{mha_forward.3} parent=178 // pred_region
          %s8831 = sand.u32 %s175, 1
          %s8832 = scalar_lea.sflag [#allocation9], %s8831
          %s8833 = sand.u32 %s175, 1
          %s8834 = smul.addr %s8833, 128
          %s8835 = scalar_lea.vmem [#allocation8], %s8834
          %8837 = dma.done %s8832, 2048
        $region183: #{mha_forward.3} parent=178 // pred_fallthru
          _
      $region179: #{mha_forward.3} parent=5 // pred_fallthru
        _
    $region6: #{mha_forward.3} parent=1 // loop_footer
      %s18 = sadd.s32 1, %s14
    $region7: #{mha_forward.3} parent=1 // loop_footer_branch
      %13 = sbr.rel target = $region3
    $region8: #{mha_forward.3} parent=1 // loop_exit
      _
    %8838 = vsyncpa [#allocation9], 1
    %s8839 = scalar_lea.sflag [#allocation9], 1
    %8840 = vsyncpa %s8839, 1

</llo_original>
